<compile_context>
chip_gen: v6e
topology: v6e:2x2x1
jax: 0.10.0
libtpu: 0.0.40
codegen_flags: <defaults>
</compile_context>

<pallas_src>
import functools
import math

import jax
import jax.numpy as jnp
from jax import lax
from jax.experimental import pallas as pl
from jax.experimental.pallas import tpu as pltpu

# ---------------------------------------------------------------------------
# Small, structure-preserving demo config (original: S=493, D=1024, 16 heads
# of 64, 18+18 layers, latent 128).  head_dim=64 matches the original.
# ---------------------------------------------------------------------------
SEQ = 16
D_MODEL = 128
N_HEADS = 2
HEAD_DIM = 64            # N_HEADS * HEAD_DIM == D_MODEL
FF_INNER = 4 * D_MODEL   # GEGLU inner dim
NUM_LAYERS = 2
LATENT_DIM = 32
BATCH = 2

DTYPE = jnp.float32          # activations / biases / LN params
WEIGHT_DTYPE = jnp.bfloat16  # matmul weights stored in HBM as bf16
MATMUL_DTYPE = jnp.bfloat16  # MXU feed dtype; accumulation stays f32
LN_EPS = 1e-5

ROW_TILE = 256   # rows per grid step for FF / latent kernels (falls back to M)
Q_TILE = 128     # q rows per grid step for attention (falls back to S)
FF_TILE = 2048   # GEGLU inner-dim tile (falls back to FF_INNER)
VMEM_LIMIT_BYTES = 64 * 1024 * 1024   # <= v7x physical VMEM, > scoped defaults


# ---------------------------------------------------------------------------
# In-kernel math helpers (f32 elementwise, bf16 MXU feed, f32 accumulate)
# ---------------------------------------------------------------------------
def _mm(a, b):
    """a @ b with f32 accumulation; b is already stored in MATMUL_DTYPE."""
    return jnp.dot(a.astype(MATMUL_DTYPE), b, preferred_element_type=jnp.float32)


def _ln(x, g, b):
    mu = jnp.mean(x, axis=-1, keepdims=True)
    xc = x - mu
    var = jnp.mean(xc * xc, axis=-1, keepdims=True)
    return xc * lax.rsqrt(var + LN_EPS) * g + b


def _gelu_tanh(x):
    # TODO(synk): torch F.gelu defaults to exact erf; tanh approximation keeps
    # the transcendental on the EUP slot (numerically close, not bit-exact).
    c = math.sqrt(2.0 / math.pi)
    return 0.5 * x * (1.0 + jnp.tanh(c * (x + 0.044715 * x * x * x)))


# ---------------------------------------------------------------------------
# Fused kernels
# ---------------------------------------------------------------------------
def _attn_kernel(ln_kv, xq_ref, kv_ref, g_ref, b_ref, wq_ref, wk_ref, wv_ref,
                 wo_ref, bo_ref, o_ref, oc_ref):
    """Pre-LN multi-head attention + single out-projection + residual.

    xq_ref : (1, tq, D) rows used for q / residual / output
    kv_ref : (1, Sk, D) k/v source (x itself for self-attn, raw ctx for cross)
    oc_ref : (tq, D) bf16 VMEM scratch with the concatenated head outputs
    """
    xq = xq_ref[0].astype(jnp.float32)                     # (tq, D)
    hq = _ln(xq, g_ref[...], b_ref[...])
    kv = kv_ref[0].astype(jnp.float32)                     # (Sk, D)
    if ln_kv:                                              # self-attention path
        kv = _ln(kv, g_ref[...], b_ref[...])

    # Full-width projections; one bf16 cast each, sliced per head below.
    q = _mm(hq, wq_ref[...]).astype(MATMUL_DTYPE)          # 1/sqrt(Dh) folded in Wq
    k = _mm(kv, wk_ref[...]).astype(MATMUL_DTYPE)          # (Sk, D)
    v = _mm(kv, wv_ref[...]).astype(MATMUL_DTYPE)          # (Sk, D)

    for h in range(N_HEADS):
        lo = h * HEAD_DIM
        s = lax.dot_general(q[:, lo:lo + HEAD_DIM], k[:, lo:lo + HEAD_DIM],
                            (((1,), (1,)), ((), ())),
                            preferred_element_type=jnp.float32)   # (tq, Sk)
        s = s - jnp.max(s, axis=-1, keepdims=True)
        p = jnp.exp(s)
        p = p * pl.reciprocal(jnp.sum(p, axis=-1, keepdims=True), approx=True)
        oh = jnp.dot(p.astype(MATMUL_DTYPE), v[:, lo:lo + HEAD_DIM],
                     preferred_element_type=jnp.float32)          # (tq, Dh)
        oc_ref[:, lo:lo + HEAD_DIM] = oh.astype(oc_ref.dtype)

    # Single lane-dense out-projection over the full contraction depth D.
    out = xq + bo_ref[...] + jnp.dot(oc_ref[...], wo_ref[...],
                                     preferred_element_type=jnp.float32)
    o_ref[0] = out.astype(o_ref.dtype)


def _ff_kernel(x_ref, g_ref, b_ref, wl_ref, bl_ref, wg_ref, bg_ref, w2_ref,
               b2_ref, o_ref, h_ref, acc_ref):
    """Pre-LN GEGLU feed-forward + residual; inner dim tiled over grid axis 1."""
    j = pl.program_id(1)

    @pl.when(j == 0)
    def _():
        x = x_ref[...].astype(jnp.float32)
        h_ref[...] = _ln(x, g_ref[...], b_ref[...]).astype(h_ref.dtype)
        acc_ref[...] = jnp.zeros_like(acc_ref)

    h = h_ref[...]                                         # (tm, D) bf16
    lin = _mm(h, wl_ref[...]) + bl_ref[...]                # (tm, tf) f32
    gate = _mm(h, wg_ref[...]) + bg_ref[...]               # (tm, tf) f32
    ff = (lin * _gelu_tanh(gate)).astype(MATMUL_DTYPE)     # fused GEGLU, in VMEM
    acc_ref[...] += jnp.dot(ff, w2_ref[...], preferred_element_type=jnp.float32)

    @pl.when(j == pl.num_programs(1) - 1)
    def _():
        out = acc_ref[...] + b2_ref[...] + x_ref[...].astype(jnp.float32)
        o_ref[...] = out.astype(o_ref.dtype)


def _latent_kernel(x_ref, we_ref, be_ref, wd_ref, bd_ref, o_ref):
    x = x_ref[...].astype(jnp.float32)                     # (tm, D)
    lat = _mm(x, we_ref[...]) + be_ref[...]                # (tm, latent) in VMEM
    o_ref[...] = (_mm(lat, wd_ref[...]) + bd_ref[...]).astype(o_ref.dtype)


# ---------------------------------------------------------------------------
# pallas_call wrappers
# ---------------------------------------------------------------------------
def _full_spec(shape):
    nd = len(shape)
    return pl.BlockSpec(shape, lambda *_: (0,) * nd)


def _cparams(*dims):
    return pltpu.CompilerParams(dimension_semantics=dims,
                                vmem_limit_bytes=VMEM_LIMIT_BYTES)


def attn_block(x, ctx, norm_p, attn_p):
    """Pre-LN multi-head attention with residual.  ctx=None -> self-attention."""
    B, S, D = x.shape
    tq = Q_TILE if S % Q_TILE == 0 else S
    kv = x if ctx is None else ctx
    Sk = kv.shape[1]
    g, b = norm_p["g"], norm_p["b"]
    wq, wk, wv = attn_p["q"]["w"], attn_p["k"]["w"], attn_p["v"]["w"]
    wo, bo = attn_p["o"]["w"], attn_p["o"]["b"]
    xq_spec = pl.BlockSpec((1, tq, D), lambda bi, qi: (bi, qi, 0))
    kv_spec = pl.BlockSpec((1, Sk, D), lambda bi, qi: (bi, 0, 0))
    param_specs = [_full_spec(p.shape) for p in (g, b, wq, wk, wv, wo, bo)]
    return pl.pallas_call(
        functools.partial(_attn_kernel, ctx is None),
        out_shape=jax.ShapeDtypeStruct((B, S, D), x.dtype),
        grid=(B, S // tq),
        in_specs=[xq_spec, kv_spec] + param_specs,
        out_specs=xq_spec,
        scratch_shapes=[pltpu.VMEM((tq, D), MATMUL_DTYPE)],
        compiler_params=_cparams("parallel", "parallel"),
    )(x, kv, g, b, wq, wk, wv, wo, bo)


def ff_block(x, norm_p, ff_p):
    """Pre-LN GEGLU feed-forward with residual, tiled over rows and inner dim."""
    B, S, D = x.shape
    M = B * S
    tm = ROW_TILE if M % ROW_TILE == 0 else M
    F = ff_p["w2"]["w"].shape[0]
    tf = FF_TILE if F % FF_TILE == 0 else F
    x2 = x.reshape(M, D)
    g, b = norm_p["g"], norm_p["b"]
    wl, bl = ff_p["lin"]["w"], ff_p["lin"]["b"]
    wg, bg = ff_p["gate"]["w"], ff_p["gate"]["b"]
    w2, b2 = ff_p["w2"]["w"], ff_p["w2"]["b"]
    out2 = pl.pallas_call(
        _ff_kernel,
        out_shape=jax.ShapeDtypeStruct((M, D), x.dtype),
        grid=(M // tm, F // tf),
        in_specs=[pl.BlockSpec((tm, D), lambda i, j: (i, 0)),
                  _full_spec(g.shape), _full_spec(b.shape),
                  pl.BlockSpec((D, tf), lambda i, j: (0, j)),
                  pl.BlockSpec((1, tf), lambda i, j: (0, j)),
                  pl.BlockSpec((D, tf), lambda i, j: (0, j)),
                  pl.BlockSpec((1, tf), lambda i, j: (0, j)),
                  pl.BlockSpec((tf, D), lambda i, j: (j, 0)),
                  _full_spec(b2.shape)],
        out_specs=pl.BlockSpec((tm, D), lambda i, j: (i, 0)),
        scratch_shapes=[pltpu.VMEM((tm, D), MATMUL_DTYPE),
                        pltpu.VMEM((tm, D), jnp.float32)],
        compiler_params=_cparams("parallel", "arbitrary"),
    )(x2, g, b, wl, bl, wg, bg, w2, b2)
    return out2.reshape(B, S, D)


def latent_projection(x, en_p, de_p):
    """Fused latent_en -> latent_de (the (B,S,latent) bottleneck never hits HBM)."""
    B, S, D = x.shape
    M = B * S
    tm = ROW_TILE if M % ROW_TILE == 0 else M
    x2 = x.reshape(M, D)
    out2 = pl.pallas_call(
        _latent_kernel,
        out_shape=jax.ShapeDtypeStruct((M, D), x.dtype),
        grid=(M // tm,),
        in_specs=[pl.BlockSpec((tm, D), lambda i: (i, 0)),
                  _full_spec(en_p["w"].shape), _full_spec(en_p["b"].shape),
                  _full_spec(de_p["w"].shape), _full_spec(de_p["b"].shape)],
        out_specs=pl.BlockSpec((tm, D), lambda i: (i, 0)),
        compiler_params=_cparams("parallel"),
    )(x2, en_p["w"], en_p["b"], de_p["w"], de_p["b"])
    return out2.reshape(B, S, D)


# ---------------------------------------------------------------------------
# Parameters / model glue
# ---------------------------------------------------------------------------
def positional_encoding(max_len, d_model):
    pos = jnp.arange(max_len, dtype=jnp.float32)[:, None]
    i2 = jnp.arange(0, d_model, 2, dtype=jnp.float32)
    angle = pos / jnp.power(10000.0, i2 / d_model)
    enc = jnp.zeros((max_len, d_model), jnp.float32)
    enc = enc.at[:, 0::2].set(jnp.sin(angle))
    enc = enc.at[:, 1::2].set(jnp.cos(angle))
    return enc.astype(DTYPE)


def _init_linear(key, fan_in, fan_out, bias=True):
    kw, kb = jax.random.split(key)
    w = (jax.random.normal(kw, (fan_in, fan_out), jnp.float32)
         * (1.0 / math.sqrt(fan_in))).astype(WEIGHT_DTYPE)   # bf16 in HBM
    b = (jax.random.normal(kb, (1, fan_out), DTYPE) * 0.01) if bias else None
    return {"w": w, "b": b}


def _init_attn(keys, dim, inner):
    p = {
        "q": _init_linear(keys[0], dim, inner, bias=False),
        "k": _init_linear(keys[1], dim, inner, bias=False),
        "v": _init_linear(keys[2], dim, inner, bias=False),
        "o": _init_linear(keys[3], inner, dim, bias=True),
    }
    # Fold 1/sqrt(head_dim) attention scale into Wq (exact reparametrization).
    p["q"]["w"] = (p["q"]["w"].astype(jnp.float32)
                   / math.sqrt(HEAD_DIM)).astype(WEIGHT_DTYPE)
    return p


def _init_block(key):
    ks = jax.random.split(key, 11)
    inner = N_HEADS * HEAD_DIM
    ln = lambda: {"g": jnp.ones((1, D_MODEL), DTYPE),
                  "b": jnp.zeros((1, D_MODEL), DTYPE)}
    return {
        "norm1": ln(),
        "attn1": _init_attn(ks[0:4], D_MODEL, inner),
        "norm2": ln(),
        "attn2": _init_attn(ks[4:8], D_MODEL, inner),
        "norm3": ln(),
        "ff": {
            # GEGLU proj Linear(D, 2F) stored as separate lin / gate halves so
            # the inner dim can be grid-tiled coherently.
            "lin": _init_linear(ks[8], D_MODEL, FF_INNER, bias=True),
            "gate": _init_linear(ks[9], D_MODEL, FF_INNER, bias=True),
            "w2": _init_linear(ks[10], FF_INNER, D_MODEL, bias=True),
        },
    }


def init_params(key):
    keys = jax.random.split(key, 2 * NUM_LAYERS + 2)
    return {
        "pos_enc": positional_encoding(SEQ, D_MODEL),
        "encoder": [_init_block(keys[i]) for i in range(NUM_LAYERS)],
        "decoder": [_init_block(keys[NUM_LAYERS + i]) for i in range(NUM_LAYERS)],
        "latent_en": _init_linear(keys[-2], D_MODEL, LATENT_DIM, bias=True),
        "latent_de": _init_linear(keys[-1], LATENT_DIM, D_MODEL, bias=True),
    }


def transformer_block(p, x, encoder_hidden_states=None):
    # Dropout layers are inference no-ops.
    x = attn_block(x, None, p["norm1"], p["attn1"])
    x = attn_block(x, encoder_hidden_states, p["norm2"], p["attn2"])
    x = ff_block(x, p["norm3"], p["ff"])
    return x


def latent_injection_transformer(params, x_flat):
    # mirrors: x = x.view(-1, 493, 1024)
    x = x_flat.reshape(-1, SEQ, D_MODEL)
    # PositionalEncoding.forward (cheap elementwise add, left to XLA)
    x = x + params["pos_enc"][None, :SEQ, :]
    for bp in params["encoder"]:
        x = transformer_block(bp, x)
    latent = latent_projection(x, params["latent_en"], params["latent_de"])
    x = latent
    for bp in params["decoder"][:-1]:
        x = transformer_block(bp, x, encoder_hidden_states=latent)
    x = transformer_block(params["decoder"][-1], x)
    # mirrors: x.flatten(start_dim=1, end_dim=2)
    return x.reshape(x.shape[0], SEQ * D_MODEL)


if __name__ == "__main__":
    key = jax.random.PRNGKey(0)
    kx, kp = jax.random.split(key)
    params = init_params(kp)
    x = jax.random.normal(kx, (BATCH, SEQ * D_MODEL), DTYPE)

    fwd = jax.jit(latent_injection_transformer)
    out = fwd(params, x)
    jax.block_until_ready(out)

    assert out.shape == (BATCH, SEQ * D_MODEL), out.shape
    assert bool(jnp.all(jnp.isfinite(out)))
    print("KERNEL_OK")
</pallas_src>

<mosaic_0001>
module attributes {stable_mosaic.version = 11 : i64} {
  func.func @_attn_kernel(%arg0: i32, %arg1: i32, %arg2: memref<1x16x128xf32, #tpu.memory_space<vmem>>, %arg3: memref<1x16x128xf32, #tpu.memory_space<vmem>>, %arg4: memref<1x128xf32, #tpu.memory_space<vmem>>, %arg5: memref<1x128xf32, #tpu.memory_space<vmem>>, %arg6: memref<128x128xbf16, #tpu.memory_space<vmem>>, %arg7: memref<128x128xbf16, #tpu.memory_space<vmem>>, %arg8: memref<128x128xbf16, #tpu.memory_space<vmem>>, %arg9: memref<128x128xbf16, #tpu.memory_space<vmem>>, %arg10: memref<1x128xf32, #tpu.memory_space<vmem>>, %arg11: memref<1x16x128xf32, #tpu.memory_space<vmem>>, %arg12: memref<16x128xbf16, #tpu.memory_space<vmem>>) attributes {dimension_semantics = [#tpu.dimension_semantics<parallel>, #tpu.dimension_semantics<parallel>], iteration_bounds = array<i64: 2, 1>, scalar_prefetch = 0 : i64, scratch_operands = 1 : i64, tpu.core_type = #tpu.core_type<tc>, window_params = [{transform_indices = @transform_0, window_bounds = array<i64: 1, 16, 128>}, {transform_indices = @transform_1, window_bounds = array<i64: 1, 16, 128>}, {pipeline_mode = #tpu.pipeline_mode<synchronous>, transform_indices = @transform_2, window_bounds = array<i64: 1, 128>}, {pipeline_mode = #tpu.pipeline_mode<synchronous>, transform_indices = @transform_3, window_bounds = array<i64: 1, 128>}, {pipeline_mode = #tpu.pipeline_mode<synchronous>, transform_indices = @transform_4, window_bounds = array<i64: 128, 128>}, {pipeline_mode = #tpu.pipeline_mode<synchronous>, transform_indices = @transform_5, window_bounds = array<i64: 128, 128>}, {pipeline_mode = #tpu.pipeline_mode<synchronous>, transform_indices = @transform_6, window_bounds = array<i64: 128, 128>}, {pipeline_mode = #tpu.pipeline_mode<synchronous>, transform_indices = @transform_7, window_bounds = array<i64: 128, 128>}, {pipeline_mode = #tpu.pipeline_mode<synchronous>, transform_indices = @transform_8, window_bounds = array<i64: 1, 128>}, {transform_indices = @transform_9, window_bounds = array<i64: 1, 16, 128>}]} {
    %c0 = arith.constant 0 : index
    %c0_0 = arith.constant 0 : index
    %c0_1 = arith.constant 0 : index
    %0 = vector.load %arg2[%c0, %c0_0, %c0_1] : memref<1x16x128xf32, #tpu.memory_space<vmem>>, vector<1x16x128xf32>
    %1 = vector.shape_cast %0 : vector<1x16x128xf32> to vector<16x128xf32>
    %c0_2 = arith.constant 0 : index
    %c0_3 = arith.constant 0 : index
    %2 = vector.load %arg4[%c0_2, %c0_3] : memref<1x128xf32, #tpu.memory_space<vmem>>, vector<1x128xf32>
    %c0_4 = arith.constant 0 : index
    %c0_5 = arith.constant 0 : index
    %3 = vector.load %arg5[%c0_4, %c0_5] : memref<1x128xf32, #tpu.memory_space<vmem>>, vector<1x128xf32>
    %cst = arith.constant dense<0.000000e+00> : vector<16xf32>
    %4 = vector.multi_reduction <add>, %1, %cst [1] : vector<16x128xf32> to vector<16xf32>
    %5 = vector.shape_cast %4 : vector<16xf32> to vector<16x1xf32>
    %cst_6 = arith.constant 1.280000e+02 : f32
    %6 = vector.broadcast %cst_6 : f32 to vector<16x1xf32>
    %7 = arith.divf %5, %6 : vector<16x1xf32>
    %8 = vector.broadcast %7 : vector<16x1xf32> to vector<16x128xf32>
    %9 = arith.subf %1, %8 : vector<16x128xf32>
    %10 = arith.mulf %9, %9 : vector<16x128xf32>
    %cst_7 = arith.constant dense<0.000000e+00> : vector<16xf32>
    %11 = vector.multi_reduction <add>, %10, %cst_7 [1] : vector<16x128xf32> to vector<16xf32>
    %12 = vector.shape_cast %11 : vector<16xf32> to vector<16x1xf32>
    %cst_8 = arith.constant 1.280000e+02 : f32
    %13 = vector.broadcast %cst_8 : f32 to vector<16x1xf32>
    %14 = arith.divf %12, %13 : vector<16x1xf32>
    %cst_9 = arith.constant 9.99999974E-6 : f32
    %15 = vector.broadcast %cst_9 : f32 to vector<16x1xf32>
    %16 = arith.addf %14, %15 : vector<16x1xf32>
    %17 = math.rsqrt %16 : vector<16x1xf32>
    %18 = vector.broadcast %17 : vector<16x1xf32> to vector<16x128xf32>
    %19 = arith.mulf %9, %18 : vector<16x128xf32>
    %20 = vector.broadcast %2 : vector<1x128xf32> to vector<16x128xf32>
    %21 = arith.mulf %19, %20 : vector<16x128xf32>
    %22 = vector.broadcast %3 : vector<1x128xf32> to vector<16x128xf32>
    %23 = arith.addf %21, %22 : vector<16x128xf32>
    %c0_10 = arith.constant 0 : index
    %c0_11 = arith.constant 0 : index
    %c0_12 = arith.constant 0 : index
    %24 = vector.load %arg3[%c0_10, %c0_11, %c0_12] : memref<1x16x128xf32, #tpu.memory_space<vmem>>, vector<1x16x128xf32>
    %25 = vector.shape_cast %24 : vector<1x16x128xf32> to vector<16x128xf32>
    %c0_13 = arith.constant 0 : index
    %c0_14 = arith.constant 0 : index
    %26 = vector.load %arg4[%c0_13, %c0_14] : memref<1x128xf32, #tpu.memory_space<vmem>>, vector<1x128xf32>
    %c0_15 = arith.constant 0 : index
    %c0_16 = arith.constant 0 : index
    %27 = vector.load %arg5[%c0_15, %c0_16] : memref<1x128xf32, #tpu.memory_space<vmem>>, vector<1x128xf32>
    %cst_17 = arith.constant dense<0.000000e+00> : vector<16xf32>
    %28 = vector.multi_reduction <add>, %25, %cst_17 [1] : vector<16x128xf32> to vector<16xf32>
    %29 = vector.shape_cast %28 : vector<16xf32> to vector<16x1xf32>
    %cst_18 = arith.constant 1.280000e+02 : f32
    %30 = vector.broadcast %cst_18 : f32 to vector<16x1xf32>
    %31 = arith.divf %29, %30 : vector<16x1xf32>
    %32 = vector.broadcast %31 : vector<16x1xf32> to vector<16x128xf32>
    %33 = arith.subf %25, %32 : vector<16x128xf32>
    %34 = arith.mulf %33, %33 : vector<16x128xf32>
    %cst_19 = arith.constant dense<0.000000e+00> : vector<16xf32>
    %35 = vector.multi_reduction <add>, %34, %cst_19 [1] : vector<16x128xf32> to vector<16xf32>
    %36 = vector.shape_cast %35 : vector<16xf32> to vector<16x1xf32>
    %cst_20 = arith.constant 1.280000e+02 : f32
    %37 = vector.broadcast %cst_20 : f32 to vector<16x1xf32>
    %38 = arith.divf %36, %37 : vector<16x1xf32>
    %cst_21 = arith.constant 9.99999974E-6 : f32
    %39 = vector.broadcast %cst_21 : f32 to vector<16x1xf32>
    %40 = arith.addf %38, %39 : vector<16x1xf32>
    %41 = math.rsqrt %40 : vector<16x1xf32>
    %42 = vector.broadcast %41 : vector<16x1xf32> to vector<16x128xf32>
    %43 = arith.mulf %33, %42 : vector<16x128xf32>
    %44 = vector.broadcast %26 : vector<1x128xf32> to vector<16x128xf32>
    %45 = arith.mulf %43, %44 : vector<16x128xf32>
    %46 = vector.broadcast %27 : vector<1x128xf32> to vector<16x128xf32>
    %47 = arith.addf %45, %46 : vector<16x128xf32>
    %c0_22 = arith.constant 0 : index
    %c0_23 = arith.constant 0 : index
    %48 = vector.load %arg6[%c0_22, %c0_23] : memref<128x128xbf16, #tpu.memory_space<vmem>>, vector<128x128xbf16>
    %49 = arith.truncf %23 : vector<16x128xf32> to vector<16x128xbf16>
    %cst_24 = arith.constant dense<0.000000e+00> : vector<16x128xf32>
    %50 = tpu.matmul %49, %48, %cst_24 {dimension_numbers = #tpu.dot_dimension_numbers<[1], [0], [0], [1], [0, 0, 1, 1], [], []>} : vector<16x128xbf16>, vector<128x128xbf16>, vector<16x128xf32> -> vector<16x128xf32>
    %51 = arith.truncf %50 : vector<16x128xf32> to vector<16x128xbf16>
    %c0_25 = arith.constant 0 : index
    %c0_26 = arith.constant 0 : index
    %52 = vector.load %arg7[%c0_25, %c0_26] : memref<128x128xbf16, #tpu.memory_space<vmem>>, vector<128x128xbf16>
    %53 = arith.truncf %47 : vector<16x128xf32> to vector<16x128xbf16>
    %cst_27 = arith.constant dense<0.000000e+00> : vector<16x128xf32>
    %54 = tpu.matmul %53, %52, %cst_27 {dimension_numbers = #tpu.dot_dimension_numbers<[1], [0], [0], [1], [0, 0, 1, 1], [], []>} : vector<16x128xbf16>, vector<128x128xbf16>, vector<16x128xf32> -> vector<16x128xf32>
    %55 = arith.truncf %54 : vector<16x128xf32> to vector<16x128xbf16>
    %c0_28 = arith.constant 0 : index
    %c0_29 = arith.constant 0 : index
    %56 = vector.load %arg8[%c0_28, %c0_29] : memref<128x128xbf16, #tpu.memory_space<vmem>>, vector<128x128xbf16>
    %57 = arith.truncf %47 : vector<16x128xf32> to vector<16x128xbf16>
    %cst_30 = arith.constant dense<0.000000e+00> : vector<16x128xf32>
    %58 = tpu.matmul %57, %56, %cst_30 {dimension_numbers = #tpu.dot_dimension_numbers<[1], [0], [0], [1], [0, 0, 1, 1], [], []>} : vector<16x128xbf16>, vector<128x128xbf16>, vector<16x128xf32> -> vector<16x128xf32>
    %59 = arith.truncf %58 : vector<16x128xf32> to vector<16x128xbf16>
    %60 = vector.extract_strided_slice %51 {offsets = [0, 0], sizes = [16, 64], strides = [1, 1]} : vector<16x128xbf16> to vector<16x64xbf16>
    %61 = vector.extract_strided_slice %55 {offsets = [0, 0], sizes = [16, 64], strides = [1, 1]} : vector<16x128xbf16> to vector<16x64xbf16>
    %cst_31 = arith.constant dense<0.000000e+00> : vector<16x16xf32>
    %62 = tpu.matmul %60, %61, %cst_31 {dimension_numbers = #tpu.dot_dimension_numbers<[1], [1], [0], [0], [0, 0, 1, 0], [], []>} : vector<16x64xbf16>, vector<16x64xbf16>, vector<16x16xf32> -> vector<16x16xf32>
    %cst_32 = arith.constant dense<0xFF800000> : vector<16xf32>
    %63 = vector.multi_reduction <maximumf>, %62, %cst_32 [1] : vector<16x16xf32> to vector<16xf32>
    %64 = vector.shape_cast %63 : vector<16xf32> to vector<16x1xf32>
    %65 = vector.broadcast %64 : vector<16x1xf32> to vector<16x16xf32>
    %66 = arith.subf %62, %65 : vector<16x16xf32>
    %67 = math.exp %66 : vector<16x16xf32>
    %cst_33 = arith.constant dense<0.000000e+00> : vector<16xf32>
    %68 = vector.multi_reduction <add>, %67, %cst_33 [1] : vector<16x16xf32> to vector<16xf32>
    %69 = vector.shape_cast %68 : vector<16xf32> to vector<16x1xf32>
    %70 = tpu.reciprocal %69 {approx = true} : vector<16x1xf32> -> vector<16x1xf32>
    %71 = vector.broadcast %70 : vector<16x1xf32> to vector<16x16xf32>
    %72 = arith.mulf %67, %71 : vector<16x16xf32>
    %73 = arith.truncf %72 : vector<16x16xf32> to vector<16x16xbf16>
    %74 = vector.extract_strided_slice %59 {offsets = [0, 0], sizes = [16, 64], strides = [1, 1]} : vector<16x128xbf16> to vector<16x64xbf16>
    %cst_34 = arith.constant dense<0.000000e+00> : vector<16x64xf32>
    %75 = tpu.matmul %73, %74, %cst_34 {dimension_numbers = #tpu.dot_dimension_numbers<[1], [0], [0], [1], [0, 0, 1, 1], [], []>} : vector<16x16xbf16>, vector<16x64xbf16>, vector<16x64xf32> -> vector<16x64xf32>
    %76 = arith.truncf %75 : vector<16x64xf32> to vector<16x64xbf16>
    %c0_35 = arith.constant 0 : index
    %c0_36 = arith.constant 0 : index
    %77 = vector.load %arg12[%c0_35, %c0_36] : memref<16x128xbf16, #tpu.memory_space<vmem>>, vector<16x64xbf16>
    tpu.vector_store %arg12[%c0_35, %c0_36], %76 {strides = array<i32>} : memref<16x128xbf16, #tpu.memory_space<vmem>>, vector<16x64xbf16>,
    %78 = vector.extract_strided_slice %51 {offsets = [0, 64], sizes = [16, 64], strides = [1, 1]} : vector<16x128xbf16> to vector<16x64xbf16>
    %79 = vector.extract_strided_slice %55 {offsets = [0, 64], sizes = [16, 64], strides = [1, 1]} : vector<16x128xbf16> to vector<16x64xbf16>
    %cst_37 = arith.constant dense<0.000000e+00> : vector<16x16xf32>
    %80 = tpu.matmul %78, %79, %cst_37 {dimension_numbers = #tpu.dot_dimension_numbers<[1], [1], [0], [0], [0, 0, 1, 0], [], []>} : vector<16x64xbf16>, vector<16x64xbf16>, vector<16x16xf32> -> vector<16x16xf32>
    %cst_38 = arith.constant dense<0xFF800000> : vector<16xf32>
    %81 = vector.multi_reduction <maximumf>, %80, %cst_38 [1] : vector<16x16xf32> to vector<16xf32>
    %82 = vector.shape_cast %81 : vector<16xf32> to vector<16x1xf32>
    %83 = vector.broadcast %82 : vector<16x1xf32> to vector<16x16xf32>
    %84 = arith.subf %80, %83 : vector<16x16xf32>
    %85 = math.exp %84 : vector<16x16xf32>
    %cst_39 = arith.constant dense<0.000000e+00> : vector<16xf32>
    %86 = vector.multi_reduction <add>, %85, %cst_39 [1] : vector<16x16xf32> to vector<16xf32>
    %87 = vector.shape_cast %86 : vector<16xf32> to vector<16x1xf32>
    %88 = tpu.reciprocal %87 {approx = true} : vector<16x1xf32> -> vector<16x1xf32>
    %89 = vector.broadcast %88 : vector<16x1xf32> to vector<16x16xf32>
    %90 = arith.mulf %85, %89 : vector<16x16xf32>
    %91 = arith.truncf %90 : vector<16x16xf32> to vector<16x16xbf16>
    %92 = vector.extract_strided_slice %59 {offsets = [0, 64], sizes = [16, 64], strides = [1, 1]} : vector<16x128xbf16> to vector<16x64xbf16>
    %cst_40 = arith.constant dense<0.000000e+00> : vector<16x64xf32>
    %93 = tpu.matmul %91, %92, %cst_40 {dimension_numbers = #tpu.dot_dimension_numbers<[1], [0], [0], [1], [0, 0, 1, 1], [], []>} : vector<16x16xbf16>, vector<16x64xbf16>, vector<16x64xf32> -> vector<16x64xf32>
    %94 = arith.truncf %93 : vector<16x64xf32> to vector<16x64xbf16>
    %c0_41 = arith.constant 0 : index
    %c64 = arith.constant 64 : index
    %95 = vector.load %arg12[%c0_41, %c64] : memref<16x128xbf16, #tpu.memory_space<vmem>>, vector<16x64xbf16>
    tpu.vector_store %arg12[%c0_41, %c64], %94 {strides = array<i32>} : memref<16x128xbf16, #tpu.memory_space<vmem>>, vector<16x64xbf16>,
    %c0_42 = arith.constant 0 : index
    %c0_43 = arith.constant 0 : index
    %96 = vector.load %arg10[%c0_42, %c0_43] : memref<1x128xf32, #tpu.memory_space<vmem>>, vector<1x128xf32>
    %97 = vector.broadcast %96 : vector<1x128xf32> to vector<16x128xf32>
    %98 = arith.addf %1, %97 : vector<16x128xf32>
    %c0_44 = arith.constant 0 : index
    %c0_45 = arith.constant 0 : index
    %99 = vector.load %arg12[%c0_44, %c0_45] : memref<16x128xbf16, #tpu.memory_space<vmem>>, vector<16x128xbf16>
    %c0_46 = arith.constant 0 : index
    %c0_47 = arith.constant 0 : index
    %100 = vector.load %arg9[%c0_46, %c0_47] : memref<128x128xbf16, #tpu.memory_space<vmem>>, vector<128x128xbf16>
    %cst_48 = arith.constant dense<0.000000e+00> : vector<16x128xf32>
    %101 = tpu.matmul %99, %100, %cst_48 {dimension_numbers = #tpu.dot_dimension_numbers<[1], [0], [0], [1], [0, 0, 1, 1], [], []>} : vector<16x128xbf16>, vector<128x128xbf16>, vector<16x128xf32> -> vector<16x128xf32>
    %102 = arith.addf %98, %101 : vector<16x128xf32>
    %c0_49 = arith.constant 0 : index
    %c0_50 = arith.constant 0 : index
    %c0_51 = arith.constant 0 : index
    %103 = vector.load %arg11[%c0_49, %c0_50, %c0_51] : memref<1x16x128xf32, #tpu.memory_space<vmem>>, vector<1x16x128xf32>
    %104 = vector.shape_cast %103 : vector<1x16x128xf32> to vector<16x128xf32>
    %105 = vector.shape_cast %102 : vector<16x128xf32> to vector<1x16x128xf32>
    tpu.vector_store %arg11[%c0_49, %c0_50, %c0_51], %105 {strides = array<i32>} : memref<1x16x128xf32, #tpu.memory_space<vmem>>, vector<1x16x128xf32>,
    return
  }
  func.func @transform_0(%arg0: i32, %arg1: i32) -> (i32, i32, i32) {
    %c0_i32 = arith.constant 0 : i32
    %c0_i32_0 = arith.constant 0 : i32
    return %arg0, %arg1, %c0_i32 : i32, i32, i32
  }
  func.func @transform_1(%arg0: i32, %arg1: i32) -> (i32, i32, i32) {
    %c0_i32 = arith.constant 0 : i32
    %c0_i32_0 = arith.constant 0 : i32
    %c0_i32_1 = arith.constant 0 : i32
    return %arg0, %c0_i32, %c0_i32_0 : i32, i32, i32
  }
  func.func @transform_2(%arg0: i32, %arg1: i32) -> (i32, i32) {
    %c0_i32 = arith.constant 0 : i32
    %c0_i32_0 = arith.constant 0 : i32
    %c0_i32_1 = arith.constant 0 : i32
    return %c0_i32, %c0_i32_0 : i32, i32
  }
  func.func @transform_3(%arg0: i32, %arg1: i32) -> (i32, i32) {
    %c0_i32 = arith.constant 0 : i32
    %c0_i32_0 = arith.constant 0 : i32
    %c0_i32_1 = arith.constant 0 : i32
    return %c0_i32, %c0_i32_0 : i32, i32
  }
  func.func @transform_4(%arg0: i32, %arg1: i32) -> (i32, i32) {
    %c0_i32 = arith.constant 0 : i32
    %c0_i32_0 = arith.constant 0 : i32
    %c0_i32_1 = arith.constant 0 : i32
    return %c0_i32, %c0_i32_0 : i32, i32
  }
  func.func @transform_5(%arg0: i32, %arg1: i32) -> (i32, i32) {
    %c0_i32 = arith.constant 0 : i32
    %c0_i32_0 = arith.constant 0 : i32
    %c0_i32_1 = arith.constant 0 : i32
    return %c0_i32, %c0_i32_0 : i32, i32
  }
  func.func @transform_6(%arg0: i32, %arg1: i32) -> (i32, i32) {
    %c0_i32 = arith.constant 0 : i32
    %c0_i32_0 = arith.constant 0 : i32
    %c0_i32_1 = arith.constant 0 : i32
    return %c0_i32, %c0_i32_0 : i32, i32
  }
  func.func @transform_7(%arg0: i32, %arg1: i32) -> (i32, i32) {
    %c0_i32 = arith.constant 0 : i32
    %c0_i32_0 = arith.constant 0 : i32
    %c0_i32_1 = arith.constant 0 : i32
    return %c0_i32, %c0_i32_0 : i32, i32
  }
  func.func @transform_8(%arg0: i32, %arg1: i32) -> (i32, i32) {
    %c0_i32 = arith.constant 0 : i32
    %c0_i32_0 = arith.constant 0 : i32
    %c0_i32_1 = arith.constant 0 : i32
    return %c0_i32, %c0_i32_0 : i32, i32
  }
  func.func @transform_9(%arg0: i32, %arg1: i32) -> (i32, i32, i32) {
    %c0_i32 = arith.constant 0 : i32
    %c0_i32_0 = arith.constant 0 : i32
    return %arg0, %arg1, %c0_i32 : i32, i32, i32
  }
}

module attributes {stable_mosaic.version = 11 : i64} {
  func.func @_attn_kernel(%arg0: i32, %arg1: i32, %arg2: memref<1x16x128xf32, #tpu.memory_space<vmem>>, %arg3: memref<1x16x128xf32, #tpu.memory_space<vmem>>, %arg4: memref<1x128xf32, #tpu.memory_space<vmem>>, %arg5: memref<1x128xf32, #tpu.memory_space<vmem>>, %arg6: memref<128x128xbf16, #tpu.memory_space<vmem>>, %arg7: memref<128x128xbf16, #tpu.memory_space<vmem>>, %arg8: memref<128x128xbf16, #tpu.memory_space<vmem>>, %arg9: memref<128x128xbf16, #tpu.memory_space<vmem>>, %arg10: memref<1x128xf32, #tpu.memory_space<vmem>>, %arg11: memref<1x16x128xf32, #tpu.memory_space<vmem>>, %arg12: memref<16x128xbf16, #tpu.memory_space<vmem>>) attributes {dimension_semantics = [#tpu.dimension_semantics<parallel>, #tpu.dimension_semantics<parallel>], iteration_bounds = array<i64: 2, 1>, scalar_prefetch = 0 : i64, scratch_operands = 1 : i64, tpu.core_type = #tpu.core_type<tc>, window_params = [{transform_indices = @transform_0, window_bounds = array<i64: 1, 16, 128>}, {transform_indices = @transform_1, window_bounds = array<i64: 1, 16, 128>}, {pipeline_mode = #tpu.pipeline_mode<synchronous>, transform_indices = @transform_2, window_bounds = array<i64: 1, 128>}, {pipeline_mode = #tpu.pipeline_mode<synchronous>, transform_indices = @transform_3, window_bounds = array<i64: 1, 128>}, {pipeline_mode = #tpu.pipeline_mode<synchronous>, transform_indices = @transform_4, window_bounds = array<i64: 128, 128>}, {pipeline_mode = #tpu.pipeline_mode<synchronous>, transform_indices = @transform_5, window_bounds = array<i64: 128, 128>}, {pipeline_mode = #tpu.pipeline_mode<synchronous>, transform_indices = @transform_6, window_bounds = array<i64: 128, 128>}, {pipeline_mode = #tpu.pipeline_mode<synchronous>, transform_indices = @transform_7, window_bounds = array<i64: 128, 128>}, {pipeline_mode = #tpu.pipeline_mode<synchronous>, transform_indices = @transform_8, window_bounds = array<i64: 1, 128>}, {transform_indices = @transform_9, window_bounds = array<i64: 1, 16, 128>}]} {
    %c0 = arith.constant 0 : index
    %c0_0 = arith.constant 0 : index
    %c0_1 = arith.constant 0 : index
    %0 = vector.load %arg2[%c0, %c0_0, %c0_1] : memref<1x16x128xf32, #tpu.memory_space<vmem>>, vector<1x16x128xf32>
    %1 = vector.shape_cast %0 : vector<1x16x128xf32> to vector<16x128xf32>
    %c0_2 = arith.constant 0 : index
    %c0_3 = arith.constant 0 : index
    %2 = vector.load %arg4[%c0_2, %c0_3] : memref<1x128xf32, #tpu.memory_space<vmem>>, vector<1x128xf32>
    %c0_4 = arith.constant 0 : index
    %c0_5 = arith.constant 0 : index
    %3 = vector.load %arg5[%c0_4, %c0_5] : memref<1x128xf32, #tpu.memory_space<vmem>>, vector<1x128xf32>
    %cst = arith.constant dense<0.000000e+00> : vector<16xf32>
    %4 = vector.multi_reduction <add>, %1, %cst [1] : vector<16x128xf32> to vector<16xf32>
    %5 = vector.shape_cast %4 : vector<16xf32> to vector<16x1xf32>
    %cst_6 = arith.constant 1.280000e+02 : f32
    %6 = vector.broadcast %cst_6 : f32 to vector<16x1xf32>
    %7 = arith.divf %5, %6 : vector<16x1xf32>
    %8 = vector.broadcast %7 : vector<16x1xf32> to vector<16x128xf32>
    %9 = arith.subf %1, %8 : vector<16x128xf32>
    %10 = arith.mulf %9, %9 : vector<16x128xf32>
    %cst_7 = arith.constant dense<0.000000e+00> : vector<16xf32>
    %11 = vector.multi_reduction <add>, %10, %cst_7 [1] : vector<16x128xf32> to vector<16xf32>
    %12 = vector.shape_cast %11 : vector<16xf32> to vector<16x1xf32>
    %cst_8 = arith.constant 1.280000e+02 : f32
    %13 = vector.broadcast %cst_8 : f32 to vector<16x1xf32>
    %14 = arith.divf %12, %13 : vector<16x1xf32>
    %cst_9 = arith.constant 9.99999974E-6 : f32
    %15 = vector.broadcast %cst_9 : f32 to vector<16x1xf32>
    %16 = arith.addf %14, %15 : vector<16x1xf32>
    %17 = math.rsqrt %16 : vector<16x1xf32>
    %18 = vector.broadcast %17 : vector<16x1xf32> to vector<16x128xf32>
    %19 = arith.mulf %9, %18 : vector<16x128xf32>
    %20 = vector.broadcast %2 : vector<1x128xf32> to vector<16x128xf32>
    %21 = arith.mulf %19, %20 : vector<16x128xf32>
    %22 = vector.broadcast %3 : vector<1x128xf32> to vector<16x128xf32>
    %23 = arith.addf %21, %22 : vector<16x128xf32>
    %c0_10 = arith.constant 0 : index
    %c0_11 = arith.constant 0 : index
    %c0_12 = arith.constant 0 : index
    %24 = vector.load %arg3[%c0_10, %c0_11, %c0_12] : memref<1x16x128xf32, #tpu.memory_space<vmem>>, vector<1x16x128xf32>
    %25 = vector.shape_cast %24 : vector<1x16x128xf32> to vector<16x128xf32>
    %c0_13 = arith.constant 0 : index
    %c0_14 = arith.constant 0 : index
    %26 = vector.load %arg4[%c0_13, %c0_14] : memref<1x128xf32, #tpu.memory_space<vmem>>, vector<1x128xf32>
    %c0_15 = arith.constant 0 : index
    %c0_16 = arith.constant 0 : index
    %27 = vector.load %arg5[%c0_15, %c0_16] : memref<1x128xf32, #tpu.memory_space<vmem>>, vector<1x128xf32>
    %cst_17 = arith.constant dense<0.000000e+00> : vector<16xf32>
    %28 = vector.multi_reduction <add>, %25, %cst_17 [1] : vector<16x128xf32> to vector<16xf32>
    %29 = vector.shape_cast %28 : vector<16xf32> to vector<16x1xf32>
    %cst_18 = arith.constant 1.280000e+02 : f32
    %30 = vector.broadcast %cst_18 : f32 to vector<16x1xf32>
    %31 = arith.divf %29, %30 : vector<16x1xf32>
    %32 = vector.broadcast %31 : vector<16x1xf32> to vector<16x128xf32>
    %33 = arith.subf %25, %32 : vector<16x128xf32>
    %34 = arith.mulf %33, %33 : vector<16x128xf32>
    %cst_19 = arith.constant dense<0.000000e+00> : vector<16xf32>
    %35 = vector.multi_reduction <add>, %34, %cst_19 [1] : vector<16x128xf32> to vector<16xf32>
    %36 = vector.shape_cast %35 : vector<16xf32> to vector<16x1xf32>
    %cst_20 = arith.constant 1.280000e+02 : f32
    %37 = vector.broadcast %cst_20 : f32 to vector<16x1xf32>
    %38 = arith.divf %36, %37 : vector<16x1xf32>
    %cst_21 = arith.constant 9.99999974E-6 : f32
    %39 = vector.broadcast %cst_21 : f32 to vector<16x1xf32>
    %40 = arith.addf %38, %39 : vector<16x1xf32>
    %41 = math.rsqrt %40 : vector<16x1xf32>
    %42 = vector.broadcast %41 : vector<16x1xf32> to vector<16x128xf32>
    %43 = arith.mulf %33, %42 : vector<16x128xf32>
    %44 = vector.broadcast %26 : vector<1x128xf32> to vector<16x128xf32>
    %45 = arith.mulf %43, %44 : vector<16x128xf32>
    %46 = vector.broadcast %27 : vector<1x128xf32> to vector<16x128xf32>
    %47 = arith.addf %45, %46 : vector<16x128xf32>
    %c0_22 = arith.constant 0 : index
    %c0_23 = arith.constant 0 : index
    %48 = vector.load %arg6[%c0_22, %c0_23] : memref<128x128xbf16, #tpu.memory_space<vmem>>, vector<128x128xbf16>
    %49 = arith.truncf %23 : vector<16x128xf32> to vector<16x128xbf16>
    %cst_24 = arith.constant dense<0.000000e+00> : vector<16x128xf32>
    %50 = tpu.matmul %49, %48, %cst_24 {dimension_numbers = #tpu.dot_dimension_numbers<[1], [0], [0], [1], [0, 0, 1, 1], [], []>} : vector<16x128xbf16>, vector<128x128xbf16>, vector<16x128xf32> -> vector<16x128xf32>
    %51 = arith.truncf %50 : vector<16x128xf32> to vector<16x128xbf16>
    %c0_25 = arith.constant 0 : index
    %c0_26 = arith.constant 0 : index
    %52 = vector.load %arg7[%c0_25, %c0_26] : memref<128x128xbf16, #tpu.memory_space<vmem>>, vector<128x128xbf16>
    %53 = arith.truncf %47 : vector<16x128xf32> to vector<16x128xbf16>
    %cst_27 = arith.constant dense<0.000000e+00> : vector<16x128xf32>
    %54 = tpu.matmul %53, %52, %cst_27 {dimension_numbers = #tpu.dot_dimension_numbers<[1], [0], [0], [1], [0, 0, 1, 1], [], []>} : vector<16x128xbf16>, vector<128x128xbf16>, vector<16x128xf32> -> vector<16x128xf32>
    %55 = arith.truncf %54 : vector<16x128xf32> to vector<16x128xbf16>
    %c0_28 = arith.constant 0 : index
    %c0_29 = arith.constant 0 : index
    %56 = vector.load %arg8[%c0_28, %c0_29] : memref<128x128xbf16, #tpu.memory_space<vmem>>, vector<128x128xbf16>
    %57 = arith.truncf %47 : vector<16x128xf32> to vector<16x128xbf16>
    %cst_30 = arith.constant dense<0.000000e+00> : vector<16x128xf32>
    %58 = tpu.matmul %57, %56, %cst_30 {dimension_numbers = #tpu.dot_dimension_numbers<[1], [0], [0], [1], [0, 0, 1, 1], [], []>} : vector<16x128xbf16>, vector<128x128xbf16>, vector<16x128xf32> -> vector<16x128xf32>
    %59 = arith.truncf %58 : vector<16x128xf32> to vector<16x128xbf16>
    %60 = vector.extract_strided_slice %51 {offsets = [0, 0], sizes = [16, 64], strides = [1, 1]} : vector<16x128xbf16> to vector<16x64xbf16>
    %61 = vector.extract_strided_slice %55 {offsets = [0, 0], sizes = [16, 64], strides = [1, 1]} : vector<16x128xbf16> to vector<16x64xbf16>
    %cst_31 = arith.constant dense<0.000000e+00> : vector<16x16xf32>
    %62 = tpu.matmul %60, %61, %cst_31 {dimension_numbers = #tpu.dot_dimension_numbers<[1], [1], [0], [0], [0, 0, 1, 0], [], []>} : vector<16x64xbf16>, vector<16x64xbf16>, vector<16x16xf32> -> vector<16x16xf32>
    %cst_32 = arith.constant dense<0xFF800000> : vector<16xf32>
    %63 = vector.multi_reduction <maximumf>, %62, %cst_32 [1] : vector<16x16xf32> to vector<16xf32>
    %64 = vector.shape_cast %63 : vector<16xf32> to vector<16x1xf32>
    %65 = vector.broadcast %64 : vector<16x1xf32> to vector<16x16xf32>
    %66 = arith.subf %62, %65 : vector<16x16xf32>
    %67 = math.exp %66 : vector<16x16xf32>
    %cst_33 = arith.constant dense<0.000000e+00> : vector<16xf32>
    %68 = vector.multi_reduction <add>, %67, %cst_33 [1] : vector<16x16xf32> to vector<16xf32>
    %69 = vector.shape_cast %68 : vector<16xf32> to vector<16x1xf32>
    %70 = tpu.reciprocal %69 {approx = true} : vector<16x1xf32> -> vector<16x1xf32>
    %71 = vector.broadcast %70 : vector<16x1xf32> to vector<16x16xf32>
    %72 = arith.mulf %67, %71 : vector<16x16xf32>
    %73 = arith.truncf %72 : vector<16x16xf32> to vector<16x16xbf16>
    %74 = vector.extract_strided_slice %59 {offsets = [0, 0], sizes = [16, 64], strides = [1, 1]} : vector<16x128xbf16> to vector<16x64xbf16>
    %cst_34 = arith.constant dense<0.000000e+00> : vector<16x64xf32>
    %75 = tpu.matmul %73, %74, %cst_34 {dimension_numbers = #tpu.dot_dimension_numbers<[1], [0], [0], [1], [0, 0, 1, 1], [], []>} : vector<16x16xbf16>, vector<16x64xbf16>, vector<16x64xf32> -> vector<16x64xf32>
    %76 = arith.truncf %75 : vector<16x64xf32> to vector<16x64xbf16>
    %c0_35 = arith.constant 0 : index
    %c0_36 = arith.constant 0 : index
    %77 = vector.load %arg12[%c0_35, %c0_36] : memref<16x128xbf16, #tpu.memory_space<vmem>>, vector<16x64xbf16>
    tpu.vector_store %arg12[%c0_35, %c0_36], %76 {strides = array<i32>} : memref<16x128xbf16, #tpu.memory_space<vmem>>, vector<16x64xbf16>,
    %78 = vector.extract_strided_slice %51 {offsets = [0, 64], sizes = [16, 64], strides = [1, 1]} : vector<16x128xbf16> to vector<16x64xbf16>
    %79 = vector.extract_strided_slice %55 {offsets = [0, 64], sizes = [16, 64], strides = [1, 1]} : vector<16x128xbf16> to vector<16x64xbf16>
    %cst_37 = arith.constant dense<0.000000e+00> : vector<16x16xf32>
    %80 = tpu.matmul %78, %79, %cst_37 {dimension_numbers = #tpu.dot_dimension_numbers<[1], [1], [0], [0], [0, 0, 1, 0], [], []>} : vector<16x64xbf16>, vector<16x64xbf16>, vector<16x16xf32> -> vector<16x16xf32>
    %cst_38 = arith.constant dense<0xFF800000> : vector<16xf32>
    %81 = vector.multi_reduction <maximumf>, %80, %cst_38 [1] : vector<16x16xf32> to vector<16xf32>
    %82 = vector.shape_cast %81 : vector<16xf32> to vector<16x1xf32>
    %83 = vector.broadcast %82 : vector<16x1xf32> to vector<16x16xf32>
    %84 = arith.subf %80, %83 : vector<16x16xf32>
    %85 = math.exp %84 : vector<16x16xf32>
    %cst_39 = arith.constant dense<0.000000e+00> : vector<16xf32>
    %86 = vector.multi_reduction <add>, %85, %cst_39 [1] : vector<16x16xf32> to vector<16xf32>
    %87 = vector.shape_cast %86 : vector<16xf32> to vector<16x1xf32>
    %88 = tpu.reciprocal %87 {approx = true} : vector<16x1xf32> -> vector<16x1xf32>
    %89 = vector.broadcast %88 : vector<16x1xf32> to vector<16x16xf32>
    %90 = arith.mulf %85, %89 : vector<16x16xf32>
    %91 = arith.truncf %90 : vector<16x16xf32> to vector<16x16xbf16>
    %92 = vector.extract_strided_slice %59 {offsets = [0, 64], sizes = [16, 64], strides = [1, 1]} : vector<16x128xbf16> to vector<16x64xbf16>
    %cst_40 = arith.constant dense<0.000000e+00> : vector<16x64xf32>
    %93 = tpu.matmul %91, %92, %cst_40 {dimension_numbers = #tpu.dot_dimension_numbers<[1], [0], [0], [1], [0, 0, 1, 1], [], []>} : vector<16x16xbf16>, vector<16x64xbf16>, vector<16x64xf32> -> vector<16x64xf32>
    %94 = arith.truncf %93 : vector<16x64xf32> to vector<16x64xbf16>
    %c0_41 = arith.constant 0 : index
    %c64 = arith.constant 64 : index
    %95 = vector.load %arg12[%c0_41, %c64] : memref<16x128xbf16, #tpu.memory_space<vmem>>, vector<16x64xbf16>
    tpu.vector_store %arg12[%c0_41, %c64], %94 {strides = array<i32>} : memref<16x128xbf16, #tpu.memory_space<vmem>>, vector<16x64xbf16>,
    %c0_42 = arith.constant 0 : index
    %c0_43 = arith.constant 0 : index
    %96 = vector.load %arg10[%c0_42, %c0_43] : memref<1x128xf32, #tpu.memory_space<vmem>>, vector<1x128xf32>
    %97 = vector.broadcast %96 : vector<1x128xf32> to vector<16x128xf32>
    %98 = arith.addf %1, %97 : vector<16x128xf32>
    %c0_44 = arith.constant 0 : index
    %c0_45 = arith.constant 0 : index
    %99 = vector.load %arg12[%c0_44, %c0_45] : memref<16x128xbf16, #tpu.memory_space<vmem>>, vector<16x128xbf16>
    %c0_46 = arith.constant 0 : index
    %c0_47 = arith.constant 0 : index
    %100 = vector.load %arg9[%c0_46, %c0_47] : memref<128x128xbf16, #tpu.memory_space<vmem>>, vector<128x128xbf16>
    %cst_48 = arith.constant dense<0.000000e+00> : vector<16x128xf32>
    %101 = tpu.matmul %99, %100, %cst_48 {dimension_numbers = #tpu.dot_dimension_numbers<[1], [0], [0], [1], [0, 0, 1, 1], [], []>} : vector<16x128xbf16>, vector<128x128xbf16>, vector<16x128xf32> -> vector<16x128xf32>
    %102 = arith.addf %98, %101 : vector<16x128xf32>
    %c0_49 = arith.constant 0 : index
    %c0_50 = arith.constant 0 : index
    %c0_51 = arith.constant 0 : index
    %103 = vector.load %arg11[%c0_49, %c0_50, %c0_51] : memref<1x16x128xf32, #tpu.memory_space<vmem>>, vector<1x16x128xf32>
    %104 = vector.shape_cast %103 : vector<1x16x128xf32> to vector<16x128xf32>
    %105 = vector.shape_cast %102 : vector<16x128xf32> to vector<1x16x128xf32>
    tpu.vector_store %arg11[%c0_49, %c0_50, %c0_51], %105 {strides = array<i32>} : memref<1x16x128xf32, #tpu.memory_space<vmem>>, vector<1x16x128xf32>,
    return
  }
  func.func @transform_0(%arg0: i32, %arg1: i32) -> (i32, i32, i32) {
    %c0_i32 = arith.constant 0 : i32
    %c0_i32_0 = arith.constant 0 : i32
    return %arg0, %arg1, %c0_i32 : i32, i32, i32
  }
  func.func @transform_1(%arg0: i32, %arg1: i32) -> (i32, i32, i32) {
    %c0_i32 = arith.constant 0 : i32
    %c0_i32_0 = arith.constant 0 : i32
    %c0_i32_1 = arith.constant 0 : i32
    return %arg0, %c0_i32, %c0_i32_0 : i32, i32, i32
  }
  func.func @transform_2(%arg0: i32, %arg1: i32) -> (i32, i32) {
    %c0_i32 = arith.constant 0 : i32
    %c0_i32_0 = arith.constant 0 : i32
    %c0_i32_1 = arith.constant 0 : i32
    return %c0_i32, %c0_i32_0 : i32, i32
  }
  func.func @transform_3(%arg0: i32, %arg1: i32) -> (i32, i32) {
    %c0_i32 = arith.constant 0 : i32
    %c0_i32_0 = arith.constant 0 : i32
    %c0_i32_1 = arith.constant 0 : i32
    return %c0_i32, %c0_i32_0 : i32, i32
  }
  func.func @transform_4(%arg0: i32, %arg1: i32) -> (i32, i32) {
    %c0_i32 = arith.constant 0 : i32
    %c0_i32_0 = arith.constant 0 : i32
    %c0_i32_1 = arith.constant 0 : i32
    return %c0_i32, %c0_i32_0 : i32, i32
  }
  func.func @transform_5(%arg0: i32, %arg1: i32) -> (i32, i32) {
    %c0_i32 = arith.constant 0 : i32
    %c0_i32_0 = arith.constant 0 : i32
    %c0_i32_1 = arith.constant 0 : i32
    return %c0_i32, %c0_i32_0 : i32, i32
  }
  func.func @transform_6(%arg0: i32, %arg1: i32) -> (i32, i32) {
    %c0_i32 = arith.constant 0 : i32
    %c0_i32_0 = arith.constant 0 : i32
    %c0_i32_1 = arith.constant 0 : i32
    return %c0_i32, %c0_i32_0 : i32, i32
  }
  func.func @transform_7(%arg0: i32, %arg1: i32) -> (i32, i32) {
    %c0_i32 = arith.constant 0 : i32
    %c0_i32_0 = arith.constant 0 : i32
    %c0_i32_1 = arith.constant 0 : i32
    return %c0_i32, %c0_i32_0 : i32, i32
  }
  func.func @transform_8(%arg0: i32, %arg1: i32) -> (i32, i32) {
    %c0_i32 = arith.constant 0 : i32
    %c0_i32_0 = arith.constant 0 : i32
    %c0_i32_1 = arith.constant 0 : i32
    return %c0_i32, %c0_i32_0 : i32, i32
  }
  func.func @transform_9(%arg0: i32, %arg1: i32) -> (i32, i32, i32) {
    %c0_i32 = arith.constant 0 : i32
    %c0_i32_0 = arith.constant 0 : i32
    return %arg0, %arg1, %c0_i32 : i32, i32, i32
  }
}

module attributes {stable_mosaic.version = 11 : i64} {
  func.func @_ff_kernel(%arg0: i32, %arg1: i32, %arg2: memref<32x128xf32, #tpu.memory_space<vmem>>, %arg3: memref<1x128xf32, #tpu.memory_space<vmem>>, %arg4: memref<1x128xf32, #tpu.memory_space<vmem>>, %arg5: memref<128x512xbf16, #tpu.memory_space<vmem>>, %arg6: memref<1x512xf32, #tpu.memory_space<vmem>>, %arg7: memref<128x512xbf16, #tpu.memory_space<vmem>>, %arg8: memref<1x512xf32, #tpu.memory_space<vmem>>, %arg9: memref<512x128xbf16, #tpu.memory_space<vmem>>, %arg10: memref<1x128xf32, #tpu.memory_space<vmem>>, %arg11: memref<32x128xf32, #tpu.memory_space<vmem>>, %arg12: memref<32x128xbf16, #tpu.memory_space<vmem>>, %arg13: memref<32x128xf32, #tpu.memory_space<vmem>>) attributes {dimension_semantics = [#tpu.dimension_semantics<parallel>, #tpu.dimension_semantics<arbitrary>], iteration_bounds = array<i64: 1, 1>, scalar_prefetch = 0 : i64, scratch_operands = 2 : i64, tpu.core_type = #tpu.core_type<tc>, window_params = [{transform_indices = @transform_0, window_bounds = array<i64: 32, 128>}, {pipeline_mode = #tpu.pipeline_mode<synchronous>, transform_indices = @transform_1, window_bounds = array<i64: 1, 128>}, {pipeline_mode = #tpu.pipeline_mode<synchronous>, transform_indices = @transform_2, window_bounds = array<i64: 1, 128>}, {transform_indices = @transform_3, window_bounds = array<i64: 128, 512>}, {transform_indices = @transform_4, window_bounds = array<i64: 1, 512>}, {transform_indices = @transform_5, window_bounds = array<i64: 128, 512>}, {transform_indices = @transform_6, window_bounds = array<i64: 1, 512>}, {transform_indices = @transform_7, window_bounds = array<i64: 512, 128>}, {pipeline_mode = #tpu.pipeline_mode<synchronous>, transform_indices = @transform_8, window_bounds = array<i64: 1, 128>}, {transform_indices = @transform_9, window_bounds = array<i64: 32, 128>}]} {
    %c0_i32 = arith.constant 0 : i32
    %0 = arith.cmpi eq, %arg1, %c0_i32 : i32
    %1 = arith.extui %0 : i1 to i32
    %c0_i32_0 = arith.constant 0 : i32
    %2 = arith.cmpi ne, %1, %c0_i32_0 : i32
    scf.if %2 {
      %c0_24 = arith.constant 0 : index
      %c0_25 = arith.constant 0 : index
      %37 = vector.load %arg2[%c0_24, %c0_25] : memref<32x128xf32, #tpu.memory_space<vmem>>, vector<32x128xf32>
      %c0_26 = arith.constant 0 : index
      %c0_27 = arith.constant 0 : index
      %38 = vector.load %arg3[%c0_26, %c0_27] : memref<1x128xf32, #tpu.memory_space<vmem>>, vector<1x128xf32>
      %c0_28 = arith.constant 0 : index
      %c0_29 = arith.constant 0 : index
      %39 = vector.load %arg4[%c0_28, %c0_29] : memref<1x128xf32, #tpu.memory_space<vmem>>, vector<1x128xf32>
      %cst_30 = arith.constant dense<0.000000e+00> : vector<32xf32>
      %40 = vector.multi_reduction <add>, %37, %cst_30 [1] : vector<32x128xf32> to vector<32xf32>
      %41 = vector.shape_cast %40 : vector<32xf32> to vector<32x1xf32>
      %cst_31 = arith.constant 1.280000e+02 : f32
      %42 = vector.broadcast %cst_31 : f32 to vector<32x1xf32>
      %43 = arith.divf %41, %42 : vector<32x1xf32>
      %44 = vector.broadcast %43 : vector<32x1xf32> to vector<32x128xf32>
      %45 = arith.subf %37, %44 : vector<32x128xf32>
      %46 = arith.mulf %45, %45 : vector<32x128xf32>
      %cst_32 = arith.constant dense<0.000000e+00> : vector<32xf32>
      %47 = vector.multi_reduction <add>, %46, %cst_32 [1] : vector<32x128xf32> to vector<32xf32>
      %48 = vector.shape_cast %47 : vector<32xf32> to vector<32x1xf32>
      %cst_33 = arith.constant 1.280000e+02 : f32
      %49 = vector.broadcast %cst_33 : f32 to vector<32x1xf32>
      %50 = arith.divf %48, %49 : vector<32x1xf32>
      %cst_34 = arith.constant 9.99999974E-6 : f32
      %51 = vector.broadcast %cst_34 : f32 to vector<32x1xf32>
      %52 = arith.addf %50, %51 : vector<32x1xf32>
      %53 = math.rsqrt %52 : vector<32x1xf32>
      %54 = vector.broadcast %53 : vector<32x1xf32> to vector<32x128xf32>
      %55 = arith.mulf %45, %54 : vector<32x128xf32>
      %56 = vector.broadcast %38 : vector<1x128xf32> to vector<32x128xf32>
      %57 = arith.mulf %55, %56 : vector<32x128xf32>
      %58 = vector.broadcast %39 : vector<1x128xf32> to vector<32x128xf32>
      %59 = arith.addf %57, %58 : vector<32x128xf32>
      %60 = arith.truncf %59 : vector<32x128xf32> to vector<32x128xbf16>
      %c0_35 = arith.constant 0 : index
      %c0_36 = arith.constant 0 : index
      %61 = vector.load %arg12[%c0_35, %c0_36] : memref<32x128xbf16, #tpu.memory_space<vmem>>, vector<32x128xbf16>
      tpu.vector_store %arg12[%c0_35, %c0_36], %60 {strides = array<i32>} : memref<32x128xbf16, #tpu.memory_space<vmem>>, vector<32x128xbf16>,
      %cst_37 = arith.constant 0.000000e+00 : f32
      %62 = vector.broadcast %cst_37 : f32 to vector<32x128xf32>
      %c0_38 = arith.constant 0 : index
      %c0_39 = arith.constant 0 : index
      %63 = vector.load %arg13[%c0_38, %c0_39] : memref<32x128xf32, #tpu.memory_space<vmem>>, vector<32x128xf32>
      tpu.vector_store %arg13[%c0_38, %c0_39], %62 {strides = array<i32>} : memref<32x128xf32, #tpu.memory_space<vmem>>, vector<32x128xf32>,
    } else {
    }
    %c0 = arith.constant 0 : index
    %c0_1 = arith.constant 0 : index
    %3 = vector.load %arg12[%c0, %c0_1] : memref<32x128xbf16, #tpu.memory_space<vmem>>, vector<32x128xbf16>
    %c0_2 = arith.constant 0 : index
    %c0_3 = arith.constant 0 : index
    %4 = vector.load %arg5[%c0_2, %c0_3] : memref<128x512xbf16, #tpu.memory_space<vmem>>, vector<128x512xbf16>
    %cst = arith.constant dense<0.000000e+00> : vector<32x512xf32>
    %5 = tpu.matmul %3, %4, %cst {dimension_numbers = #tpu.dot_dimension_numbers<[1], [0], [0], [1], [0, 0, 1, 1], [], []>} : vector<32x128xbf16>, vector<128x512xbf16>, vector<32x512xf32> -> vector<32x512xf32>
    %c0_4 = arith.constant 0 : index
    %c0_5 = arith.constant 0 : index
    %6 = vector.load %arg6[%c0_4, %c0_5] : memref<1x512xf32, #tpu.memory_space<vmem>>, vector<1x512xf32>
    %7 = vector.broadcast %6 : vector<1x512xf32> to vector<32x512xf32>
    %8 = arith.addf %5, %7 : vector<32x512xf32>
    %c0_6 = arith.constant 0 : index
    %c0_7 = arith.constant 0 : index
    %9 = vector.load %arg7[%c0_6, %c0_7] : memref<128x512xbf16, #tpu.memory_space<vmem>>, vector<128x512xbf16>
    %cst_8 = arith.constant dense<0.000000e+00> : vector<32x512xf32>
    %10 = tpu.matmul %3, %9, %cst_8 {dimension_numbers = #tpu.dot_dimension_numbers<[1], [0], [0], [1], [0, 0, 1, 1], [], []>} : vector<32x128xbf16>, vector<128x512xbf16>, vector<32x512xf32> -> vector<32x512xf32>
    %c0_9 = arith.constant 0 : index
    %c0_10 = arith.constant 0 : index
    %11 = vector.load %arg8[%c0_9, %c0_10] : memref<1x512xf32, #tpu.memory_space<vmem>>, vector<1x512xf32>
    %12 = vector.broadcast %11 : vector<1x512xf32> to vector<32x512xf32>
    %13 = arith.addf %10, %12 : vector<32x512xf32>
    %cst_11 = arith.constant 5.000000e-01 : f32
    %14 = vector.broadcast %cst_11 : f32 to vector<32x512xf32>
    %15 = arith.mulf %14, %13 : vector<32x512xf32>
    %cst_12 = arith.constant 4.471500e-02 : f32
    %16 = vector.broadcast %cst_12 : f32 to vector<32x512xf32>
    %17 = arith.mulf %16, %13 : vector<32x512xf32>
    %18 = arith.mulf %17, %13 : vector<32x512xf32>
    %19 = arith.mulf %18, %13 : vector<32x512xf32>
    %20 = arith.addf %13, %19 : vector<32x512xf32>
    %cst_13 = arith.constant 0.797884583 : f32
    %21 = vector.broadcast %cst_13 : f32 to vector<32x512xf32>
    %22 = arith.mulf %21, %20 : vector<32x512xf32>
    %23 = math.tanh %22 : vector<32x512xf32>
    %cst_14 = arith.constant 1.000000e+00 : f32
    %24 = vector.broadcast %cst_14 : f32 to vector<32x512xf32>
    %25 = arith.addf %24, %23 : vector<32x512xf32>
    %26 = arith.mulf %15, %25 : vector<32x512xf32>
    %27 = arith.mulf %8, %26 : vector<32x512xf32>
    %28 = arith.truncf %27 : vector<32x512xf32> to vector<32x512xbf16>
    %c0_15 = arith.constant 0 : index
    %c0_16 = arith.constant 0 : index
    %29 = vector.load %arg13[%c0_15, %c0_16] : memref<32x128xf32, #tpu.memory_space<vmem>>, vector<32x128xf32>
    %c0_17 = arith.constant 0 : index
    %c0_18 = arith.constant 0 : index
    %30 = vector.load %arg9[%c0_17, %c0_18] : memref<512x128xbf16, #tpu.memory_space<vmem>>, vector<512x128xbf16>
    %cst_19 = arith.constant dense<0.000000e+00> : vector<32x128xf32>
    %31 = tpu.matmul %28, %30, %cst_19 {dimension_numbers = #tpu.dot_dimension_numbers<[1], [0], [0], [1], [0, 0, 1, 1], [], []>} : vector<32x512xbf16>, vector<512x128xbf16>, vector<32x128xf32> -> vector<32x128xf32>
    %32 = arith.addf %29, %31 : vector<32x128xf32>
    %c0_20 = arith.constant 0 : index
    %c0_21 = arith.constant 0 : index
    %33 = vector.load %arg13[%c0_20, %c0_21] : memref<32x128xf32, #tpu.memory_space<vmem>>, vector<32x128xf32>
    tpu.vector_store %arg13[%c0_20, %c0_21], %32 {strides = array<i32>} : memref<32x128xf32, #tpu.memory_space<vmem>>, vector<32x128xf32>,
    %c0_i32_22 = arith.constant 0 : i32
    %34 = arith.cmpi eq, %arg1, %c0_i32_22 : i32
    %35 = arith.extui %34 : i1 to i32
    %c0_i32_23 = arith.constant 0 : i32
    %36 = arith.cmpi ne, %35, %c0_i32_23 : i32
    scf.if %36 {
      %c0_24 = arith.constant 0 : index
      %c0_25 = arith.constant 0 : index
      %37 = vector.load %arg13[%c0_24, %c0_25] : memref<32x128xf32, #tpu.memory_space<vmem>>, vector<32x128xf32>
      %c0_26 = arith.constant 0 : index
      %c0_27 = arith.constant 0 : index
      %38 = vector.load %arg10[%c0_26, %c0_27] : memref<1x128xf32, #tpu.memory_space<vmem>>, vector<1x128xf32>
      %39 = vector.broadcast %38 : vector<1x128xf32> to vector<32x128xf32>
      %40 = arith.addf %37, %39 : vector<32x128xf32>
      %c0_28 = arith.constant 0 : index
      %c0_29 = arith.constant 0 : index
      %41 = vector.load %arg2[%c0_28, %c0_29] : memref<32x128xf32, #tpu.memory_space<vmem>>, vector<32x128xf32>
      %42 = arith.addf %40, %41 : vector<32x128xf32>
      %c0_30 = arith.constant 0 : index
      %c0_31 = arith.constant 0 : index
      %43 = vector.load %arg11[%c0_30, %c0_31] : memref<32x128xf32, #tpu.memory_space<vmem>>, vector<32x128xf32>
      tpu.vector_store %arg11[%c0_30, %c0_31], %42 {strides = array<i32>} : memref<32x128xf32, #tpu.memory_space<vmem>>, vector<32x128xf32>,
    } else {
    }
    return
  }
  func.func @transform_0(%arg0: i32, %arg1: i32) -> (i32, i32) {
    %c0_i32 = arith.constant 0 : i32
    %c0_i32_0 = arith.constant 0 : i32
    return %arg0, %c0_i32 : i32, i32
  }
  func.func @transform_1(%arg0: i32, %arg1: i32) -> (i32, i32) {
    %c0_i32 = arith.constant 0 : i32
    %c0_i32_0 = arith.constant 0 : i32
    %c0_i32_1 = arith.constant 0 : i32
    return %c0_i32, %c0_i32_0 : i32, i32
  }
  func.func @transform_2(%arg0: i32, %arg1: i32) -> (i32, i32) {
    %c0_i32 = arith.constant 0 : i32
    %c0_i32_0 = arith.constant 0 : i32
    %c0_i32_1 = arith.constant 0 : i32
    return %c0_i32, %c0_i32_0 : i32, i32
  }
  func.func @transform_3(%arg0: i32, %arg1: i32) -> (i32, i32) {
    %c0_i32 = arith.constant 0 : i32
    %c0_i32_0 = arith.constant 0 : i32
    return %c0_i32, %arg1 : i32, i32
  }
  func.func @transform_4(%arg0: i32, %arg1: i32) -> (i32, i32) {
    %c0_i32 = arith.constant 0 : i32
    %c0_i32_0 = arith.constant 0 : i32
    return %c0_i32, %arg1 : i32, i32
  }
  func.func @transform_5(%arg0: i32, %arg1: i32) -> (i32, i32) {
    %c0_i32 = arith.constant 0 : i32
    %c0_i32_0 = arith.constant 0 : i32
    return %c0_i32, %arg1 : i32, i32
  }
  func.func @transform_6(%arg0: i32, %arg1: i32) -> (i32, i32) {
    %c0_i32 = arith.constant 0 : i32
    %c0_i32_0 = arith.constant 0 : i32
    return %c0_i32, %arg1 : i32, i32
  }
  func.func @transform_7(%arg0: i32, %arg1: i32) -> (i32, i32) {
    %c0_i32 = arith.constant 0 : i32
    %c0_i32_0 = arith.constant 0 : i32
    return %arg1, %c0_i32 : i32, i32
  }
  func.func @transform_8(%arg0: i32, %arg1: i32) -> (i32, i32) {
    %c0_i32 = arith.constant 0 : i32
    %c0_i32_0 = arith.constant 0 : i32
    %c0_i32_1 = arith.constant 0 : i32
    return %c0_i32, %c0_i32_0 : i32, i32
  }
  func.func @transform_9(%arg0: i32, %arg1: i32) -> (i32, i32) {
    %c0_i32 = arith.constant 0 : i32
    %c0_i32_0 = arith.constant 0 : i32
    return %arg0, %c0_i32 : i32, i32
  }
}

module attributes {stable_mosaic.version = 11 : i64} {
  func.func @_attn_kernel(%arg0: i32, %arg1: i32, %arg2: memref<1x16x128xf32, #tpu.memory_space<vmem>>, %arg3: memref<1x16x128xf32, #tpu.memory_space<vmem>>, %arg4: memref<1x128xf32, #tpu.memory_space<vmem>>, %arg5: memref<1x128xf32, #tpu.memory_space<vmem>>, %arg6: memref<128x128xbf16, #tpu.memory_space<vmem>>, %arg7: memref<128x128xbf16, #tpu.memory_space<vmem>>, %arg8: memref<128x128xbf16, #tpu.memory_space<vmem>>, %arg9: memref<128x128xbf16, #tpu.memory_space<vmem>>, %arg10: memref<1x128xf32, #tpu.memory_space<vmem>>, %arg11: memref<1x16x128xf32, #tpu.memory_space<vmem>>, %arg12: memref<16x128xbf16, #tpu.memory_space<vmem>>) attributes {dimension_semantics = [#tpu.dimension_semantics<parallel>, #tpu.dimension_semantics<parallel>], iteration_bounds = array<i64: 2, 1>, scalar_prefetch = 0 : i64, scratch_operands = 1 : i64, tpu.core_type = #tpu.core_type<tc>, window_params = [{transform_indices = @transform_0, window_bounds = array<i64: 1, 16, 128>}, {transform_indices = @transform_1, window_bounds = array<i64: 1, 16, 128>}, {pipeline_mode = #tpu.pipeline_mode<synchronous>, transform_indices = @transform_2, window_bounds = array<i64: 1, 128>}, {pipeline_mode = #tpu.pipeline_mode<synchronous>, transform_indices = @transform_3, window_bounds = array<i64: 1, 128>}, {pipeline_mode = #tpu.pipeline_mode<synchronous>, transform_indices = @transform_4, window_bounds = array<i64: 128, 128>}, {pipeline_mode = #tpu.pipeline_mode<synchronous>, transform_indices = @transform_5, window_bounds = array<i64: 128, 128>}, {pipeline_mode = #tpu.pipeline_mode<synchronous>, transform_indices = @transform_6, window_bounds = array<i64: 128, 128>}, {pipeline_mode = #tpu.pipeline_mode<synchronous>, transform_indices = @transform_7, window_bounds = array<i64: 128, 128>}, {pipeline_mode = #tpu.pipeline_mode<synchronous>, transform_indices = @transform_8, window_bounds = array<i64: 1, 128>}, {transform_indices = @transform_9, window_bounds = array<i64: 1, 16, 128>}]} {
    %c0 = arith.constant 0 : index
    %c0_0 = arith.constant 0 : index
    %c0_1 = arith.constant 0 : index
    %0 = vector.load %arg2[%c0, %c0_0, %c0_1] : memref<1x16x128xf32, #tpu.memory_space<vmem>>, vector<1x16x128xf32>
    %1 = vector.shape_cast %0 : vector<1x16x128xf32> to vector<16x128xf32>
    %c0_2 = arith.constant 0 : index
    %c0_3 = arith.constant 0 : index
    %2 = vector.load %arg4[%c0_2, %c0_3] : memref<1x128xf32, #tpu.memory_space<vmem>>, vector<1x128xf32>
    %c0_4 = arith.constant 0 : index
    %c0_5 = arith.constant 0 : index
    %3 = vector.load %arg5[%c0_4, %c0_5] : memref<1x128xf32, #tpu.memory_space<vmem>>, vector<1x128xf32>
    %cst = arith.constant dense<0.000000e+00> : vector<16xf32>
    %4 = vector.multi_reduction <add>, %1, %cst [1] : vector<16x128xf32> to vector<16xf32>
    %5 = vector.shape_cast %4 : vector<16xf32> to vector<16x1xf32>
    %cst_6 = arith.constant 1.280000e+02 : f32
    %6 = vector.broadcast %cst_6 : f32 to vector<16x1xf32>
    %7 = arith.divf %5, %6 : vector<16x1xf32>
    %8 = vector.broadcast %7 : vector<16x1xf32> to vector<16x128xf32>
    %9 = arith.subf %1, %8 : vector<16x128xf32>
    %10 = arith.mulf %9, %9 : vector<16x128xf32>
    %cst_7 = arith.constant dense<0.000000e+00> : vector<16xf32>
    %11 = vector.multi_reduction <add>, %10, %cst_7 [1] : vector<16x128xf32> to vector<16xf32>
    %12 = vector.shape_cast %11 : vector<16xf32> to vector<16x1xf32>
    %cst_8 = arith.constant 1.280000e+02 : f32
    %13 = vector.broadcast %cst_8 : f32 to vector<16x1xf32>
    %14 = arith.divf %12, %13 : vector<16x1xf32>
    %cst_9 = arith.constant 9.99999974E-6 : f32
    %15 = vector.broadcast %cst_9 : f32 to vector<16x1xf32>
    %16 = arith.addf %14, %15 : vector<16x1xf32>
    %17 = math.rsqrt %16 : vector<16x1xf32>
    %18 = vector.broadcast %17 : vector<16x1xf32> to vector<16x128xf32>
    %19 = arith.mulf %9, %18 : vector<16x128xf32>
    %20 = vector.broadcast %2 : vector<1x128xf32> to vector<16x128xf32>
    %21 = arith.mulf %19, %20 : vector<16x128xf32>
    %22 = vector.broadcast %3 : vector<1x128xf32> to vector<16x128xf32>
    %23 = arith.addf %21, %22 : vector<16x128xf32>
    %c0_10 = arith.constant 0 : index
    %c0_11 = arith.constant 0 : index
    %c0_12 = arith.constant 0 : index
    %24 = vector.load %arg3[%c0_10, %c0_11, %c0_12] : memref<1x16x128xf32, #tpu.memory_space<vmem>>, vector<1x16x128xf32>
    %25 = vector.shape_cast %24 : vector<1x16x128xf32> to vector<16x128xf32>
    %c0_13 = arith.constant 0 : index
    %c0_14 = arith.constant 0 : index
    %26 = vector.load %arg4[%c0_13, %c0_14] : memref<1x128xf32, #tpu.memory_space<vmem>>, vector<1x128xf32>
    %c0_15 = arith.constant 0 : index
    %c0_16 = arith.constant 0 : index
    %27 = vector.load %arg5[%c0_15, %c0_16] : memref<1x128xf32, #tpu.memory_space<vmem>>, vector<1x128xf32>
    %cst_17 = arith.constant dense<0.000000e+00> : vector<16xf32>
    %28 = vector.multi_reduction <add>, %25, %cst_17 [1] : vector<16x128xf32> to vector<16xf32>
    %29 = vector.shape_cast %28 : vector<16xf32> to vector<16x1xf32>
    %cst_18 = arith.constant 1.280000e+02 : f32
    %30 = vector.broadcast %cst_18 : f32 to vector<16x1xf32>
    %31 = arith.divf %29, %30 : vector<16x1xf32>
    %32 = vector.broadcast %31 : vector<16x1xf32> to vector<16x128xf32>
    %33 = arith.subf %25, %32 : vector<16x128xf32>
    %34 = arith.mulf %33, %33 : vector<16x128xf32>
    %cst_19 = arith.constant dense<0.000000e+00> : vector<16xf32>
    %35 = vector.multi_reduction <add>, %34, %cst_19 [1] : vector<16x128xf32> to vector<16xf32>
    %36 = vector.shape_cast %35 : vector<16xf32> to vector<16x1xf32>
    %cst_20 = arith.constant 1.280000e+02 : f32
    %37 = vector.broadcast %cst_20 : f32 to vector<16x1xf32>
    %38 = arith.divf %36, %37 : vector<16x1xf32>
    %cst_21 = arith.constant 9.99999974E-6 : f32
    %39 = vector.broadcast %cst_21 : f32 to vector<16x1xf32>
    %40 = arith.addf %38, %39 : vector<16x1xf32>
    %41 = math.rsqrt %40 : vector<16x1xf32>
    %42 = vector.broadcast %41 : vector<16x1xf32> to vector<16x128xf32>
    %43 = arith.mulf %33, %42 : vector<16x128xf32>
    %44 = vector.broadcast %26 : vector<1x128xf32> to vector<16x128xf32>
    %45 = arith.mulf %43, %44 : vector<16x128xf32>
    %46 = vector.broadcast %27 : vector<1x128xf32> to vector<16x128xf32>
    %47 = arith.addf %45, %46 : vector<16x128xf32>
    %c0_22 = arith.constant 0 : index
    %c0_23 = arith.constant 0 : index
    %48 = vector.load %arg6[%c0_22, %c0_23] : memref<128x128xbf16, #tpu.memory_space<vmem>>, vector<128x128xbf16>
    %49 = arith.truncf %23 : vector<16x128xf32> to vector<16x128xbf16>
    %cst_24 = arith.constant dense<0.000000e+00> : vector<16x128xf32>
    %50 = tpu.matmul %49, %48, %cst_24 {dimension_numbers = #tpu.dot_dimension_numbers<[1], [0], [0], [1], [0, 0, 1, 1], [], []>} : vector<16x128xbf16>, vector<128x128xbf16>, vector<16x128xf32> -> vector<16x128xf32>
    %51 = arith.truncf %50 : vector<16x128xf32> to vector<16x128xbf16>
    %c0_25 = arith.constant 0 : index
    %c0_26 = arith.constant 0 : index
    %52 = vector.load %arg7[%c0_25, %c0_26] : memref<128x128xbf16, #tpu.memory_space<vmem>>, vector<128x128xbf16>
    %53 = arith.truncf %47 : vector<16x128xf32> to vector<16x128xbf16>
    %cst_27 = arith.constant dense<0.000000e+00> : vector<16x128xf32>
    %54 = tpu.matmul %53, %52, %cst_27 {dimension_numbers = #tpu.dot_dimension_numbers<[1], [0], [0], [1], [0, 0, 1, 1], [], []>} : vector<16x128xbf16>, vector<128x128xbf16>, vector<16x128xf32> -> vector<16x128xf32>
    %55 = arith.truncf %54 : vector<16x128xf32> to vector<16x128xbf16>
    %c0_28 = arith.constant 0 : index
    %c0_29 = arith.constant 0 : index
    %56 = vector.load %arg8[%c0_28, %c0_29] : memref<128x128xbf16, #tpu.memory_space<vmem>>, vector<128x128xbf16>
    %57 = arith.truncf %47 : vector<16x128xf32> to vector<16x128xbf16>
    %cst_30 = arith.constant dense<0.000000e+00> : vector<16x128xf32>
    %58 = tpu.matmul %57, %56, %cst_30 {dimension_numbers = #tpu.dot_dimension_numbers<[1], [0], [0], [1], [0, 0, 1, 1], [], []>} : vector<16x128xbf16>, vector<128x128xbf16>, vector<16x128xf32> -> vector<16x128xf32>
    %59 = arith.truncf %58 : vector<16x128xf32> to vector<16x128xbf16>
    %60 = vector.extract_strided_slice %51 {offsets = [0, 0], sizes = [16, 64], strides = [1, 1]} : vector<16x128xbf16> to vector<16x64xbf16>
    %61 = vector.extract_strided_slice %55 {offsets = [0, 0], sizes = [16, 64], strides = [1, 1]} : vector<16x128xbf16> to vector<16x64xbf16>
    %cst_31 = arith.constant dense<0.000000e+00> : vector<16x16xf32>
    %62 = tpu.matmul %60, %61, %cst_31 {dimension_numbers = #tpu.dot_dimension_numbers<[1], [1], [0], [0], [0, 0, 1, 0], [], []>} : vector<16x64xbf16>, vector<16x64xbf16>, vector<16x16xf32> -> vector<16x16xf32>
    %cst_32 = arith.constant dense<0xFF800000> : vector<16xf32>
    %63 = vector.multi_reduction <maximumf>, %62, %cst_32 [1] : vector<16x16xf32> to vector<16xf32>
    %64 = vector.shape_cast %63 : vector<16xf32> to vector<16x1xf32>
    %65 = vector.broadcast %64 : vector<16x1xf32> to vector<16x16xf32>
    %66 = arith.subf %62, %65 : vector<16x16xf32>
    %67 = math.exp %66 : vector<16x16xf32>
    %cst_33 = arith.constant dense<0.000000e+00> : vector<16xf32>
    %68 = vector.multi_reduction <add>, %67, %cst_33 [1] : vector<16x16xf32> to vector<16xf32>
    %69 = vector.shape_cast %68 : vector<16xf32> to vector<16x1xf32>
    %70 = tpu.reciprocal %69 {approx = true} : vector<16x1xf32> -> vector<16x1xf32>
    %71 = vector.broadcast %70 : vector<16x1xf32> to vector<16x16xf32>
    %72 = arith.mulf %67, %71 : vector<16x16xf32>
    %73 = arith.truncf %72 : vector<16x16xf32> to vector<16x16xbf16>
    %74 = vector.extract_strided_slice %59 {offsets = [0, 0], sizes = [16, 64], strides = [1, 1]} : vector<16x128xbf16> to vector<16x64xbf16>
    %cst_34 = arith.constant dense<0.000000e+00> : vector<16x64xf32>
    %75 = tpu.matmul %73, %74, %cst_34 {dimension_numbers = #tpu.dot_dimension_numbers<[1], [0], [0], [1], [0, 0, 1, 1], [], []>} : vector<16x16xbf16>, vector<16x64xbf16>, vector<16x64xf32> -> vector<16x64xf32>
    %76 = arith.truncf %75 : vector<16x64xf32> to vector<16x64xbf16>
    %c0_35 = arith.constant 0 : index
    %c0_36 = arith.constant 0 : index
    %77 = vector.load %arg12[%c0_35, %c0_36] : memref<16x128xbf16, #tpu.memory_space<vmem>>, vector<16x64xbf16>
    tpu.vector_store %arg12[%c0_35, %c0_36], %76 {strides = array<i32>} : memref<16x128xbf16, #tpu.memory_space<vmem>>, vector<16x64xbf16>,
    %78 = vector.extract_strided_slice %51 {offsets = [0, 64], sizes = [16, 64], strides = [1, 1]} : vector<16x128xbf16> to vector<16x64xbf16>
    %79 = vector.extract_strided_slice %55 {offsets = [0, 64], sizes = [16, 64], strides = [1, 1]} : vector<16x128xbf16> to vector<16x64xbf16>
    %cst_37 = arith.constant dense<0.000000e+00> : vector<16x16xf32>
    %80 = tpu.matmul %78, %79, %cst_37 {dimension_numbers = #tpu.dot_dimension_numbers<[1], [1], [0], [0], [0, 0, 1, 0], [], []>} : vector<16x64xbf16>, vector<16x64xbf16>, vector<16x16xf32> -> vector<16x16xf32>
    %cst_38 = arith.constant dense<0xFF800000> : vector<16xf32>
    %81 = vector.multi_reduction <maximumf>, %80, %cst_38 [1] : vector<16x16xf32> to vector<16xf32>
    %82 = vector.shape_cast %81 : vector<16xf32> to vector<16x1xf32>
    %83 = vector.broadcast %82 : vector<16x1xf32> to vector<16x16xf32>
    %84 = arith.subf %80, %83 : vector<16x16xf32>
    %85 = math.exp %84 : vector<16x16xf32>
    %cst_39 = arith.constant dense<0.000000e+00> : vector<16xf32>
    %86 = vector.multi_reduction <add>, %85, %cst_39 [1] : vector<16x16xf32> to vector<16xf32>
    %87 = vector.shape_cast %86 : vector<16xf32> to vector<16x1xf32>
    %88 = tpu.reciprocal %87 {approx = true} : vector<16x1xf32> -> vector<16x1xf32>
    %89 = vector.broadcast %88 : vector<16x1xf32> to vector<16x16xf32>
    %90 = arith.mulf %85, %89 : vector<16x16xf32>
    %91 = arith.truncf %90 : vector<16x16xf32> to vector<16x16xbf16>
    %92 = vector.extract_strided_slice %59 {offsets = [0, 64], sizes = [16, 64], strides = [1, 1]} : vector<16x128xbf16> to vector<16x64xbf16>
    %cst_40 = arith.constant dense<0.000000e+00> : vector<16x64xf32>
    %93 = tpu.matmul %91, %92, %cst_40 {dimension_numbers = #tpu.dot_dimension_numbers<[1], [0], [0], [1], [0, 0, 1, 1], [], []>} : vector<16x16xbf16>, vector<16x64xbf16>, vector<16x64xf32> -> vector<16x64xf32>
    %94 = arith.truncf %93 : vector<16x64xf32> to vector<16x64xbf16>
    %c0_41 = arith.constant 0 : index
    %c64 = arith.constant 64 : index
    %95 = vector.load %arg12[%c0_41, %c64] : memref<16x128xbf16, #tpu.memory_space<vmem>>, vector<16x64xbf16>
    tpu.vector_store %arg12[%c0_41, %c64], %94 {strides = array<i32>} : memref<16x128xbf16, #tpu.memory_space<vmem>>, vector<16x64xbf16>,
    %c0_42 = arith.constant 0 : index
    %c0_43 = arith.constant 0 : index
    %96 = vector.load %arg10[%c0_42, %c0_43] : memref<1x128xf32, #tpu.memory_space<vmem>>, vector<1x128xf32>
    %97 = vector.broadcast %96 : vector<1x128xf32> to vector<16x128xf32>
    %98 = arith.addf %1, %97 : vector<16x128xf32>
    %c0_44 = arith.constant 0 : index
    %c0_45 = arith.constant 0 : index
    %99 = vector.load %arg12[%c0_44, %c0_45] : memref<16x128xbf16, #tpu.memory_space<vmem>>, vector<16x128xbf16>
    %c0_46 = arith.constant 0 : index
    %c0_47 = arith.constant 0 : index
    %100 = vector.load %arg9[%c0_46, %c0_47] : memref<128x128xbf16, #tpu.memory_space<vmem>>, vector<128x128xbf16>
    %cst_48 = arith.constant dense<0.000000e+00> : vector<16x128xf32>
    %101 = tpu.matmul %99, %100, %cst_48 {dimension_numbers = #tpu.dot_dimension_numbers<[1], [0], [0], [1], [0, 0, 1, 1], [], []>} : vector<16x128xbf16>, vector<128x128xbf16>, vector<16x128xf32> -> vector<16x128xf32>
    %102 = arith.addf %98, %101 : vector<16x128xf32>
    %c0_49 = arith.constant 0 : index
    %c0_50 = arith.constant 0 : index
    %c0_51 = arith.constant 0 : index
    %103 = vector.load %arg11[%c0_49, %c0_50, %c0_51] : memref<1x16x128xf32, #tpu.memory_space<vmem>>, vector<1x16x128xf32>
    %104 = vector.shape_cast %103 : vector<1x16x128xf32> to vector<16x128xf32>
    %105 = vector.shape_cast %102 : vector<16x128xf32> to vector<1x16x128xf32>
    tpu.vector_store %arg11[%c0_49, %c0_50, %c0_51], %105 {strides = array<i32>} : memref<1x16x128xf32, #tpu.memory_space<vmem>>, vector<1x16x128xf32>,
    return
  }
  func.func @transform_0(%arg0: i32, %arg1: i32) -> (i32, i32, i32) {
    %c0_i32 = arith.constant 0 : i32
    %c0_i32_0 = arith.constant 0 : i32
    return %arg0, %arg1, %c0_i32 : i32, i32, i32
  }
  func.func @transform_1(%arg0: i32, %arg1: i32) -> (i32, i32, i32) {
    %c0_i32 = arith.constant 0 : i32
    %c0_i32_0 = arith.constant 0 : i32
    %c0_i32_1 = arith.constant 0 : i32
    return %arg0, %c0_i32, %c0_i32_0 : i32, i32, i32
  }
  func.func @transform_2(%arg0: i32, %arg1: i32) -> (i32, i32) {
    %c0_i32 = arith.constant 0 : i32
    %c0_i32_0 = arith.constant 0 : i32
    %c0_i32_1 = arith.constant 0 : i32
    return %c0_i32, %c0_i32_0 : i32, i32
  }
  func.func @transform_3(%arg0: i32, %arg1: i32) -> (i32, i32) {
    %c0_i32 = arith.constant 0 : i32
    %c0_i32_0 = arith.constant 0 : i32
    %c0_i32_1 = arith.constant 0 : i32
    return %c0_i32, %c0_i32_0 : i32, i32
  }
  func.func @transform_4(%arg0: i32, %arg1: i32) -> (i32, i32) {
    %c0_i32 = arith.constant 0 : i32
    %c0_i32_0 = arith.constant 0 : i32
    %c0_i32_1 = arith.constant 0 : i32
    return %c0_i32, %c0_i32_0 : i32, i32
  }
  func.func @transform_5(%arg0: i32, %arg1: i32) -> (i32, i32) {
    %c0_i32 = arith.constant 0 : i32
    %c0_i32_0 = arith.constant 0 : i32
    %c0_i32_1 = arith.constant 0 : i32
    return %c0_i32, %c0_i32_0 : i32, i32
  }
  func.func @transform_6(%arg0: i32, %arg1: i32) -> (i32, i32) {
    %c0_i32 = arith.constant 0 : i32
    %c0_i32_0 = arith.constant 0 : i32
    %c0_i32_1 = arith.constant 0 : i32
    return %c0_i32, %c0_i32_0 : i32, i32
  }
  func.func @transform_7(%arg0: i32, %arg1: i32) -> (i32, i32) {
    %c0_i32 = arith.constant 0 : i32
    %c0_i32_0 = arith.constant 0 : i32
    %c0_i32_1 = arith.constant 0 : i32
    return %c0_i32, %c0_i32_0 : i32, i32
  }
  func.func @transform_8(%arg0: i32, %arg1: i32) -> (i32, i32) {
    %c0_i32 = arith.constant 0 : i32
    %c0_i32_0 = arith.constant 0 : i32
    %c0_i32_1 = arith.constant 0 : i32
    return %c0_i32, %c0_i32_0 : i32, i32
  }
  func.func @transform_9(%arg0: i32, %arg1: i32) -> (i32, i32, i32) {
    %c0_i32 = arith.constant 0 : i32
    %c0_i32_0 = arith.constant 0 : i32
    return %arg0, %arg1, %c0_i32 : i32, i32, i32
  }
}

module attributes {stable_mosaic.version = 11 : i64} {
  func.func @_ff_kernel(%arg0: i32, %arg1: i32, %arg2: memref<32x128xf32, #tpu.memory_space<vmem>>, %arg3: memref<1x128xf32, #tpu.memory_space<vmem>>, %arg4: memref<1x128xf32, #tpu.memory_space<vmem>>, %arg5: memref<128x512xbf16, #tpu.memory_space<vmem>>, %arg6: memref<1x512xf32, #tpu.memory_space<vmem>>, %arg7: memref<128x512xbf16, #tpu.memory_space<vmem>>, %arg8: memref<1x512xf32, #tpu.memory_space<vmem>>, %arg9: memref<512x128xbf16, #tpu.memory_space<vmem>>, %arg10: memref<1x128xf32, #tpu.memory_space<vmem>>, %arg11: memref<32x128xf32, #tpu.memory_space<vmem>>, %arg12: memref<32x128xbf16, #tpu.memory_space<vmem>>, %arg13: memref<32x128xf32, #tpu.memory_space<vmem>>) attributes {dimension_semantics = [#tpu.dimension_semantics<parallel>, #tpu.dimension_semantics<arbitrary>], iteration_bounds = array<i64: 1, 1>, scalar_prefetch = 0 : i64, scratch_operands = 2 : i64, tpu.core_type = #tpu.core_type<tc>, window_params = [{transform_indices = @transform_0, window_bounds = array<i64: 32, 128>}, {pipeline_mode = #tpu.pipeline_mode<synchronous>, transform_indices = @transform_1, window_bounds = array<i64: 1, 128>}, {pipeline_mode = #tpu.pipeline_mode<synchronous>, transform_indices = @transform_2, window_bounds = array<i64: 1, 128>}, {transform_indices = @transform_3, window_bounds = array<i64: 128, 512>}, {transform_indices = @transform_4, window_bounds = array<i64: 1, 512>}, {transform_indices = @transform_5, window_bounds = array<i64: 128, 512>}, {transform_indices = @transform_6, window_bounds = array<i64: 1, 512>}, {transform_indices = @transform_7, window_bounds = array<i64: 512, 128>}, {pipeline_mode = #tpu.pipeline_mode<synchronous>, transform_indices = @transform_8, window_bounds = array<i64: 1, 128>}, {transform_indices = @transform_9, window_bounds = array<i64: 32, 128>}]} {
    %c0_i32 = arith.constant 0 : i32
    %0 = arith.cmpi eq, %arg1, %c0_i32 : i32
    %1 = arith.extui %0 : i1 to i32
    %c0_i32_0 = arith.constant 0 : i32
    %2 = arith.cmpi ne, %1, %c0_i32_0 : i32
    scf.if %2 {
      %c0_24 = arith.constant 0 : index
      %c0_25 = arith.constant 0 : index
      %37 = vector.load %arg2[%c0_24, %c0_25] : memref<32x128xf32, #tpu.memory_space<vmem>>, vector<32x128xf32>
      %c0_26 = arith.constant 0 : index
      %c0_27 = arith.constant 0 : index
      %38 = vector.load %arg3[%c0_26, %c0_27] : memref<1x128xf32, #tpu.memory_space<vmem>>, vector<1x128xf32>
      %c0_28 = arith.constant 0 : index
      %c0_29 = arith.constant 0 : index
      %39 = vector.load %arg4[%c0_28, %c0_29] : memref<1x128xf32, #tpu.memory_space<vmem>>, vector<1x128xf32>
      %cst_30 = arith.constant dense<0.000000e+00> : vector<32xf32>
      %40 = vector.multi_reduction <add>, %37, %cst_30 [1] : vector<32x128xf32> to vector<32xf32>
      %41 = vector.shape_cast %40 : vector<32xf32> to vector<32x1xf32>
      %cst_31 = arith.constant 1.280000e+02 : f32
      %42 = vector.broadcast %cst_31 : f32 to vector<32x1xf32>
      %43 = arith.divf %41, %42 : vector<32x1xf32>
      %44 = vector.broadcast %43 : vector<32x1xf32> to vector<32x128xf32>
      %45 = arith.subf %37, %44 : vector<32x128xf32>
      %46 = arith.mulf %45, %45 : vector<32x128xf32>
      %cst_32 = arith.constant dense<0.000000e+00> : vector<32xf32>
      %47 = vector.multi_reduction <add>, %46, %cst_32 [1] : vector<32x128xf32> to vector<32xf32>
      %48 = vector.shape_cast %47 : vector<32xf32> to vector<32x1xf32>
      %cst_33 = arith.constant 1.280000e+02 : f32
      %49 = vector.broadcast %cst_33 : f32 to vector<32x1xf32>
      %50 = arith.divf %48, %49 : vector<32x1xf32>
      %cst_34 = arith.constant 9.99999974E-6 : f32
      %51 = vector.broadcast %cst_34 : f32 to vector<32x1xf32>
      %52 = arith.addf %50, %51 : vector<32x1xf32>
      %53 = math.rsqrt %52 : vector<32x1xf32>
      %54 = vector.broadcast %53 : vector<32x1xf32> to vector<32x128xf32>
      %55 = arith.mulf %45, %54 : vector<32x128xf32>
      %56 = vector.broadcast %38 : vector<1x128xf32> to vector<32x128xf32>
      %57 = arith.mulf %55, %56 : vector<32x128xf32>
      %58 = vector.broadcast %39 : vector<1x128xf32> to vector<32x128xf32>
      %59 = arith.addf %57, %58 : vector<32x128xf32>
      %60 = arith.truncf %59 : vector<32x128xf32> to vector<32x128xbf16>
      %c0_35 = arith.constant 0 : index
      %c0_36 = arith.constant 0 : index
      %61 = vector.load %arg12[%c0_35, %c0_36] : memref<32x128xbf16, #tpu.memory_space<vmem>>, vector<32x128xbf16>
      tpu.vector_store %arg12[%c0_35, %c0_36], %60 {strides = array<i32>} : memref<32x128xbf16, #tpu.memory_space<vmem>>, vector<32x128xbf16>,
      %cst_37 = arith.constant 0.000000e+00 : f32
      %62 = vector.broadcast %cst_37 : f32 to vector<32x128xf32>
      %c0_38 = arith.constant 0 : index
      %c0_39 = arith.constant 0 : index
      %63 = vector.load %arg13[%c0_38, %c0_39] : memref<32x128xf32, #tpu.memory_space<vmem>>, vector<32x128xf32>
      tpu.vector_store %arg13[%c0_38, %c0_39], %62 {strides = array<i32>} : memref<32x128xf32, #tpu.memory_space<vmem>>, vector<32x128xf32>,
    } else {
    }
    %c0 = arith.constant 0 : index
    %c0_1 = arith.constant 0 : index
    %3 = vector.load %arg12[%c0, %c0_1] : memref<32x128xbf16, #tpu.memory_space<vmem>>, vector<32x128xbf16>
    %c0_2 = arith.constant 0 : index
    %c0_3 = arith.constant 0 : index
    %4 = vector.load %arg5[%c0_2, %c0_3] : memref<128x512xbf16, #tpu.memory_space<vmem>>, vector<128x512xbf16>
    %cst = arith.constant dense<0.000000e+00> : vector<32x512xf32>
    %5 = tpu.matmul %3, %4, %cst {dimension_numbers = #tpu.dot_dimension_numbers<[1], [0], [0], [1], [0, 0, 1, 1], [], []>} : vector<32x128xbf16>, vector<128x512xbf16>, vector<32x512xf32> -> vector<32x512xf32>
    %c0_4 = arith.constant 0 : index
    %c0_5 = arith.constant 0 : index
    %6 = vector.load %arg6[%c0_4, %c0_5] : memref<1x512xf32, #tpu.memory_space<vmem>>, vector<1x512xf32>
    %7 = vector.broadcast %6 : vector<1x512xf32> to vector<32x512xf32>
    %8 = arith.addf %5, %7 : vector<32x512xf32>
    %c0_6 = arith.constant 0 : index
    %c0_7 = arith.constant 0 : index
    %9 = vector.load %arg7[%c0_6, %c0_7] : memref<128x512xbf16, #tpu.memory_space<vmem>>, vector<128x512xbf16>
    %cst_8 = arith.constant dense<0.000000e+00> : vector<32x512xf32>
    %10 = tpu.matmul %3, %9, %cst_8 {dimension_numbers = #tpu.dot_dimension_numbers<[1], [0], [0], [1], [0, 0, 1, 1], [], []>} : vector<32x128xbf16>, vector<128x512xbf16>, vector<32x512xf32> -> vector<32x512xf32>
    %c0_9 = arith.constant 0 : index
    %c0_10 = arith.constant 0 : index
    %11 = vector.load %arg8[%c0_9, %c0_10] : memref<1x512xf32, #tpu.memory_space<vmem>>, vector<1x512xf32>
    %12 = vector.broadcast %11 : vector<1x512xf32> to vector<32x512xf32>
    %13 = arith.addf %10, %12 : vector<32x512xf32>
    %cst_11 = arith.constant 5.000000e-01 : f32
    %14 = vector.broadcast %cst_11 : f32 to vector<32x512xf32>
    %15 = arith.mulf %14, %13 : vector<32x512xf32>
    %cst_12 = arith.constant 4.471500e-02 : f32
    %16 = vector.broadcast %cst_12 : f32 to vector<32x512xf32>
    %17 = arith.mulf %16, %13 : vector<32x512xf32>
    %18 = arith.mulf %17, %13 : vector<32x512xf32>
    %19 = arith.mulf %18, %13 : vector<32x512xf32>
    %20 = arith.addf %13, %19 : vector<32x512xf32>
    %cst_13 = arith.constant 0.797884583 : f32
    %21 = vector.broadcast %cst_13 : f32 to vector<32x512xf32>
    %22 = arith.mulf %21, %20 : vector<32x512xf32>
    %23 = math.tanh %22 : vector<32x512xf32>
    %cst_14 = arith.constant 1.000000e+00 : f32
    %24 = vector.broadcast %cst_14 : f32 to vector<32x512xf32>
    %25 = arith.addf %24, %23 : vector<32x512xf32>
    %26 = arith.mulf %15, %25 : vector<32x512xf32>
    %27 = arith.mulf %8, %26 : vector<32x512xf32>
    %28 = arith.truncf %27 : vector<32x512xf32> to vector<32x512xbf16>
    %c0_15 = arith.constant 0 : index
    %c0_16 = arith.constant 0 : index
    %29 = vector.load %arg13[%c0_15, %c0_16] : memref<32x128xf32, #tpu.memory_space<vmem>>, vector<32x128xf32>
    %c0_17 = arith.constant 0 : index
    %c0_18 = arith.constant 0 : index
    %30 = vector.load %arg9[%c0_17, %c0_18] : memref<512x128xbf16, #tpu.memory_space<vmem>>, vector<512x128xbf16>
    %cst_19 = arith.constant dense<0.000000e+00> : vector<32x128xf32>
    %31 = tpu.matmul %28, %30, %cst_19 {dimension_numbers = #tpu.dot_dimension_numbers<[1], [0], [0], [1], [0, 0, 1, 1], [], []>} : vector<32x512xbf16>, vector<512x128xbf16>, vector<32x128xf32> -> vector<32x128xf32>
    %32 = arith.addf %29, %31 : vector<32x128xf32>
    %c0_20 = arith.constant 0 : index
    %c0_21 = arith.constant 0 : index
    %33 = vector.load %arg13[%c0_20, %c0_21] : memref<32x128xf32, #tpu.memory_space<vmem>>, vector<32x128xf32>
    tpu.vector_store %arg13[%c0_20, %c0_21], %32 {strides = array<i32>} : memref<32x128xf32, #tpu.memory_space<vmem>>, vector<32x128xf32>,
    %c0_i32_22 = arith.constant 0 : i32
    %34 = arith.cmpi eq, %arg1, %c0_i32_22 : i32
    %35 = arith.extui %34 : i1 to i32
    %c0_i32_23 = arith.constant 0 : i32
    %36 = arith.cmpi ne, %35, %c0_i32_23 : i32
    scf.if %36 {
      %c0_24 = arith.constant 0 : index
      %c0_25 = arith.constant 0 : index
      %37 = vector.load %arg13[%c0_24, %c0_25] : memref<32x128xf32, #tpu.memory_space<vmem>>, vector<32x128xf32>
      %c0_26 = arith.constant 0 : index
      %c0_27 = arith.constant 0 : index
      %38 = vector.load %arg10[%c0_26, %c0_27] : memref<1x128xf32, #tpu.memory_space<vmem>>, vector<1x128xf32>
      %39 = vector.broadcast %38 : vector<1x128xf32> to vector<32x128xf32>
      %40 = arith.addf %37, %39 : vector<32x128xf32>
      %c0_28 = arith.constant 0 : index
      %c0_29 = arith.constant 0 : index
      %41 = vector.load %arg2[%c0_28, %c0_29] : memref<32x128xf32, #tpu.memory_space<vmem>>, vector<32x128xf32>
      %42 = arith.addf %40, %41 : vector<32x128xf32>
      %c0_30 = arith.constant 0 : index
      %c0_31 = arith.constant 0 : index
      %43 = vector.load %arg11[%c0_30, %c0_31] : memref<32x128xf32, #tpu.memory_space<vmem>>, vector<32x128xf32>
      tpu.vector_store %arg11[%c0_30, %c0_31], %42 {strides = array<i32>} : memref<32x128xf32, #tpu.memory_space<vmem>>, vector<32x128xf32>,
    } else {
    }
    return
  }
  func.func @transform_0(%arg0: i32, %arg1: i32) -> (i32, i32) {
    %c0_i32 = arith.constant 0 : i32
    %c0_i32_0 = arith.constant 0 : i32
    return %arg0, %c0_i32 : i32, i32
  }
  func.func @transform_1(%arg0: i32, %arg1: i32) -> (i32, i32) {
    %c0_i32 = arith.constant 0 : i32
    %c0_i32_0 = arith.constant 0 : i32
    %c0_i32_1 = arith.constant 0 : i32
    return %c0_i32, %c0_i32_0 : i32, i32
  }
  func.func @transform_2(%arg0: i32, %arg1: i32) -> (i32, i32) {
    %c0_i32 = arith.constant 0 : i32
    %c0_i32_0 = arith.constant 0 : i32
    %c0_i32_1 = arith.constant 0 : i32
    return %c0_i32, %c0_i32_0 : i32, i32
  }
  func.func @transform_3(%arg0: i32, %arg1: i32) -> (i32, i32) {
    %c0_i32 = arith.constant 0 : i32
    %c0_i32_0 = arith.constant 0 : i32
    return %c0_i32, %arg1 : i32, i32
  }
  func.func @transform_4(%arg0: i32, %arg1: i32) -> (i32, i32) {
    %c0_i32 = arith.constant 0 : i32
    %c0_i32_0 = arith.constant 0 : i32
    return %c0_i32, %arg1 : i32, i32
  }
  func.func @transform_5(%arg0: i32, %arg1: i32) -> (i32, i32) {
    %c0_i32 = arith.constant 0 : i32
    %c0_i32_0 = arith.constant 0 : i32
    return %c0_i32, %arg1 : i32, i32
  }
  func.func @transform_6(%arg0: i32, %arg1: i32) -> (i32, i32) {
    %c0_i32 = arith.constant 0 : i32
    %c0_i32_0 = arith.constant 0 : i32
    return %c0_i32, %arg1 : i32, i32
  }
  func.func @transform_7(%arg0: i32, %arg1: i32) -> (i32, i32) {
    %c0_i32 = arith.constant 0 : i32
    %c0_i32_0 = arith.constant 0 : i32
    return %arg1, %c0_i32 : i32, i32
  }
  func.func @transform_8(%arg0: i32, %arg1: i32) -> (i32, i32) {
    %c0_i32 = arith.constant 0 : i32
    %c0_i32_0 = arith.constant 0 : i32
    %c0_i32_1 = arith.constant 0 : i32
    return %c0_i32, %c0_i32_0 : i32, i32
  }
  func.func @transform_9(%arg0: i32, %arg1: i32) -> (i32, i32) {
    %c0_i32 = arith.constant 0 : i32
    %c0_i32_0 = arith.constant 0 : i32
    return %arg0, %c0_i32 : i32, i32
  }
}

module attributes {stable_mosaic.version = 11 : i64} {
  func.func @_latent_kernel(%arg0: i32, %arg1: memref<32x128xf32, #tpu.memory_space<vmem>>, %arg2: memref<128x32xbf16, #tpu.memory_space<vmem>>, %arg3: memref<1x32xf32, #tpu.memory_space<vmem>>, %arg4: memref<32x128xbf16, #tpu.memory_space<vmem>>, %arg5: memref<1x128xf32, #tpu.memory_space<vmem>>, %arg6: memref<32x128xf32, #tpu.memory_space<vmem>>) attributes {dimension_semantics = [#tpu.dimension_semantics<parallel>], iteration_bounds = array<i64: 1>, scalar_prefetch = 0 : i64, scratch_operands = 0 : i64, tpu.core_type = #tpu.core_type<tc>, window_params = [{transform_indices = @transform_0, window_bounds = array<i64: 32, 128>}, {pipeline_mode = #tpu.pipeline_mode<synchronous>, transform_indices = @transform_1, window_bounds = array<i64: 128, 32>}, {pipeline_mode = #tpu.pipeline_mode<synchronous>, transform_indices = @transform_2, window_bounds = array<i64: 1, 32>}, {pipeline_mode = #tpu.pipeline_mode<synchronous>, transform_indices = @transform_3, window_bounds = array<i64: 32, 128>}, {pipeline_mode = #tpu.pipeline_mode<synchronous>, transform_indices = @transform_4, window_bounds = array<i64: 1, 128>}, {transform_indices = @transform_5, window_bounds = array<i64: 32, 128>}]} {
    %c0 = arith.constant 0 : index
    %c0_0 = arith.constant 0 : index
    %0 = vector.load %arg1[%c0, %c0_0] : memref<32x128xf32, #tpu.memory_space<vmem>>, vector<32x128xf32>
    %c0_1 = arith.constant 0 : index
    %c0_2 = arith.constant 0 : index
    %1 = vector.load %arg2[%c0_1, %c0_2] : memref<128x32xbf16, #tpu.memory_space<vmem>>, vector<128x32xbf16>
    %2 = arith.truncf %0 : vector<32x128xf32> to vector<32x128xbf16>
    %cst = arith.constant dense<0.000000e+00> : vector<32x32xf32>
    %3 = tpu.matmul %2, %1, %cst {dimension_numbers = #tpu.dot_dimension_numbers<[1], [0], [0], [1], [0, 0, 1, 1], [], []>} : vector<32x128xbf16>, vector<128x32xbf16>, vector<32x32xf32> -> vector<32x32xf32>
    %c0_3 = arith.constant 0 : index
    %c0_4 = arith.constant 0 : index
    %4 = vector.load %arg3[%c0_3, %c0_4] : memref<1x32xf32, #tpu.memory_space<vmem>>, vector<1x32xf32>
    %5 = vector.broadcast %4 : vector<1x32xf32> to vector<32x32xf32>
    %6 = arith.addf %3, %5 : vector<32x32xf32>
    %c0_5 = arith.constant 0 : index
    %c0_6 = arith.constant 0 : index
    %7 = vector.load %arg4[%c0_5, %c0_6] : memref<32x128xbf16, #tpu.memory_space<vmem>>, vector<32x128xbf16>
    %8 = arith.truncf %6 : vector<32x32xf32> to vector<32x32xbf16>
    %cst_7 = arith.constant dense<0.000000e+00> : vector<32x128xf32>
    %9 = tpu.matmul %8, %7, %cst_7 {dimension_numbers = #tpu.dot_dimension_numbers<[1], [0], [0], [1], [0, 0, 1, 1], [], []>} : vector<32x32xbf16>, vector<32x128xbf16>, vector<32x128xf32> -> vector<32x128xf32>
    %c0_8 = arith.constant 0 : index
    %c0_9 = arith.constant 0 : index
    %10 = vector.load %arg5[%c0_8, %c0_9] : memref<1x128xf32, #tpu.memory_space<vmem>>, vector<1x128xf32>
    %11 = vector.broadcast %10 : vector<1x128xf32> to vector<32x128xf32>
    %12 = arith.addf %9, %11 : vector<32x128xf32>
    %c0_10 = arith.constant 0 : index
    %c0_11 = arith.constant 0 : index
    %13 = vector.load %arg6[%c0_10, %c0_11] : memref<32x128xf32, #tpu.memory_space<vmem>>, vector<32x128xf32>
    tpu.vector_store %arg6[%c0_10, %c0_11], %12 {strides = array<i32>} : memref<32x128xf32, #tpu.memory_space<vmem>>, vector<32x128xf32>,
    return
  }
  func.func @transform_0(%arg0: i32) -> (i32, i32) {
    %c0_i32 = arith.constant 0 : i32
    %c0_i32_0 = arith.constant 0 : i32
    return %arg0, %c0_i32 : i32, i32
  }
  func.func @transform_1(%arg0: i32) -> (i32, i32) {
    %c0_i32 = arith.constant 0 : i32
    %c0_i32_0 = arith.constant 0 : i32
    %c0_i32_1 = arith.constant 0 : i32
    return %c0_i32, %c0_i32_0 : i32, i32
  }
  func.func @transform_2(%arg0: i32) -> (i32, i32) {
    %c0_i32 = arith.constant 0 : i32
    %c0_i32_0 = arith.constant 0 : i32
    %c0_i32_1 = arith.constant 0 : i32
    return %c0_i32, %c0_i32_0 : i32, i32
  }
  func.func @transform_3(%arg0: i32) -> (i32, i32) {
    %c0_i32 = arith.constant 0 : i32
    %c0_i32_0 = arith.constant 0 : i32
    %c0_i32_1 = arith.constant 0 : i32
    return %c0_i32, %c0_i32_0 : i32, i32
  }
  func.func @transform_4(%arg0: i32) -> (i32, i32) {
    %c0_i32 = arith.constant 0 : i32
    %c0_i32_0 = arith.constant 0 : i32
    %c0_i32_1 = arith.constant 0 : i32
    return %c0_i32, %c0_i32_0 : i32, i32
  }
  func.func @transform_5(%arg0: i32) -> (i32, i32) {
    %c0_i32 = arith.constant 0 : i32
    %c0_i32_0 = arith.constant 0 : i32
    return %arg0, %c0_i32 : i32, i32
  }
}

module attributes {stable_mosaic.version = 11 : i64} {
  func.func @_attn_kernel(%arg0: i32, %arg1: i32, %arg2: memref<1x16x128xf32, #tpu.memory_space<vmem>>, %arg3: memref<1x16x128xf32, #tpu.memory_space<vmem>>, %arg4: memref<1x128xf32, #tpu.memory_space<vmem>>, %arg5: memref<1x128xf32, #tpu.memory_space<vmem>>, %arg6: memref<128x128xbf16, #tpu.memory_space<vmem>>, %arg7: memref<128x128xbf16, #tpu.memory_space<vmem>>, %arg8: memref<128x128xbf16, #tpu.memory_space<vmem>>, %arg9: memref<128x128xbf16, #tpu.memory_space<vmem>>, %arg10: memref<1x128xf32, #tpu.memory_space<vmem>>, %arg11: memref<1x16x128xf32, #tpu.memory_space<vmem>>, %arg12: memref<16x128xbf16, #tpu.memory_space<vmem>>) attributes {dimension_semantics = [#tpu.dimension_semantics<parallel>, #tpu.dimension_semantics<parallel>], iteration_bounds = array<i64: 2, 1>, scalar_prefetch = 0 : i64, scratch_operands = 1 : i64, tpu.core_type = #tpu.core_type<tc>, window_params = [{transform_indices = @transform_0, window_bounds = array<i64: 1, 16, 128>}, {transform_indices = @transform_1, window_bounds = array<i64: 1, 16, 128>}, {pipeline_mode = #tpu.pipeline_mode<synchronous>, transform_indices = @transform_2, window_bounds = array<i64: 1, 128>}, {pipeline_mode = #tpu.pipeline_mode<synchronous>, transform_indices = @transform_3, window_bounds = array<i64: 1, 128>}, {pipeline_mode = #tpu.pipeline_mode<synchronous>, transform_indices = @transform_4, window_bounds = array<i64: 128, 128>}, {pipeline_mode = #tpu.pipeline_mode<synchronous>, transform_indices = @transform_5, window_bounds = array<i64: 128, 128>}, {pipeline_mode = #tpu.pipeline_mode<synchronous>, transform_indices = @transform_6, window_bounds = array<i64: 128, 128>}, {pipeline_mode = #tpu.pipeline_mode<synchronous>, transform_indices = @transform_7, window_bounds = array<i64: 128, 128>}, {pipeline_mode = #tpu.pipeline_mode<synchronous>, transform_indices = @transform_8, window_bounds = array<i64: 1, 128>}, {transform_indices = @transform_9, window_bounds = array<i64: 1, 16, 128>}]} {
    %c0 = arith.constant 0 : index
    %c0_0 = arith.constant 0 : index
    %c0_1 = arith.constant 0 : index
    %0 = vector.load %arg2[%c0, %c0_0, %c0_1] : memref<1x16x128xf32, #tpu.memory_space<vmem>>, vector<1x16x128xf32>
    %1 = vector.shape_cast %0 : vector<1x16x128xf32> to vector<16x128xf32>
    %c0_2 = arith.constant 0 : index
    %c0_3 = arith.constant 0 : index
    %2 = vector.load %arg4[%c0_2, %c0_3] : memref<1x128xf32, #tpu.memory_space<vmem>>, vector<1x128xf32>
    %c0_4 = arith.constant 0 : index
    %c0_5 = arith.constant 0 : index
    %3 = vector.load %arg5[%c0_4, %c0_5] : memref<1x128xf32, #tpu.memory_space<vmem>>, vector<1x128xf32>
    %cst = arith.constant dense<0.000000e+00> : vector<16xf32>
    %4 = vector.multi_reduction <add>, %1, %cst [1] : vector<16x128xf32> to vector<16xf32>
    %5 = vector.shape_cast %4 : vector<16xf32> to vector<16x1xf32>
    %cst_6 = arith.constant 1.280000e+02 : f32
    %6 = vector.broadcast %cst_6 : f32 to vector<16x1xf32>
    %7 = arith.divf %5, %6 : vector<16x1xf32>
    %8 = vector.broadcast %7 : vector<16x1xf32> to vector<16x128xf32>
    %9 = arith.subf %1, %8 : vector<16x128xf32>
    %10 = arith.mulf %9, %9 : vector<16x128xf32>
    %cst_7 = arith.constant dense<0.000000e+00> : vector<16xf32>
    %11 = vector.multi_reduction <add>, %10, %cst_7 [1] : vector<16x128xf32> to vector<16xf32>
    %12 = vector.shape_cast %11 : vector<16xf32> to vector<16x1xf32>
    %cst_8 = arith.constant 1.280000e+02 : f32
    %13 = vector.broadcast %cst_8 : f32 to vector<16x1xf32>
    %14 = arith.divf %12, %13 : vector<16x1xf32>
    %cst_9 = arith.constant 9.99999974E-6 : f32
    %15 = vector.broadcast %cst_9 : f32 to vector<16x1xf32>
    %16 = arith.addf %14, %15 : vector<16x1xf32>
    %17 = math.rsqrt %16 : vector<16x1xf32>
    %18 = vector.broadcast %17 : vector<16x1xf32> to vector<16x128xf32>
    %19 = arith.mulf %9, %18 : vector<16x128xf32>
    %20 = vector.broadcast %2 : vector<1x128xf32> to vector<16x128xf32>
    %21 = arith.mulf %19, %20 : vector<16x128xf32>
    %22 = vector.broadcast %3 : vector<1x128xf32> to vector<16x128xf32>
    %23 = arith.addf %21, %22 : vector<16x128xf32>
    %c0_10 = arith.constant 0 : index
    %c0_11 = arith.constant 0 : index
    %c0_12 = arith.constant 0 : index
    %24 = vector.load %arg3[%c0_10, %c0_11, %c0_12] : memref<1x16x128xf32, #tpu.memory_space<vmem>>, vector<1x16x128xf32>
    %25 = vector.shape_cast %24 : vector<1x16x128xf32> to vector<16x128xf32>
    %c0_13 = arith.constant 0 : index
    %c0_14 = arith.constant 0 : index
    %26 = vector.load %arg6[%c0_13, %c0_14] : memref<128x128xbf16, #tpu.memory_space<vmem>>, vector<128x128xbf16>
    %27 = arith.truncf %23 : vector<16x128xf32> to vector<16x128xbf16>
    %cst_15 = arith.constant dense<0.000000e+00> : vector<16x128xf32>
    %28 = tpu.matmul %27, %26, %cst_15 {dimension_numbers = #tpu.dot_dimension_numbers<[1], [0], [0], [1], [0, 0, 1, 1], [], []>} : vector<16x128xbf16>, vector<128x128xbf16>, vector<16x128xf32> -> vector<16x128xf32>
    %29 = arith.truncf %28 : vector<16x128xf32> to vector<16x128xbf16>
    %c0_16 = arith.constant 0 : index
    %c0_17 = arith.constant 0 : index
    %30 = vector.load %arg7[%c0_16, %c0_17] : memref<128x128xbf16, #tpu.memory_space<vmem>>, vector<128x128xbf16>
    %31 = arith.truncf %25 : vector<16x128xf32> to vector<16x128xbf16>
    %cst_18 = arith.constant dense<0.000000e+00> : vector<16x128xf32>
    %32 = tpu.matmul %31, %30, %cst_18 {dimension_numbers = #tpu.dot_dimension_numbers<[1], [0], [0], [1], [0, 0, 1, 1], [], []>} : vector<16x128xbf16>, vector<128x128xbf16>, vector<16x128xf32> -> vector<16x128xf32>
    %33 = arith.truncf %32 : vector<16x128xf32> to vector<16x128xbf16>
    %c0_19 = arith.constant 0 : index
    %c0_20 = arith.constant 0 : index
    %34 = vector.load %arg8[%c0_19, %c0_20] : memref<128x128xbf16, #tpu.memory_space<vmem>>, vector<128x128xbf16>
    %35 = arith.truncf %25 : vector<16x128xf32> to vector<16x128xbf16>
    %cst_21 = arith.constant dense<0.000000e+00> : vector<16x128xf32>
    %36 = tpu.matmul %35, %34, %cst_21 {dimension_numbers = #tpu.dot_dimension_numbers<[1], [0], [0], [1], [0, 0, 1, 1], [], []>} : vector<16x128xbf16>, vector<128x128xbf16>, vector<16x128xf32> -> vector<16x128xf32>
    %37 = arith.truncf %36 : vector<16x128xf32> to vector<16x128xbf16>
    %38 = vector.extract_strided_slice %29 {offsets = [0, 0], sizes = [16, 64], strides = [1, 1]} : vector<16x128xbf16> to vector<16x64xbf16>
    %39 = vector.extract_strided_slice %33 {offsets = [0, 0], sizes = [16, 64], strides = [1, 1]} : vector<16x128xbf16> to vector<16x64xbf16>
    %cst_22 = arith.constant dense<0.000000e+00> : vector<16x16xf32>
    %40 = tpu.matmul %38, %39, %cst_22 {dimension_numbers = #tpu.dot_dimension_numbers<[1], [1], [0], [0], [0, 0, 1, 0], [], []>} : vector<16x64xbf16>, vector<16x64xbf16>, vector<16x16xf32> -> vector<16x16xf32>
    %cst_23 = arith.constant dense<0xFF800000> : vector<16xf32>
    %41 = vector.multi_reduction <maximumf>, %40, %cst_23 [1] : vector<16x16xf32> to vector<16xf32>
    %42 = vector.shape_cast %41 : vector<16xf32> to vector<16x1xf32>
    %43 = vector.broadcast %42 : vector<16x1xf32> to vector<16x16xf32>
    %44 = arith.subf %40, %43 : vector<16x16xf32>
    %45 = math.exp %44 : vector<16x16xf32>
    %cst_24 = arith.constant dense<0.000000e+00> : vector<16xf32>
    %46 = vector.multi_reduction <add>, %45, %cst_24 [1] : vector<16x16xf32> to vector<16xf32>
    %47 = vector.shape_cast %46 : vector<16xf32> to vector<16x1xf32>
    %48 = tpu.reciprocal %47 {approx = true} : vector<16x1xf32> -> vector<16x1xf32>
    %49 = vector.broadcast %48 : vector<16x1xf32> to vector<16x16xf32>
    %50 = arith.mulf %45, %49 : vector<16x16xf32>
    %51 = arith.truncf %50 : vector<16x16xf32> to vector<16x16xbf16>
    %52 = vector.extract_strided_slice %37 {offsets = [0, 0], sizes = [16, 64], strides = [1, 1]} : vector<16x128xbf16> to vector<16x64xbf16>
    %cst_25 = arith.constant dense<0.000000e+00> : vector<16x64xf32>
    %53 = tpu.matmul %51, %52, %cst_25 {dimension_numbers = #tpu.dot_dimension_numbers<[1], [0], [0], [1], [0, 0, 1, 1], [], []>} : vector<16x16xbf16>, vector<16x64xbf16>, vector<16x64xf32> -> vector<16x64xf32>
    %54 = arith.truncf %53 : vector<16x64xf32> to vector<16x64xbf16>
    %c0_26 = arith.constant 0 : index
    %c0_27 = arith.constant 0 : index
    %55 = vector.load %arg12[%c0_26, %c0_27] : memref<16x128xbf16, #tpu.memory_space<vmem>>, vector<16x64xbf16>
    tpu.vector_store %arg12[%c0_26, %c0_27], %54 {strides = array<i32>} : memref<16x128xbf16, #tpu.memory_space<vmem>>, vector<16x64xbf16>,
    %56 = vector.extract_strided_slice %29 {offsets = [0, 64], sizes = [16, 64], strides = [1, 1]} : vector<16x128xbf16> to vector<16x64xbf16>
    %57 = vector.extract_strided_slice %33 {offsets = [0, 64], sizes = [16, 64], strides = [1, 1]} : vector<16x128xbf16> to vector<16x64xbf16>
    %cst_28 = arith.constant dense<0.000000e+00> : vector<16x16xf32>
    %58 = tpu.matmul %56, %57, %cst_28 {dimension_numbers = #tpu.dot_dimension_numbers<[1], [1], [0], [0], [0, 0, 1, 0], [], []>} : vector<16x64xbf16>, vector<16x64xbf16>, vector<16x16xf32> -> vector<16x16xf32>
    %cst_29 = arith.constant dense<0xFF800000> : vector<16xf32>
    %59 = vector.multi_reduction <maximumf>, %58, %cst_29 [1] : vector<16x16xf32> to vector<16xf32>
    %60 = vector.shape_cast %59 : vector<16xf32> to vector<16x1xf32>
    %61 = vector.broadcast %60 : vector<16x1xf32> to vector<16x16xf32>
    %62 = arith.subf %58, %61 : vector<16x16xf32>
    %63 = math.exp %62 : vector<16x16xf32>
    %cst_30 = arith.constant dense<0.000000e+00> : vector<16xf32>
    %64 = vector.multi_reduction <add>, %63, %cst_30 [1] : vector<16x16xf32> to vector<16xf32>
    %65 = vector.shape_cast %64 : vector<16xf32> to vector<16x1xf32>
    %66 = tpu.reciprocal %65 {approx = true} : vector<16x1xf32> -> vector<16x1xf32>
    %67 = vector.broadcast %66 : vector<16x1xf32> to vector<16x16xf32>
    %68 = arith.mulf %63, %67 : vector<16x16xf32>
    %69 = arith.truncf %68 : vector<16x16xf32> to vector<16x16xbf16>
    %70 = vector.extract_strided_slice %37 {offsets = [0, 64], sizes = [16, 64], strides = [1, 1]} : vector<16x128xbf16> to vector<16x64xbf16>
    %cst_31 = arith.constant dense<0.000000e+00> : vector<16x64xf32>
    %71 = tpu.matmul %69, %70, %cst_31 {dimension_numbers = #tpu.dot_dimension_numbers<[1], [0], [0], [1], [0, 0, 1, 1], [], []>} : vector<16x16xbf16>, vector<16x64xbf16>, vector<16x64xf32> -> vector<16x64xf32>
    %72 = arith.truncf %71 : vector<16x64xf32> to vector<16x64xbf16>
    %c0_32 = arith.constant 0 : index
    %c64 = arith.constant 64 : index
    %73 = vector.load %arg12[%c0_32, %c64] : memref<16x128xbf16, #tpu.memory_space<vmem>>, vector<16x64xbf16>
    tpu.vector_store %arg12[%c0_32, %c64], %72 {strides = array<i32>} : memref<16x128xbf16, #tpu.memory_space<vmem>>, vector<16x64xbf16>,
    %c0_33 = arith.constant 0 : index
    %c0_34 = arith.constant 0 : index
    %74 = vector.load %arg10[%c0_33, %c0_34] : memref<1x128xf32, #tpu.memory_space<vmem>>, vector<1x128xf32>
    %75 = vector.broadcast %74 : vector<1x128xf32> to vector<16x128xf32>
    %76 = arith.addf %1, %75 : vector<16x128xf32>
    %c0_35 = arith.constant 0 : index
    %c0_36 = arith.constant 0 : index
    %77 = vector.load %arg12[%c0_35, %c0_36] : memref<16x128xbf16, #tpu.memory_space<vmem>>, vector<16x128xbf16>
    %c0_37 = arith.constant 0 : index
    %c0_38 = arith.constant 0 : index
    %78 = vector.load %arg9[%c0_37, %c0_38] : memref<128x128xbf16, #tpu.memory_space<vmem>>, vector<128x128xbf16>
    %cst_39 = arith.constant dense<0.000000e+00> : vector<16x128xf32>
    %79 = tpu.matmul %77, %78, %cst_39 {dimension_numbers = #tpu.dot_dimension_numbers<[1], [0], [0], [1], [0, 0, 1, 1], [], []>} : vector<16x128xbf16>, vector<128x128xbf16>, vector<16x128xf32> -> vector<16x128xf32>
    %80 = arith.addf %76, %79 : vector<16x128xf32>
    %c0_40 = arith.constant 0 : index
    %c0_41 = arith.constant 0 : index
    %c0_42 = arith.constant 0 : index
    %81 = vector.load %arg11[%c0_40, %c0_41, %c0_42] : memref<1x16x128xf32, #tpu.memory_space<vmem>>, vector<1x16x128xf32>
    %82 = vector.shape_cast %81 : vector<1x16x128xf32> to vector<16x128xf32>
    %83 = vector.shape_cast %80 : vector<16x128xf32> to vector<1x16x128xf32>
    tpu.vector_store %arg11[%c0_40, %c0_41, %c0_42], %83 {strides = array<i32>} : memref<1x16x128xf32, #tpu.memory_space<vmem>>, vector<1x16x128xf32>,
    return
  }
  func.func @transform_0(%arg0: i32, %arg1: i32) -> (i32, i32, i32) {
    %c0_i32 = arith.constant 0 : i32
    %c0_i32_0 = arith.constant 0 : i32
    return %arg0, %arg1, %c0_i32 : i32, i32, i32
  }
  func.func @transform_1(%arg0: i32, %arg1: i32) -> (i32, i32, i32) {
    %c0_i32 = arith.constant 0 : i32
    %c0_i32_0 = arith.constant 0 : i32
    %c0_i32_1 = arith.constant 0 : i32
    return %arg0, %c0_i32, %c0_i32_0 : i32, i32, i32
  }
  func.func @transform_2(%arg0: i32, %arg1: i32) -> (i32, i32) {
    %c0_i32 = arith.constant 0 : i32
    %c0_i32_0 = arith.constant 0 : i32
    %c0_i32_1 = arith.constant 0 : i32
    return %c0_i32, %c0_i32_0 : i32, i32
  }
  func.func @transform_3(%arg0: i32, %arg1: i32) -> (i32, i32) {
    %c0_i32 = arith.constant 0 : i32
    %c0_i32_0 = arith.constant 0 : i32
    %c0_i32_1 = arith.constant 0 : i32
    return %c0_i32, %c0_i32_0 : i32, i32
  }
  func.func @transform_4(%arg0: i32, %arg1: i32) -> (i32, i32) {
    %c0_i32 = arith.constant 0 : i32
    %c0_i32_0 = arith.constant 0 : i32
    %c0_i32_1 = arith.constant 0 : i32
    return %c0_i32, %c0_i32_0 : i32, i32
  }
  func.func @transform_5(%arg0: i32, %arg1: i32) -> (i32, i32) {
    %c0_i32 = arith.constant 0 : i32
    %c0_i32_0 = arith.constant 0 : i32
    %c0_i32_1 = arith.constant 0 : i32
    return %c0_i32, %c0_i32_0 : i32, i32
  }
  func.func @transform_6(%arg0: i32, %arg1: i32) -> (i32, i32) {
    %c0_i32 = arith.constant 0 : i32
    %c0_i32_0 = arith.constant 0 : i32
    %c0_i32_1 = arith.constant 0 : i32
    return %c0_i32, %c0_i32_0 : i32, i32
  }
  func.func @transform_7(%arg0: i32, %arg1: i32) -> (i32, i32) {
    %c0_i32 = arith.constant 0 : i32
    %c0_i32_0 = arith.constant 0 : i32
    %c0_i32_1 = arith.constant 0 : i32
    return %c0_i32, %c0_i32_0 : i32, i32
  }
  func.func @transform_8(%arg0: i32, %arg1: i32) -> (i32, i32) {
    %c0_i32 = arith.constant 0 : i32
    %c0_i32_0 = arith.constant 0 : i32
    %c0_i32_1 = arith.constant 0 : i32
    return %c0_i32, %c0_i32_0 : i32, i32
  }
  func.func @transform_9(%arg0: i32, %arg1: i32) -> (i32, i32, i32) {
    %c0_i32 = arith.constant 0 : i32
    %c0_i32_0 = arith.constant 0 : i32
    return %arg0, %arg1, %c0_i32 : i32, i32, i32
  }
}

</mosaic_0001>

<llo_original>
// kernel: latent_injection_transformer.14
$region0: #{latent_injection_transformer.14}
  #allocation0 [shape = 'u32[]', space=smem, size = 0x4, offset = 0x4, fixed_abs, tag = 'smem constant byte address 0x4 - core index']
  #allocation1 [shape = 'u32[144,128]{1,0:T(1,128)}', space=vmem, size = 0x12000, scoped, tag = 'internal scratch']
  #allocation2 [shape = 'bf16[16,128]{1,0:T(8,128)(2,1)}', space=vmem, size = 0x1000, scoped, tag = 'scratch operand']
  %s0 = inlined_call_operand.vmem [shape: f32[2,16,128], index: 0, kind: input, shape index: {}, may-alias: {0,1}]
  %s1 = inlined_call_operand.vmem [shape: f32[2,16,128], index: 1, kind: input, shape index: {}, may-alias: {0,1}]
  %s2 = inlined_call_operand.vmem [shape: f32[1,128], index: 2, kind: input, shape index: {}]
  %s3 = inlined_call_operand.vmem [shape: f32[1,128], index: 3, kind: input, shape index: {}]
  %s4 = inlined_call_operand.hbm [shape: bf16[128,128], index: 4, kind: input, shape index: {}]
  %s5 = inlined_call_operand.hbm [shape: bf16[128,128], index: 5, kind: input, shape index: {}]
  %s6 = inlined_call_operand.hbm [shape: bf16[128,128], index: 6, kind: input, shape index: {}]
  %s7 = inlined_call_operand.hbm [shape: bf16[128,128], index: 7, kind: input, shape index: {}]
  %s8 = inlined_call_operand.hbm [shape: f32[1,128], index: 8, kind: input, shape index: {}]
  %s9 = inlined_call_operand.vmem [shape: f32[2,16,128], index: 9, kind: output, shape index: {}]
  %s10 = sld [smem:[#allocation0]]
  $region89: #{latent_injection_transformer.14} parent=0
    _
  %s12 = ssub.s32 1, %s10
  %s13 = scalar_select 0, %s12, %s10
  $region1: #{latent_injection_transformer.14} parent=0
    #allocation3 [shape = 'u8[32768]{0}', space=vmem, size = 0x8000, scoped, tag = 'input window, operand 4, single buffered']
    #allocation4 [shape = 's32[2]{0}', space=sflag, size = 0x8, scoped, tag = 'scoped memory for latent_injection_transformer.14']
    #allocation5 [shape = 'u8[32768]{0}', space=vmem, size = 0x8000, scoped, tag = 'input window, operand 5, single buffered']
    #allocation6 [shape = 's32[1]{0}', space=sflag, size = 0x4, scoped, tag = 'scoped memory for latent_injection_transformer.14']
    #allocation7 [shape = 'u8[32768]{0}', space=vmem, size = 0x8000, scoped, tag = 'input window, operand 6, single buffered']
    #allocation8 [shape = 'u8[32768]{0}', space=vmem, size = 0x8000, scoped, tag = 'input window, operand 7, single buffered']
    #allocation9 [shape = 's32[1]{0}', space=sflag, size = 0x4, scoped, tag = 'scoped memory for latent_injection_transformer.14']
    #allocation10 [shape = 'u8[512]{0}', space=vmem, size = 0x400, scoped, tag = 'input window, operand 8, single buffered']
    %14 = vsyncpa [#allocation4], 0
    %15 = vsyncpa [#allocation6], 0
    %16 = vsyncpa [#allocation9], 0
    loop: start=0, step=1, limit=4
    $region2: #{latent_injection_transformer.14} parent=1 // loop_pre_header
      _
    $region3: #{latent_injection_transformer.14} parent=1 // loop_header
      %s18 = sphi 0, %s22
      %p19 = scmp.ge.s32.totalorder %s18, 4
      %s25 = sphi 0, %s37
      %s26 = sphi 0, %s33
      %s27 = sphi 0, %s25
      %s28 = sphi 0, %s26
      %s29 = sphi 0, %s27
      %s30 = sphi 0, %s28
      %s42 = sphi 0, %s44
      %s45 = sphi 0, %s42
      %s46 = sphi 0, %s45
      %s62 = sphi 0, %s46
      %s68 = sphi 0, %s70
      %s71 = sphi 0, %s68
      %s72 = sphi 0, %s71
      %s88 = sphi 0, %s72
      %s92 = sphi 0, %s92
      %s94 = sphi 0, %s92
      %s95 = sphi 0, %s94
      %s109 = sphi 0, %s95
      %s113 = sphi 0, %s113
      %s115 = sphi 0, %s113
      %s116 = sphi 0, %s115
      %s130 = sphi 0, %s116
      %s134 = sphi 0, %s134
      %s136 = sphi 0, %s134
      %s137 = sphi 0, %s136
      %s151 = sphi 0, %s137
      %s155 = sphi 0, %s155
      %s157 = sphi 0, %s155
      %s158 = sphi 0, %s157
      %s172 = sphi 0, %s158
      %s176 = sphi 0, %s176
      %s178 = sphi 0, %s176
      %s179 = sphi 0, %s178
      %s193 = sphi 0, %s179
      %s197 = sphi 0, %s197
      %s199 = sphi 0, %s197
      %s200 = sphi 0, %s199
      %s214 = sphi 0, %s200
      %s218 = sphi 0, %s218
      %s220 = sphi 0, %s218
      %s221 = sphi 0, %s220
      %s235 = sphi 0, %s221
      %s243 = sphi 0, %s245
      %s246 = sphi 0, %s243
      %s247 = sphi 0, %s246
      %s263 = sphi 0, %s247
    $region4: #{latent_injection_transformer.14} parent=1 // loop_header_branch
      %21 = sbr.rel (%p19) target = $region8
    $region5: #{latent_injection_transformer.14} parent=1 // loop_body
      %s23 = ssub.s32 %s18, 1
      %s24 = ssub.s32 %s18, 2
      %s31 = sadd.s32 1, %s26
      %p32 = scmp.ge.s32.totalorder %s31, 1
      %s33 = scalar_select %p32, 0, %s31
      %s34 = sadd.s32 1, %s25
      %s35 = scalar_select %p32, %s34, %s25
      %p36 = scmp.ge.s32.totalorder %s35, 2
      %s37 = scalar_select %p36, 0, %s35
      %s38 = ssub.s32 %s25, %s37
      %s39 = ssub.s32 %s26, %s33
      %s40 = sor.u32 %s38, %s39
      %p41 = scmp.eq.s32.totalorder %s40, 0
      %s43 = sadd.s32 %s42, 1
      %s44 = scalar_select %p41, %s42, %s43
      %p47 = pneg %p41
      %p48 = scmp.eq.s32.totalorder %s18, 1
      %p49 = por %p47, %p48
      %p50 = scmp.ne.s32.totalorder %s42, %s45
      %p51 = scmp.eq.s32.totalorder %s18, 0
      %p52 = por %p50, %p51
      %p53 = scmp.ne.s32.totalorder %s42, %s45
      %p54 = scmp.eq.s32.totalorder %s23, 1
      %p55 = por %p53, %p54
      %p56 = scmp.ne.s32.totalorder %s45, %s46
      %p57 = scmp.eq.s32.totalorder %s23, 0
      %p58 = por %p56, %p57
      %p59 = scmp.ne.s32.totalorder %s45, %s46
      %p60 = scmp.eq.s32.totalorder %s24, 1
      %p61 = por %p59, %p60
      %p63 = scmp.ne.s32.totalorder %s46, %s62
      %p64 = scmp.eq.s32.totalorder %s24, 0
      %p65 = por %p63, %p64
      %s66 = ssub.s32 %s25, %s37
      %p67 = scmp.eq.s32.totalorder %s66, 0
      %s69 = sadd.s32 %s68, 1
      %s70 = scalar_select %p67, %s68, %s69
      %p73 = pneg %p67
      %p74 = scmp.eq.s32.totalorder %s18, 1
      %p75 = por %p73, %p74
      %p76 = scmp.ne.s32.totalorder %s68, %s71
      %p77 = scmp.eq.s32.totalorder %s18, 0
      %p78 = por %p76, %p77
      %p79 = scmp.ne.s32.totalorder %s68, %s71
      %p80 = scmp.eq.s32.totalorder %s23, 1
      %p81 = por %p79, %p80
      %p82 = scmp.ne.s32.totalorder %s71, %s72
      %p83 = scmp.eq.s32.totalorder %s23, 0
      %p84 = por %p82, %p83
      %p85 = scmp.ne.s32.totalorder %s71, %s72
      %p86 = scmp.eq.s32.totalorder %s24, 1
      %p87 = por %p85, %p86
      %p89 = scmp.ne.s32.totalorder %s72, %s88
      %p90 = scmp.eq.s32.totalorder %s24, 0
      %p91 = por %p89, %p90
      %s93 = sadd.s32 %s92, 1
      %p96 = scmp.eq.s32.totalorder %s18, 1
      %p97 = scmp.ne.s32.totalorder %s92, %s94
      %p98 = scmp.eq.s32.totalorder %s18, 0
      %p99 = por %p97, %p98
      %p100 = scmp.ne.s32.totalorder %s92, %s94
      %p101 = scmp.eq.s32.totalorder %s23, 1
      %p102 = por %p100, %p101
      %p103 = scmp.ne.s32.totalorder %s94, %s95
      %p104 = scmp.eq.s32.totalorder %s23, 0
      %p105 = por %p103, %p104
      %p106 = scmp.ne.s32.totalorder %s94, %s95
      %p107 = scmp.eq.s32.totalorder %s24, 1
      %p108 = por %p106, %p107
      %p110 = scmp.ne.s32.totalorder %s95, %s109
      %p111 = scmp.eq.s32.totalorder %s24, 0
      %p112 = por %p110, %p111
      %s114 = sadd.s32 %s113, 1
      %p117 = scmp.eq.s32.totalorder %s18, 1
      %p118 = scmp.ne.s32.totalorder %s113, %s115
      %p119 = scmp.eq.s32.totalorder %s18, 0
      %p120 = por %p118, %p119
      %p121 = scmp.ne.s32.totalorder %s113, %s115
      %p122 = scmp.eq.s32.totalorder %s23, 1
      %p123 = por %p121, %p122
      %p124 = scmp.ne.s32.totalorder %s115, %s116
      %p125 = scmp.eq.s32.totalorder %s23, 0
      %p126 = por %p124, %p125
      %p127 = scmp.ne.s32.totalorder %s115, %s116
      %p128 = scmp.eq.s32.totalorder %s24, 1
      %p129 = por %p127, %p128
      %p131 = scmp.ne.s32.totalorder %s116, %s130
      %p132 = scmp.eq.s32.totalorder %s24, 0
      %p133 = por %p131, %p132
      %s135 = sadd.s32 %s134, 1
      %p138 = scmp.eq.s32.totalorder %s18, 1
      %p139 = scmp.ne.s32.totalorder %s134, %s136
      %p140 = scmp.eq.s32.totalorder %s18, 0
      %p141 = por %p139, %p140
      %p142 = scmp.ne.s32.totalorder %s134, %s136
      %p143 = scmp.eq.s32.totalorder %s23, 1
      %p144 = por %p142, %p143
      %p145 = scmp.ne.s32.totalorder %s136, %s137
      %p146 = scmp.eq.s32.totalorder %s23, 0
      %p147 = por %p145, %p146
      %p148 = scmp.ne.s32.totalorder %s136, %s137
      %p149 = scmp.eq.s32.totalorder %s24, 1
      %p150 = por %p148, %p149
      %p152 = scmp.ne.s32.totalorder %s137, %s151
      %p153 = scmp.eq.s32.totalorder %s24, 0
      %p154 = por %p152, %p153
      %s156 = sadd.s32 %s155, 1
      %p159 = scmp.eq.s32.totalorder %s18, 1
      %p160 = scmp.ne.s32.totalorder %s155, %s157
      %p161 = scmp.eq.s32.totalorder %s18, 0
      %p162 = por %p160, %p161
      %p163 = scmp.ne.s32.totalorder %s155, %s157
      %p164 = scmp.eq.s32.totalorder %s23, 1
      %p165 = por %p163, %p164
      %p166 = scmp.ne.s32.totalorder %s157, %s158
      %p167 = scmp.eq.s32.totalorder %s23, 0
      %p168 = por %p166, %p167
      %p169 = scmp.ne.s32.totalorder %s157, %s158
      %p170 = scmp.eq.s32.totalorder %s24, 1
      %p171 = por %p169, %p170
      %p173 = scmp.ne.s32.totalorder %s158, %s172
      %p174 = scmp.eq.s32.totalorder %s24, 0
      %p175 = por %p173, %p174
      %s177 = sadd.s32 %s176, 1
      %p180 = scmp.eq.s32.totalorder %s18, 1
      %p181 = scmp.ne.s32.totalorder %s176, %s178
      %p182 = scmp.eq.s32.totalorder %s18, 0
      %p183 = por %p181, %p182
      %p184 = scmp.ne.s32.totalorder %s176, %s178
      %p185 = scmp.eq.s32.totalorder %s23, 1
      %p186 = por %p184, %p185
      %p187 = scmp.ne.s32.totalorder %s178, %s179
      %p188 = scmp.eq.s32.totalorder %s23, 0
      %p189 = por %p187, %p188
      %p190 = scmp.ne.s32.totalorder %s178, %s179
      %p191 = scmp.eq.s32.totalorder %s24, 1
      %p192 = por %p190, %p191
      %p194 = scmp.ne.s32.totalorder %s179, %s193
      %p195 = scmp.eq.s32.totalorder %s24, 0
      %p196 = por %p194, %p195
      %s198 = sadd.s32 %s197, 1
      %p201 = scmp.eq.s32.totalorder %s18, 1
      %p202 = scmp.ne.s32.totalorder %s197, %s199
      %p203 = scmp.eq.s32.totalorder %s18, 0
      %p204 = por %p202, %p203
      %p205 = scmp.ne.s32.totalorder %s197, %s199
      %p206 = scmp.eq.s32.totalorder %s23, 1
      %p207 = por %p205, %p206
      %p208 = scmp.ne.s32.totalorder %s199, %s200
      %p209 = scmp.eq.s32.totalorder %s23, 0
      %p210 = por %p208, %p209
      %p211 = scmp.ne.s32.totalorder %s199, %s200
      %p212 = scmp.eq.s32.totalorder %s24, 1
      %p213 = por %p211, %p212
      %p215 = scmp.ne.s32.totalorder %s200, %s214
      %p216 = scmp.eq.s32.totalorder %s24, 0
      %p217 = por %p215, %p216
      %s219 = sadd.s32 %s218, 1
      %p222 = scmp.eq.s32.totalorder %s18, 1
      %p223 = scmp.ne.s32.totalorder %s218, %s220
      %p224 = scmp.eq.s32.totalorder %s18, 0
      %p225 = por %p223, %p224
      %p226 = scmp.ne.s32.totalorder %s218, %s220
      %p227 = scmp.eq.s32.totalorder %s23, 1
      %p228 = por %p226, %p227
      %p229 = scmp.ne.s32.totalorder %s220, %s221
      %p230 = scmp.eq.s32.totalorder %s23, 0
      %p231 = por %p229, %p230
      %p232 = scmp.ne.s32.totalorder %s220, %s221
      %p233 = scmp.eq.s32.totalorder %s24, 1
      %p234 = por %p232, %p233
      %p236 = scmp.ne.s32.totalorder %s221, %s235
      %p237 = scmp.eq.s32.totalorder %s24, 0
      %p238 = por %p236, %p237
      %s239 = ssub.s32 %s25, %s37
      %s240 = ssub.s32 %s26, %s33
      %s241 = sor.u32 %s239, %s240
      %p242 = scmp.eq.s32.totalorder %s241, 0
      %s244 = sadd.s32 %s243, 1
      %s245 = scalar_select %p242, %s243, %s244
      %p248 = pneg %p242
      %p249 = scmp.eq.s32.totalorder %s18, 1
      %p250 = por %p248, %p249
      %p251 = scmp.ne.s32.totalorder %s243, %s246
      %p252 = scmp.eq.s32.totalorder %s18, 0
      %p253 = por %p251, %p252
      %p254 = scmp.ne.s32.totalorder %s243, %s246
      %p255 = scmp.eq.s32.totalorder %s23, 1
      %p256 = por %p254, %p255
      %p257 = scmp.ne.s32.totalorder %s246, %s247
      %p258 = scmp.eq.s32.totalorder %s23, 0
      %p259 = por %p257, %p258
      %p260 = scmp.ne.s32.totalorder %s246, %s247
      %p261 = scmp.eq.s32.totalorder %s24, 1
      %p262 = por %p260, %p261
      %p264 = scmp.ne.s32.totalorder %s247, %s263
      %p265 = scmp.eq.s32.totalorder %s24, 0
      %p266 = por %p264, %p265
      %p267 = scmp.le.s32.totalorder 1, %s18
      %p268 = scmp.lt.s32.totalorder %s18, 3
      %p269 = pnand %p267, %p268
      %p270 = pneg %p269
      // Predicated region
      $region9: #{latent_injection_transformer.14} parent=5 // pred_check
        _
      $region10: #{latent_injection_transformer.14} parent=5 // pred_check_branch
        %272 = sbr.rel (%p269) target = $region12
      $region11: #{latent_injection_transformer.14} parent=5 // pred_region
        %s273 = ssub.s32 %s18, 1
        // Predicated region
        $region13: #{latent_injection_transformer.14} parent=11 // pred_check
          %p274 = pneg %p105
        $region14: #{latent_injection_transformer.14} parent=11 // pred_check_branch
          %276 = sbr.rel (%p274) target = $region16
        $region15: #{latent_injection_transformer.14} parent=11 // pred_region
          _
        $region16: #{latent_injection_transformer.14} parent=11 // pred_fallthru
          _
        // Predicated region
        $region17: #{latent_injection_transformer.14} parent=11 // pred_check
          %p277 = pneg %p126
        $region18: #{latent_injection_transformer.14} parent=11 // pred_check_branch
          %279 = sbr.rel (%p277) target = $region20
        $region19: #{latent_injection_transformer.14} parent=11 // pred_region
          _
        $region20: #{latent_injection_transformer.14} parent=11 // pred_fallthru
          _
        // Predicated region
        $region21: #{latent_injection_transformer.14} parent=11 // pred_check
          %p280 = pneg %p147
        $region22: #{latent_injection_transformer.14} parent=11 // pred_check_branch
          %282 = sbr.rel (%p280) target = $region24
        $region23: #{latent_injection_transformer.14} parent=11 // pred_region
          %s284 = ssub.s32 1024, 1024
          %285 = vsyncadd [#allocation4], %s284
          %s286 = sshll.u32 [#allocation3], 4
          %s287 = int_to_ptr.vmem [resolvable:$true] %s286
          %292 = dma.hbm_to_vmem [thread:$0]  %s4, 1024, %s287, [#allocation4], 64, 64, 4
        $region24: #{latent_injection_transformer.14} parent=11 // pred_fallthru
          _
        // Predicated region
        $region25: #{latent_injection_transformer.14} parent=11 // pred_check
          %p293 = pneg %p168
        $region26: #{latent_injection_transformer.14} parent=11 // pred_check_branch
          %295 = sbr.rel (%p293) target = $region28
        $region27: #{latent_injection_transformer.14} parent=11 // pred_region
          %s297 = ssub.s32 1024, 1024
          %298 = vsyncadd [#allocation6], %s297
          %s299 = sshll.u32 [#allocation5], 4
          %s300 = int_to_ptr.vmem [resolvable:$true] %s299
          %305 = dma.hbm_to_vmem [thread:$0]  %s5, 1024, %s300, [#allocation6], 64, 64, 4
        $region28: #{latent_injection_transformer.14} parent=11 // pred_fallthru
          _
        // Predicated region
        $region29: #{latent_injection_transformer.14} parent=11 // pred_check
          %p306 = pneg %p189
        $region30: #{latent_injection_transformer.14} parent=11 // pred_check_branch
          %308 = sbr.rel (%p306) target = $region32
        $region31: #{latent_injection_transformer.14} parent=11 // pred_region
          %s310 = ssub.s32 1024, 1024
          %311 = vsyncadd [#allocation6], %s310
          %s312 = sshll.u32 [#allocation7], 4
          %s313 = int_to_ptr.vmem [resolvable:$true] %s312
          %318 = dma.hbm_to_vmem [thread:$0]  %s6, 1024, %s313, [#allocation6], 64, 64, 4
        $region32: #{latent_injection_transformer.14} parent=11 // pred_fallthru
          _
        // Predicated region
        $region33: #{latent_injection_transformer.14} parent=11 // pred_check
          %p319 = pneg %p210
        $region34: #{latent_injection_transformer.14} parent=11 // pred_check_branch
          %321 = sbr.rel (%p319) target = $region36
        $region35: #{latent_injection_transformer.14} parent=11 // pred_region
          %s323 = ssub.s32 1024, 1024
          %324 = vsyncadd [#allocation9], %s323
          %s325 = sshll.u32 [#allocation8], 4
          %s326 = int_to_ptr.vmem [resolvable:$true] %s325
          %331 = dma.hbm_to_vmem [thread:$0]  %s7, 1024, %s326, [#allocation9], 64, 64, 4
        $region36: #{latent_injection_transformer.14} parent=11 // pred_fallthru
          _
        // Predicated region
        $region37: #{latent_injection_transformer.14} parent=11 // pred_check
          %p332 = pneg %p231
        $region38: #{latent_injection_transformer.14} parent=11 // pred_check_branch
          %334 = sbr.rel (%p332) target = $region40
        $region39: #{latent_injection_transformer.14} parent=11 // pred_region
          %s336 = ssub.s32 16, 16
          %337 = vsyncadd [#allocation9], %s336
          %s339 = sshll.u32 [#allocation10], 4
          %s340 = int_to_ptr.vmem [resolvable:$true] %s339
          %342 = dma.hbm_to_vmem [thread:$0]  %s8, 16, %s340, [#allocation9]
        $region40: #{latent_injection_transformer.14} parent=11 // pred_fallthru
          _
      $region12: #{latent_injection_transformer.14} parent=5 // pred_fallthru
        _
      %p343 = scmp.lt.s32.totalorder %s18, 2
      // Predicated region
      $region41: #{latent_injection_transformer.14} parent=5 // pred_check
        %p344 = pneg %p343
      $region42: #{latent_injection_transformer.14} parent=5 // pred_check_branch
        %346 = sbr.rel (%p344) target = $region44
      $region43: #{latent_injection_transformer.14} parent=5 // pred_region
        // Predicated region
        $region45: #{latent_injection_transformer.14} parent=43 // pred_check
          %p347 = pneg %p52
        $region46: #{latent_injection_transformer.14} parent=43 // pred_check_branch
          %349 = sbr.rel (%p347) target = $region48
        $region47: #{latent_injection_transformer.14} parent=43 // pred_region
          %s350 = smul.u32 2, %s26
          %p351 = scmp.lt.s32.totalorder %s25, 1
          %s352 = scalar_select %p351, %s25, 1
          %p353 = scmp.lt.s32.totalorder %s350, 1
          %s354 = scalar_select %p353, %s350, 1
          %s355 = smul.addr %s352, 2
          %s356 = sadd.s32 %s354, %s355
          %s357 = smul.addr %s356, 8
          %s358 = scalar_lea.vmem %s0, %s357
          %s359 = smul.u32 2, %s26
        $region48: #{latent_injection_transformer.14} parent=43 // pred_fallthru
          _
        // Predicated region
        $region49: #{latent_injection_transformer.14} parent=43 // pred_check
          %p360 = pneg %p78
        $region50: #{latent_injection_transformer.14} parent=43 // pred_check_branch
          %362 = sbr.rel (%p360) target = $region52
        $region51: #{latent_injection_transformer.14} parent=43 // pred_region
          %p363 = scmp.lt.s32.totalorder %s25, 1
          %s364 = scalar_select %p363, %s25, 1
          %s365 = smul.addr %s364, 2
          %s366 = smul.addr %s365, 8
          %s367 = scalar_lea.vmem %s1, %s366
        $region52: #{latent_injection_transformer.14} parent=43 // pred_fallthru
          _
      $region44: #{latent_injection_transformer.14} parent=5 // pred_fallthru
        _
      %p368 = scmp.le.s32.totalorder 1, %s18
      %p369 = scmp.lt.s32.totalorder %s18, 3
      %p370 = pnand %p368, %p369
      %p371 = pneg %p370
      // Predicated region
      $region53: #{latent_injection_transformer.14} parent=5 // pred_check
        _
      $region54: #{latent_injection_transformer.14} parent=5 // pred_check_branch
        %373 = sbr.rel (%p370) target = $region56
      $region55: #{latent_injection_transformer.14} parent=5 // pred_region
        %s374 = ssub.s32 %s18, 1
        // Predicated region
        $region57: #{latent_injection_transformer.14} parent=55 // pred_check
          %p375 = pneg %p147
        $region58: #{latent_injection_transformer.14} parent=55 // pred_check_branch
          %377 = sbr.rel (%p375) target = $region60
        $region59: #{latent_injection_transformer.14} parent=55 // pred_region
          %378 = dma.done [#allocation4], 1024
        $region60: #{latent_injection_transformer.14} parent=55 // pred_fallthru
          _
        // Predicated region
        $region61: #{latent_injection_transformer.14} parent=55 // pred_check
          %p379 = pneg %p168
        $region62: #{latent_injection_transformer.14} parent=55 // pred_check_branch
          %381 = sbr.rel (%p379) target = $region64
        $region63: #{latent_injection_transformer.14} parent=55 // pred_region
          %382 = dma.done [#allocation6], 1024
        $region64: #{latent_injection_transformer.14} parent=55 // pred_fallthru
          _
        // Predicated region
        $region65: #{latent_injection_transformer.14} parent=55 // pred_check
          %p383 = pneg %p189
        $region66: #{latent_injection_transformer.14} parent=55 // pred_check_branch
          %385 = sbr.rel (%p383) target = $region68
        $region67: #{latent_injection_transformer.14} parent=55 // pred_region
          %386 = dma.done [#allocation6], 1024
        $region68: #{latent_injection_transformer.14} parent=55 // pred_fallthru
          _
        // Predicated region
        $region69: #{latent_injection_transformer.14} parent=55 // pred_check
          %p387 = pneg %p210
        $region70: #{latent_injection_transformer.14} parent=55 // pred_check_branch
          %389 = sbr.rel (%p387) target = $region72
        $region71: #{latent_injection_transformer.14} parent=55 // pred_region
          %390 = dma.done [#allocation9], 1024
        $region72: #{latent_injection_transformer.14} parent=55 // pred_fallthru
          _
        // Predicated region
        $region73: #{latent_injection_transformer.14} parent=55 // pred_check
          %p391 = pneg %p231
        $region74: #{latent_injection_transformer.14} parent=55 // pred_check_branch
          %393 = sbr.rel (%p391) target = $region76
        $region75: #{latent_injection_transformer.14} parent=55 // pred_region
          %394 = dma.done [#allocation9], 16
        $region76: #{latent_injection_transformer.14} parent=55 // pred_fallthru
          _
        %s395 = smul.u32 2, %s28
        %p396 = scmp.lt.s32.totalorder %s27, 1
        %s397 = scalar_select %p396, %s27, 1
        %p398 = scmp.lt.s32.totalorder %s395, 1
        %s399 = scalar_select %p398, %s395, 1
        %s400 = smul.addr %s397, 2
        %s401 = sadd.s32 %s399, %s400
        %s402 = smul.addr %s401, 8
        %s403 = scalar_lea.vmem %s0, %s402
        %p404 = pneg %p58
        %p405 = pneg %p55
        %p406 = scmp.lt.s32.totalorder %s27, 1
        %s407 = scalar_select %p406, %s27, 1
        %s408 = smul.addr %s407, 2
        %s409 = smul.addr %s408, 8
        %s410 = scalar_lea.vmem %s1, %s409
        %p411 = pneg %p84
        %p412 = pneg %p81
        %p413 = pneg %p105
        %p414 = pneg %p102
        %p415 = pneg %p126
        %p416 = pneg %p123
        %p417 = pneg %p147
        %p418 = pneg %p144
        %p419 = pneg %p168
        %p420 = pneg %p165
        %p421 = pneg %p189
        %p422 = pneg %p186
        %p423 = pneg %p210
        %p424 = pneg %p207
        %p425 = pneg %p231
        %p426 = pneg %p228
        %p427 = pneg %p259
        %p428 = pneg %p256
        %s429 = smul.u32 2, %s28
        %p430 = scmp.lt.s32.totalorder %s27, 1
        %s431 = scalar_select %p430, %s27, 1
        %p432 = scmp.lt.s32.totalorder %s429, 1
        %s433 = scalar_select %p432, %s429, 1
        %s434 = smul.addr %s431, 2
        %s435 = sadd.s32 %s433, %s434
        %s436 = smul.addr %s435, 8
        %s437 = scalar_lea.vmem %s9, %s436
        %s438 = smul.u32 2, %s28
        %p439 = scmp.lt.s32.totalorder %s27, 1
        %s440 = scalar_select %p439, %s27, 1
        %p441 = scmp.lt.s32.totalorder %s438, 1
        %s442 = scalar_select %p441, %s438, 1
        %s443 = smul.addr %s440, 2
        %s444 = sadd.s32 %s442, %s443
        %s445 = smul.addr %s444, 8
        %s446 = scalar_lea.vmem %s0, %s445
        %s447 = smul.u32 2, %s28
        %p448 = scmp.lt.s32.totalorder %s27, 1
        %s449 = scalar_select %p448, %s27, 1
        %s450 = smul.addr %s449, 2
        %s451 = smul.addr %s450, 8
        %s452 = scalar_lea.vmem %s1, %s451
        %s453 = smul.u32 2, %s28
        %p454 = scmp.lt.s32.totalorder %s27, 1
        %s455 = scalar_select %p454, %s27, 1
        %p456 = scmp.lt.s32.totalorder %s453, 1
        %s457 = scalar_select %p456, %s453, 1
        %s458 = smul.addr %s455, 2
        %s459 = sadd.s32 %s457, %s458
        %s460 = smul.addr %s459, 8
        %s461 = scalar_lea.vmem %s9, %s460
        %s462 = smul.u32 2, %s28
        %v464 = vld [vmem:[%s446] sm:$0xff]
        %v465 = vld [vmem:[%s446 + $0x8] sm:$0xff]
        %v466 = vld [vmem:[%s2] sm:$0x1]
        %v467 = vld [vmem:[%s3] sm:$0x1]
        %468 = vadd.xlane.f32.xlu0 %v464
        %v469 = vpop.xlane.xlu0 %468
        %470 = vadd.xlane.f32.xlu0 %v465
        %v471 = vpop.xlane.xlu0 %470
        %v472 = vrcp.pop 128.0
        %v473 = vmul.f32 %v469, %v472
        %v474 = vmul.f32 %v471, %v472
        %v475 = vsub.f32 %v464, %v473
        %v476 = vsub.f32 %v465, %v474
        %v477 = vmul.f32 %v475, %v475
        %v478 = vmul.f32 %v476, %v476
        %479 = vadd.xlane.f32.xlu0 %v477
        %v480 = vpop.xlane.xlu0 %479
        %481 = vadd.xlane.f32.xlu0 %v478
        %v482 = vpop.xlane.xlu0 %481
        %v483 = vmul.f32 %v480, %v472
        %v484 = vmul.f32 %v482, %v472
        %v485 = vadd.f32 %v483, 1e-05
        %v486 = vadd.f32 %v484, 1e-05
        %v487 = vrsqrt.pop %v485
        %v488 = vrsqrt.pop %v486
        %v489 = vmul.f32 %v475, %v487
        %v490 = vmul.f32 %v476, %v488
        %v492 = vlaneseq
        %v493 = vshrl.u32 %v492, 7
        %v494 = vsub.s32 0, %v493
        %v495 = vrot.slane %v466, %v494
        %v497 = vmul.f32 %v489, %v495
        %v498 = vmul.f32 %v490, %v495
        %v500 = vlaneseq
        %v501 = vshrl.u32 %v500, 7
        %v502 = vsub.s32 0, %v501
        %v503 = vrot.slane %v467, %v502
        %v505 = vadd.f32 %v497, %v503
        %v506 = vadd.f32 %v498, %v503
        %v507 = vld [vmem:[%s452] sm:$0xff]
        %v508 = vld [vmem:[%s452 + $0x8] sm:$0xff]
        %509 = vadd.xlane.f32.xlu0 %v507
        %v510 = vpop.xlane.xlu0 %509
        %511 = vadd.xlane.f32.xlu0 %v508
        %v512 = vpop.xlane.xlu0 %511
        %v513 = vmul.f32 %v510, %v472
        %v514 = vmul.f32 %v512, %v472
        %v515 = vsub.f32 %v507, %v513
        %v516 = vsub.f32 %v508, %v514
        %v517 = vmul.f32 %v515, %v515
        %v518 = vmul.f32 %v516, %v516
        %519 = vadd.xlane.f32.xlu0 %v517
        %v520 = vpop.xlane.xlu0 %519
        %521 = vadd.xlane.f32.xlu0 %v518
        %v522 = vpop.xlane.xlu0 %521
        %v523 = vmul.f32 %v520, %v472
        %v524 = vmul.f32 %v522, %v472
        %v525 = vadd.f32 %v523, 1e-05
        %v526 = vadd.f32 %v524, 1e-05
        %v527 = vrsqrt.pop %v525
        %v528 = vrsqrt.pop %v526
        %v529 = vmul.f32 %v515, %v527
        %v530 = vmul.f32 %v516, %v528
        %v531 = vmul.f32 %v529, %v495
        %v532 = vmul.f32 %v530, %v495
        %v533 = vadd.f32 %v531, %v503
        %v534 = vadd.f32 %v532, %v503
        %v535 = vld [vmem:[#allocation3] sm:$0xf]
        %v536 = vld [vmem:[#allocation3 + $0x4] sm:$0xf]
        %v537 = vld [vmem:[#allocation3 + $0x8] sm:$0xf]
        %v538 = vld [vmem:[#allocation3 + $0xc] sm:$0xf]
        %v539 = vld [vmem:[#allocation3 + $0x10] sm:$0xf]
        %v540 = vld [vmem:[#allocation3 + $0x14] sm:$0xf]
        %v541 = vld [vmem:[#allocation3 + $0x18] sm:$0xf]
        %v542 = vld [vmem:[#allocation3 + $0x1c] sm:$0xf]
        %v543 = vld [vmem:[#allocation3 + $0x20] sm:$0xf]
        %v544 = vld [vmem:[#allocation3 + $0x24] sm:$0xf]
        %v545 = vld [vmem:[#allocation3 + $0x28] sm:$0xf]
        %v546 = vld [vmem:[#allocation3 + $0x2c] sm:$0xf]
        %v547 = vld [vmem:[#allocation3 + $0x30] sm:$0xf]
        %v548 = vld [vmem:[#allocation3 + $0x34] sm:$0xf]
        %v549 = vld [vmem:[#allocation3 + $0x38] sm:$0xf]
        %v550 = vld [vmem:[#allocation3 + $0x3c] sm:$0xf]
        %v551 = vpack.c.bf16 %v506, %v505
        %v568 = vunpack.c.l.b16 %v535
        %v569 = vunpack.c.l.b16 %v536
        %v570 = vunpack.c.l.b16 %v537
        %v571 = vunpack.c.l.b16 %v538
        %v572 = vunpack.c.l.b16 %v539
        %v573 = vunpack.c.l.b16 %v540
        %v574 = vunpack.c.l.b16 %v541
        %v575 = vunpack.c.l.b16 %v542
        %v576 = vunpack.c.l.b16 %v543
        %v577 = vunpack.c.l.b16 %v544
        %v578 = vunpack.c.l.b16 %v545
        %v579 = vunpack.c.l.b16 %v546
        %v580 = vunpack.c.l.b16 %v547
        %v581 = vunpack.c.l.b16 %v548
        %v582 = vunpack.c.l.b16 %v549
        %v583 = vunpack.c.l.b16 %v550
        %v584 = vpack.c.b16 %v569, %v568
        %v585 = vpack.c.b16 %v571, %v570
        %v586 = vpack.c.b16 %v573, %v572
        %v587 = vpack.c.b16 %v575, %v574
        %v588 = vpack.c.b16 %v577, %v576
        %v589 = vpack.c.b16 %v579, %v578
        %v590 = vpack.c.b16 %v581, %v580
        %v591 = vpack.c.b16 %v583, %v582
        %600 = vmatprep.subr.bf16.mxu0 0
        %601 = vmatpush1.bf16.msra.mxu0 %v591
        %602 = vmatprep.subr.bf16.mxu0 0
        %603 = vmatpush1.bf16.msra.mxu0 %v590
        %604 = vmatprep.subr.bf16.mxu0 0
        %605 = vmatpush1.bf16.msra.mxu0 %v589
        %606 = vmatprep.subr.bf16.mxu0 0
        %607 = vmatpush1.bf16.msra.mxu0 %v588
        %608 = vmatprep.subr.bf16.mxu0 0
        %609 = vmatpush1.bf16.msra.mxu0 %v587
        %610 = vmatprep.subr.bf16.mxu0 0
        %611 = vmatpush1.bf16.msra.mxu0 %v586
        %612 = vmatprep.subr.bf16.mxu0 0
        %613 = vmatpush1.bf16.msra.mxu0 %v585
        %614 = vmatprep.subr.bf16.mxu0 0
        %615 = vmatpush1.bf16.msra.mxu0 %v584
        %616 = vmatprep.subr.bf16.mxu0 0
        %617 = vmatpush2.bf16.msra.mxu0 0
        %618 = vmatprep.subr.bf16.mxu0 0
        %619 = vmatpush2.bf16.msra.mxu0 0
        %620 = vmatprep.subr.bf16.mxu0 0
        %621 = vmatpush2.bf16.msra.mxu0 0
        %622 = vmatprep.subr.bf16.mxu0 0
        %623 = vmatpush2.bf16.msra.mxu0 0
        %624 = vmatprep.subr.bf16.mxu0 0
        %625 = vmatpush2.bf16.msra.mxu0 0
        %626 = vmatprep.subr.bf16.mxu0 0
        %627 = vmatpush2.bf16.msra.mxu0 0
        %628 = vmatprep.subr.bf16.mxu0 0
        %629 = vmatpush2.bf16.msra.mxu0 0
        %630 = vmatprep.subr.bf16.mxu0 0
        %631 = vmatpush2.bf16.msra.mxu0 0
        %632 = vmatprep.mubr.bf16.mxu0 0
        %633 = vmatmul.mubr.bf16.gmra.mxu0 %v551
        %v634 = vpop.f32.mrf.mxu0
        %v635 = vadd.f32 0.0, %v634
        %v636 = vpop.f32.mrf.mxu0
        %v637 = vpop.f32.mrf.mxu0
        %v638 = vadd.f32 0.0, %v637
        %v639 = vpop.f32.mrf.mxu0
        %640 = vdwg.mxu0
        %v641 = vpack.c.bf16 %v638, %v635
        %v642 = vld [vmem:[#allocation5] sm:$0xf]
        %v643 = vld [vmem:[#allocation5 + $0x4] sm:$0xf]
        %v644 = vld [vmem:[#allocation5 + $0x8] sm:$0xf]
        %v645 = vld [vmem:[#allocation5 + $0xc] sm:$0xf]
        %v646 = vld [vmem:[#allocation5 + $0x10] sm:$0xf]
        %v647 = vld [vmem:[#allocation5 + $0x14] sm:$0xf]
        %v648 = vld [vmem:[#allocation5 + $0x18] sm:$0xf]
        %v649 = vld [vmem:[#allocation5 + $0x1c] sm:$0xf]
        %v650 = vld [vmem:[#allocation5 + $0x20] sm:$0xf]
        %v651 = vld [vmem:[#allocation5 + $0x24] sm:$0xf]
        %v652 = vld [vmem:[#allocation5 + $0x28] sm:$0xf]
        %v653 = vld [vmem:[#allocation5 + $0x2c] sm:$0xf]
        %v654 = vld [vmem:[#allocation5 + $0x30] sm:$0xf]
        %v655 = vld [vmem:[#allocation5 + $0x34] sm:$0xf]
        %v656 = vld [vmem:[#allocation5 + $0x38] sm:$0xf]
        %v657 = vld [vmem:[#allocation5 + $0x3c] sm:$0xf]
        %v658 = vpack.c.bf16 %v534, %v533
        %v675 = vunpack.c.l.b16 %v642
        %v676 = vunpack.c.l.b16 %v643
        %v677 = vunpack.c.l.b16 %v644
        %v678 = vunpack.c.l.b16 %v645
        %v679 = vunpack.c.l.b16 %v646
        %v680 = vunpack.c.l.b16 %v647
        %v681 = vunpack.c.l.b16 %v648
        %v682 = vunpack.c.l.b16 %v649
        %v683 = vunpack.c.l.b16 %v650
        %v684 = vunpack.c.l.b16 %v651
        %v685 = vunpack.c.l.b16 %v652
        %v686 = vunpack.c.l.b16 %v653
        %v687 = vunpack.c.l.b16 %v654
        %v688 = vunpack.c.l.b16 %v655
        %v689 = vunpack.c.l.b16 %v656
        %v690 = vunpack.c.l.b16 %v657
        %v691 = vpack.c.b16 %v676, %v675
        %v692 = vpack.c.b16 %v678, %v677
        %v693 = vpack.c.b16 %v680, %v679
        %v694 = vpack.c.b16 %v682, %v681
        %v695 = vpack.c.b16 %v684, %v683
        %v696 = vpack.c.b16 %v686, %v685
        %v697 = vpack.c.b16 %v688, %v687
        %v698 = vpack.c.b16 %v690, %v689
        %707 = vmatprep.subr.bf16.mxu0 0
        %708 = vmatpush1.bf16.msra.mxu0 %v698
        %709 = vmatprep.subr.bf16.mxu0 0
        %710 = vmatpush1.bf16.msra.mxu0 %v697
        %711 = vmatprep.subr.bf16.mxu0 0
        %712 = vmatpush1.bf16.msra.mxu0 %v696
        %713 = vmatprep.subr.bf16.mxu0 0
        %714 = vmatpush1.bf16.msra.mxu0 %v695
        %715 = vmatprep.subr.bf16.mxu0 0
        %716 = vmatpush1.bf16.msra.mxu0 %v694
        %717 = vmatprep.subr.bf16.mxu0 0
        %718 = vmatpush1.bf16.msra.mxu0 %v693
        %719 = vmatprep.subr.bf16.mxu0 0
        %720 = vmatpush1.bf16.msra.mxu0 %v692
        %721 = vmatprep.subr.bf16.mxu0 0
        %722 = vmatpush1.bf16.msra.mxu0 %v691
        %723 = vmatprep.subr.bf16.mxu0 0
        %724 = vmatpush2.bf16.msra.mxu0 0
        %725 = vmatprep.subr.bf16.mxu0 0
        %726 = vmatpush2.bf16.msra.mxu0 0
        %727 = vmatprep.subr.bf16.mxu0 0
        %728 = vmatpush2.bf16.msra.mxu0 0
        %729 = vmatprep.subr.bf16.mxu0 0
        %730 = vmatpush2.bf16.msra.mxu0 0
        %731 = vmatprep.subr.bf16.mxu0 0
        %732 = vmatpush2.bf16.msra.mxu0 0
        %733 = vmatprep.subr.bf16.mxu0 0
        %734 = vmatpush2.bf16.msra.mxu0 0
        %735 = vmatprep.subr.bf16.mxu0 0
        %736 = vmatpush2.bf16.msra.mxu0 0
        %737 = vmatprep.subr.bf16.mxu0 0
        %738 = vmatpush2.bf16.msra.mxu0 0
        %739 = vmatprep.mubr.bf16.mxu0 0
        %740 = vmatmul.mubr.bf16.gmra.mxu0 %v658
        %v741 = vpop.f32.mrf.mxu0
        %v742 = vadd.f32 0.0, %v741
        %v743 = vpop.f32.mrf.mxu0
        %v744 = vpop.f32.mrf.mxu0
        %v745 = vadd.f32 0.0, %v744
        %v746 = vpop.f32.mrf.mxu0
        %747 = vdwg.mxu0
        %v748 = vpack.c.bf16 %v745, %v742
        %v749 = vld [vmem:[#allocation7] sm:$0xf]
        %v750 = vld [vmem:[#allocation7 + $0x4] sm:$0xf]
        %v751 = vld [vmem:[#allocation7 + $0x8] sm:$0xf]
        %v752 = vld [vmem:[#allocation7 + $0xc] sm:$0xf]
        %v753 = vld [vmem:[#allocation7 + $0x10] sm:$0xf]
        %v754 = vld [vmem:[#allocation7 + $0x14] sm:$0xf]
        %v755 = vld [vmem:[#allocation7 + $0x18] sm:$0xf]
        %v756 = vld [vmem:[#allocation7 + $0x1c] sm:$0xf]
        %v757 = vld [vmem:[#allocation7 + $0x20] sm:$0xf]
        %v758 = vld [vmem:[#allocation7 + $0x24] sm:$0xf]
        %v759 = vld [vmem:[#allocation7 + $0x28] sm:$0xf]
        %v760 = vld [vmem:[#allocation7 + $0x2c] sm:$0xf]
        %v761 = vld [vmem:[#allocation7 + $0x30] sm:$0xf]
        %v762 = vld [vmem:[#allocation7 + $0x34] sm:$0xf]
        %v763 = vld [vmem:[#allocation7 + $0x38] sm:$0xf]
        %v764 = vld [vmem:[#allocation7 + $0x3c] sm:$0xf]
        %v781 = vunpack.c.l.b16 %v749
        %v782 = vunpack.c.l.b16 %v750
        %v783 = vunpack.c.l.b16 %v751
        %v784 = vunpack.c.l.b16 %v752
        %v785 = vunpack.c.l.b16 %v753
        %v786 = vunpack.c.l.b16 %v754
        %v787 = vunpack.c.l.b16 %v755
        %v788 = vunpack.c.l.b16 %v756
        %v789 = vunpack.c.l.b16 %v757
        %v790 = vunpack.c.l.b16 %v758
        %v791 = vunpack.c.l.b16 %v759
        %v792 = vunpack.c.l.b16 %v760
        %v793 = vunpack.c.l.b16 %v761
        %v794 = vunpack.c.l.b16 %v762
        %v795 = vunpack.c.l.b16 %v763
        %v796 = vunpack.c.l.b16 %v764
        %v797 = vpack.c.b16 %v782, %v781
        %v798 = vpack.c.b16 %v784, %v783
        %v799 = vpack.c.b16 %v786, %v785
        %v800 = vpack.c.b16 %v788, %v787
        %v801 = vpack.c.b16 %v790, %v789
        %v802 = vpack.c.b16 %v792, %v791
        %v803 = vpack.c.b16 %v794, %v793
        %v804 = vpack.c.b16 %v796, %v795
        %813 = vmatprep.subr.bf16.mxu0 0
        %814 = vmatpush1.bf16.msra.mxu0 %v804
        %815 = vmatprep.subr.bf16.mxu0 0
        %816 = vmatpush1.bf16.msra.mxu0 %v803
        %817 = vmatprep.subr.bf16.mxu0 0
        %818 = vmatpush1.bf16.msra.mxu0 %v802
        %819 = vmatprep.subr.bf16.mxu0 0
        %820 = vmatpush1.bf16.msra.mxu0 %v801
        %821 = vmatprep.subr.bf16.mxu0 0
        %822 = vmatpush1.bf16.msra.mxu0 %v800
        %823 = vmatprep.subr.bf16.mxu0 0
        %824 = vmatpush1.bf16.msra.mxu0 %v799
        %825 = vmatprep.subr.bf16.mxu0 0
        %826 = vmatpush1.bf16.msra.mxu0 %v798
        %827 = vmatprep.subr.bf16.mxu0 0
        %828 = vmatpush1.bf16.msra.mxu0 %v797
        %829 = vmatprep.subr.bf16.mxu0 0
        %830 = vmatpush2.bf16.msra.mxu0 0
        %831 = vmatprep.subr.bf16.mxu0 0
        %832 = vmatpush2.bf16.msra.mxu0 0
        %833 = vmatprep.subr.bf16.mxu0 0
        %834 = vmatpush2.bf16.msra.mxu0 0
        %835 = vmatprep.subr.bf16.mxu0 0
        %836 = vmatpush2.bf16.msra.mxu0 0
        %837 = vmatprep.subr.bf16.mxu0 0
        %838 = vmatpush2.bf16.msra.mxu0 0
        %839 = vmatprep.subr.bf16.mxu0 0
        %840 = vmatpush2.bf16.msra.mxu0 0
        %841 = vmatprep.subr.bf16.mxu0 0
        %842 = vmatpush2.bf16.msra.mxu0 0
        %843 = vmatprep.subr.bf16.mxu0 0
        %844 = vmatpush2.bf16.msra.mxu0 0
        %845 = vmatprep.mubr.bf16.mxu0 0
        %846 = vmatmul.mubr.bf16.gmra.mxu0 %v658
        %v847 = vpop.f32.mrf.mxu0
        %v848 = vadd.f32 0.0, %v847
        %v849 = vpop.f32.mrf.mxu0
        %v850 = vpop.f32.mrf.mxu0
        %v851 = vadd.f32 0.0, %v850
        %v852 = vpop.f32.mrf.mxu0
        %853 = vdwg.mxu0
        %v854 = vpack.c.bf16 %v851, %v848
        %vm855 = vcmask 523264
        %v857 = vsel %vm855, %v641, 0
        %v860 = vsel %vm855, %v748, 0
        %862 = vmatprep.subr.bf16.mxu0 0
        %863 = vmatpush1.bf16.xpose.msra.mxu0 0
        %864 = vmatprep.subr.bf16.mxu0 0
        %865 = vmatpush1.bf16.xpose.msra.mxu0 0
        %866 = vmatprep.subr.bf16.mxu0 0
        %867 = vmatpush1.bf16.xpose.msra.mxu0 0
        %868 = vmatprep.subr.bf16.mxu0 0
        %869 = vmatpush1.bf16.xpose.msra.mxu0 0
        %870 = vmatprep.subr.bf16.mxu0 0
        %871 = vmatpush1.bf16.xpose.msra.mxu0 0
        %872 = vmatprep.subr.bf16.mxu0 0
        %873 = vmatpush1.bf16.xpose.msra.mxu0 0
        %874 = vmatprep.subr.bf16.mxu0 0
        %875 = vmatpush1.bf16.xpose.msra.mxu0 0
        %876 = vmatprep.subr.bf16.mxu0 0
        %877 = vmatpush1.bf16.xpose.msra.mxu0 %v860
        %878 = vmatprep.subr.bf16.mxu0 0
        %879 = vmatpush2.bf16.xpose.msra.mxu0 0
        %880 = vmatprep.subr.bf16.mxu0 0
        %881 = vmatpush2.bf16.xpose.msra.mxu0 0
        %882 = vmatprep.subr.bf16.mxu0 0
        %883 = vmatpush2.bf16.xpose.msra.mxu0 0
        %884 = vmatprep.subr.bf16.mxu0 0
        %885 = vmatpush2.bf16.xpose.msra.mxu0 0
        %886 = vmatprep.subr.bf16.mxu0 0
        %887 = vmatpush2.bf16.xpose.msra.mxu0 0
        %888 = vmatprep.subr.bf16.mxu0 0
        %889 = vmatpush2.bf16.xpose.msra.mxu0 0
        %890 = vmatprep.subr.bf16.mxu0 0
        %891 = vmatpush2.bf16.xpose.msra.mxu0 0
        %892 = vmatprep.subr.bf16.mxu0 0
        %893 = vmatpush2.bf16.xpose.msra.mxu0 0
        %894 = vmatprep.mubr.bf16.mxu0 0
        %895 = vmatmul.mubr.bf16.gmra.mxu0 %v857
        %v896 = vpop.f32.mrf.mxu0
        %v897 = vadd.f32 0.0, %v896
        %v898 = vpop.f32.mrf.mxu0
        %v899 = vpop.f32.mrf.mxu0
        %v900 = vadd.f32 0.0, %v899
        %v901 = vpop.f32.mrf.mxu0
        %902 = vdwg.mxu0
        %vm903 = vcmask 130048
        %v904 = vsel %vm903, %v897, -inf
        %905 = vmax.xlane.f32.xlu0 %v904
        %v906 = vpop.xlane.xlu0 %905
        %v907 = vsel %vm903, %v900, -inf
        %908 = vmax.xlane.f32.xlu0 %v907
        %v909 = vpop.xlane.xlu0 %908
        %v910 = vsub.f32 %v897, %v906
        %v911 = vsub.f32 %v900, %v909
        %v912 = vmul.f32 %v910, 1.442695
        %v913 = vpow.pop %v912
        %v914 = vmul.f32 %v911, 1.442695
        %v915 = vpow.pop %v914
        %v916 = vsel %vm903, %v913, 0.0
        %917 = vadd.xlane.f32.xlu0 %v916
        %v918 = vpop.xlane.xlu0 %917
        %v919 = vsel %vm903, %v915, 0.0
        %920 = vadd.xlane.f32.xlu0 %v919
        %v921 = vpop.xlane.xlu0 %920
        %v922 = vrcp.pop %v918
        %v923 = vrcp.pop %v921
        %v924 = vmul.f32 %v913, %v922
        %v925 = vmul.f32 %v915, %v923
        %v926 = vpack.c.bf16 %v925, %v924
        %v928 = vsel %vm903, %v926, 0
        %930 = vmatprep.subr.bf16.mxu0 0
        %931 = vmatpush1.bf16.msra.mxu0 0
        %932 = vmatprep.subr.bf16.mxu0 0
        %933 = vmatpush1.bf16.msra.mxu0 0
        %934 = vmatprep.subr.bf16.mxu0 0
        %935 = vmatpush1.bf16.msra.mxu0 0
        %936 = vmatprep.subr.bf16.mxu0 0
        %937 = vmatpush1.bf16.msra.mxu0 0
        %938 = vmatprep.subr.bf16.mxu0 0
        %939 = vmatpush1.bf16.msra.mxu0 0
        %940 = vmatprep.subr.bf16.mxu0 0
        %941 = vmatpush1.bf16.msra.mxu0 0
        %942 = vmatprep.subr.bf16.mxu0 0
        %943 = vmatpush1.bf16.msra.mxu0 0
        %944 = vmatprep.subr.bf16.mxu0 0
        %945 = vmatpush1.bf16.msra.mxu0 %v854
        %946 = vmatprep.subr.bf16.mxu0 0
        %947 = vmatpush2.bf16.msra.mxu0 0
        %948 = vmatprep.subr.bf16.mxu0 0
        %949 = vmatpush2.bf16.msra.mxu0 0
        %950 = vmatprep.subr.bf16.mxu0 0
        %951 = vmatpush2.bf16.msra.mxu0 0
        %952 = vmatprep.subr.bf16.mxu0 0
        %953 = vmatpush2.bf16.msra.mxu0 0
        %954 = vmatprep.subr.bf16.mxu0 0
        %955 = vmatpush2.bf16.msra.mxu0 0
        %956 = vmatprep.subr.bf16.mxu0 0
        %957 = vmatpush2.bf16.msra.mxu0 0
        %958 = vmatprep.subr.bf16.mxu0 0
        %959 = vmatpush2.bf16.msra.mxu0 0
        %960 = vmatprep.subr.bf16.mxu0 0
        %961 = vmatpush2.bf16.msra.mxu0 0
        %962 = vmatprep.mubr.bf16.mxu0 0
        %963 = vmatmul.mubr.bf16.gmra.mxu0 %v928
        %v964 = vpop.f32.mrf.mxu0
        %v965 = vadd.f32 0.0, %v964
        %v966 = vpop.f32.mrf.mxu0
        %v967 = vpop.f32.mrf.mxu0
        %v968 = vadd.f32 0.0, %v967
        %v969 = vpop.f32.mrf.mxu0
        %970 = vdwg.mxu0
        %v971 = vpack.c.bf16 %v968, %v965
        %v973 = vunpack.c.l.b16 %v971
        %v974 = vunpack.c.h.b16 %v971
        %v975 = vpack.c.b16 %v973, %v973
        %v976 = vpack.c.b16 %v974, %v974
        %vm979 = vcmask 519168
        %980 = vst.msk [vmem:[#allocation2] sm:$0xf] %vm979, %v975
        %981 = vst.msk [vmem:[#allocation2 + $0x4] sm:$0xf] %vm979, %v976
        %983 = vrot.lane.b32.xlu0 %v641, 64
        %v984 = vpop.permute.xlu0 %983
        %986 = vrot.lane.b32.xlu0 %v748, 64
        %v987 = vpop.permute.xlu0 %986
        %v989 = vsel %vm855, %v984, 0
        %v992 = vsel %vm855, %v987, 0
        %994 = vmatprep.subr.bf16.mxu0 0
        %995 = vmatpush1.bf16.xpose.msra.mxu0 0
        %996 = vmatprep.subr.bf16.mxu0 0
        %997 = vmatpush1.bf16.xpose.msra.mxu0 0
        %998 = vmatprep.subr.bf16.mxu0 0
        %999 = vmatpush1.bf16.xpose.msra.mxu0 0
        %1000 = vmatprep.subr.bf16.mxu0 0
        %1001 = vmatpush1.bf16.xpose.msra.mxu0 0
        %1002 = vmatprep.subr.bf16.mxu0 0
        %1003 = vmatpush1.bf16.xpose.msra.mxu0 0
        %1004 = vmatprep.subr.bf16.mxu0 0
        %1005 = vmatpush1.bf16.xpose.msra.mxu0 0
        %1006 = vmatprep.subr.bf16.mxu0 0
        %1007 = vmatpush1.bf16.xpose.msra.mxu0 0
        %1008 = vmatprep.subr.bf16.mxu0 0
        %1009 = vmatpush1.bf16.xpose.msra.mxu0 %v992
        %1010 = vmatprep.subr.bf16.mxu0 0
        %1011 = vmatpush2.bf16.xpose.msra.mxu0 0
        %1012 = vmatprep.subr.bf16.mxu0 0
        %1013 = vmatpush2.bf16.xpose.msra.mxu0 0
        %1014 = vmatprep.subr.bf16.mxu0 0
        %1015 = vmatpush2.bf16.xpose.msra.mxu0 0
        %1016 = vmatprep.subr.bf16.mxu0 0
        %1017 = vmatpush2.bf16.xpose.msra.mxu0 0
        %1018 = vmatprep.subr.bf16.mxu0 0
        %1019 = vmatpush2.bf16.xpose.msra.mxu0 0
        %1020 = vmatprep.subr.bf16.mxu0 0
        %1021 = vmatpush2.bf16.xpose.msra.mxu0 0
        %1022 = vmatprep.subr.bf16.mxu0 0
        %1023 = vmatpush2.bf16.xpose.msra.mxu0 0
        %1024 = vmatprep.subr.bf16.mxu0 0
        %1025 = vmatpush2.bf16.xpose.msra.mxu0 0
        %1026 = vmatprep.mubr.bf16.mxu0 0
        %1027 = vmatmul.mubr.bf16.gmra.mxu0 %v989
        %v1028 = vpop.f32.mrf.mxu0
        %v1029 = vadd.f32 0.0, %v1028
        %v1030 = vpop.f32.mrf.mxu0
        %v1031 = vpop.f32.mrf.mxu0
        %v1032 = vadd.f32 0.0, %v1031
        %v1033 = vpop.f32.mrf.mxu0
        %1034 = vdwg.mxu0
        %v1035 = vsel %vm903, %v1029, -inf
        %1036 = vmax.xlane.f32.xlu0 %v1035
        %v1037 = vpop.xlane.xlu0 %1036
        %v1038 = vsel %vm903, %v1032, -inf
        %1039 = vmax.xlane.f32.xlu0 %v1038
        %v1040 = vpop.xlane.xlu0 %1039
        %v1041 = vsub.f32 %v1029, %v1037
        %v1042 = vsub.f32 %v1032, %v1040
        %v1043 = vmul.f32 %v1041, 1.442695
        %v1044 = vpow.pop %v1043
        %v1045 = vmul.f32 %v1042, 1.442695
        %v1046 = vpow.pop %v1045
        %v1047 = vsel %vm903, %v1044, 0.0
        %1048 = vadd.xlane.f32.xlu0 %v1047
        %v1049 = vpop.xlane.xlu0 %1048
        %v1050 = vsel %vm903, %v1046, 0.0
        %1051 = vadd.xlane.f32.xlu0 %v1050
        %v1052 = vpop.xlane.xlu0 %1051
        %v1053 = vrcp.pop %v1049
        %v1054 = vrcp.pop %v1052
        %v1055 = vmul.f32 %v1044, %v1053
        %v1056 = vmul.f32 %v1046, %v1054
        %v1057 = vpack.c.bf16 %v1056, %v1055
        %1059 = vrot.lane.b32.xlu0 %v854, 64
        %v1060 = vpop.permute.xlu0 %1059
        %v1063 = vsel %vm903, %v1057, 0
        %1065 = vmatprep.subr.bf16.mxu0 0
        %1066 = vmatpush1.bf16.msra.mxu0 0
        %1067 = vmatprep.subr.bf16.mxu0 0
        %1068 = vmatpush1.bf16.msra.mxu0 0
        %1069 = vmatprep.subr.bf16.mxu0 0
        %1070 = vmatpush1.bf16.msra.mxu0 0
        %1071 = vmatprep.subr.bf16.mxu0 0
        %1072 = vmatpush1.bf16.msra.mxu0 0
        %1073 = vmatprep.subr.bf16.mxu0 0
        %1074 = vmatpush1.bf16.msra.mxu0 0
        %1075 = vmatprep.subr.bf16.mxu0 0
        %1076 = vmatpush1.bf16.msra.mxu0 0
        %1077 = vmatprep.subr.bf16.mxu0 0
        %1078 = vmatpush1.bf16.msra.mxu0 0
        %1079 = vmatprep.subr.bf16.mxu0 0
        %1080 = vmatpush1.bf16.msra.mxu0 %v1060
        %1081 = vmatprep.subr.bf16.mxu0 0
        %1082 = vmatpush2.bf16.msra.mxu0 0
        %1083 = vmatprep.subr.bf16.mxu0 0
        %1084 = vmatpush2.bf16.msra.mxu0 0
        %1085 = vmatprep.subr.bf16.mxu0 0
        %1086 = vmatpush2.bf16.msra.mxu0 0
        %1087 = vmatprep.subr.bf16.mxu0 0
        %1088 = vmatpush2.bf16.msra.mxu0 0
        %1089 = vmatprep.subr.bf16.mxu0 0
        %1090 = vmatpush2.bf16.msra.mxu0 0
        %1091 = vmatprep.subr.bf16.mxu0 0
        %1092 = vmatpush2.bf16.msra.mxu0 0
        %1093 = vmatprep.subr.bf16.mxu0 0
        %1094 = vmatpush2.bf16.msra.mxu0 0
        %1095 = vmatprep.subr.bf16.mxu0 0
        %1096 = vmatpush2.bf16.msra.mxu0 0
        %1097 = vmatprep.mubr.bf16.mxu0 0
        %1098 = vmatmul.mubr.bf16.gmra.mxu0 %v1063
        %v1099 = vpop.f32.mrf.mxu0
        %v1100 = vadd.f32 0.0, %v1099
        %v1101 = vpop.f32.mrf.mxu0
        %v1102 = vpop.f32.mrf.mxu0
        %v1103 = vadd.f32 0.0, %v1102
        %v1104 = vpop.f32.mrf.mxu0
        %1105 = vdwg.mxu0
        %v1106 = vpack.c.bf16 %v1103, %v1100
        %v1108 = vunpack.c.l.b16 %v1106
        %v1109 = vunpack.c.h.b16 %v1106
        %v1110 = vpack.c.b16 %v1108, %v1108
        %v1111 = vpack.c.b16 %v1109, %v1109
        %1112 = vrot.lane.b32.xlu0 %v1110, 64
        %v1113 = vpop.permute.xlu0 %1112
        %1114 = vrot.lane.b32.xlu0 %v1111, 64
        %v1115 = vpop.permute.xlu0 %1114
        %vm1118 = vcmask 1043968
        %1119 = vst.msk [vmem:[#allocation2] sm:$0xf] %vm1118, %v1113
        %1120 = vst.msk [vmem:[#allocation2 + $0x4] sm:$0xf] %vm1118, %v1115
        %v1121 = vld [vmem:[#allocation10] sm:$0x1]
        %v1123 = vlaneseq
        %v1124 = vshrl.u32 %v1123, 7
        %v1125 = vsub.s32 0, %v1124
        %v1126 = vrot.slane %v1121, %v1125
        %v1128 = vadd.f32 %v464, %v1126
        %v1129 = vadd.f32 %v465, %v1126
        %v1130 = vld [vmem:[#allocation2] sm:$0xf]
        %v1131 = vld [vmem:[#allocation2 + $0x4] sm:$0xf]
        %v1132 = vld [vmem:[#allocation8] sm:$0xf]
        %v1133 = vld [vmem:[#allocation8 + $0x4] sm:$0xf]
        %v1134 = vld [vmem:[#allocation8 + $0x8] sm:$0xf]
        %v1135 = vld [vmem:[#allocation8 + $0xc] sm:$0xf]
        %v1136 = vld [vmem:[#allocation8 + $0x10] sm:$0xf]
        %v1137 = vld [vmem:[#allocation8 + $0x14] sm:$0xf]
        %v1138 = vld [vmem:[#allocation8 + $0x18] sm:$0xf]
        %v1139 = vld [vmem:[#allocation8 + $0x1c] sm:$0xf]
        %v1140 = vld [vmem:[#allocation8 + $0x20] sm:$0xf]
        %v1141 = vld [vmem:[#allocation8 + $0x24] sm:$0xf]
        %v1142 = vld [vmem:[#allocation8 + $0x28] sm:$0xf]
        %v1143 = vld [vmem:[#allocation8 + $0x2c] sm:$0xf]
        %v1144 = vld [vmem:[#allocation8 + $0x30] sm:$0xf]
        %v1145 = vld [vmem:[#allocation8 + $0x34] sm:$0xf]
        %v1146 = vld [vmem:[#allocation8 + $0x38] sm:$0xf]
        %v1147 = vld [vmem:[#allocation8 + $0x3c] sm:$0xf]
        %v1150 = vunpack.c.l.b16 %v1130
        %v1151 = vunpack.c.l.b16 %v1131
        %v1152 = vpack.c.b16 %v1151, %v1150
        %v1170 = vunpack.c.l.b16 %v1132
        %v1171 = vunpack.c.l.b16 %v1133
        %v1172 = vunpack.c.l.b16 %v1134
        %v1173 = vunpack.c.l.b16 %v1135
        %v1174 = vunpack.c.l.b16 %v1136
        %v1175 = vunpack.c.l.b16 %v1137
        %v1176 = vunpack.c.l.b16 %v1138
        %v1177 = vunpack.c.l.b16 %v1139
        %v1178 = vunpack.c.l.b16 %v1140
        %v1179 = vunpack.c.l.b16 %v1141
        %v1180 = vunpack.c.l.b16 %v1142
        %v1181 = vunpack.c.l.b16 %v1143
        %v1182 = vunpack.c.l.b16 %v1144
        %v1183 = vunpack.c.l.b16 %v1145
        %v1184 = vunpack.c.l.b16 %v1146
        %v1185 = vunpack.c.l.b16 %v1147
        %v1186 = vpack.c.b16 %v1171, %v1170
        %v1187 = vpack.c.b16 %v1173, %v1172
        %v1188 = vpack.c.b16 %v1175, %v1174
        %v1189 = vpack.c.b16 %v1177, %v1176
        %v1190 = vpack.c.b16 %v1179, %v1178
        %v1191 = vpack.c.b16 %v1181, %v1180
        %v1192 = vpack.c.b16 %v1183, %v1182
        %v1193 = vpack.c.b16 %v1185, %v1184
        %1202 = vmatprep.subr.bf16.mxu0 0
        %1203 = vmatpush1.bf16.msra.mxu0 %v1193
        %1204 = vmatprep.subr.bf16.mxu0 0
        %1205 = vmatpush1.bf16.msra.mxu0 %v1192
        %1206 = vmatprep.subr.bf16.mxu0 0
        %1207 = vmatpush1.bf16.msra.mxu0 %v1191
        %1208 = vmatprep.subr.bf16.mxu0 0
        %1209 = vmatpush1.bf16.msra.mxu0 %v1190
        %1210 = vmatprep.subr.bf16.mxu0 0
        %1211 = vmatpush1.bf16.msra.mxu0 %v1189
        %1212 = vmatprep.subr.bf16.mxu0 0
        %1213 = vmatpush1.bf16.msra.mxu0 %v1188
        %1214 = vmatprep.subr.bf16.mxu0 0
        %1215 = vmatpush1.bf16.msra.mxu0 %v1187
        %1216 = vmatprep.subr.bf16.mxu0 0
        %1217 = vmatpush1.bf16.msra.mxu0 %v1186
        %1218 = vmatprep.subr.bf16.mxu0 0
        %1219 = vmatpush2.bf16.msra.mxu0 0
        %1220 = vmatprep.subr.bf16.mxu0 0
        %1221 = vmatpush2.bf16.msra.mxu0 0
        %1222 = vmatprep.subr.bf16.mxu0 0
        %1223 = vmatpush2.bf16.msra.mxu0 0
        %1224 = vmatprep.subr.bf16.mxu0 0
        %1225 = vmatpush2.bf16.msra.mxu0 0
        %1226 = vmatprep.subr.bf16.mxu0 0
        %1227 = vmatpush2.bf16.msra.mxu0 0
        %1228 = vmatprep.subr.bf16.mxu0 0
        %1229 = vmatpush2.bf16.msra.mxu0 0
        %1230 = vmatprep.subr.bf16.mxu0 0
        %1231 = vmatpush2.bf16.msra.mxu0 0
        %1232 = vmatprep.subr.bf16.mxu0 0
        %1233 = vmatpush2.bf16.msra.mxu0 0
        %1234 = vmatprep.mubr.bf16.mxu0 0
        %1235 = vmatmul.mubr.bf16.gmra.mxu0 %v1152
        %v1236 = vpop.f32.mrf.mxu0
        %v1237 = vadd.f32 0.0, %v1236
        %v1238 = vpop.f32.mrf.mxu0
        %v1239 = vpop.f32.mrf.mxu0
        %v1240 = vadd.f32 0.0, %v1239
        %v1241 = vpop.f32.mrf.mxu0
        %1242 = vdwg.mxu0
        %v1243 = vadd.f32 %v1128, %v1237
        %v1244 = vadd.f32 %v1129, %v1240
        %1245 = vst [vmem:[%s461] sm:$0xff] %v1243
        %1246 = vst [vmem:[%s461 + $0x8] sm:$0xff] %v1244
        %s1247 = smul.u32 2, %s28
        %p1248 = scmp.lt.s32.totalorder %s27, 1
        %s1249 = scalar_select %p1248, %s27, 1
        %p1250 = scmp.lt.s32.totalorder %s1247, 1
        %s1251 = scalar_select %p1250, %s1247, 1
        %s1252 = smul.addr %s1249, 2
        %s1253 = sadd.s32 %s1251, %s1252
        %s1254 = smul.addr %s1253, 8
        %s1255 = scalar_lea.vmem %s9, %s1254
        // Predicated region
        $region77: #{latent_injection_transformer.14} parent=55 // pred_check
          %p1256 = pneg %p256
        $region78: #{latent_injection_transformer.14} parent=55 // pred_check_branch
          %1258 = sbr.rel (%p1256) target = $region80
        $region79: #{latent_injection_transformer.14} parent=55 // pred_region
          %s1259 = smul.u32 2, %s28
        $region80: #{latent_injection_transformer.14} parent=55 // pred_fallthru
          _
      $region56: #{latent_injection_transformer.14} parent=5 // pred_fallthru
        _
      %p1260 = scmp.le.s32.totalorder 2, %s18
      // Predicated region
      $region81: #{latent_injection_transformer.14} parent=5 // pred_check
        %p1261 = pneg %p1260
      $region82: #{latent_injection_transformer.14} parent=5 // pred_check_branch
        %1263 = sbr.rel (%p1261) target = $region84
      $region83: #{latent_injection_transformer.14} parent=5 // pred_region
        %s1264 = ssub.s32 %s18, 2
        // Predicated region
        $region85: #{latent_injection_transformer.14} parent=83 // pred_check
          %p1265 = pneg %p262
        $region86: #{latent_injection_transformer.14} parent=83 // pred_check_branch
          %1267 = sbr.rel (%p1265) target = $region88
        $region87: #{latent_injection_transformer.14} parent=83 // pred_region
          %s1268 = smul.u32 2, %s30
          %p1269 = scmp.lt.s32.totalorder %s29, 1
          %s1270 = scalar_select %p1269, %s29, 1
          %p1271 = scmp.lt.s32.totalorder %s1268, 1
          %s1272 = scalar_select %p1271, %s1268, 1
          %s1273 = smul.addr %s1270, 2
          %s1274 = sadd.s32 %s1272, %s1273
          %s1275 = smul.addr %s1274, 8
          %s1276 = scalar_lea.vmem %s9, %s1275
        $region88: #{latent_injection_transformer.14} parent=83 // pred_fallthru
          _
      $region84: #{latent_injection_transformer.14} parent=5 // pred_fallthru
        _
    $region6: #{latent_injection_transformer.14} parent=1 // loop_footer
      %s22 = sadd.s32 1, %s18
    $region7: #{latent_injection_transformer.14} parent=1 // loop_footer_branch
      %17 = sbr.rel target = $region3
    $region8: #{latent_injection_transformer.14} parent=1 // loop_exit
      _
    %1277 = vsyncpa [#allocation4], 1
    %s1278 = scalar_lea.sflag [#allocation4], 1
    %1279 = vsyncpa %s1278, 1
    %1280 = vsyncpa [#allocation6], 1
    %1281 = vsyncpa [#allocation9], 1

// kernel: latent_injection_transformer.13
$region0: #{latent_injection_transformer.13}
  #allocation0 [shape = 'u32[]', space=smem, size = 0x4, offset = 0x4, fixed_abs, tag = 'smem constant byte address 0x4 - core index']
  #allocation1 [shape = 'u32[144,128]{1,0:T(1,128)}', space=vmem, size = 0x12000, scoped, tag = 'internal scratch']
  #allocation2 [shape = 'bf16[16,128]{1,0:T(8,128)(2,1)}', space=vmem, size = 0x1000, scoped, tag = 'scratch operand']
  %s0 = inlined_call_operand.vmem [shape: f32[2,16,128], index: 0, kind: input, shape index: {}, may-alias: {0,1}]
  %s1 = inlined_call_operand.vmem [shape: f32[2,16,128], index: 1, kind: input, shape index: {}, may-alias: {0,1}]
  %s2 = inlined_call_operand.vmem [shape: f32[1,128], index: 2, kind: input, shape index: {}]
  %s3 = inlined_call_operand.vmem [shape: f32[1,128], index: 3, kind: input, shape index: {}]
  %s4 = inlined_call_operand.vmem [shape: bf16[128,128], index: 4, kind: input, shape index: {}]
  %s5 = inlined_call_operand.hbm [shape: bf16[128,128], index: 5, kind: input, shape index: {}]
  %s6 = inlined_call_operand.hbm [shape: bf16[128,128], index: 6, kind: input, shape index: {}]
  %s7 = inlined_call_operand.hbm [shape: bf16[128,128], index: 7, kind: input, shape index: {}]
  %s8 = inlined_call_operand.hbm [shape: f32[1,128], index: 8, kind: input, shape index: {}]
  %s9 = inlined_call_operand.vmem [shape: f32[2,16,128], index: 9, kind: output, shape index: {}]
  %s10 = sld [smem:[#allocation0]]
  $region85: #{latent_injection_transformer.13} parent=0
    _
  %s12 = ssub.s32 1, %s10
  %s13 = scalar_select 0, %s12, %s10
  $region1: #{latent_injection_transformer.13} parent=0
    #allocation3 [shape = 'u8[32768]{0}', space=vmem, size = 0x8000, scoped, tag = 'input window, operand 5, single buffered']
    #allocation4 [shape = 's32[2]{0}', space=sflag, size = 0x8, scoped, tag = 'scoped memory for latent_injection_transformer.13']
    #allocation5 [shape = 'u8[32768]{0}', space=vmem, size = 0x8000, scoped, tag = 'input window, operand 6, single buffered']
    #allocation6 [shape = 's32[1]{0}', space=sflag, size = 0x4, scoped, tag = 'scoped memory for latent_injection_transformer.13']
    #allocation7 [shape = 'u8[32768]{0}', space=vmem, size = 0x8000, scoped, tag = 'input window, operand 7, single buffered']
    #allocation8 [shape = 'u8[512]{0}', space=vmem, size = 0x400, scoped, tag = 'input window, operand 8, single buffered']
    #allocation9 [shape = 's32[1]{0}', space=sflag, size = 0x4, scoped, tag = 'scoped memory for latent_injection_transformer.13']
    %14 = vsyncpa [#allocation4], 0
    %15 = vsyncpa [#allocation6], 0
    %16 = vsyncpa [#allocation9], 0
    loop: start=0, step=1, limit=4
    $region2: #{latent_injection_transformer.13} parent=1 // loop_pre_header
      _
    $region3: #{latent_injection_transformer.13} parent=1 // loop_header
      %s18 = sphi 0, %s22
      %p19 = scmp.ge.s32.totalorder %s18, 4
      %s25 = sphi 0, %s37
      %s26 = sphi 0, %s33
      %s27 = sphi 0, %s25
      %s28 = sphi 0, %s26
      %s29 = sphi 0, %s27
      %s30 = sphi 0, %s28
      %s42 = sphi 0, %s44
      %s45 = sphi 0, %s42
      %s46 = sphi 0, %s45
      %s62 = sphi 0, %s46
      %s68 = sphi 0, %s70
      %s71 = sphi 0, %s68
      %s72 = sphi 0, %s71
      %s88 = sphi 0, %s72
      %s92 = sphi 0, %s92
      %s94 = sphi 0, %s92
      %s95 = sphi 0, %s94
      %s109 = sphi 0, %s95
      %s113 = sphi 0, %s113
      %s115 = sphi 0, %s113
      %s116 = sphi 0, %s115
      %s130 = sphi 0, %s116
      %s134 = sphi 0, %s134
      %s136 = sphi 0, %s134
      %s137 = sphi 0, %s136
      %s151 = sphi 0, %s137
      %s155 = sphi 0, %s155
      %s157 = sphi 0, %s155
      %s158 = sphi 0, %s157
      %s172 = sphi 0, %s158
      %s176 = sphi 0, %s176
      %s178 = sphi 0, %s176
      %s179 = sphi 0, %s178
      %s193 = sphi 0, %s179
      %s197 = sphi 0, %s197
      %s199 = sphi 0, %s197
      %s200 = sphi 0, %s199
      %s214 = sphi 0, %s200
      %s218 = sphi 0, %s218
      %s220 = sphi 0, %s218
      %s221 = sphi 0, %s220
      %s235 = sphi 0, %s221
      %s243 = sphi 0, %s245
      %s246 = sphi 0, %s243
      %s247 = sphi 0, %s246
      %s263 = sphi 0, %s247
    $region4: #{latent_injection_transformer.13} parent=1 // loop_header_branch
      %21 = sbr.rel (%p19) target = $region8
    $region5: #{latent_injection_transformer.13} parent=1 // loop_body
      %s23 = ssub.s32 %s18, 1
      %s24 = ssub.s32 %s18, 2
      %s31 = sadd.s32 1, %s26
      %p32 = scmp.ge.s32.totalorder %s31, 1
      %s33 = scalar_select %p32, 0, %s31
      %s34 = sadd.s32 1, %s25
      %s35 = scalar_select %p32, %s34, %s25
      %p36 = scmp.ge.s32.totalorder %s35, 2
      %s37 = scalar_select %p36, 0, %s35
      %s38 = ssub.s32 %s25, %s37
      %s39 = ssub.s32 %s26, %s33
      %s40 = sor.u32 %s38, %s39
      %p41 = scmp.eq.s32.totalorder %s40, 0
      %s43 = sadd.s32 %s42, 1
      %s44 = scalar_select %p41, %s42, %s43
      %p47 = pneg %p41
      %p48 = scmp.eq.s32.totalorder %s18, 1
      %p49 = por %p47, %p48
      %p50 = scmp.ne.s32.totalorder %s42, %s45
      %p51 = scmp.eq.s32.totalorder %s18, 0
      %p52 = por %p50, %p51
      %p53 = scmp.ne.s32.totalorder %s42, %s45
      %p54 = scmp.eq.s32.totalorder %s23, 1
      %p55 = por %p53, %p54
      %p56 = scmp.ne.s32.totalorder %s45, %s46
      %p57 = scmp.eq.s32.totalorder %s23, 0
      %p58 = por %p56, %p57
      %p59 = scmp.ne.s32.totalorder %s45, %s46
      %p60 = scmp.eq.s32.totalorder %s24, 1
      %p61 = por %p59, %p60
      %p63 = scmp.ne.s32.totalorder %s46, %s62
      %p64 = scmp.eq.s32.totalorder %s24, 0
      %p65 = por %p63, %p64
      %s66 = ssub.s32 %s25, %s37
      %p67 = scmp.eq.s32.totalorder %s66, 0
      %s69 = sadd.s32 %s68, 1
      %s70 = scalar_select %p67, %s68, %s69
      %p73 = pneg %p67
      %p74 = scmp.eq.s32.totalorder %s18, 1
      %p75 = por %p73, %p74
      %p76 = scmp.ne.s32.totalorder %s68, %s71
      %p77 = scmp.eq.s32.totalorder %s18, 0
      %p78 = por %p76, %p77
      %p79 = scmp.ne.s32.totalorder %s68, %s71
      %p80 = scmp.eq.s32.totalorder %s23, 1
      %p81 = por %p79, %p80
      %p82 = scmp.ne.s32.totalorder %s71, %s72
      %p83 = scmp.eq.s32.totalorder %s23, 0
      %p84 = por %p82, %p83
      %p85 = scmp.ne.s32.totalorder %s71, %s72
      %p86 = scmp.eq.s32.totalorder %s24, 1
      %p87 = por %p85, %p86
      %p89 = scmp.ne.s32.totalorder %s72, %s88
      %p90 = scmp.eq.s32.totalorder %s24, 0
      %p91 = por %p89, %p90
      %s93 = sadd.s32 %s92, 1
      %p96 = scmp.eq.s32.totalorder %s18, 1
      %p97 = scmp.ne.s32.totalorder %s92, %s94
      %p98 = scmp.eq.s32.totalorder %s18, 0
      %p99 = por %p97, %p98
      %p100 = scmp.ne.s32.totalorder %s92, %s94
      %p101 = scmp.eq.s32.totalorder %s23, 1
      %p102 = por %p100, %p101
      %p103 = scmp.ne.s32.totalorder %s94, %s95
      %p104 = scmp.eq.s32.totalorder %s23, 0
      %p105 = por %p103, %p104
      %p106 = scmp.ne.s32.totalorder %s94, %s95
      %p107 = scmp.eq.s32.totalorder %s24, 1
      %p108 = por %p106, %p107
      %p110 = scmp.ne.s32.totalorder %s95, %s109
      %p111 = scmp.eq.s32.totalorder %s24, 0
      %p112 = por %p110, %p111
      %s114 = sadd.s32 %s113, 1
      %p117 = scmp.eq.s32.totalorder %s18, 1
      %p118 = scmp.ne.s32.totalorder %s113, %s115
      %p119 = scmp.eq.s32.totalorder %s18, 0
      %p120 = por %p118, %p119
      %p121 = scmp.ne.s32.totalorder %s113, %s115
      %p122 = scmp.eq.s32.totalorder %s23, 1
      %p123 = por %p121, %p122
      %p124 = scmp.ne.s32.totalorder %s115, %s116
      %p125 = scmp.eq.s32.totalorder %s23, 0
      %p126 = por %p124, %p125
      %p127 = scmp.ne.s32.totalorder %s115, %s116
      %p128 = scmp.eq.s32.totalorder %s24, 1
      %p129 = por %p127, %p128
      %p131 = scmp.ne.s32.totalorder %s116, %s130
      %p132 = scmp.eq.s32.totalorder %s24, 0
      %p133 = por %p131, %p132
      %s135 = sadd.s32 %s134, 1
      %p138 = scmp.eq.s32.totalorder %s18, 1
      %p139 = scmp.ne.s32.totalorder %s134, %s136
      %p140 = scmp.eq.s32.totalorder %s18, 0
      %p141 = por %p139, %p140
      %p142 = scmp.ne.s32.totalorder %s134, %s136
      %p143 = scmp.eq.s32.totalorder %s23, 1
      %p144 = por %p142, %p143
      %p145 = scmp.ne.s32.totalorder %s136, %s137
      %p146 = scmp.eq.s32.totalorder %s23, 0
      %p147 = por %p145, %p146
      %p148 = scmp.ne.s32.totalorder %s136, %s137
      %p149 = scmp.eq.s32.totalorder %s24, 1
      %p150 = por %p148, %p149
      %p152 = scmp.ne.s32.totalorder %s137, %s151
      %p153 = scmp.eq.s32.totalorder %s24, 0
      %p154 = por %p152, %p153
      %s156 = sadd.s32 %s155, 1
      %p159 = scmp.eq.s32.totalorder %s18, 1
      %p160 = scmp.ne.s32.totalorder %s155, %s157
      %p161 = scmp.eq.s32.totalorder %s18, 0
      %p162 = por %p160, %p161
      %p163 = scmp.ne.s32.totalorder %s155, %s157
      %p164 = scmp.eq.s32.totalorder %s23, 1
      %p165 = por %p163, %p164
      %p166 = scmp.ne.s32.totalorder %s157, %s158
      %p167 = scmp.eq.s32.totalorder %s23, 0
      %p168 = por %p166, %p167
      %p169 = scmp.ne.s32.totalorder %s157, %s158
      %p170 = scmp.eq.s32.totalorder %s24, 1
      %p171 = por %p169, %p170
      %p173 = scmp.ne.s32.totalorder %s158, %s172
      %p174 = scmp.eq.s32.totalorder %s24, 0
      %p175 = por %p173, %p174
      %s177 = sadd.s32 %s176, 1
      %p180 = scmp.eq.s32.totalorder %s18, 1
      %p181 = scmp.ne.s32.totalorder %s176, %s178
      %p182 = scmp.eq.s32.totalorder %s18, 0
      %p183 = por %p181, %p182
      %p184 = scmp.ne.s32.totalorder %s176, %s178
      %p185 = scmp.eq.s32.totalorder %s23, 1
      %p186 = por %p184, %p185
      %p187 = scmp.ne.s32.totalorder %s178, %s179
      %p188 = scmp.eq.s32.totalorder %s23, 0
      %p189 = por %p187, %p188
      %p190 = scmp.ne.s32.totalorder %s178, %s179
      %p191 = scmp.eq.s32.totalorder %s24, 1
      %p192 = por %p190, %p191
      %p194 = scmp.ne.s32.totalorder %s179, %s193
      %p195 = scmp.eq.s32.totalorder %s24, 0
      %p196 = por %p194, %p195
      %s198 = sadd.s32 %s197, 1
      %p201 = scmp.eq.s32.totalorder %s18, 1
      %p202 = scmp.ne.s32.totalorder %s197, %s199
      %p203 = scmp.eq.s32.totalorder %s18, 0
      %p204 = por %p202, %p203
      %p205 = scmp.ne.s32.totalorder %s197, %s199
      %p206 = scmp.eq.s32.totalorder %s23, 1
      %p207 = por %p205, %p206
      %p208 = scmp.ne.s32.totalorder %s199, %s200
      %p209 = scmp.eq.s32.totalorder %s23, 0
      %p210 = por %p208, %p209
      %p211 = scmp.ne.s32.totalorder %s199, %s200
      %p212 = scmp.eq.s32.totalorder %s24, 1
      %p213 = por %p211, %p212
      %p215 = scmp.ne.s32.totalorder %s200, %s214
      %p216 = scmp.eq.s32.totalorder %s24, 0
      %p217 = por %p215, %p216
      %s219 = sadd.s32 %s218, 1
      %p222 = scmp.eq.s32.totalorder %s18, 1
      %p223 = scmp.ne.s32.totalorder %s218, %s220
      %p224 = scmp.eq.s32.totalorder %s18, 0
      %p225 = por %p223, %p224
      %p226 = scmp.ne.s32.totalorder %s218, %s220
      %p227 = scmp.eq.s32.totalorder %s23, 1
      %p228 = por %p226, %p227
      %p229 = scmp.ne.s32.totalorder %s220, %s221
      %p230 = scmp.eq.s32.totalorder %s23, 0
      %p231 = por %p229, %p230
      %p232 = scmp.ne.s32.totalorder %s220, %s221
      %p233 = scmp.eq.s32.totalorder %s24, 1
      %p234 = por %p232, %p233
      %p236 = scmp.ne.s32.totalorder %s221, %s235
      %p237 = scmp.eq.s32.totalorder %s24, 0
      %p238 = por %p236, %p237
      %s239 = ssub.s32 %s25, %s37
      %s240 = ssub.s32 %s26, %s33
      %s241 = sor.u32 %s239, %s240
      %p242 = scmp.eq.s32.totalorder %s241, 0
      %s244 = sadd.s32 %s243, 1
      %s245 = scalar_select %p242, %s243, %s244
      %p248 = pneg %p242
      %p249 = scmp.eq.s32.totalorder %s18, 1
      %p250 = por %p248, %p249
      %p251 = scmp.ne.s32.totalorder %s243, %s246
      %p252 = scmp.eq.s32.totalorder %s18, 0
      %p253 = por %p251, %p252
      %p254 = scmp.ne.s32.totalorder %s243, %s246
      %p255 = scmp.eq.s32.totalorder %s23, 1
      %p256 = por %p254, %p255
      %p257 = scmp.ne.s32.totalorder %s246, %s247
      %p258 = scmp.eq.s32.totalorder %s23, 0
      %p259 = por %p257, %p258
      %p260 = scmp.ne.s32.totalorder %s246, %s247
      %p261 = scmp.eq.s32.totalorder %s24, 1
      %p262 = por %p260, %p261
      %p264 = scmp.ne.s32.totalorder %s247, %s263
      %p265 = scmp.eq.s32.totalorder %s24, 0
      %p266 = por %p264, %p265
      %p267 = scmp.le.s32.totalorder 1, %s18
      %p268 = scmp.lt.s32.totalorder %s18, 3
      %p269 = pnand %p267, %p268
      %p270 = pneg %p269
      // Predicated region
      $region9: #{latent_injection_transformer.13} parent=5 // pred_check
        _
      $region10: #{latent_injection_transformer.13} parent=5 // pred_check_branch
        %272 = sbr.rel (%p269) target = $region12
      $region11: #{latent_injection_transformer.13} parent=5 // pred_region
        %s273 = ssub.s32 %s18, 1
        // Predicated region
        $region13: #{latent_injection_transformer.13} parent=11 // pred_check
          %p274 = pneg %p105
        $region14: #{latent_injection_transformer.13} parent=11 // pred_check_branch
          %276 = sbr.rel (%p274) target = $region16
        $region15: #{latent_injection_transformer.13} parent=11 // pred_region
          _
        $region16: #{latent_injection_transformer.13} parent=11 // pred_fallthru
          _
        // Predicated region
        $region17: #{latent_injection_transformer.13} parent=11 // pred_check
          %p277 = pneg %p126
        $region18: #{latent_injection_transformer.13} parent=11 // pred_check_branch
          %279 = sbr.rel (%p277) target = $region20
        $region19: #{latent_injection_transformer.13} parent=11 // pred_region
          _
        $region20: #{latent_injection_transformer.13} parent=11 // pred_fallthru
          _
        // Predicated region
        $region21: #{latent_injection_transformer.13} parent=11 // pred_check
          %p280 = pneg %p147
        $region22: #{latent_injection_transformer.13} parent=11 // pred_check_branch
          %282 = sbr.rel (%p280) target = $region24
        $region23: #{latent_injection_transformer.13} parent=11 // pred_region
          _
        $region24: #{latent_injection_transformer.13} parent=11 // pred_fallthru
          _
        // Predicated region
        $region25: #{latent_injection_transformer.13} parent=11 // pred_check
          %p283 = pneg %p168
        $region26: #{latent_injection_transformer.13} parent=11 // pred_check_branch
          %285 = sbr.rel (%p283) target = $region28
        $region27: #{latent_injection_transformer.13} parent=11 // pred_region
          %s287 = ssub.s32 1024, 1024
          %288 = vsyncadd [#allocation4], %s287
          %s289 = sshll.u32 [#allocation3], 4
          %s290 = int_to_ptr.vmem [resolvable:$true] %s289
          %295 = dma.hbm_to_vmem [thread:$0]  %s5, 1024, %s290, [#allocation4], 64, 64, 4
        $region28: #{latent_injection_transformer.13} parent=11 // pred_fallthru
          _
        // Predicated region
        $region29: #{latent_injection_transformer.13} parent=11 // pred_check
          %p296 = pneg %p189
        $region30: #{latent_injection_transformer.13} parent=11 // pred_check_branch
          %298 = sbr.rel (%p296) target = $region32
        $region31: #{latent_injection_transformer.13} parent=11 // pred_region
          %s300 = ssub.s32 1024, 1024
          %301 = vsyncadd [#allocation6], %s300
          %s302 = sshll.u32 [#allocation5], 4
          %s303 = int_to_ptr.vmem [resolvable:$true] %s302
          %308 = dma.hbm_to_vmem [thread:$0]  %s6, 1024, %s303, [#allocation6], 64, 64, 4
        $region32: #{latent_injection_transformer.13} parent=11 // pred_fallthru
          _
        // Predicated region
        $region33: #{latent_injection_transformer.13} parent=11 // pred_check
          %p309 = pneg %p210
        $region34: #{latent_injection_transformer.13} parent=11 // pred_check_branch
          %311 = sbr.rel (%p309) target = $region36
        $region35: #{latent_injection_transformer.13} parent=11 // pred_region
          %s313 = ssub.s32 1024, 1024
          %314 = vsyncadd [#allocation6], %s313
          %s315 = sshll.u32 [#allocation7], 4
          %s316 = int_to_ptr.vmem [resolvable:$true] %s315
          %321 = dma.hbm_to_vmem [thread:$0]  %s7, 1024, %s316, [#allocation6], 64, 64, 4
        $region36: #{latent_injection_transformer.13} parent=11 // pred_fallthru
          _
        // Predicated region
        $region37: #{latent_injection_transformer.13} parent=11 // pred_check
          %p322 = pneg %p231
        $region38: #{latent_injection_transformer.13} parent=11 // pred_check_branch
          %324 = sbr.rel (%p322) target = $region40
        $region39: #{latent_injection_transformer.13} parent=11 // pred_region
          %s326 = ssub.s32 16, 16
          %327 = vsyncadd [#allocation9], %s326
          %s329 = sshll.u32 [#allocation8], 4
          %s330 = int_to_ptr.vmem [resolvable:$true] %s329
          %332 = dma.hbm_to_vmem [thread:$0]  %s8, 16, %s330, [#allocation9]
        $region40: #{latent_injection_transformer.13} parent=11 // pred_fallthru
          _
      $region12: #{latent_injection_transformer.13} parent=5 // pred_fallthru
        _
      %p333 = scmp.lt.s32.totalorder %s18, 2
      // Predicated region
      $region41: #{latent_injection_transformer.13} parent=5 // pred_check
        %p334 = pneg %p333
      $region42: #{latent_injection_transformer.13} parent=5 // pred_check_branch
        %336 = sbr.rel (%p334) target = $region44
      $region43: #{latent_injection_transformer.13} parent=5 // pred_region
        // Predicated region
        $region45: #{latent_injection_transformer.13} parent=43 // pred_check
          %p337 = pneg %p52
        $region46: #{latent_injection_transformer.13} parent=43 // pred_check_branch
          %339 = sbr.rel (%p337) target = $region48
        $region47: #{latent_injection_transformer.13} parent=43 // pred_region
          %s340 = smul.u32 2, %s26
          %p341 = scmp.lt.s32.totalorder %s25, 1
          %s342 = scalar_select %p341, %s25, 1
          %p343 = scmp.lt.s32.totalorder %s340, 1
          %s344 = scalar_select %p343, %s340, 1
          %s345 = smul.addr %s342, 2
          %s346 = sadd.s32 %s344, %s345
          %s347 = smul.addr %s346, 8
          %s348 = scalar_lea.vmem %s0, %s347
          %s349 = smul.u32 2, %s26
        $region48: #{latent_injection_transformer.13} parent=43 // pred_fallthru
          _
        // Predicated region
        $region49: #{latent_injection_transformer.13} parent=43 // pred_check
          %p350 = pneg %p78
        $region50: #{latent_injection_transformer.13} parent=43 // pred_check_branch
          %352 = sbr.rel (%p350) target = $region52
        $region51: #{latent_injection_transformer.13} parent=43 // pred_region
          %p353 = scmp.lt.s32.totalorder %s25, 1
          %s354 = scalar_select %p353, %s25, 1
          %s355 = smul.addr %s354, 2
          %s356 = smul.addr %s355, 8
          %s357 = scalar_lea.vmem %s1, %s356
        $region52: #{latent_injection_transformer.13} parent=43 // pred_fallthru
          _
      $region44: #{latent_injection_transformer.13} parent=5 // pred_fallthru
        _
      %p358 = scmp.le.s32.totalorder 1, %s18
      %p359 = scmp.lt.s32.totalorder %s18, 3
      %p360 = pnand %p358, %p359
      %p361 = pneg %p360
      // Predicated region
      $region53: #{latent_injection_transformer.13} parent=5 // pred_check
        _
      $region54: #{latent_injection_transformer.13} parent=5 // pred_check_branch
        %363 = sbr.rel (%p360) target = $region56
      $region55: #{latent_injection_transformer.13} parent=5 // pred_region
        %s364 = ssub.s32 %s18, 1
        // Predicated region
        $region57: #{latent_injection_transformer.13} parent=55 // pred_check
          %p365 = pneg %p168
        $region58: #{latent_injection_transformer.13} parent=55 // pred_check_branch
          %367 = sbr.rel (%p365) target = $region60
        $region59: #{latent_injection_transformer.13} parent=55 // pred_region
          %368 = dma.done [#allocation4], 1024
        $region60: #{latent_injection_transformer.13} parent=55 // pred_fallthru
          _
        // Predicated region
        $region61: #{latent_injection_transformer.13} parent=55 // pred_check
          %p369 = pneg %p189
        $region62: #{latent_injection_transformer.13} parent=55 // pred_check_branch
          %371 = sbr.rel (%p369) target = $region64
        $region63: #{latent_injection_transformer.13} parent=55 // pred_region
          %372 = dma.done [#allocation6], 1024
        $region64: #{latent_injection_transformer.13} parent=55 // pred_fallthru
          _
        // Predicated region
        $region65: #{latent_injection_transformer.13} parent=55 // pred_check
          %p373 = pneg %p210
        $region66: #{latent_injection_transformer.13} parent=55 // pred_check_branch
          %375 = sbr.rel (%p373) target = $region68
        $region67: #{latent_injection_transformer.13} parent=55 // pred_region
          %376 = dma.done [#allocation6], 1024
        $region68: #{latent_injection_transformer.13} parent=55 // pred_fallthru
          _
        // Predicated region
        $region69: #{latent_injection_transformer.13} parent=55 // pred_check
          %p377 = pneg %p231
        $region70: #{latent_injection_transformer.13} parent=55 // pred_check_branch
          %379 = sbr.rel (%p377) target = $region72
        $region71: #{latent_injection_transformer.13} parent=55 // pred_region
          %380 = dma.done [#allocation9], 16
        $region72: #{latent_injection_transformer.13} parent=55 // pred_fallthru
          _
        %s381 = smul.u32 2, %s28
        %p382 = scmp.lt.s32.totalorder %s27, 1
        %s383 = scalar_select %p382, %s27, 1
        %p384 = scmp.lt.s32.totalorder %s381, 1
        %s385 = scalar_select %p384, %s381, 1
        %s386 = smul.addr %s383, 2
        %s387 = sadd.s32 %s385, %s386
        %s388 = smul.addr %s387, 8
        %s389 = scalar_lea.vmem %s0, %s388
        %p390 = pneg %p58
        %p391 = pneg %p55
        %p392 = scmp.lt.s32.totalorder %s27, 1
        %s393 = scalar_select %p392, %s27, 1
        %s394 = smul.addr %s393, 2
        %s395 = smul.addr %s394, 8
        %s396 = scalar_lea.vmem %s1, %s395
        %p397 = pneg %p84
        %p398 = pneg %p81
        %p399 = pneg %p105
        %p400 = pneg %p102
        %p401 = pneg %p126
        %p402 = pneg %p123
        %p403 = pneg %p147
        %p404 = pneg %p144
        %p405 = pneg %p168
        %p406 = pneg %p165
        %p407 = pneg %p189
        %p408 = pneg %p186
        %p409 = pneg %p210
        %p410 = pneg %p207
        %p411 = pneg %p231
        %p412 = pneg %p228
        %p413 = pneg %p259
        %p414 = pneg %p256
        %s415 = smul.u32 2, %s28
        %p416 = scmp.lt.s32.totalorder %s27, 1
        %s417 = scalar_select %p416, %s27, 1
        %p418 = scmp.lt.s32.totalorder %s415, 1
        %s419 = scalar_select %p418, %s415, 1
        %s420 = smul.addr %s417, 2
        %s421 = sadd.s32 %s419, %s420
        %s422 = smul.addr %s421, 8
        %s423 = scalar_lea.vmem %s9, %s422
        %s424 = smul.u32 2, %s28
        %p425 = scmp.lt.s32.totalorder %s27, 1
        %s426 = scalar_select %p425, %s27, 1
        %p427 = scmp.lt.s32.totalorder %s424, 1
        %s428 = scalar_select %p427, %s424, 1
        %s429 = smul.addr %s426, 2
        %s430 = sadd.s32 %s428, %s429
        %s431 = smul.addr %s430, 8
        %s432 = scalar_lea.vmem %s0, %s431
        %s433 = smul.u32 2, %s28
        %p434 = scmp.lt.s32.totalorder %s27, 1
        %s435 = scalar_select %p434, %s27, 1
        %s436 = smul.addr %s435, 2
        %s437 = smul.addr %s436, 8
        %s438 = scalar_lea.vmem %s1, %s437
        %s439 = smul.u32 2, %s28
        %p440 = scmp.lt.s32.totalorder %s27, 1
        %s441 = scalar_select %p440, %s27, 1
        %p442 = scmp.lt.s32.totalorder %s439, 1
        %s443 = scalar_select %p442, %s439, 1
        %s444 = smul.addr %s441, 2
        %s445 = sadd.s32 %s443, %s444
        %s446 = smul.addr %s445, 8
        %s447 = scalar_lea.vmem %s9, %s446
        %s448 = smul.u32 2, %s28
        %v450 = vld [vmem:[%s432] sm:$0xff]
        %v451 = vld [vmem:[%s432 + $0x8] sm:$0xff]
        %v452 = vld [vmem:[%s2] sm:$0x1]
        %v453 = vld [vmem:[%s3] sm:$0x1]
        %454 = vadd.xlane.f32.xlu0 %v450
        %v455 = vpop.xlane.xlu0 %454
        %456 = vadd.xlane.f32.xlu0 %v451
        %v457 = vpop.xlane.xlu0 %456
        %v458 = vrcp.pop 128.0
        %v459 = vmul.f32 %v455, %v458
        %v460 = vmul.f32 %v457, %v458
        %v461 = vsub.f32 %v450, %v459
        %v462 = vsub.f32 %v451, %v460
        %v463 = vmul.f32 %v461, %v461
        %v464 = vmul.f32 %v462, %v462
        %465 = vadd.xlane.f32.xlu0 %v463
        %v466 = vpop.xlane.xlu0 %465
        %467 = vadd.xlane.f32.xlu0 %v464
        %v468 = vpop.xlane.xlu0 %467
        %v469 = vmul.f32 %v466, %v458
        %v470 = vmul.f32 %v468, %v458
        %v471 = vadd.f32 %v469, 1e-05
        %v472 = vadd.f32 %v470, 1e-05
        %v473 = vrsqrt.pop %v471
        %v474 = vrsqrt.pop %v472
        %v475 = vmul.f32 %v461, %v473
        %v476 = vmul.f32 %v462, %v474
        %v478 = vlaneseq
        %v479 = vshrl.u32 %v478, 7
        %v480 = vsub.s32 0, %v479
        %v481 = vrot.slane %v452, %v480
        %v483 = vmul.f32 %v475, %v481
        %v484 = vmul.f32 %v476, %v481
        %v486 = vlaneseq
        %v487 = vshrl.u32 %v486, 7
        %v488 = vsub.s32 0, %v487
        %v489 = vrot.slane %v453, %v488
        %v491 = vadd.f32 %v483, %v489
        %v492 = vadd.f32 %v484, %v489
        %v493 = vld [vmem:[%s438] sm:$0xff]
        %v494 = vld [vmem:[%s438 + $0x8] sm:$0xff]
        %495 = vadd.xlane.f32.xlu0 %v493
        %v496 = vpop.xlane.xlu0 %495
        %497 = vadd.xlane.f32.xlu0 %v494
        %v498 = vpop.xlane.xlu0 %497
        %v499 = vmul.f32 %v496, %v458
        %v500 = vmul.f32 %v498, %v458
        %v501 = vsub.f32 %v493, %v499
        %v502 = vsub.f32 %v494, %v500
        %v503 = vmul.f32 %v501, %v501
        %v504 = vmul.f32 %v502, %v502
        %505 = vadd.xlane.f32.xlu0 %v503
        %v506 = vpop.xlane.xlu0 %505
        %507 = vadd.xlane.f32.xlu0 %v504
        %v508 = vpop.xlane.xlu0 %507
        %v509 = vmul.f32 %v506, %v458
        %v510 = vmul.f32 %v508, %v458
        %v511 = vadd.f32 %v509, 1e-05
        %v512 = vadd.f32 %v510, 1e-05
        %v513 = vrsqrt.pop %v511
        %v514 = vrsqrt.pop %v512
        %v515 = vmul.f32 %v501, %v513
        %v516 = vmul.f32 %v502, %v514
        %v517 = vmul.f32 %v515, %v481
        %v518 = vmul.f32 %v516, %v481
        %v519 = vadd.f32 %v517, %v489
        %v520 = vadd.f32 %v518, %v489
        %v521 = vld [vmem:[%s4] sm:$0xf]
        %v522 = vld [vmem:[%s4 + $0x4] sm:$0xf]
        %v523 = vld [vmem:[%s4 + $0x8] sm:$0xf]
        %v524 = vld [vmem:[%s4 + $0xc] sm:$0xf]
        %v525 = vld [vmem:[%s4 + $0x10] sm:$0xf]
        %v526 = vld [vmem:[%s4 + $0x14] sm:$0xf]
        %v527 = vld [vmem:[%s4 + $0x18] sm:$0xf]
        %v528 = vld [vmem:[%s4 + $0x1c] sm:$0xf]
        %v529 = vld [vmem:[%s4 + $0x20] sm:$0xf]
        %v530 = vld [vmem:[%s4 + $0x24] sm:$0xf]
        %v531 = vld [vmem:[%s4 + $0x28] sm:$0xf]
        %v532 = vld [vmem:[%s4 + $0x2c] sm:$0xf]
        %v533 = vld [vmem:[%s4 + $0x30] sm:$0xf]
        %v534 = vld [vmem:[%s4 + $0x34] sm:$0xf]
        %v535 = vld [vmem:[%s4 + $0x38] sm:$0xf]
        %v536 = vld [vmem:[%s4 + $0x3c] sm:$0xf]
        %v537 = vpack.c.bf16 %v492, %v491
        %v554 = vunpack.c.l.b16 %v521
        %v555 = vunpack.c.l.b16 %v522
        %v556 = vunpack.c.l.b16 %v523
        %v557 = vunpack.c.l.b16 %v524
        %v558 = vunpack.c.l.b16 %v525
        %v559 = vunpack.c.l.b16 %v526
        %v560 = vunpack.c.l.b16 %v527
        %v561 = vunpack.c.l.b16 %v528
        %v562 = vunpack.c.l.b16 %v529
        %v563 = vunpack.c.l.b16 %v530
        %v564 = vunpack.c.l.b16 %v531
        %v565 = vunpack.c.l.b16 %v532
        %v566 = vunpack.c.l.b16 %v533
        %v567 = vunpack.c.l.b16 %v534
        %v568 = vunpack.c.l.b16 %v535
        %v569 = vunpack.c.l.b16 %v536
        %v570 = vpack.c.b16 %v555, %v554
        %v571 = vpack.c.b16 %v557, %v556
        %v572 = vpack.c.b16 %v559, %v558
        %v573 = vpack.c.b16 %v561, %v560
        %v574 = vpack.c.b16 %v563, %v562
        %v575 = vpack.c.b16 %v565, %v564
        %v576 = vpack.c.b16 %v567, %v566
        %v577 = vpack.c.b16 %v569, %v568
        %586 = vmatprep.subr.bf16.mxu0 0
        %587 = vmatpush1.bf16.msra.mxu0 %v577
        %588 = vmatprep.subr.bf16.mxu0 0
        %589 = vmatpush1.bf16.msra.mxu0 %v576
        %590 = vmatprep.subr.bf16.mxu0 0
        %591 = vmatpush1.bf16.msra.mxu0 %v575
        %592 = vmatprep.subr.bf16.mxu0 0
        %593 = vmatpush1.bf16.msra.mxu0 %v574
        %594 = vmatprep.subr.bf16.mxu0 0
        %595 = vmatpush1.bf16.msra.mxu0 %v573
        %596 = vmatprep.subr.bf16.mxu0 0
        %597 = vmatpush1.bf16.msra.mxu0 %v572
        %598 = vmatprep.subr.bf16.mxu0 0
        %599 = vmatpush1.bf16.msra.mxu0 %v571
        %600 = vmatprep.subr.bf16.mxu0 0
        %601 = vmatpush1.bf16.msra.mxu0 %v570
        %602 = vmatprep.subr.bf16.mxu0 0
        %603 = vmatpush2.bf16.msra.mxu0 0
        %604 = vmatprep.subr.bf16.mxu0 0
        %605 = vmatpush2.bf16.msra.mxu0 0
        %606 = vmatprep.subr.bf16.mxu0 0
        %607 = vmatpush2.bf16.msra.mxu0 0
        %608 = vmatprep.subr.bf16.mxu0 0
        %609 = vmatpush2.bf16.msra.mxu0 0
        %610 = vmatprep.subr.bf16.mxu0 0
        %611 = vmatpush2.bf16.msra.mxu0 0
        %612 = vmatprep.subr.bf16.mxu0 0
        %613 = vmatpush2.bf16.msra.mxu0 0
        %614 = vmatprep.subr.bf16.mxu0 0
        %615 = vmatpush2.bf16.msra.mxu0 0
        %616 = vmatprep.subr.bf16.mxu0 0
        %617 = vmatpush2.bf16.msra.mxu0 0
        %618 = vmatprep.mubr.bf16.mxu0 0
        %619 = vmatmul.mubr.bf16.gmra.mxu0 %v537
        %v620 = vpop.f32.mrf.mxu0
        %v621 = vadd.f32 0.0, %v620
        %v622 = vpop.f32.mrf.mxu0
        %v623 = vpop.f32.mrf.mxu0
        %v624 = vadd.f32 0.0, %v623
        %v625 = vpop.f32.mrf.mxu0
        %626 = vdwg.mxu0
        %v627 = vpack.c.bf16 %v624, %v621
        %v628 = vld [vmem:[#allocation3] sm:$0xf]
        %v629 = vld [vmem:[#allocation3 + $0x4] sm:$0xf]
        %v630 = vld [vmem:[#allocation3 + $0x8] sm:$0xf]
        %v631 = vld [vmem:[#allocation3 + $0xc] sm:$0xf]
        %v632 = vld [vmem:[#allocation3 + $0x10] sm:$0xf]
        %v633 = vld [vmem:[#allocation3 + $0x14] sm:$0xf]
        %v634 = vld [vmem:[#allocation3 + $0x18] sm:$0xf]
        %v635 = vld [vmem:[#allocation3 + $0x1c] sm:$0xf]
        %v636 = vld [vmem:[#allocation3 + $0x20] sm:$0xf]
        %v637 = vld [vmem:[#allocation3 + $0x24] sm:$0xf]
        %v638 = vld [vmem:[#allocation3 + $0x28] sm:$0xf]
        %v639 = vld [vmem:[#allocation3 + $0x2c] sm:$0xf]
        %v640 = vld [vmem:[#allocation3 + $0x30] sm:$0xf]
        %v641 = vld [vmem:[#allocation3 + $0x34] sm:$0xf]
        %v642 = vld [vmem:[#allocation3 + $0x38] sm:$0xf]
        %v643 = vld [vmem:[#allocation3 + $0x3c] sm:$0xf]
        %v644 = vpack.c.bf16 %v520, %v519
        %v661 = vunpack.c.l.b16 %v628
        %v662 = vunpack.c.l.b16 %v629
        %v663 = vunpack.c.l.b16 %v630
        %v664 = vunpack.c.l.b16 %v631
        %v665 = vunpack.c.l.b16 %v632
        %v666 = vunpack.c.l.b16 %v633
        %v667 = vunpack.c.l.b16 %v634
        %v668 = vunpack.c.l.b16 %v635
        %v669 = vunpack.c.l.b16 %v636
        %v670 = vunpack.c.l.b16 %v637
        %v671 = vunpack.c.l.b16 %v638
        %v672 = vunpack.c.l.b16 %v639
        %v673 = vunpack.c.l.b16 %v640
        %v674 = vunpack.c.l.b16 %v641
        %v675 = vunpack.c.l.b16 %v642
        %v676 = vunpack.c.l.b16 %v643
        %v677 = vpack.c.b16 %v662, %v661
        %v678 = vpack.c.b16 %v664, %v663
        %v679 = vpack.c.b16 %v666, %v665
        %v680 = vpack.c.b16 %v668, %v667
        %v681 = vpack.c.b16 %v670, %v669
        %v682 = vpack.c.b16 %v672, %v671
        %v683 = vpack.c.b16 %v674, %v673
        %v684 = vpack.c.b16 %v676, %v675
        %693 = vmatprep.subr.bf16.mxu0 0
        %694 = vmatpush1.bf16.msra.mxu0 %v684
        %695 = vmatprep.subr.bf16.mxu0 0
        %696 = vmatpush1.bf16.msra.mxu0 %v683
        %697 = vmatprep.subr.bf16.mxu0 0
        %698 = vmatpush1.bf16.msra.mxu0 %v682
        %699 = vmatprep.subr.bf16.mxu0 0
        %700 = vmatpush1.bf16.msra.mxu0 %v681
        %701 = vmatprep.subr.bf16.mxu0 0
        %702 = vmatpush1.bf16.msra.mxu0 %v680
        %703 = vmatprep.subr.bf16.mxu0 0
        %704 = vmatpush1.bf16.msra.mxu0 %v679
        %705 = vmatprep.subr.bf16.mxu0 0
        %706 = vmatpush1.bf16.msra.mxu0 %v678
        %707 = vmatprep.subr.bf16.mxu0 0
        %708 = vmatpush1.bf16.msra.mxu0 %v677
        %709 = vmatprep.subr.bf16.mxu0 0
        %710 = vmatpush2.bf16.msra.mxu0 0
        %711 = vmatprep.subr.bf16.mxu0 0
        %712 = vmatpush2.bf16.msra.mxu0 0
        %713 = vmatprep.subr.bf16.mxu0 0
        %714 = vmatpush2.bf16.msra.mxu0 0
        %715 = vmatprep.subr.bf16.mxu0 0
        %716 = vmatpush2.bf16.msra.mxu0 0
        %717 = vmatprep.subr.bf16.mxu0 0
        %718 = vmatpush2.bf16.msra.mxu0 0
        %719 = vmatprep.subr.bf16.mxu0 0
        %720 = vmatpush2.bf16.msra.mxu0 0
        %721 = vmatprep.subr.bf16.mxu0 0
        %722 = vmatpush2.bf16.msra.mxu0 0
        %723 = vmatprep.subr.bf16.mxu0 0
        %724 = vmatpush2.bf16.msra.mxu0 0
        %725 = vmatprep.mubr.bf16.mxu0 0
        %726 = vmatmul.mubr.bf16.gmra.mxu0 %v644
        %v727 = vpop.f32.mrf.mxu0
        %v728 = vadd.f32 0.0, %v727
        %v729 = vpop.f32.mrf.mxu0
        %v730 = vpop.f32.mrf.mxu0
        %v731 = vadd.f32 0.0, %v730
        %v732 = vpop.f32.mrf.mxu0
        %733 = vdwg.mxu0
        %v734 = vpack.c.bf16 %v731, %v728
        %v735 = vld [vmem:[#allocation5] sm:$0xf]
        %v736 = vld [vmem:[#allocation5 + $0x4] sm:$0xf]
        %v737 = vld [vmem:[#allocation5 + $0x8] sm:$0xf]
        %v738 = vld [vmem:[#allocation5 + $0xc] sm:$0xf]
        %v739 = vld [vmem:[#allocation5 + $0x10] sm:$0xf]
        %v740 = vld [vmem:[#allocation5 + $0x14] sm:$0xf]
        %v741 = vld [vmem:[#allocation5 + $0x18] sm:$0xf]
        %v742 = vld [vmem:[#allocation5 + $0x1c] sm:$0xf]
        %v743 = vld [vmem:[#allocation5 + $0x20] sm:$0xf]
        %v744 = vld [vmem:[#allocation5 + $0x24] sm:$0xf]
        %v745 = vld [vmem:[#allocation5 + $0x28] sm:$0xf]
        %v746 = vld [vmem:[#allocation5 + $0x2c] sm:$0xf]
        %v747 = vld [vmem:[#allocation5 + $0x30] sm:$0xf]
        %v748 = vld [vmem:[#allocation5 + $0x34] sm:$0xf]
        %v749 = vld [vmem:[#allocation5 + $0x38] sm:$0xf]
        %v750 = vld [vmem:[#allocation5 + $0x3c] sm:$0xf]
        %v767 = vunpack.c.l.b16 %v735
        %v768 = vunpack.c.l.b16 %v736
        %v769 = vunpack.c.l.b16 %v737
        %v770 = vunpack.c.l.b16 %v738
        %v771 = vunpack.c.l.b16 %v739
        %v772 = vunpack.c.l.b16 %v740
        %v773 = vunpack.c.l.b16 %v741
        %v774 = vunpack.c.l.b16 %v742
        %v775 = vunpack.c.l.b16 %v743
        %v776 = vunpack.c.l.b16 %v744
        %v777 = vunpack.c.l.b16 %v745
        %v778 = vunpack.c.l.b16 %v746
        %v779 = vunpack.c.l.b16 %v747
        %v780 = vunpack.c.l.b16 %v748
        %v781 = vunpack.c.l.b16 %v749
        %v782 = vunpack.c.l.b16 %v750
        %v783 = vpack.c.b16 %v768, %v767
        %v784 = vpack.c.b16 %v770, %v769
        %v785 = vpack.c.b16 %v772, %v771
        %v786 = vpack.c.b16 %v774, %v773
        %v787 = vpack.c.b16 %v776, %v775
        %v788 = vpack.c.b16 %v778, %v777
        %v789 = vpack.c.b16 %v780, %v779
        %v790 = vpack.c.b16 %v782, %v781
        %799 = vmatprep.subr.bf16.mxu0 0
        %800 = vmatpush1.bf16.msra.mxu0 %v790
        %801 = vmatprep.subr.bf16.mxu0 0
        %802 = vmatpush1.bf16.msra.mxu0 %v789
        %803 = vmatprep.subr.bf16.mxu0 0
        %804 = vmatpush1.bf16.msra.mxu0 %v788
        %805 = vmatprep.subr.bf16.mxu0 0
        %806 = vmatpush1.bf16.msra.mxu0 %v787
        %807 = vmatprep.subr.bf16.mxu0 0
        %808 = vmatpush1.bf16.msra.mxu0 %v786
        %809 = vmatprep.subr.bf16.mxu0 0
        %810 = vmatpush1.bf16.msra.mxu0 %v785
        %811 = vmatprep.subr.bf16.mxu0 0
        %812 = vmatpush1.bf16.msra.mxu0 %v784
        %813 = vmatprep.subr.bf16.mxu0 0
        %814 = vmatpush1.bf16.msra.mxu0 %v783
        %815 = vmatprep.subr.bf16.mxu0 0
        %816 = vmatpush2.bf16.msra.mxu0 0
        %817 = vmatprep.subr.bf16.mxu0 0
        %818 = vmatpush2.bf16.msra.mxu0 0
        %819 = vmatprep.subr.bf16.mxu0 0
        %820 = vmatpush2.bf16.msra.mxu0 0
        %821 = vmatprep.subr.bf16.mxu0 0
        %822 = vmatpush2.bf16.msra.mxu0 0
        %823 = vmatprep.subr.bf16.mxu0 0
        %824 = vmatpush2.bf16.msra.mxu0 0
        %825 = vmatprep.subr.bf16.mxu0 0
        %826 = vmatpush2.bf16.msra.mxu0 0
        %827 = vmatprep.subr.bf16.mxu0 0
        %828 = vmatpush2.bf16.msra.mxu0 0
        %829 = vmatprep.subr.bf16.mxu0 0
        %830 = vmatpush2.bf16.msra.mxu0 0
        %831 = vmatprep.mubr.bf16.mxu0 0
        %832 = vmatmul.mubr.bf16.gmra.mxu0 %v644
        %v833 = vpop.f32.mrf.mxu0
        %v834 = vadd.f32 0.0, %v833
        %v835 = vpop.f32.mrf.mxu0
        %v836 = vpop.f32.mrf.mxu0
        %v837 = vadd.f32 0.0, %v836
        %v838 = vpop.f32.mrf.mxu0
        %839 = vdwg.mxu0
        %v840 = vpack.c.bf16 %v837, %v834
        %vm841 = vcmask 523264
        %v843 = vsel %vm841, %v627, 0
        %v846 = vsel %vm841, %v734, 0
        %848 = vmatprep.subr.bf16.mxu0 0
        %849 = vmatpush1.bf16.xpose.msra.mxu0 0
        %850 = vmatprep.subr.bf16.mxu0 0
        %851 = vmatpush1.bf16.xpose.msra.mxu0 0
        %852 = vmatprep.subr.bf16.mxu0 0
        %853 = vmatpush1.bf16.xpose.msra.mxu0 0
        %854 = vmatprep.subr.bf16.mxu0 0
        %855 = vmatpush1.bf16.xpose.msra.mxu0 0
        %856 = vmatprep.subr.bf16.mxu0 0
        %857 = vmatpush1.bf16.xpose.msra.mxu0 0
        %858 = vmatprep.subr.bf16.mxu0 0
        %859 = vmatpush1.bf16.xpose.msra.mxu0 0
        %860 = vmatprep.subr.bf16.mxu0 0
        %861 = vmatpush1.bf16.xpose.msra.mxu0 0
        %862 = vmatprep.subr.bf16.mxu0 0
        %863 = vmatpush1.bf16.xpose.msra.mxu0 %v846
        %864 = vmatprep.subr.bf16.mxu0 0
        %865 = vmatpush2.bf16.xpose.msra.mxu0 0
        %866 = vmatprep.subr.bf16.mxu0 0
        %867 = vmatpush2.bf16.xpose.msra.mxu0 0
        %868 = vmatprep.subr.bf16.mxu0 0
        %869 = vmatpush2.bf16.xpose.msra.mxu0 0
        %870 = vmatprep.subr.bf16.mxu0 0
        %871 = vmatpush2.bf16.xpose.msra.mxu0 0
        %872 = vmatprep.subr.bf16.mxu0 0
        %873 = vmatpush2.bf16.xpose.msra.mxu0 0
        %874 = vmatprep.subr.bf16.mxu0 0
        %875 = vmatpush2.bf16.xpose.msra.mxu0 0
        %876 = vmatprep.subr.bf16.mxu0 0
        %877 = vmatpush2.bf16.xpose.msra.mxu0 0
        %878 = vmatprep.subr.bf16.mxu0 0
        %879 = vmatpush2.bf16.xpose.msra.mxu0 0
        %880 = vmatprep.mubr.bf16.mxu0 0
        %881 = vmatmul.mubr.bf16.gmra.mxu0 %v843
        %v882 = vpop.f32.mrf.mxu0
        %v883 = vadd.f32 0.0, %v882
        %v884 = vpop.f32.mrf.mxu0
        %v885 = vpop.f32.mrf.mxu0
        %v886 = vadd.f32 0.0, %v885
        %v887 = vpop.f32.mrf.mxu0
        %888 = vdwg.mxu0
        %vm889 = vcmask 130048
        %v890 = vsel %vm889, %v883, -inf
        %891 = vmax.xlane.f32.xlu0 %v890
        %v892 = vpop.xlane.xlu0 %891
        %v893 = vsel %vm889, %v886, -inf
        %894 = vmax.xlane.f32.xlu0 %v893
        %v895 = vpop.xlane.xlu0 %894
        %v896 = vsub.f32 %v883, %v892
        %v897 = vsub.f32 %v886, %v895
        %v898 = vmul.f32 %v896, 1.442695
        %v899 = vpow.pop %v898
        %v900 = vmul.f32 %v897, 1.442695
        %v901 = vpow.pop %v900
        %v902 = vsel %vm889, %v899, 0.0
        %903 = vadd.xlane.f32.xlu0 %v902
        %v904 = vpop.xlane.xlu0 %903
        %v905 = vsel %vm889, %v901, 0.0
        %906 = vadd.xlane.f32.xlu0 %v905
        %v907 = vpop.xlane.xlu0 %906
        %v908 = vrcp.pop %v904
        %v909 = vrcp.pop %v907
        %v910 = vmul.f32 %v899, %v908
        %v911 = vmul.f32 %v901, %v909
        %v912 = vpack.c.bf16 %v911, %v910
        %v914 = vsel %vm889, %v912, 0
        %916 = vmatprep.subr.bf16.mxu0 0
        %917 = vmatpush1.bf16.msra.mxu0 0
        %918 = vmatprep.subr.bf16.mxu0 0
        %919 = vmatpush1.bf16.msra.mxu0 0
        %920 = vmatprep.subr.bf16.mxu0 0
        %921 = vmatpush1.bf16.msra.mxu0 0
        %922 = vmatprep.subr.bf16.mxu0 0
        %923 = vmatpush1.bf16.msra.mxu0 0
        %924 = vmatprep.subr.bf16.mxu0 0
        %925 = vmatpush1.bf16.msra.mxu0 0
        %926 = vmatprep.subr.bf16.mxu0 0
        %927 = vmatpush1.bf16.msra.mxu0 0
        %928 = vmatprep.subr.bf16.mxu0 0
        %929 = vmatpush1.bf16.msra.mxu0 0
        %930 = vmatprep.subr.bf16.mxu0 0
        %931 = vmatpush1.bf16.msra.mxu0 %v840
        %932 = vmatprep.subr.bf16.mxu0 0
        %933 = vmatpush2.bf16.msra.mxu0 0
        %934 = vmatprep.subr.bf16.mxu0 0
        %935 = vmatpush2.bf16.msra.mxu0 0
        %936 = vmatprep.subr.bf16.mxu0 0
        %937 = vmatpush2.bf16.msra.mxu0 0
        %938 = vmatprep.subr.bf16.mxu0 0
        %939 = vmatpush2.bf16.msra.mxu0 0
        %940 = vmatprep.subr.bf16.mxu0 0
        %941 = vmatpush2.bf16.msra.mxu0 0
        %942 = vmatprep.subr.bf16.mxu0 0
        %943 = vmatpush2.bf16.msra.mxu0 0
        %944 = vmatprep.subr.bf16.mxu0 0
        %945 = vmatpush2.bf16.msra.mxu0 0
        %946 = vmatprep.subr.bf16.mxu0 0
        %947 = vmatpush2.bf16.msra.mxu0 0
        %948 = vmatprep.mubr.bf16.mxu0 0
        %949 = vmatmul.mubr.bf16.gmra.mxu0 %v914
        %v950 = vpop.f32.mrf.mxu0
        %v951 = vadd.f32 0.0, %v950
        %v952 = vpop.f32.mrf.mxu0
        %v953 = vpop.f32.mrf.mxu0
        %v954 = vadd.f32 0.0, %v953
        %v955 = vpop.f32.mrf.mxu0
        %956 = vdwg.mxu0
        %v957 = vpack.c.bf16 %v954, %v951
        %v959 = vunpack.c.l.b16 %v957
        %v960 = vunpack.c.h.b16 %v957
        %v961 = vpack.c.b16 %v959, %v959
        %v962 = vpack.c.b16 %v960, %v960
        %vm965 = vcmask 519168
        %966 = vst.msk [vmem:[#allocation2] sm:$0xf] %vm965, %v961
        %967 = vst.msk [vmem:[#allocation2 + $0x4] sm:$0xf] %vm965, %v962
        %969 = vrot.lane.b32.xlu0 %v627, 64
        %v970 = vpop.permute.xlu0 %969
        %972 = vrot.lane.b32.xlu0 %v734, 64
        %v973 = vpop.permute.xlu0 %972
        %v975 = vsel %vm841, %v970, 0
        %v978 = vsel %vm841, %v973, 0
        %980 = vmatprep.subr.bf16.mxu0 0
        %981 = vmatpush1.bf16.xpose.msra.mxu0 0
        %982 = vmatprep.subr.bf16.mxu0 0
        %983 = vmatpush1.bf16.xpose.msra.mxu0 0
        %984 = vmatprep.subr.bf16.mxu0 0
        %985 = vmatpush1.bf16.xpose.msra.mxu0 0
        %986 = vmatprep.subr.bf16.mxu0 0
        %987 = vmatpush1.bf16.xpose.msra.mxu0 0
        %988 = vmatprep.subr.bf16.mxu0 0
        %989 = vmatpush1.bf16.xpose.msra.mxu0 0
        %990 = vmatprep.subr.bf16.mxu0 0
        %991 = vmatpush1.bf16.xpose.msra.mxu0 0
        %992 = vmatprep.subr.bf16.mxu0 0
        %993 = vmatpush1.bf16.xpose.msra.mxu0 0
        %994 = vmatprep.subr.bf16.mxu0 0
        %995 = vmatpush1.bf16.xpose.msra.mxu0 %v978
        %996 = vmatprep.subr.bf16.mxu0 0
        %997 = vmatpush2.bf16.xpose.msra.mxu0 0
        %998 = vmatprep.subr.bf16.mxu0 0
        %999 = vmatpush2.bf16.xpose.msra.mxu0 0
        %1000 = vmatprep.subr.bf16.mxu0 0
        %1001 = vmatpush2.bf16.xpose.msra.mxu0 0
        %1002 = vmatprep.subr.bf16.mxu0 0
        %1003 = vmatpush2.bf16.xpose.msra.mxu0 0
        %1004 = vmatprep.subr.bf16.mxu0 0
        %1005 = vmatpush2.bf16.xpose.msra.mxu0 0
        %1006 = vmatprep.subr.bf16.mxu0 0
        %1007 = vmatpush2.bf16.xpose.msra.mxu0 0
        %1008 = vmatprep.subr.bf16.mxu0 0
        %1009 = vmatpush2.bf16.xpose.msra.mxu0 0
        %1010 = vmatprep.subr.bf16.mxu0 0
        %1011 = vmatpush2.bf16.xpose.msra.mxu0 0
        %1012 = vmatprep.mubr.bf16.mxu0 0
        %1013 = vmatmul.mubr.bf16.gmra.mxu0 %v975
        %v1014 = vpop.f32.mrf.mxu0
        %v1015 = vadd.f32 0.0, %v1014
        %v1016 = vpop.f32.mrf.mxu0
        %v1017 = vpop.f32.mrf.mxu0
        %v1018 = vadd.f32 0.0, %v1017
        %v1019 = vpop.f32.mrf.mxu0
        %1020 = vdwg.mxu0
        %v1021 = vsel %vm889, %v1015, -inf
        %1022 = vmax.xlane.f32.xlu0 %v1021
        %v1023 = vpop.xlane.xlu0 %1022
        %v1024 = vsel %vm889, %v1018, -inf
        %1025 = vmax.xlane.f32.xlu0 %v1024
        %v1026 = vpop.xlane.xlu0 %1025
        %v1027 = vsub.f32 %v1015, %v1023
        %v1028 = vsub.f32 %v1018, %v1026
        %v1029 = vmul.f32 %v1027, 1.442695
        %v1030 = vpow.pop %v1029
        %v1031 = vmul.f32 %v1028, 1.442695
        %v1032 = vpow.pop %v1031
        %v1033 = vsel %vm889, %v1030, 0.0
        %1034 = vadd.xlane.f32.xlu0 %v1033
        %v1035 = vpop.xlane.xlu0 %1034
        %v1036 = vsel %vm889, %v1032, 0.0
        %1037 = vadd.xlane.f32.xlu0 %v1036
        %v1038 = vpop.xlane.xlu0 %1037
        %v1039 = vrcp.pop %v1035
        %v1040 = vrcp.pop %v1038
        %v1041 = vmul.f32 %v1030, %v1039
        %v1042 = vmul.f32 %v1032, %v1040
        %v1043 = vpack.c.bf16 %v1042, %v1041
        %1045 = vrot.lane.b32.xlu0 %v840, 64
        %v1046 = vpop.permute.xlu0 %1045
        %v1049 = vsel %vm889, %v1043, 0
        %1051 = vmatprep.subr.bf16.mxu0 0
        %1052 = vmatpush1.bf16.msra.mxu0 0
        %1053 = vmatprep.subr.bf16.mxu0 0
        %1054 = vmatpush1.bf16.msra.mxu0 0
        %1055 = vmatprep.subr.bf16.mxu0 0
        %1056 = vmatpush1.bf16.msra.mxu0 0
        %1057 = vmatprep.subr.bf16.mxu0 0
        %1058 = vmatpush1.bf16.msra.mxu0 0
        %1059 = vmatprep.subr.bf16.mxu0 0
        %1060 = vmatpush1.bf16.msra.mxu0 0
        %1061 = vmatprep.subr.bf16.mxu0 0
        %1062 = vmatpush1.bf16.msra.mxu0 0
        %1063 = vmatprep.subr.bf16.mxu0 0
        %1064 = vmatpush1.bf16.msra.mxu0 0
        %1065 = vmatprep.subr.bf16.mxu0 0
        %1066 = vmatpush1.bf16.msra.mxu0 %v1046
        %1067 = vmatprep.subr.bf16.mxu0 0
        %1068 = vmatpush2.bf16.msra.mxu0 0
        %1069 = vmatprep.subr.bf16.mxu0 0
        %1070 = vmatpush2.bf16.msra.mxu0 0
        %1071 = vmatprep.subr.bf16.mxu0 0
        %1072 = vmatpush2.bf16.msra.mxu0 0
        %1073 = vmatprep.subr.bf16.mxu0 0
        %1074 = vmatpush2.bf16.msra.mxu0 0
        %1075 = vmatprep.subr.bf16.mxu0 0
        %1076 = vmatpush2.bf16.msra.mxu0 0
        %1077 = vmatprep.subr.bf16.mxu0 0
        %1078 = vmatpush2.bf16.msra.mxu0 0
        %1079 = vmatprep.subr.bf16.mxu0 0
        %1080 = vmatpush2.bf16.msra.mxu0 0
        %1081 = vmatprep.subr.bf16.mxu0 0
        %1082 = vmatpush2.bf16.msra.mxu0 0
        %1083 = vmatprep.mubr.bf16.mxu0 0
        %1084 = vmatmul.mubr.bf16.gmra.mxu0 %v1049
        %v1085 = vpop.f32.mrf.mxu0
        %v1086 = vadd.f32 0.0, %v1085
        %v1087 = vpop.f32.mrf.mxu0
        %v1088 = vpop.f32.mrf.mxu0
        %v1089 = vadd.f32 0.0, %v1088
        %v1090 = vpop.f32.mrf.mxu0
        %1091 = vdwg.mxu0
        %v1092 = vpack.c.bf16 %v1089, %v1086
        %v1094 = vunpack.c.l.b16 %v1092
        %v1095 = vunpack.c.h.b16 %v1092
        %v1096 = vpack.c.b16 %v1094, %v1094
        %v1097 = vpack.c.b16 %v1095, %v1095
        %1098 = vrot.lane.b32.xlu0 %v1096, 64
        %v1099 = vpop.permute.xlu0 %1098
        %1100 = vrot.lane.b32.xlu0 %v1097, 64
        %v1101 = vpop.permute.xlu0 %1100
        %vm1104 = vcmask 1043968
        %1105 = vst.msk [vmem:[#allocation2] sm:$0xf] %vm1104, %v1099
        %1106 = vst.msk [vmem:[#allocation2 + $0x4] sm:$0xf] %vm1104, %v1101
        %v1107 = vld [vmem:[#allocation8] sm:$0x1]
        %v1109 = vlaneseq
        %v1110 = vshrl.u32 %v1109, 7
        %v1111 = vsub.s32 0, %v1110
        %v1112 = vrot.slane %v1107, %v1111
        %v1114 = vadd.f32 %v450, %v1112
        %v1115 = vadd.f32 %v451, %v1112
        %v1116 = vld [vmem:[#allocation2] sm:$0xf]
        %v1117 = vld [vmem:[#allocation2 + $0x4] sm:$0xf]
        %v1118 = vld [vmem:[#allocation7] sm:$0xf]
        %v1119 = vld [vmem:[#allocation7 + $0x4] sm:$0xf]
        %v1120 = vld [vmem:[#allocation7 + $0x8] sm:$0xf]
        %v1121 = vld [vmem:[#allocation7 + $0xc] sm:$0xf]
        %v1122 = vld [vmem:[#allocation7 + $0x10] sm:$0xf]
        %v1123 = vld [vmem:[#allocation7 + $0x14] sm:$0xf]
        %v1124 = vld [vmem:[#allocation7 + $0x18] sm:$0xf]
        %v1125 = vld [vmem:[#allocation7 + $0x1c] sm:$0xf]
        %v1126 = vld [vmem:[#allocation7 + $0x20] sm:$0xf]
        %v1127 = vld [vmem:[#allocation7 + $0x24] sm:$0xf]
        %v1128 = vld [vmem:[#allocation7 + $0x28] sm:$0xf]
        %v1129 = vld [vmem:[#allocation7 + $0x2c] sm:$0xf]
        %v1130 = vld [vmem:[#allocation7 + $0x30] sm:$0xf]
        %v1131 = vld [vmem:[#allocation7 + $0x34] sm:$0xf]
        %v1132 = vld [vmem:[#allocation7 + $0x38] sm:$0xf]
        %v1133 = vld [vmem:[#allocation7 + $0x3c] sm:$0xf]
        %v1136 = vunpack.c.l.b16 %v1116
        %v1137 = vunpack.c.l.b16 %v1117
        %v1138 = vpack.c.b16 %v1137, %v1136
        %v1156 = vunpack.c.l.b16 %v1118
        %v1157 = vunpack.c.l.b16 %v1119
        %v1158 = vunpack.c.l.b16 %v1120
        %v1159 = vunpack.c.l.b16 %v1121
        %v1160 = vunpack.c.l.b16 %v1122
        %v1161 = vunpack.c.l.b16 %v1123
        %v1162 = vunpack.c.l.b16 %v1124
        %v1163 = vunpack.c.l.b16 %v1125
        %v1164 = vunpack.c.l.b16 %v1126
        %v1165 = vunpack.c.l.b16 %v1127
        %v1166 = vunpack.c.l.b16 %v1128
        %v1167 = vunpack.c.l.b16 %v1129
        %v1168 = vunpack.c.l.b16 %v1130
        %v1169 = vunpack.c.l.b16 %v1131
        %v1170 = vunpack.c.l.b16 %v1132
        %v1171 = vunpack.c.l.b16 %v1133
        %v1172 = vpack.c.b16 %v1157, %v1156
        %v1173 = vpack.c.b16 %v1159, %v1158
        %v1174 = vpack.c.b16 %v1161, %v1160
        %v1175 = vpack.c.b16 %v1163, %v1162
        %v1176 = vpack.c.b16 %v1165, %v1164
        %v1177 = vpack.c.b16 %v1167, %v1166
        %v1178 = vpack.c.b16 %v1169, %v1168
        %v1179 = vpack.c.b16 %v1171, %v1170
        %1188 = vmatprep.subr.bf16.mxu0 0
        %1189 = vmatpush1.bf16.msra.mxu0 %v1179
        %1190 = vmatprep.subr.bf16.mxu0 0
        %1191 = vmatpush1.bf16.msra.mxu0 %v1178
        %1192 = vmatprep.subr.bf16.mxu0 0
        %1193 = vmatpush1.bf16.msra.mxu0 %v1177
        %1194 = vmatprep.subr.bf16.mxu0 0
        %1195 = vmatpush1.bf16.msra.mxu0 %v1176
        %1196 = vmatprep.subr.bf16.mxu0 0
        %1197 = vmatpush1.bf16.msra.mxu0 %v1175
        %1198 = vmatprep.subr.bf16.mxu0 0
        %1199 = vmatpush1.bf16.msra.mxu0 %v1174
        %1200 = vmatprep.subr.bf16.mxu0 0
        %1201 = vmatpush1.bf16.msra.mxu0 %v1173
        %1202 = vmatprep.subr.bf16.mxu0 0
        %1203 = vmatpush1.bf16.msra.mxu0 %v1172
        %1204 = vmatprep.subr.bf16.mxu0 0
        %1205 = vmatpush2.bf16.msra.mxu0 0
        %1206 = vmatprep.subr.bf16.mxu0 0
        %1207 = vmatpush2.bf16.msra.mxu0 0
        %1208 = vmatprep.subr.bf16.mxu0 0
        %1209 = vmatpush2.bf16.msra.mxu0 0
        %1210 = vmatprep.subr.bf16.mxu0 0
        %1211 = vmatpush2.bf16.msra.mxu0 0
        %1212 = vmatprep.subr.bf16.mxu0 0
        %1213 = vmatpush2.bf16.msra.mxu0 0
        %1214 = vmatprep.subr.bf16.mxu0 0
        %1215 = vmatpush2.bf16.msra.mxu0 0
        %1216 = vmatprep.subr.bf16.mxu0 0
        %1217 = vmatpush2.bf16.msra.mxu0 0
        %1218 = vmatprep.subr.bf16.mxu0 0
        %1219 = vmatpush2.bf16.msra.mxu0 0
        %1220 = vmatprep.mubr.bf16.mxu0 0
        %1221 = vmatmul.mubr.bf16.gmra.mxu0 %v1138
        %v1222 = vpop.f32.mrf.mxu0
        %v1223 = vadd.f32 0.0, %v1222
        %v1224 = vpop.f32.mrf.mxu0
        %v1225 = vpop.f32.mrf.mxu0
        %v1226 = vadd.f32 0.0, %v1225
        %v1227 = vpop.f32.mrf.mxu0
        %1228 = vdwg.mxu0
        %v1229 = vadd.f32 %v1114, %v1223
        %v1230 = vadd.f32 %v1115, %v1226
        %1231 = vst [vmem:[%s447] sm:$0xff] %v1229
        %1232 = vst [vmem:[%s447 + $0x8] sm:$0xff] %v1230
        %s1233 = smul.u32 2, %s28
        %p1234 = scmp.lt.s32.totalorder %s27, 1
        %s1235 = scalar_select %p1234, %s27, 1
        %p1236 = scmp.lt.s32.totalorder %s1233, 1
        %s1237 = scalar_select %p1236, %s1233, 1
        %s1238 = smul.addr %s1235, 2
        %s1239 = sadd.s32 %s1237, %s1238
        %s1240 = smul.addr %s1239, 8
        %s1241 = scalar_lea.vmem %s9, %s1240
        // Predicated region
        $region73: #{latent_injection_transformer.13} parent=55 // pred_check
          %p1242 = pneg %p256
        $region74: #{latent_injection_transformer.13} parent=55 // pred_check_branch
          %1244 = sbr.rel (%p1242) target = $region76
        $region75: #{latent_injection_transformer.13} parent=55 // pred_region
          %s1245 = smul.u32 2, %s28
        $region76: #{latent_injection_transformer.13} parent=55 // pred_fallthru
          _
      $region56: #{latent_injection_transformer.13} parent=5 // pred_fallthru
        _
      %p1246 = scmp.le.s32.totalorder 2, %s18
      // Predicated region
      $region77: #{latent_injection_transformer.13} parent=5 // pred_check
        %p1247 = pneg %p1246
      $region78: #{latent_injection_transformer.13} parent=5 // pred_check_branch
        %1249 = sbr.rel (%p1247) target = $region80
      $region79: #{latent_injection_transformer.13} parent=5 // pred_region
        %s1250 = ssub.s32 %s18, 2
        // Predicated region
        $region81: #{latent_injection_transformer.13} parent=79 // pred_check
          %p1251 = pneg %p262
        $region82: #{latent_injection_transformer.13} parent=79 // pred_check_branch
          %1253 = sbr.rel (%p1251) target = $region84
        $region83: #{latent_injection_transformer.13} parent=79 // pred_region
          %s1254 = smul.u32 2, %s30
          %p1255 = scmp.lt.s32.totalorder %s29, 1
          %s1256 = scalar_select %p1255, %s29, 1
          %p1257 = scmp.lt.s32.totalorder %s1254, 1
          %s1258 = scalar_select %p1257, %s1254, 1
          %s1259 = smul.addr %s1256, 2
          %s1260 = sadd.s32 %s1258, %s1259
          %s1261 = smul.addr %s1260, 8
          %s1262 = scalar_lea.vmem %s9, %s1261
        $region84: #{latent_injection_transformer.13} parent=79 // pred_fallthru
          _
      $region80: #{latent_injection_transformer.13} parent=5 // pred_fallthru
        _
    $region6: #{latent_injection_transformer.13} parent=1 // loop_footer
      %s22 = sadd.s32 1, %s18
    $region7: #{latent_injection_transformer.13} parent=1 // loop_footer_branch
      %17 = sbr.rel target = $region3
    $region8: #{latent_injection_transformer.13} parent=1 // loop_exit
      _
    %1263 = vsyncpa [#allocation4], 1
    %s1264 = scalar_lea.sflag [#allocation4], 1
    %1265 = vsyncpa %s1264, 1
    %1266 = vsyncpa [#allocation6], 1
    %1267 = vsyncpa [#allocation9], 1

// kernel: latent_injection_transformer.15
$region0: #{latent_injection_transformer.15}
  #allocation0 [shape = 'u32[]', space=smem, size = 0x4, offset = 0x4, fixed_abs, tag = 'smem constant byte address 0x4 - core index']
  #allocation1 [shape = 'u32[144,128]{1,0:T(1,128)}', space=vmem, size = 0x12000, scoped, tag = 'internal scratch']
  #allocation2 [shape = 'bf16[32,128]{1,0:T(8,128)(2,1)}', space=vmem, size = 0x2000, scoped, tag = 'scratch operand']
  #allocation3 [shape = 'f32[32,128]{1,0:T(8,128)}', space=vmem, size = 0x4000, scoped, tag = 'scratch operand']
  %s0 = inlined_call_operand.vmem [shape: f32[32,128], index: 0, kind: input, shape index: {}]
  %s1 = inlined_call_operand.vmem [shape: f32[1,128], index: 1, kind: input, shape index: {}]
  %s2 = inlined_call_operand.vmem [shape: f32[1,128], index: 2, kind: input, shape index: {}]
  %s3 = inlined_call_operand.vmem [shape: bf16[128,512], index: 3, kind: input, shape index: {}]
  %s4 = inlined_call_operand.vmem [shape: f32[1,512], index: 4, kind: input, shape index: {}]
  %s5 = inlined_call_operand.vmem [shape: bf16[128,512], index: 5, kind: input, shape index: {}]
  %s6 = inlined_call_operand.vmem [shape: f32[1,512], index: 6, kind: input, shape index: {}]
  %s7 = inlined_call_operand.vmem [shape: bf16[512,128], index: 7, kind: input, shape index: {}]
  %s8 = inlined_call_operand.hbm [shape: f32[1,128], index: 8, kind: input, shape index: {}]
  %s9 = inlined_call_operand.vmem [shape: f32[32,128], index: 9, kind: output, shape index: {}]
  %s10 = sld [smem:[#allocation0]]
  $region58: #{latent_injection_transformer.15} parent=0
    _
  %s12 = ssub.s32 1, %s10
  %s13 = scalar_select 0, %s12, %s10
  $region1: #{latent_injection_transformer.15} parent=0
    #allocation4 [shape = 'u8[512]{0}', space=vmem, size = 0x400, scoped, tag = 'input window, operand 8, single buffered']
    #allocation5 [shape = 's32[1]{0}', space=sflag, size = 0x4, scoped, tag = 'scoped memory for latent_injection_transformer.15']
    %14 = vsyncpa [#allocation5], 0
    // Predicated region
    $region2: #{latent_injection_transformer.15} parent=1 // pred_check
      _
    $region3: #{latent_injection_transformer.15} parent=1 // pred_check_branch
      %16 = sbr.rel (0) target = $region5
    $region4: #{latent_injection_transformer.15} parent=1 // pred_region
      _
    $region5: #{latent_injection_transformer.15} parent=1 // pred_fallthru
      _
    // Predicated region
    $region6: #{latent_injection_transformer.15} parent=1 // pred_check
      _
    $region7: #{latent_injection_transformer.15} parent=1 // pred_check_branch
      %18 = sbr.rel (0) target = $region9
    $region8: #{latent_injection_transformer.15} parent=1 // pred_region
      _
    $region9: #{latent_injection_transformer.15} parent=1 // pred_fallthru
      _
    // Predicated region
    $region10: #{latent_injection_transformer.15} parent=1 // pred_check
      _
    $region11: #{latent_injection_transformer.15} parent=1 // pred_check_branch
      %20 = sbr.rel (0) target = $region13
    $region12: #{latent_injection_transformer.15} parent=1 // pred_region
      _
    $region13: #{latent_injection_transformer.15} parent=1 // pred_fallthru
      _
    // Predicated region
    $region14: #{latent_injection_transformer.15} parent=1 // pred_check
      _
    $region15: #{latent_injection_transformer.15} parent=1 // pred_check_branch
      %22 = sbr.rel (0) target = $region17
    $region16: #{latent_injection_transformer.15} parent=1 // pred_region
      _
    $region17: #{latent_injection_transformer.15} parent=1 // pred_fallthru
      _
    // Predicated region
    $region18: #{latent_injection_transformer.15} parent=1 // pred_check
      _
    $region19: #{latent_injection_transformer.15} parent=1 // pred_check_branch
      %24 = sbr.rel (0) target = $region21
    $region20: #{latent_injection_transformer.15} parent=1 // pred_region
      _
    $region21: #{latent_injection_transformer.15} parent=1 // pred_fallthru
      _
    // Predicated region
    $region22: #{latent_injection_transformer.15} parent=1 // pred_check
      _
    $region23: #{latent_injection_transformer.15} parent=1 // pred_check_branch
      %26 = sbr.rel (0) target = $region25
    $region24: #{latent_injection_transformer.15} parent=1 // pred_region
      _
    $region25: #{latent_injection_transformer.15} parent=1 // pred_fallthru
      _
    // Predicated region
    $region26: #{latent_injection_transformer.15} parent=1 // pred_check
      _
    $region27: #{latent_injection_transformer.15} parent=1 // pred_check_branch
      %28 = sbr.rel (0) target = $region29
    $region28: #{latent_injection_transformer.15} parent=1 // pred_region
      _
    $region29: #{latent_injection_transformer.15} parent=1 // pred_fallthru
      _
    // Predicated region
    $region30: #{latent_injection_transformer.15} parent=1 // pred_check
      _
    $region31: #{latent_injection_transformer.15} parent=1 // pred_check_branch
      %30 = sbr.rel (0) target = $region33
    $region32: #{latent_injection_transformer.15} parent=1 // pred_region
      _
    $region33: #{latent_injection_transformer.15} parent=1 // pred_fallthru
      _
    // Predicated region
    $region34: #{latent_injection_transformer.15} parent=1 // pred_check
      _
    $region35: #{latent_injection_transformer.15} parent=1 // pred_check_branch
      %32 = sbr.rel (0) target = $region37
    $region36: #{latent_injection_transformer.15} parent=1 // pred_region
      %s34 = ssub.s32 16, 16
      %35 = vsyncadd [#allocation5], %s34
      %s37 = sshll.u32 [#allocation4], 4
      %s38 = int_to_ptr.vmem [resolvable:$true] %s37
      %40 = dma.hbm_to_vmem [thread:$0]  %s8, 16, %s38, [#allocation5]
    $region37: #{latent_injection_transformer.15} parent=1 // pred_fallthru
      _
    // Predicated region
    $region38: #{latent_injection_transformer.15} parent=1 // pred_check
      _
    $region39: #{latent_injection_transformer.15} parent=1 // pred_check_branch
      %42 = sbr.rel (0) target = $region41
    $region40: #{latent_injection_transformer.15} parent=1 // pred_region
      %43 = dma.done [#allocation5], 16
    $region41: #{latent_injection_transformer.15} parent=1 // pred_fallthru
      _
    %p45 = scmp.eq.s32.totalorder 0, 0
    // Predicated region
    $region42: #{latent_injection_transformer.15} parent=1 // pred_check
      %p46 = pneg %p45
    $region43: #{latent_injection_transformer.15} parent=1 // pred_check_branch
      %48 = sbr.rel (%p46) target = $region45
    $region44: #{latent_injection_transformer.15} parent=1 // pred_region
      %v49 = vld [vmem:[%s0] sm:$0xff]
      %v50 = vld [vmem:[%s0 + $0x8] sm:$0xff]
      %v51 = vld [vmem:[%s0 + $0x10] sm:$0xff]
      %v52 = vld [vmem:[%s0 + $0x18] sm:$0xff]
      %v53 = vld [vmem:[%s1] sm:$0x1]
      %v54 = vld [vmem:[%s2] sm:$0x1]
      %55 = vadd.xlane.f32.xlu0 %v49
      %v56 = vpop.xlane.xlu0 %55
      %57 = vadd.xlane.f32.xlu0 %v50
      %v58 = vpop.xlane.xlu0 %57
      %59 = vadd.xlane.f32.xlu0 %v51
      %v60 = vpop.xlane.xlu0 %59
      %61 = vadd.xlane.f32.xlu0 %v52
      %v62 = vpop.xlane.xlu0 %61
      %v63 = vrcp.pop 128.0
      %v64 = vmul.f32 %v56, %v63
      %v65 = vmul.f32 %v58, %v63
      %v66 = vmul.f32 %v60, %v63
      %v67 = vmul.f32 %v62, %v63
      %v68 = vsub.f32 %v49, %v64
      %v69 = vsub.f32 %v50, %v65
      %v70 = vsub.f32 %v51, %v66
      %v71 = vsub.f32 %v52, %v67
      %v72 = vmul.f32 %v68, %v68
      %v73 = vmul.f32 %v69, %v69
      %v74 = vmul.f32 %v70, %v70
      %v75 = vmul.f32 %v71, %v71
      %76 = vadd.xlane.f32.xlu0 %v72
      %v77 = vpop.xlane.xlu0 %76
      %78 = vadd.xlane.f32.xlu0 %v73
      %v79 = vpop.xlane.xlu0 %78
      %80 = vadd.xlane.f32.xlu0 %v74
      %v81 = vpop.xlane.xlu0 %80
      %82 = vadd.xlane.f32.xlu0 %v75
      %v83 = vpop.xlane.xlu0 %82
      %v84 = vmul.f32 %v77, %v63
      %v85 = vmul.f32 %v79, %v63
      %v86 = vmul.f32 %v81, %v63
      %v87 = vmul.f32 %v83, %v63
      %v88 = vadd.f32 %v84, 1e-05
      %v89 = vadd.f32 %v85, 1e-05
      %v90 = vadd.f32 %v86, 1e-05
      %v91 = vadd.f32 %v87, 1e-05
      %v92 = vrsqrt.pop %v88
      %v93 = vrsqrt.pop %v89
      %v94 = vrsqrt.pop %v90
      %v95 = vrsqrt.pop %v91
      %v96 = vmul.f32 %v68, %v92
      %v97 = vmul.f32 %v69, %v93
      %v98 = vmul.f32 %v70, %v94
      %v99 = vmul.f32 %v71, %v95
      %v101 = vlaneseq
      %v102 = vshrl.u32 %v101, 7
      %v103 = vsub.s32 0, %v102
      %v104 = vrot.slane %v53, %v103
      %v106 = vmul.f32 %v96, %v104
      %v107 = vmul.f32 %v97, %v104
      %v108 = vmul.f32 %v98, %v104
      %v109 = vmul.f32 %v99, %v104
      %v111 = vlaneseq
      %v112 = vshrl.u32 %v111, 7
      %v113 = vsub.s32 0, %v112
      %v114 = vrot.slane %v54, %v113
      %v116 = vadd.f32 %v106, %v114
      %v117 = vadd.f32 %v107, %v114
      %v118 = vadd.f32 %v108, %v114
      %v119 = vadd.f32 %v109, %v114
      %v120 = vpack.c.bf16 %v117, %v116
      %v121 = vpack.c.bf16 %v119, %v118
      %v124 = vunpack.c.l.b16 %v120
      %v125 = vunpack.c.h.b16 %v120
      %v126 = vunpack.c.l.b16 %v121
      %v127 = vunpack.c.h.b16 %v121
      %v128 = vpack.c.b16 %v124, %v124
      %v129 = vpack.c.b16 %v125, %v125
      %v130 = vpack.c.b16 %v126, %v126
      %v131 = vpack.c.b16 %v127, %v127
      %136 = vst [vmem:[#allocation2] sm:$0xf] %v128
      %137 = vst [vmem:[#allocation2 + $0x4] sm:$0xf] %v129
      %138 = vst [vmem:[#allocation2 + $0x8] sm:$0xf] %v130
      %139 = vst [vmem:[#allocation2 + $0xc] sm:$0xf] %v131
      %140 = vst [vmem:[#allocation3] sm:$0xff] 0.0
      %141 = vst [vmem:[#allocation3 + $0x8] sm:$0xff] 0.0
      %142 = vst [vmem:[#allocation3 + $0x10] sm:$0xff] 0.0
      %143 = vst [vmem:[#allocation3 + $0x18] sm:$0xff] 0.0
    $region45: #{latent_injection_transformer.15} parent=1 // pred_fallthru
      _
    %v144 = vld [vmem:[#allocation2] sm:$0xf]
    %v145 = vld [vmem:[#allocation2 + $0x4] sm:$0xf]
    %v146 = vld [vmem:[#allocation2 + $0x8] sm:$0xf]
    %v147 = vld [vmem:[#allocation2 + $0xc] sm:$0xf]
    %v148 = vld [vmem:[%s3] sm:$0xff]
    %v149 = vld [vmem:[%s3 + $0x8] sm:$0xff]
    %v150 = vld [vmem:[%s3 + $0x10] sm:$0xff]
    %v151 = vld [vmem:[%s3 + $0x18] sm:$0xff]
    %v152 = vld [vmem:[%s3 + $0x20] sm:$0xff]
    %v153 = vld [vmem:[%s3 + $0x28] sm:$0xff]
    %v154 = vld [vmem:[%s3 + $0x30] sm:$0xff]
    %v155 = vld [vmem:[%s3 + $0x38] sm:$0xff]
    %v156 = vld [vmem:[%s3 + $0x40] sm:$0xff]
    %v157 = vld [vmem:[%s3 + $0x48] sm:$0xff]
    %v158 = vld [vmem:[%s3 + $0x50] sm:$0xff]
    %v159 = vld [vmem:[%s3 + $0x58] sm:$0xff]
    %v160 = vld [vmem:[%s3 + $0x60] sm:$0xff]
    %v161 = vld [vmem:[%s3 + $0x68] sm:$0xff]
    %v162 = vld [vmem:[%s3 + $0x70] sm:$0xff]
    %v163 = vld [vmem:[%s3 + $0x78] sm:$0xff]
    %v164 = vld [vmem:[%s3 + $0x80] sm:$0xff]
    %v165 = vld [vmem:[%s3 + $0x88] sm:$0xff]
    %v166 = vld [vmem:[%s3 + $0x90] sm:$0xff]
    %v167 = vld [vmem:[%s3 + $0x98] sm:$0xff]
    %v168 = vld [vmem:[%s3 + $0xa0] sm:$0xff]
    %v169 = vld [vmem:[%s3 + $0xa8] sm:$0xff]
    %v170 = vld [vmem:[%s3 + $0xb0] sm:$0xff]
    %v171 = vld [vmem:[%s3 + $0xb8] sm:$0xff]
    %v172 = vld [vmem:[%s3 + $0xc0] sm:$0xff]
    %v173 = vld [vmem:[%s3 + $0xc8] sm:$0xff]
    %v174 = vld [vmem:[%s3 + $0xd0] sm:$0xff]
    %v175 = vld [vmem:[%s3 + $0xd8] sm:$0xff]
    %v176 = vld [vmem:[%s3 + $0xe0] sm:$0xff]
    %v177 = vld [vmem:[%s3 + $0xe8] sm:$0xff]
    %v178 = vld [vmem:[%s3 + $0xf0] sm:$0xff]
    %v179 = vld [vmem:[%s3 + $0xf8] sm:$0xff]
    %v180 = vld [vmem:[%s4] sm:$0xf]
    %v182 = vlaneseq
    %v183 = vshrl.u32 %v182, 7
    %v184 = vsub.s32 0, %v183
    %v185 = vrot.slane %v180, %v184
    %v186 = vlaneseq
    %v187 = vshrl.u32 %v186, 7
    %v188 = vsub.s32 1, %v187
    %v189 = vrot.slane %v180, %v188
    %v190 = vlaneseq
    %v191 = vshrl.u32 %v190, 7
    %v192 = vsub.s32 2, %v191
    %v193 = vrot.slane %v180, %v192
    %v194 = vlaneseq
    %v195 = vshrl.u32 %v194, 7
    %v196 = vsub.s32 3, %v195
    %v197 = vrot.slane %v180, %v196
    %v206 = vunpack.c.l.b16 %v144
    %v207 = vunpack.c.l.b16 %v145
    %v208 = vunpack.c.l.b16 %v146
    %v209 = vunpack.c.l.b16 %v147
    %v210 = vpack.c.b16 %v207, %v206
    %v211 = vpack.c.b16 %v209, %v208
    %v246 = vunpack.c.l.b16 %v148
    %v247 = vunpack.c.h.b16 %v148
    %v248 = vunpack.c.l.b16 %v149
    %v249 = vunpack.c.h.b16 %v149
    %v250 = vunpack.c.l.b16 %v150
    %v251 = vunpack.c.h.b16 %v150
    %v252 = vunpack.c.l.b16 %v151
    %v253 = vunpack.c.h.b16 %v151
    %v254 = vunpack.c.l.b16 %v152
    %v255 = vunpack.c.h.b16 %v152
    %v256 = vunpack.c.l.b16 %v153
    %v257 = vunpack.c.h.b16 %v153
    %v258 = vunpack.c.l.b16 %v154
    %v259 = vunpack.c.h.b16 %v154
    %v260 = vunpack.c.l.b16 %v155
    %v261 = vunpack.c.h.b16 %v155
    %v262 = vunpack.c.l.b16 %v156
    %v263 = vunpack.c.h.b16 %v156
    %v264 = vunpack.c.l.b16 %v157
    %v265 = vunpack.c.h.b16 %v157
    %v266 = vunpack.c.l.b16 %v158
    %v267 = vunpack.c.h.b16 %v158
    %v268 = vunpack.c.l.b16 %v159
    %v269 = vunpack.c.h.b16 %v159
    %v270 = vunpack.c.l.b16 %v160
    %v271 = vunpack.c.h.b16 %v160
    %v272 = vunpack.c.l.b16 %v161
    %v273 = vunpack.c.h.b16 %v161
    %v274 = vunpack.c.l.b16 %v162
    %v275 = vunpack.c.h.b16 %v162
    %v276 = vunpack.c.l.b16 %v163
    %v277 = vunpack.c.h.b16 %v163
    %v278 = vunpack.c.l.b16 %v164
    %v279 = vunpack.c.h.b16 %v164
    %v280 = vunpack.c.l.b16 %v165
    %v281 = vunpack.c.h.b16 %v165
    %v282 = vunpack.c.l.b16 %v166
    %v283 = vunpack.c.h.b16 %v166
    %v284 = vunpack.c.l.b16 %v167
    %v285 = vunpack.c.h.b16 %v167
    %v286 = vunpack.c.l.b16 %v168
    %v287 = vunpack.c.h.b16 %v168
    %v288 = vunpack.c.l.b16 %v169
    %v289 = vunpack.c.h.b16 %v169
    %v290 = vunpack.c.l.b16 %v170
    %v291 = vunpack.c.h.b16 %v170
    %v292 = vunpack.c.l.b16 %v171
    %v293 = vunpack.c.h.b16 %v171
    %v294 = vunpack.c.l.b16 %v172
    %v295 = vunpack.c.h.b16 %v172
    %v296 = vunpack.c.l.b16 %v173
    %v297 = vunpack.c.h.b16 %v173
    %v298 = vunpack.c.l.b16 %v174
    %v299 = vunpack.c.h.b16 %v174
    %v300 = vunpack.c.l.b16 %v175
    %v301 = vunpack.c.h.b16 %v175
    %v302 = vunpack.c.l.b16 %v176
    %v303 = vunpack.c.h.b16 %v176
    %v304 = vunpack.c.l.b16 %v177
    %v305 = vunpack.c.h.b16 %v177
    %v306 = vunpack.c.l.b16 %v178
    %v307 = vunpack.c.h.b16 %v178
    %v308 = vunpack.c.l.b16 %v179
    %v309 = vunpack.c.h.b16 %v179
    %v310 = vpack.c.b16 %v250, %v246
    %v311 = vpack.c.b16 %v251, %v247
    %v312 = vpack.c.b16 %v252, %v248
    %v313 = vpack.c.b16 %v253, %v249
    %v314 = vpack.c.b16 %v258, %v254
    %v315 = vpack.c.b16 %v259, %v255
    %v316 = vpack.c.b16 %v260, %v256
    %v317 = vpack.c.b16 %v261, %v257
    %v318 = vpack.c.b16 %v266, %v262
    %v319 = vpack.c.b16 %v267, %v263
    %v320 = vpack.c.b16 %v268, %v264
    %v321 = vpack.c.b16 %v269, %v265
    %v322 = vpack.c.b16 %v274, %v270
    %v323 = vpack.c.b16 %v275, %v271
    %v324 = vpack.c.b16 %v276, %v272
    %v325 = vpack.c.b16 %v277, %v273
    %v326 = vpack.c.b16 %v282, %v278
    %v327 = vpack.c.b16 %v283, %v279
    %v328 = vpack.c.b16 %v284, %v280
    %v329 = vpack.c.b16 %v285, %v281
    %v330 = vpack.c.b16 %v290, %v286
    %v331 = vpack.c.b16 %v291, %v287
    %v332 = vpack.c.b16 %v292, %v288
    %v333 = vpack.c.b16 %v293, %v289
    %v334 = vpack.c.b16 %v298, %v294
    %v335 = vpack.c.b16 %v299, %v295
    %v336 = vpack.c.b16 %v300, %v296
    %v337 = vpack.c.b16 %v301, %v297
    %v338 = vpack.c.b16 %v306, %v302
    %v339 = vpack.c.b16 %v307, %v303
    %v340 = vpack.c.b16 %v308, %v304
    %v341 = vpack.c.b16 %v309, %v305
    %374 = vmatprep.subr.bf16.mxu0 %v339
    %375 = vmatpush1.bf16.msra.mxu0 %v338
    %376 = vmatprep.subr.bf16.mxu0 %v335
    %377 = vmatpush1.bf16.msra.mxu0 %v334
    %378 = vmatprep.subr.bf16.mxu0 %v331
    %379 = vmatpush1.bf16.msra.mxu0 %v330
    %380 = vmatprep.subr.bf16.mxu0 %v327
    %381 = vmatpush1.bf16.msra.mxu0 %v326
    %382 = vmatprep.subr.bf16.mxu0 %v323
    %383 = vmatpush1.bf16.msra.mxu0 %v322
    %384 = vmatprep.subr.bf16.mxu0 %v319
    %385 = vmatpush1.bf16.msra.mxu0 %v318
    %386 = vmatprep.subr.bf16.mxu0 %v315
    %387 = vmatpush1.bf16.msra.mxu0 %v314
    %388 = vmatprep.subr.bf16.mxu0 %v311
    %389 = vmatpush1.bf16.msra.mxu0 %v310
    %390 = vmatprep.subr.bf16.mxu0 0
    %391 = vmatpush2.bf16.msra.mxu0 0
    %392 = vmatprep.subr.bf16.mxu0 0
    %393 = vmatpush2.bf16.msra.mxu0 0
    %394 = vmatprep.subr.bf16.mxu0 0
    %395 = vmatpush2.bf16.msra.mxu0 0
    %396 = vmatprep.subr.bf16.mxu0 0
    %397 = vmatpush2.bf16.msra.mxu0 0
    %398 = vmatprep.subr.bf16.mxu0 0
    %399 = vmatpush2.bf16.msra.mxu0 0
    %400 = vmatprep.subr.bf16.mxu0 0
    %401 = vmatpush2.bf16.msra.mxu0 0
    %402 = vmatprep.subr.bf16.mxu0 0
    %403 = vmatpush2.bf16.msra.mxu0 0
    %404 = vmatprep.subr.bf16.mxu0 0
    %405 = vmatpush2.bf16.msra.mxu0 0
    %406 = vmatprep.mubr.bf16.mxu0 0
    %407 = vmatmul.mubr.bf16.gmra.mxu0 %v210
    %v408 = vpop.f32.mrf.mxu0
    %v409 = vadd.f32 %v185, %v408
    %v410 = vpop.f32.mrf.mxu0
    %v411 = vadd.f32 %v189, %v410
    %v412 = vpop.f32.mrf.mxu0
    %v413 = vadd.f32 %v185, %v412
    %v414 = vpop.f32.mrf.mxu0
    %v415 = vadd.f32 %v189, %v414
    %416 = vmatprep.mubr.bf16.mxu0 0
    %417 = vmatmul.mubr.bf16.gmra.mxu0 %v211
    %v418 = vpop.f32.mrf.mxu0
    %v419 = vadd.f32 %v185, %v418
    %v420 = vpop.f32.mrf.mxu0
    %v421 = vadd.f32 %v189, %v420
    %v422 = vpop.f32.mrf.mxu0
    %v423 = vadd.f32 %v185, %v422
    %v424 = vpop.f32.mrf.mxu0
    %v425 = vadd.f32 %v189, %v424
    %426 = vdwg.mxu0
    %427 = vmatprep.subr.bf16.mxu0 %v341
    %428 = vmatpush1.bf16.msra.mxu0 %v340
    %429 = vmatprep.subr.bf16.mxu0 %v337
    %430 = vmatpush1.bf16.msra.mxu0 %v336
    %431 = vmatprep.subr.bf16.mxu0 %v333
    %432 = vmatpush1.bf16.msra.mxu0 %v332
    %433 = vmatprep.subr.bf16.mxu0 %v329
    %434 = vmatpush1.bf16.msra.mxu0 %v328
    %435 = vmatprep.subr.bf16.mxu0 %v325
    %436 = vmatpush1.bf16.msra.mxu0 %v324
    %437 = vmatprep.subr.bf16.mxu0 %v321
    %438 = vmatpush1.bf16.msra.mxu0 %v320
    %439 = vmatprep.subr.bf16.mxu0 %v317
    %440 = vmatpush1.bf16.msra.mxu0 %v316
    %441 = vmatprep.subr.bf16.mxu0 %v313
    %442 = vmatpush1.bf16.msra.mxu0 %v312
    %443 = vmatprep.subr.bf16.mxu0 0
    %444 = vmatpush2.bf16.msra.mxu0 0
    %445 = vmatprep.subr.bf16.mxu0 0
    %446 = vmatpush2.bf16.msra.mxu0 0
    %447 = vmatprep.subr.bf16.mxu0 0
    %448 = vmatpush2.bf16.msra.mxu0 0
    %449 = vmatprep.subr.bf16.mxu0 0
    %450 = vmatpush2.bf16.msra.mxu0 0
    %451 = vmatprep.subr.bf16.mxu0 0
    %452 = vmatpush2.bf16.msra.mxu0 0
    %453 = vmatprep.subr.bf16.mxu0 0
    %454 = vmatpush2.bf16.msra.mxu0 0
    %455 = vmatprep.subr.bf16.mxu0 0
    %456 = vmatpush2.bf16.msra.mxu0 0
    %457 = vmatprep.subr.bf16.mxu0 0
    %458 = vmatpush2.bf16.msra.mxu0 0
    %459 = vmatprep.mubr.bf16.mxu0 0
    %460 = vmatmul.mubr.bf16.gmra.mxu0 %v210
    %v461 = vpop.f32.mrf.mxu0
    %v462 = vadd.f32 %v193, %v461
    %v463 = vpop.f32.mrf.mxu0
    %v464 = vadd.f32 %v197, %v463
    %v465 = vpop.f32.mrf.mxu0
    %v466 = vadd.f32 %v193, %v465
    %v467 = vpop.f32.mrf.mxu0
    %v468 = vadd.f32 %v197, %v467
    %469 = vmatprep.mubr.bf16.mxu0 0
    %470 = vmatmul.mubr.bf16.gmra.mxu0 %v211
    %v471 = vpop.f32.mrf.mxu0
    %v472 = vadd.f32 %v193, %v471
    %v473 = vpop.f32.mrf.mxu0
    %v474 = vadd.f32 %v197, %v473
    %v475 = vpop.f32.mrf.mxu0
    %v476 = vadd.f32 %v193, %v475
    %v477 = vpop.f32.mrf.mxu0
    %v478 = vadd.f32 %v197, %v477
    %479 = vdwg.mxu0
    %v480 = vld [vmem:[%s5] sm:$0xff]
    %v481 = vld [vmem:[%s5 + $0x8] sm:$0xff]
    %v482 = vld [vmem:[%s5 + $0x10] sm:$0xff]
    %v483 = vld [vmem:[%s5 + $0x18] sm:$0xff]
    %v484 = vld [vmem:[%s5 + $0x20] sm:$0xff]
    %v485 = vld [vmem:[%s5 + $0x28] sm:$0xff]
    %v486 = vld [vmem:[%s5 + $0x30] sm:$0xff]
    %v487 = vld [vmem:[%s5 + $0x38] sm:$0xff]
    %v488 = vld [vmem:[%s5 + $0x40] sm:$0xff]
    %v489 = vld [vmem:[%s5 + $0x48] sm:$0xff]
    %v490 = vld [vmem:[%s5 + $0x50] sm:$0xff]
    %v491 = vld [vmem:[%s5 + $0x58] sm:$0xff]
    %v492 = vld [vmem:[%s5 + $0x60] sm:$0xff]
    %v493 = vld [vmem:[%s5 + $0x68] sm:$0xff]
    %v494 = vld [vmem:[%s5 + $0x70] sm:$0xff]
    %v495 = vld [vmem:[%s5 + $0x78] sm:$0xff]
    %v496 = vld [vmem:[%s5 + $0x80] sm:$0xff]
    %v497 = vld [vmem:[%s5 + $0x88] sm:$0xff]
    %v498 = vld [vmem:[%s5 + $0x90] sm:$0xff]
    %v499 = vld [vmem:[%s5 + $0x98] sm:$0xff]
    %v500 = vld [vmem:[%s5 + $0xa0] sm:$0xff]
    %v501 = vld [vmem:[%s5 + $0xa8] sm:$0xff]
    %v502 = vld [vmem:[%s5 + $0xb0] sm:$0xff]
    %v503 = vld [vmem:[%s5 + $0xb8] sm:$0xff]
    %v504 = vld [vmem:[%s5 + $0xc0] sm:$0xff]
    %v505 = vld [vmem:[%s5 + $0xc8] sm:$0xff]
    %v506 = vld [vmem:[%s5 + $0xd0] sm:$0xff]
    %v507 = vld [vmem:[%s5 + $0xd8] sm:$0xff]
    %v508 = vld [vmem:[%s5 + $0xe0] sm:$0xff]
    %v509 = vld [vmem:[%s5 + $0xe8] sm:$0xff]
    %v510 = vld [vmem:[%s5 + $0xf0] sm:$0xff]
    %v511 = vld [vmem:[%s5 + $0xf8] sm:$0xff]
    %v512 = vld [vmem:[%s6] sm:$0xf]
    %v514 = vlaneseq
    %v515 = vshrl.u32 %v514, 7
    %v516 = vsub.s32 0, %v515
    %v517 = vrot.slane %v512, %v516
    %v518 = vlaneseq
    %v519 = vshrl.u32 %v518, 7
    %v520 = vsub.s32 1, %v519
    %v521 = vrot.slane %v512, %v520
    %v522 = vlaneseq
    %v523 = vshrl.u32 %v522, 7
    %v524 = vsub.s32 2, %v523
    %v525 = vrot.slane %v512, %v524
    %v526 = vlaneseq
    %v527 = vshrl.u32 %v526, 7
    %v528 = vsub.s32 3, %v527
    %v529 = vrot.slane %v512, %v528
    %v566 = vunpack.c.l.b16 %v480
    %v567 = vunpack.c.h.b16 %v480
    %v568 = vunpack.c.l.b16 %v481
    %v569 = vunpack.c.h.b16 %v481
    %v570 = vunpack.c.l.b16 %v482
    %v571 = vunpack.c.h.b16 %v482
    %v572 = vunpack.c.l.b16 %v483
    %v573 = vunpack.c.h.b16 %v483
    %v574 = vunpack.c.l.b16 %v484
    %v575 = vunpack.c.h.b16 %v484
    %v576 = vunpack.c.l.b16 %v485
    %v577 = vunpack.c.h.b16 %v485
    %v578 = vunpack.c.l.b16 %v486
    %v579 = vunpack.c.h.b16 %v486
    %v580 = vunpack.c.l.b16 %v487
    %v581 = vunpack.c.h.b16 %v487
    %v582 = vunpack.c.l.b16 %v488
    %v583 = vunpack.c.h.b16 %v488
    %v584 = vunpack.c.l.b16 %v489
    %v585 = vunpack.c.h.b16 %v489
    %v586 = vunpack.c.l.b16 %v490
    %v587 = vunpack.c.h.b16 %v490
    %v588 = vunpack.c.l.b16 %v491
    %v589 = vunpack.c.h.b16 %v491
    %v590 = vunpack.c.l.b16 %v492
    %v591 = vunpack.c.h.b16 %v492
    %v592 = vunpack.c.l.b16 %v493
    %v593 = vunpack.c.h.b16 %v493
    %v594 = vunpack.c.l.b16 %v494
    %v595 = vunpack.c.h.b16 %v494
    %v596 = vunpack.c.l.b16 %v495
    %v597 = vunpack.c.h.b16 %v495
    %v598 = vunpack.c.l.b16 %v496
    %v599 = vunpack.c.h.b16 %v496
    %v600 = vunpack.c.l.b16 %v497
    %v601 = vunpack.c.h.b16 %v497
    %v602 = vunpack.c.l.b16 %v498
    %v603 = vunpack.c.h.b16 %v498
    %v604 = vunpack.c.l.b16 %v499
    %v605 = vunpack.c.h.b16 %v499
    %v606 = vunpack.c.l.b16 %v500
    %v607 = vunpack.c.h.b16 %v500
    %v608 = vunpack.c.l.b16 %v501
    %v609 = vunpack.c.h.b16 %v501
    %v610 = vunpack.c.l.b16 %v502
    %v611 = vunpack.c.h.b16 %v502
    %v612 = vunpack.c.l.b16 %v503
    %v613 = vunpack.c.h.b16 %v503
    %v614 = vunpack.c.l.b16 %v504
    %v615 = vunpack.c.h.b16 %v504
    %v616 = vunpack.c.l.b16 %v505
    %v617 = vunpack.c.h.b16 %v505
    %v618 = vunpack.c.l.b16 %v506
    %v619 = vunpack.c.h.b16 %v506
    %v620 = vunpack.c.l.b16 %v507
    %v621 = vunpack.c.h.b16 %v507
    %v622 = vunpack.c.l.b16 %v508
    %v623 = vunpack.c.h.b16 %v508
    %v624 = vunpack.c.l.b16 %v509
    %v625 = vunpack.c.h.b16 %v509
    %v626 = vunpack.c.l.b16 %v510
    %v627 = vunpack.c.h.b16 %v510
    %v628 = vunpack.c.l.b16 %v511
    %v629 = vunpack.c.h.b16 %v511
    %v630 = vpack.c.b16 %v570, %v566
    %v631 = vpack.c.b16 %v571, %v567
    %v632 = vpack.c.b16 %v572, %v568
    %v633 = vpack.c.b16 %v573, %v569
    %v634 = vpack.c.b16 %v578, %v574
    %v635 = vpack.c.b16 %v579, %v575
    %v636 = vpack.c.b16 %v580, %v576
    %v637 = vpack.c.b16 %v581, %v577
    %v638 = vpack.c.b16 %v586, %v582
    %v639 = vpack.c.b16 %v587, %v583
    %v640 = vpack.c.b16 %v588, %v584
    %v641 = vpack.c.b16 %v589, %v585
    %v642 = vpack.c.b16 %v594, %v590
    %v643 = vpack.c.b16 %v595, %v591
    %v644 = vpack.c.b16 %v596, %v592
    %v645 = vpack.c.b16 %v597, %v593
    %v646 = vpack.c.b16 %v602, %v598
    %v647 = vpack.c.b16 %v603, %v599
    %v648 = vpack.c.b16 %v604, %v600
    %v649 = vpack.c.b16 %v605, %v601
    %v650 = vpack.c.b16 %v610, %v606
    %v651 = vpack.c.b16 %v611, %v607
    %v652 = vpack.c.b16 %v612, %v608
    %v653 = vpack.c.b16 %v613, %v609
    %v654 = vpack.c.b16 %v618, %v614
    %v655 = vpack.c.b16 %v619, %v615
    %v656 = vpack.c.b16 %v620, %v616
    %v657 = vpack.c.b16 %v621, %v617
    %v658 = vpack.c.b16 %v626, %v622
    %v659 = vpack.c.b16 %v627, %v623
    %v660 = vpack.c.b16 %v628, %v624
    %v661 = vpack.c.b16 %v629, %v625
    %694 = vmatprep.subr.bf16.mxu0 %v659
    %695 = vmatpush1.bf16.msra.mxu0 %v658
    %696 = vmatprep.subr.bf16.mxu0 %v655
    %697 = vmatpush1.bf16.msra.mxu0 %v654
    %698 = vmatprep.subr.bf16.mxu0 %v651
    %699 = vmatpush1.bf16.msra.mxu0 %v650
    %700 = vmatprep.subr.bf16.mxu0 %v647
    %701 = vmatpush1.bf16.msra.mxu0 %v646
    %702 = vmatprep.subr.bf16.mxu0 %v643
    %703 = vmatpush1.bf16.msra.mxu0 %v642
    %704 = vmatprep.subr.bf16.mxu0 %v639
    %705 = vmatpush1.bf16.msra.mxu0 %v638
    %706 = vmatprep.subr.bf16.mxu0 %v635
    %707 = vmatpush1.bf16.msra.mxu0 %v634
    %708 = vmatprep.subr.bf16.mxu0 %v631
    %709 = vmatpush1.bf16.msra.mxu0 %v630
    %710 = vmatprep.subr.bf16.mxu0 0
    %711 = vmatpush2.bf16.msra.mxu0 0
    %712 = vmatprep.subr.bf16.mxu0 0
    %713 = vmatpush2.bf16.msra.mxu0 0
    %714 = vmatprep.subr.bf16.mxu0 0
    %715 = vmatpush2.bf16.msra.mxu0 0
    %716 = vmatprep.subr.bf16.mxu0 0
    %717 = vmatpush2.bf16.msra.mxu0 0
    %718 = vmatprep.subr.bf16.mxu0 0
    %719 = vmatpush2.bf16.msra.mxu0 0
    %720 = vmatprep.subr.bf16.mxu0 0
    %721 = vmatpush2.bf16.msra.mxu0 0
    %722 = vmatprep.subr.bf16.mxu0 0
    %723 = vmatpush2.bf16.msra.mxu0 0
    %724 = vmatprep.subr.bf16.mxu0 0
    %725 = vmatpush2.bf16.msra.mxu0 0
    %726 = vmatprep.mubr.bf16.mxu0 0
    %727 = vmatmul.mubr.bf16.gmra.mxu0 %v210
    %v728 = vpop.f32.mrf.mxu0
    %v729 = vadd.f32 %v517, %v728
    %v730 = vpop.f32.mrf.mxu0
    %v731 = vadd.f32 %v521, %v730
    %v732 = vpop.f32.mrf.mxu0
    %v733 = vadd.f32 %v517, %v732
    %v734 = vpop.f32.mrf.mxu0
    %v735 = vadd.f32 %v521, %v734
    %736 = vmatprep.mubr.bf16.mxu0 0
    %737 = vmatmul.mubr.bf16.gmra.mxu0 %v211
    %v738 = vpop.f32.mrf.mxu0
    %v739 = vadd.f32 %v517, %v738
    %v740 = vpop.f32.mrf.mxu0
    %v741 = vadd.f32 %v521, %v740
    %v742 = vpop.f32.mrf.mxu0
    %v743 = vadd.f32 %v517, %v742
    %v744 = vpop.f32.mrf.mxu0
    %v745 = vadd.f32 %v521, %v744
    %746 = vdwg.mxu0
    %747 = vmatprep.subr.bf16.mxu0 %v661
    %748 = vmatpush1.bf16.msra.mxu0 %v660
    %749 = vmatprep.subr.bf16.mxu0 %v657
    %750 = vmatpush1.bf16.msra.mxu0 %v656
    %751 = vmatprep.subr.bf16.mxu0 %v653
    %752 = vmatpush1.bf16.msra.mxu0 %v652
    %753 = vmatprep.subr.bf16.mxu0 %v649
    %754 = vmatpush1.bf16.msra.mxu0 %v648
    %755 = vmatprep.subr.bf16.mxu0 %v645
    %756 = vmatpush1.bf16.msra.mxu0 %v644
    %757 = vmatprep.subr.bf16.mxu0 %v641
    %758 = vmatpush1.bf16.msra.mxu0 %v640
    %759 = vmatprep.subr.bf16.mxu0 %v637
    %760 = vmatpush1.bf16.msra.mxu0 %v636
    %761 = vmatprep.subr.bf16.mxu0 %v633
    %762 = vmatpush1.bf16.msra.mxu0 %v632
    %763 = vmatprep.subr.bf16.mxu0 0
    %764 = vmatpush2.bf16.msra.mxu0 0
    %765 = vmatprep.subr.bf16.mxu0 0
    %766 = vmatpush2.bf16.msra.mxu0 0
    %767 = vmatprep.subr.bf16.mxu0 0
    %768 = vmatpush2.bf16.msra.mxu0 0
    %769 = vmatprep.subr.bf16.mxu0 0
    %770 = vmatpush2.bf16.msra.mxu0 0
    %771 = vmatprep.subr.bf16.mxu0 0
    %772 = vmatpush2.bf16.msra.mxu0 0
    %773 = vmatprep.subr.bf16.mxu0 0
    %774 = vmatpush2.bf16.msra.mxu0 0
    %775 = vmatprep.subr.bf16.mxu0 0
    %776 = vmatpush2.bf16.msra.mxu0 0
    %777 = vmatprep.subr.bf16.mxu0 0
    %778 = vmatpush2.bf16.msra.mxu0 0
    %779 = vmatprep.mubr.bf16.mxu0 0
    %780 = vmatmul.mubr.bf16.gmra.mxu0 %v210
    %v781 = vpop.f32.mrf.mxu0
    %v782 = vadd.f32 %v525, %v781
    %v783 = vpop.f32.mrf.mxu0
    %v784 = vadd.f32 %v529, %v783
    %v785 = vpop.f32.mrf.mxu0
    %v786 = vadd.f32 %v525, %v785
    %v787 = vpop.f32.mrf.mxu0
    %v788 = vadd.f32 %v529, %v787
    %789 = vmatprep.mubr.bf16.mxu0 0
    %790 = vmatmul.mubr.bf16.gmra.mxu0 %v211
    %v791 = vpop.f32.mrf.mxu0
    %v792 = vadd.f32 %v525, %v791
    %v793 = vpop.f32.mrf.mxu0
    %v794 = vadd.f32 %v529, %v793
    %v795 = vpop.f32.mrf.mxu0
    %v796 = vadd.f32 %v525, %v795
    %v797 = vpop.f32.mrf.mxu0
    %v798 = vadd.f32 %v529, %v797
    %799 = vdwg.mxu0
    %v800 = vmul.f32 %v729, 0.5
    %v801 = vmul.f32 %v731, 0.5
    %v802 = vmul.f32 %v782, 0.5
    %v803 = vmul.f32 %v784, 0.5
    %v804 = vmul.f32 %v733, 0.5
    %v805 = vmul.f32 %v735, 0.5
    %v806 = vmul.f32 %v786, 0.5
    %v807 = vmul.f32 %v788, 0.5
    %v808 = vmul.f32 %v739, 0.5
    %v809 = vmul.f32 %v741, 0.5
    %v810 = vmul.f32 %v792, 0.5
    %v811 = vmul.f32 %v794, 0.5
    %v812 = vmul.f32 %v743, 0.5
    %v813 = vmul.f32 %v745, 0.5
    %v814 = vmul.f32 %v796, 0.5
    %v815 = vmul.f32 %v798, 0.5
    %v816 = vmul.f32 %v729, 0.044715
    %v817 = vmul.f32 %v731, 0.044715
    %v818 = vmul.f32 %v782, 0.044715
    %v819 = vmul.f32 %v784, 0.044715
    %v820 = vmul.f32 %v733, 0.044715
    %v821 = vmul.f32 %v735, 0.044715
    %v822 = vmul.f32 %v786, 0.044715
    %v823 = vmul.f32 %v788, 0.044715
    %v824 = vmul.f32 %v739, 0.044715
    %v825 = vmul.f32 %v741, 0.044715
    %v826 = vmul.f32 %v792, 0.044715
    %v827 = vmul.f32 %v794, 0.044715
    %v828 = vmul.f32 %v743, 0.044715
    %v829 = vmul.f32 %v745, 0.044715
    %v830 = vmul.f32 %v796, 0.044715
    %v831 = vmul.f32 %v798, 0.044715
    %v832 = vmul.f32 %v816, %v729
    %v833 = vmul.f32 %v817, %v731
    %v834 = vmul.f32 %v818, %v782
    %v835 = vmul.f32 %v819, %v784
    %v836 = vmul.f32 %v820, %v733
    %v837 = vmul.f32 %v821, %v735
    %v838 = vmul.f32 %v822, %v786
    %v839 = vmul.f32 %v823, %v788
    %v840 = vmul.f32 %v824, %v739
    %v841 = vmul.f32 %v825, %v741
    %v842 = vmul.f32 %v826, %v792
    %v843 = vmul.f32 %v827, %v794
    %v844 = vmul.f32 %v828, %v743
    %v845 = vmul.f32 %v829, %v745
    %v846 = vmul.f32 %v830, %v796
    %v847 = vmul.f32 %v831, %v798
    %v848 = vmul.f32 %v832, %v729
    %v849 = vmul.f32 %v833, %v731
    %v850 = vmul.f32 %v834, %v782
    %v851 = vmul.f32 %v835, %v784
    %v852 = vmul.f32 %v836, %v733
    %v853 = vmul.f32 %v837, %v735
    %v854 = vmul.f32 %v838, %v786
    %v855 = vmul.f32 %v839, %v788
    %v856 = vmul.f32 %v840, %v739
    %v857 = vmul.f32 %v841, %v741
    %v858 = vmul.f32 %v842, %v792
    %v859 = vmul.f32 %v843, %v794
    %v860 = vmul.f32 %v844, %v743
    %v861 = vmul.f32 %v845, %v745
    %v862 = vmul.f32 %v846, %v796
    %v863 = vmul.f32 %v847, %v798
    %v864 = vadd.f32 %v729, %v848
    %v865 = vadd.f32 %v731, %v849
    %v866 = vadd.f32 %v782, %v850
    %v867 = vadd.f32 %v784, %v851
    %v868 = vadd.f32 %v733, %v852
    %v869 = vadd.f32 %v735, %v853
    %v870 = vadd.f32 %v786, %v854
    %v871 = vadd.f32 %v788, %v855
    %v872 = vadd.f32 %v739, %v856
    %v873 = vadd.f32 %v741, %v857
    %v874 = vadd.f32 %v792, %v858
    %v875 = vadd.f32 %v794, %v859
    %v876 = vadd.f32 %v743, %v860
    %v877 = vadd.f32 %v745, %v861
    %v878 = vadd.f32 %v796, %v862
    %v879 = vadd.f32 %v798, %v863
    %v880 = vmul.f32 %v864, 0.7978846
    %v881 = vmul.f32 %v865, 0.7978846
    %v882 = vmul.f32 %v866, 0.7978846
    %v883 = vmul.f32 %v867, 0.7978846
    %v884 = vmul.f32 %v868, 0.7978846
    %v885 = vmul.f32 %v869, 0.7978846
    %v886 = vmul.f32 %v870, 0.7978846
    %v887 = vmul.f32 %v871, 0.7978846
    %v888 = vmul.f32 %v872, 0.7978846
    %v889 = vmul.f32 %v873, 0.7978846
    %v890 = vmul.f32 %v874, 0.7978846
    %v891 = vmul.f32 %v875, 0.7978846
    %v892 = vmul.f32 %v876, 0.7978846
    %v893 = vmul.f32 %v877, 0.7978846
    %v894 = vmul.f32 %v878, 0.7978846
    %v895 = vmul.f32 %v879, 0.7978846
    %v896 = vtanh.pop %v880
    %v897 = vtanh.pop %v881
    %v898 = vtanh.pop %v882
    %v899 = vtanh.pop %v883
    %v900 = vtanh.pop %v884
    %v901 = vtanh.pop %v885
    %v902 = vtanh.pop %v886
    %v903 = vtanh.pop %v887
    %v904 = vtanh.pop %v888
    %v905 = vtanh.pop %v889
    %v906 = vtanh.pop %v890
    %v907 = vtanh.pop %v891
    %v908 = vtanh.pop %v892
    %v909 = vtanh.pop %v893
    %v910 = vtanh.pop %v894
    %v911 = vtanh.pop %v895
    %v912 = vadd.f32 %v896, 1.0
    %v913 = vadd.f32 %v897, 1.0
    %v914 = vadd.f32 %v898, 1.0
    %v915 = vadd.f32 %v899, 1.0
    %v916 = vadd.f32 %v900, 1.0
    %v917 = vadd.f32 %v901, 1.0
    %v918 = vadd.f32 %v902, 1.0
    %v919 = vadd.f32 %v903, 1.0
    %v920 = vadd.f32 %v904, 1.0
    %v921 = vadd.f32 %v905, 1.0
    %v922 = vadd.f32 %v906, 1.0
    %v923 = vadd.f32 %v907, 1.0
    %v924 = vadd.f32 %v908, 1.0
    %v925 = vadd.f32 %v909, 1.0
    %v926 = vadd.f32 %v910, 1.0
    %v927 = vadd.f32 %v911, 1.0
    %v928 = vmul.f32 %v800, %v912
    %v929 = vmul.f32 %v801, %v913
    %v930 = vmul.f32 %v802, %v914
    %v931 = vmul.f32 %v803, %v915
    %v932 = vmul.f32 %v804, %v916
    %v933 = vmul.f32 %v805, %v917
    %v934 = vmul.f32 %v806, %v918
    %v935 = vmul.f32 %v807, %v919
    %v936 = vmul.f32 %v808, %v920
    %v937 = vmul.f32 %v809, %v921
    %v938 = vmul.f32 %v810, %v922
    %v939 = vmul.f32 %v811, %v923
    %v940 = vmul.f32 %v812, %v924
    %v941 = vmul.f32 %v813, %v925
    %v942 = vmul.f32 %v814, %v926
    %v943 = vmul.f32 %v815, %v927
    %v944 = vmul.f32 %v409, %v928
    %v945 = vmul.f32 %v411, %v929
    %v946 = vmul.f32 %v462, %v930
    %v947 = vmul.f32 %v464, %v931
    %v948 = vmul.f32 %v413, %v932
    %v949 = vmul.f32 %v415, %v933
    %v950 = vmul.f32 %v466, %v934
    %v951 = vmul.f32 %v468, %v935
    %v952 = vmul.f32 %v419, %v936
    %v953 = vmul.f32 %v421, %v937
    %v954 = vmul.f32 %v472, %v938
    %v955 = vmul.f32 %v474, %v939
    %v956 = vmul.f32 %v423, %v940
    %v957 = vmul.f32 %v425, %v941
    %v958 = vmul.f32 %v476, %v942
    %v959 = vmul.f32 %v478, %v943
    %v960 = vpack.c.bf16 %v948, %v944
    %v961 = vpack.c.bf16 %v949, %v945
    %v962 = vpack.c.bf16 %v950, %v946
    %v963 = vpack.c.bf16 %v951, %v947
    %v964 = vpack.c.bf16 %v956, %v952
    %v965 = vpack.c.bf16 %v957, %v953
    %v966 = vpack.c.bf16 %v958, %v954
    %v967 = vpack.c.bf16 %v959, %v955
    %v968 = vld [vmem:[#allocation3] sm:$0xff]
    %v969 = vld [vmem:[#allocation3 + $0x8] sm:$0xff]
    %v970 = vld [vmem:[#allocation3 + $0x10] sm:$0xff]
    %v971 = vld [vmem:[#allocation3 + $0x18] sm:$0xff]
    %v972 = vld [vmem:[%s7] sm:$0xf]
    %v973 = vld [vmem:[%s7 + $0x4] sm:$0xf]
    %v974 = vld [vmem:[%s7 + $0x8] sm:$0xf]
    %v975 = vld [vmem:[%s7 + $0xc] sm:$0xf]
    %v976 = vld [vmem:[%s7 + $0x10] sm:$0xf]
    %v977 = vld [vmem:[%s7 + $0x14] sm:$0xf]
    %v978 = vld [vmem:[%s7 + $0x18] sm:$0xf]
    %v979 = vld [vmem:[%s7 + $0x1c] sm:$0xf]
    %v980 = vld [vmem:[%s7 + $0x20] sm:$0xf]
    %v981 = vld [vmem:[%s7 + $0x24] sm:$0xf]
    %v982 = vld [vmem:[%s7 + $0x28] sm:$0xf]
    %v983 = vld [vmem:[%s7 + $0x2c] sm:$0xf]
    %v984 = vld [vmem:[%s7 + $0x30] sm:$0xf]
    %v985 = vld [vmem:[%s7 + $0x34] sm:$0xf]
    %v986 = vld [vmem:[%s7 + $0x38] sm:$0xf]
    %v987 = vld [vmem:[%s7 + $0x3c] sm:$0xf]
    %v988 = vld [vmem:[%s7 + $0x40] sm:$0xf]
    %v989 = vld [vmem:[%s7 + $0x44] sm:$0xf]
    %v990 = vld [vmem:[%s7 + $0x48] sm:$0xf]
    %v991 = vld [vmem:[%s7 + $0x4c] sm:$0xf]
    %v992 = vld [vmem:[%s7 + $0x50] sm:$0xf]
    %v993 = vld [vmem:[%s7 + $0x54] sm:$0xf]
    %v994 = vld [vmem:[%s7 + $0x58] sm:$0xf]
    %v995 = vld [vmem:[%s7 + $0x5c] sm:$0xf]
    %v996 = vld [vmem:[%s7 + $0x60] sm:$0xf]
    %v997 = vld [vmem:[%s7 + $0x64] sm:$0xf]
    %v998 = vld [vmem:[%s7 + $0x68] sm:$0xf]
    %v999 = vld [vmem:[%s7 + $0x6c] sm:$0xf]
    %v1000 = vld [vmem:[%s7 + $0x70] sm:$0xf]
    %v1001 = vld [vmem:[%s7 + $0x74] sm:$0xf]
    %v1002 = vld [vmem:[%s7 + $0x78] sm:$0xf]
    %v1003 = vld [vmem:[%s7 + $0x7c] sm:$0xf]
    %v1004 = vld [vmem:[%s7 + $0x80] sm:$0xf]
    %v1005 = vld [vmem:[%s7 + $0x84] sm:$0xf]
    %v1006 = vld [vmem:[%s7 + $0x88] sm:$0xf]
    %v1007 = vld [vmem:[%s7 + $0x8c] sm:$0xf]
    %v1008 = vld [vmem:[%s7 + $0x90] sm:$0xf]
    %v1009 = vld [vmem:[%s7 + $0x94] sm:$0xf]
    %v1010 = vld [vmem:[%s7 + $0x98] sm:$0xf]
    %v1011 = vld [vmem:[%s7 + $0x9c] sm:$0xf]
    %v1012 = vld [vmem:[%s7 + $0xa0] sm:$0xf]
    %v1013 = vld [vmem:[%s7 + $0xa4] sm:$0xf]
    %v1014 = vld [vmem:[%s7 + $0xa8] sm:$0xf]
    %v1015 = vld [vmem:[%s7 + $0xac] sm:$0xf]
    %v1016 = vld [vmem:[%s7 + $0xb0] sm:$0xf]
    %v1017 = vld [vmem:[%s7 + $0xb4] sm:$0xf]
    %v1018 = vld [vmem:[%s7 + $0xb8] sm:$0xf]
    %v1019 = vld [vmem:[%s7 + $0xbc] sm:$0xf]
    %v1020 = vld [vmem:[%s7 + $0xc0] sm:$0xf]
    %v1021 = vld [vmem:[%s7 + $0xc4] sm:$0xf]
    %v1022 = vld [vmem:[%s7 + $0xc8] sm:$0xf]
    %v1023 = vld [vmem:[%s7 + $0xcc] sm:$0xf]
    %v1024 = vld [vmem:[%s7 + $0xd0] sm:$0xf]
    %v1025 = vld [vmem:[%s7 + $0xd4] sm:$0xf]
    %v1026 = vld [vmem:[%s7 + $0xd8] sm:$0xf]
    %v1027 = vld [vmem:[%s7 + $0xdc] sm:$0xf]
    %v1028 = vld [vmem:[%s7 + $0xe0] sm:$0xf]
    %v1029 = vld [vmem:[%s7 + $0xe4] sm:$0xf]
    %v1030 = vld [vmem:[%s7 + $0xe8] sm:$0xf]
    %v1031 = vld [vmem:[%s7 + $0xec] sm:$0xf]
    %v1032 = vld [vmem:[%s7 + $0xf0] sm:$0xf]
    %v1033 = vld [vmem:[%s7 + $0xf4] sm:$0xf]
    %v1034 = vld [vmem:[%s7 + $0xf8] sm:$0xf]
    %v1035 = vld [vmem:[%s7 + $0xfc] sm:$0xf]
    %v1100 = vunpack.c.l.b16 %v972
    %v1101 = vunpack.c.l.b16 %v973
    %v1102 = vunpack.c.l.b16 %v974
    %v1103 = vunpack.c.l.b16 %v975
    %v1104 = vunpack.c.l.b16 %v976
    %v1105 = vunpack.c.l.b16 %v977
    %v1106 = vunpack.c.l.b16 %v978
    %v1107 = vunpack.c.l.b16 %v979
    %v1108 = vunpack.c.l.b16 %v980
    %v1109 = vunpack.c.l.b16 %v981
    %v1110 = vunpack.c.l.b16 %v982
    %v1111 = vunpack.c.l.b16 %v983
    %v1112 = vunpack.c.l.b16 %v984
    %v1113 = vunpack.c.l.b16 %v985
    %v1114 = vunpack.c.l.b16 %v986
    %v1115 = vunpack.c.l.b16 %v987
    %v1116 = vunpack.c.l.b16 %v988
    %v1117 = vunpack.c.l.b16 %v989
    %v1118 = vunpack.c.l.b16 %v990
    %v1119 = vunpack.c.l.b16 %v991
    %v1120 = vunpack.c.l.b16 %v992
    %v1121 = vunpack.c.l.b16 %v993
    %v1122 = vunpack.c.l.b16 %v994
    %v1123 = vunpack.c.l.b16 %v995
    %v1124 = vunpack.c.l.b16 %v996
    %v1125 = vunpack.c.l.b16 %v997
    %v1126 = vunpack.c.l.b16 %v998
    %v1127 = vunpack.c.l.b16 %v999
    %v1128 = vunpack.c.l.b16 %v1000
    %v1129 = vunpack.c.l.b16 %v1001
    %v1130 = vunpack.c.l.b16 %v1002
    %v1131 = vunpack.c.l.b16 %v1003
    %v1132 = vunpack.c.l.b16 %v1004
    %v1133 = vunpack.c.l.b16 %v1005
    %v1134 = vunpack.c.l.b16 %v1006
    %v1135 = vunpack.c.l.b16 %v1007
    %v1136 = vunpack.c.l.b16 %v1008
    %v1137 = vunpack.c.l.b16 %v1009
    %v1138 = vunpack.c.l.b16 %v1010
    %v1139 = vunpack.c.l.b16 %v1011
    %v1140 = vunpack.c.l.b16 %v1012
    %v1141 = vunpack.c.l.b16 %v1013
    %v1142 = vunpack.c.l.b16 %v1014
    %v1143 = vunpack.c.l.b16 %v1015
    %v1144 = vunpack.c.l.b16 %v1016
    %v1145 = vunpack.c.l.b16 %v1017
    %v1146 = vunpack.c.l.b16 %v1018
    %v1147 = vunpack.c.l.b16 %v1019
    %v1148 = vunpack.c.l.b16 %v1020
    %v1149 = vunpack.c.l.b16 %v1021
    %v1150 = vunpack.c.l.b16 %v1022
    %v1151 = vunpack.c.l.b16 %v1023
    %v1152 = vunpack.c.l.b16 %v1024
    %v1153 = vunpack.c.l.b16 %v1025
    %v1154 = vunpack.c.l.b16 %v1026
    %v1155 = vunpack.c.l.b16 %v1027
    %v1156 = vunpack.c.l.b16 %v1028
    %v1157 = vunpack.c.l.b16 %v1029
    %v1158 = vunpack.c.l.b16 %v1030
    %v1159 = vunpack.c.l.b16 %v1031
    %v1160 = vunpack.c.l.b16 %v1032
    %v1161 = vunpack.c.l.b16 %v1033
    %v1162 = vunpack.c.l.b16 %v1034
    %v1163 = vunpack.c.l.b16 %v1035
    %v1164 = vpack.c.b16 %v1101, %v1100
    %v1165 = vpack.c.b16 %v1103, %v1102
    %v1166 = vpack.c.b16 %v1105, %v1104
    %v1167 = vpack.c.b16 %v1107, %v1106
    %v1168 = vpack.c.b16 %v1109, %v1108
    %v1169 = vpack.c.b16 %v1111, %v1110
    %v1170 = vpack.c.b16 %v1113, %v1112
    %v1171 = vpack.c.b16 %v1115, %v1114
    %v1172 = vpack.c.b16 %v1117, %v1116
    %v1173 = vpack.c.b16 %v1119, %v1118
    %v1174 = vpack.c.b16 %v1121, %v1120
    %v1175 = vpack.c.b16 %v1123, %v1122
    %v1176 = vpack.c.b16 %v1125, %v1124
    %v1177 = vpack.c.b16 %v1127, %v1126
    %v1178 = vpack.c.b16 %v1129, %v1128
    %v1179 = vpack.c.b16 %v1131, %v1130
    %v1180 = vpack.c.b16 %v1133, %v1132
    %v1181 = vpack.c.b16 %v1135, %v1134
    %v1182 = vpack.c.b16 %v1137, %v1136
    %v1183 = vpack.c.b16 %v1139, %v1138
    %v1184 = vpack.c.b16 %v1141, %v1140
    %v1185 = vpack.c.b16 %v1143, %v1142
    %v1186 = vpack.c.b16 %v1145, %v1144
    %v1187 = vpack.c.b16 %v1147, %v1146
    %v1188 = vpack.c.b16 %v1149, %v1148
    %v1189 = vpack.c.b16 %v1151, %v1150
    %v1190 = vpack.c.b16 %v1153, %v1152
    %v1191 = vpack.c.b16 %v1155, %v1154
    %v1192 = vpack.c.b16 %v1157, %v1156
    %v1193 = vpack.c.b16 %v1159, %v1158
    %v1194 = vpack.c.b16 %v1161, %v1160
    %v1195 = vpack.c.b16 %v1163, %v1162
    %1228 = vmatprep.subr.bf16.mxu0 0
    %1229 = vmatpush1.bf16.msra.mxu0 %v1171
    %1230 = vmatprep.subr.bf16.mxu0 0
    %1231 = vmatpush1.bf16.msra.mxu0 %v1170
    %1232 = vmatprep.subr.bf16.mxu0 0
    %1233 = vmatpush1.bf16.msra.mxu0 %v1169
    %1234 = vmatprep.subr.bf16.mxu0 0
    %1235 = vmatpush1.bf16.msra.mxu0 %v1168
    %1236 = vmatprep.subr.bf16.mxu0 0
    %1237 = vmatpush1.bf16.msra.mxu0 %v1167
    %1238 = vmatprep.subr.bf16.mxu0 0
    %1239 = vmatpush1.bf16.msra.mxu0 %v1166
    %1240 = vmatprep.subr.bf16.mxu0 0
    %1241 = vmatpush1.bf16.msra.mxu0 %v1165
    %1242 = vmatprep.subr.bf16.mxu0 0
    %1243 = vmatpush1.bf16.msra.mxu0 %v1164
    %1244 = vmatprep.subr.bf16.mxu0 0
    %1245 = vmatpush2.bf16.msra.mxu0 %v1179
    %1246 = vmatprep.subr.bf16.mxu0 0
    %1247 = vmatpush2.bf16.msra.mxu0 %v1178
    %1248 = vmatprep.subr.bf16.mxu0 0
    %1249 = vmatpush2.bf16.msra.mxu0 %v1177
    %1250 = vmatprep.subr.bf16.mxu0 0
    %1251 = vmatpush2.bf16.msra.mxu0 %v1176
    %1252 = vmatprep.subr.bf16.mxu0 0
    %1253 = vmatpush2.bf16.msra.mxu0 %v1175
    %1254 = vmatprep.subr.bf16.mxu0 0
    %1255 = vmatpush2.bf16.msra.mxu0 %v1174
    %1256 = vmatprep.subr.bf16.mxu0 0
    %1257 = vmatpush2.bf16.msra.mxu0 %v1173
    %1258 = vmatprep.subr.bf16.mxu0 0
    %1259 = vmatpush2.bf16.msra.mxu0 %v1172
    %1260 = vmatprep.mubr.bf16.mxu0 %v961
    %1261 = vmatmul.mubr.bf16.gmra.mxu0 %v960
    %v1262 = vpop.f32.mrf.mxu0
    %v1263 = vadd.f32 0.0, %v1262
    %v1264 = vpop.f32.mrf.mxu0
    %v1265 = vpop.f32.mrf.mxu0
    %v1266 = vadd.f32 0.0, %v1265
    %v1267 = vpop.f32.mrf.mxu0
    %1268 = vmatprep.mubr.bf16.mxu0 %v965
    %1269 = vmatmul.mubr.bf16.gmra.mxu0 %v964
    %v1270 = vpop.f32.mrf.mxu0
    %v1271 = vadd.f32 0.0, %v1270
    %v1272 = vpop.f32.mrf.mxu0
    %v1273 = vpop.f32.mrf.mxu0
    %v1274 = vadd.f32 0.0, %v1273
    %v1275 = vpop.f32.mrf.mxu0
    %1276 = vdwg.mxu0
    %1277 = vmatprep.subr.bf16.mxu0 0
    %1278 = vmatpush1.bf16.msra.mxu0 %v1187
    %1279 = vmatprep.subr.bf16.mxu0 0
    %1280 = vmatpush1.bf16.msra.mxu0 %v1186
    %1281 = vmatprep.subr.bf16.mxu0 0
    %1282 = vmatpush1.bf16.msra.mxu0 %v1185
    %1283 = vmatprep.subr.bf16.mxu0 0
    %1284 = vmatpush1.bf16.msra.mxu0 %v1184
    %1285 = vmatprep.subr.bf16.mxu0 0
    %1286 = vmatpush1.bf16.msra.mxu0 %v1183
    %1287 = vmatprep.subr.bf16.mxu0 0
    %1288 = vmatpush1.bf16.msra.mxu0 %v1182
    %1289 = vmatprep.subr.bf16.mxu0 0
    %1290 = vmatpush1.bf16.msra.mxu0 %v1181
    %1291 = vmatprep.subr.bf16.mxu0 0
    %1292 = vmatpush1.bf16.msra.mxu0 %v1180
    %1293 = vmatprep.subr.bf16.mxu0 0
    %1294 = vmatpush2.bf16.msra.mxu0 %v1195
    %1295 = vmatprep.subr.bf16.mxu0 0
    %1296 = vmatpush2.bf16.msra.mxu0 %v1194
    %1297 = vmatprep.subr.bf16.mxu0 0
    %1298 = vmatpush2.bf16.msra.mxu0 %v1193
    %1299 = vmatprep.subr.bf16.mxu0 0
    %1300 = vmatpush2.bf16.msra.mxu0 %v1192
    %1301 = vmatprep.subr.bf16.mxu0 0
    %1302 = vmatpush2.bf16.msra.mxu0 %v1191
    %1303 = vmatprep.subr.bf16.mxu0 0
    %1304 = vmatpush2.bf16.msra.mxu0 %v1190
    %1305 = vmatprep.subr.bf16.mxu0 0
    %1306 = vmatpush2.bf16.msra.mxu0 %v1189
    %1307 = vmatprep.subr.bf16.mxu0 0
    %1308 = vmatpush2.bf16.msra.mxu0 %v1188
    %1309 = vmatprep.mubr.bf16.mxu0 %v963
    %1310 = vmatmul.mubr.bf16.gmra.mxu0 %v962
    %v1311 = vpop.f32.mrf.mxu0
    %v1312 = vadd.f32 %v1263, %v1311
    %v1313 = vpop.f32.mrf.mxu0
    %v1314 = vpop.f32.mrf.mxu0
    %v1315 = vadd.f32 %v1266, %v1314
    %v1316 = vpop.f32.mrf.mxu0
    %1317 = vmatprep.mubr.bf16.mxu0 %v967
    %1318 = vmatmul.mubr.bf16.gmra.mxu0 %v966
    %v1319 = vpop.f32.mrf.mxu0
    %v1320 = vadd.f32 %v1271, %v1319
    %v1321 = vpop.f32.mrf.mxu0
    %v1322 = vpop.f32.mrf.mxu0
    %v1323 = vadd.f32 %v1274, %v1322
    %v1324 = vpop.f32.mrf.mxu0
    %1325 = vdwg.mxu0
    %v1326 = vadd.f32 %v968, %v1312
    %v1327 = vadd.f32 %v969, %v1315
    %v1328 = vadd.f32 %v970, %v1320
    %v1329 = vadd.f32 %v971, %v1323
    %1330 = vst [vmem:[#allocation3] sm:$0xff] %v1326
    %1331 = vst [vmem:[#allocation3 + $0x8] sm:$0xff] %v1327
    %1332 = vst [vmem:[#allocation3 + $0x10] sm:$0xff] %v1328
    %1333 = vst [vmem:[#allocation3 + $0x18] sm:$0xff] %v1329
    // Predicated region
    $region46: #{latent_injection_transformer.15} parent=1 // pred_check
      %p1334 = pneg %p45
    $region47: #{latent_injection_transformer.15} parent=1 // pred_check_branch
      %1336 = sbr.rel (%p1334) target = $region49
    $region48: #{latent_injection_transformer.15} parent=1 // pred_region
      %v1337 = vld [vmem:[#allocation3] sm:$0xff]
      %v1338 = vld [vmem:[#allocation3 + $0x8] sm:$0xff]
      %v1339 = vld [vmem:[#allocation3 + $0x10] sm:$0xff]
      %v1340 = vld [vmem:[#allocation3 + $0x18] sm:$0xff]
      %v1341 = vld [vmem:[#allocation4] sm:$0x1]
      %v1343 = vlaneseq
      %v1344 = vshrl.u32 %v1343, 7
      %v1345 = vsub.s32 0, %v1344
      %v1346 = vrot.slane %v1341, %v1345
      %v1348 = vadd.f32 %v1337, %v1346
      %v1349 = vadd.f32 %v1338, %v1346
      %v1350 = vadd.f32 %v1339, %v1346
      %v1351 = vadd.f32 %v1340, %v1346
      %v1352 = vld [vmem:[%s0] sm:$0xff]
      %v1353 = vld [vmem:[%s0 + $0x8] sm:$0xff]
      %v1354 = vld [vmem:[%s0 + $0x10] sm:$0xff]
      %v1355 = vld [vmem:[%s0 + $0x18] sm:$0xff]
      %v1356 = vadd.f32 %v1348, %v1352
      %v1357 = vadd.f32 %v1349, %v1353
      %v1358 = vadd.f32 %v1350, %v1354
      %v1359 = vadd.f32 %v1351, %v1355
      %1360 = vst [vmem:[%s9] sm:$0xff] %v1356
      %1361 = vst [vmem:[%s9 + $0x8] sm:$0xff] %v1357
      %1362 = vst [vmem:[%s9 + $0x10] sm:$0xff] %v1358
      %1363 = vst [vmem:[%s9 + $0x18] sm:$0xff] %v1359
    $region49: #{latent_injection_transformer.15} parent=1 // pred_fallthru
      _
    // Predicated region
    $region50: #{latent_injection_transformer.15} parent=1 // pred_check
      _
    $region51: #{latent_injection_transformer.15} parent=1 // pred_check_branch
      %1365 = sbr.rel (0) target = $region53
    $region52: #{latent_injection_transformer.15} parent=1 // pred_region
      _
    $region53: #{latent_injection_transformer.15} parent=1 // pred_fallthru
      _
    // Predicated region
    $region54: #{latent_injection_transformer.15} parent=1 // pred_check
      _
    $region55: #{latent_injection_transformer.15} parent=1 // pred_check_branch
      %1367 = sbr.rel (0) target = $region57
    $region56: #{latent_injection_transformer.15} parent=1 // pred_region
      _
    $region57: #{latent_injection_transformer.15} parent=1 // pred_fallthru
      _
    %1368 = vsyncpa [#allocation5], 1

// kernel: latent_injection_transformer.16
$region0: #{latent_injection_transformer.16}
  #allocation0 [shape = 'u32[]', space=smem, size = 0x4, offset = 0x4, fixed_abs, tag = 'smem constant byte address 0x4 - core index']
  #allocation1 [shape = 'u32[144,128]{1,0:T(1,128)}', space=vmem, size = 0x12000, scoped, tag = 'internal scratch']
  #allocation2 [shape = 'bf16[16,128]{1,0:T(8,128)(2,1)}', space=vmem, size = 0x1000, scoped, tag = 'scratch operand']
  %s0 = inlined_call_operand.vmem [shape: f32[2,16,128], index: 0, kind: input, shape index: {}, may-alias: {0,1}]
  %s1 = inlined_call_operand.vmem [shape: f32[2,16,128], index: 1, kind: input, shape index: {}, may-alias: {0,1}]
  %s2 = inlined_call_operand.vmem [shape: f32[1,128], index: 2, kind: input, shape index: {}]
  %s3 = inlined_call_operand.vmem [shape: f32[1,128], index: 3, kind: input, shape index: {}]
  %s4 = inlined_call_operand.vmem [shape: bf16[128,128], index: 4, kind: input, shape index: {}]
  %s5 = inlined_call_operand.vmem [shape: bf16[128,128], index: 5, kind: input, shape index: {}]
  %s6 = inlined_call_operand.vmem [shape: bf16[128,128], index: 6, kind: input, shape index: {}]
  %s7 = inlined_call_operand.vmem [shape: bf16[128,128], index: 7, kind: input, shape index: {}]
  %s8 = inlined_call_operand.vmem [shape: f32[1,128], index: 8, kind: input, shape index: {}]
  %s9 = inlined_call_operand.vmem [shape: f32[2,16,128], index: 9, kind: output, shape index: {}]
  %s10 = sld [smem:[#allocation0]]
  $region69: #{latent_injection_transformer.16} parent=0
    _
  %s12 = ssub.s32 1, %s10
  %s13 = scalar_select 0, %s12, %s10
  loop: start=0, step=1, limit=4
  $region2: #{latent_injection_transformer.16} parent=0 // loop_pre_header
    _
  $region3: #{latent_injection_transformer.16} parent=0 // loop_header
    %s15 = sphi 0, %s19
    %p16 = scmp.ge.s32.totalorder %s15, 4
    %s22 = sphi 0, %s34
    %s23 = sphi 0, %s30
    %s24 = sphi 0, %s22
    %s25 = sphi 0, %s23
    %s26 = sphi 0, %s24
    %s27 = sphi 0, %s25
    %s39 = sphi 0, %s41
    %s42 = sphi 0, %s39
    %s43 = sphi 0, %s42
    %s59 = sphi 0, %s43
    %s65 = sphi 0, %s67
    %s68 = sphi 0, %s65
    %s69 = sphi 0, %s68
    %s85 = sphi 0, %s69
    %s89 = sphi 0, %s89
    %s91 = sphi 0, %s89
    %s92 = sphi 0, %s91
    %s106 = sphi 0, %s92
    %s110 = sphi 0, %s110
    %s112 = sphi 0, %s110
    %s113 = sphi 0, %s112
    %s127 = sphi 0, %s113
    %s131 = sphi 0, %s131
    %s133 = sphi 0, %s131
    %s134 = sphi 0, %s133
    %s148 = sphi 0, %s134
    %s152 = sphi 0, %s152
    %s154 = sphi 0, %s152
    %s155 = sphi 0, %s154
    %s169 = sphi 0, %s155
    %s173 = sphi 0, %s173
    %s175 = sphi 0, %s173
    %s176 = sphi 0, %s175
    %s190 = sphi 0, %s176
    %s194 = sphi 0, %s194
    %s196 = sphi 0, %s194
    %s197 = sphi 0, %s196
    %s211 = sphi 0, %s197
    %s215 = sphi 0, %s215
    %s217 = sphi 0, %s215
    %s218 = sphi 0, %s217
    %s232 = sphi 0, %s218
    %s240 = sphi 0, %s242
    %s243 = sphi 0, %s240
    %s244 = sphi 0, %s243
    %s260 = sphi 0, %s244
  $region4: #{latent_injection_transformer.16} parent=0 // loop_header_branch
    %18 = sbr.rel (%p16) target = $region8
  $region5: #{latent_injection_transformer.16} parent=0 // loop_body
    %s20 = ssub.s32 %s15, 1
    %s21 = ssub.s32 %s15, 2
    %s28 = sadd.s32 1, %s23
    %p29 = scmp.ge.s32.totalorder %s28, 1
    %s30 = scalar_select %p29, 0, %s28
    %s31 = sadd.s32 1, %s22
    %s32 = scalar_select %p29, %s31, %s22
    %p33 = scmp.ge.s32.totalorder %s32, 2
    %s34 = scalar_select %p33, 0, %s32
    %s35 = ssub.s32 %s22, %s34
    %s36 = ssub.s32 %s23, %s30
    %s37 = sor.u32 %s35, %s36
    %p38 = scmp.eq.s32.totalorder %s37, 0
    %s40 = sadd.s32 %s39, 1
    %s41 = scalar_select %p38, %s39, %s40
    %p44 = pneg %p38
    %p45 = scmp.eq.s32.totalorder %s15, 1
    %p46 = por %p44, %p45
    %p47 = scmp.ne.s32.totalorder %s39, %s42
    %p48 = scmp.eq.s32.totalorder %s15, 0
    %p49 = por %p47, %p48
    %p50 = scmp.ne.s32.totalorder %s39, %s42
    %p51 = scmp.eq.s32.totalorder %s20, 1
    %p52 = por %p50, %p51
    %p53 = scmp.ne.s32.totalorder %s42, %s43
    %p54 = scmp.eq.s32.totalorder %s20, 0
    %p55 = por %p53, %p54
    %p56 = scmp.ne.s32.totalorder %s42, %s43
    %p57 = scmp.eq.s32.totalorder %s21, 1
    %p58 = por %p56, %p57
    %p60 = scmp.ne.s32.totalorder %s43, %s59
    %p61 = scmp.eq.s32.totalorder %s21, 0
    %p62 = por %p60, %p61
    %s63 = ssub.s32 %s22, %s34
    %p64 = scmp.eq.s32.totalorder %s63, 0
    %s66 = sadd.s32 %s65, 1
    %s67 = scalar_select %p64, %s65, %s66
    %p70 = pneg %p64
    %p71 = scmp.eq.s32.totalorder %s15, 1
    %p72 = por %p70, %p71
    %p73 = scmp.ne.s32.totalorder %s65, %s68
    %p74 = scmp.eq.s32.totalorder %s15, 0
    %p75 = por %p73, %p74
    %p76 = scmp.ne.s32.totalorder %s65, %s68
    %p77 = scmp.eq.s32.totalorder %s20, 1
    %p78 = por %p76, %p77
    %p79 = scmp.ne.s32.totalorder %s68, %s69
    %p80 = scmp.eq.s32.totalorder %s20, 0
    %p81 = por %p79, %p80
    %p82 = scmp.ne.s32.totalorder %s68, %s69
    %p83 = scmp.eq.s32.totalorder %s21, 1
    %p84 = por %p82, %p83
    %p86 = scmp.ne.s32.totalorder %s69, %s85
    %p87 = scmp.eq.s32.totalorder %s21, 0
    %p88 = por %p86, %p87
    %s90 = sadd.s32 %s89, 1
    %p93 = scmp.eq.s32.totalorder %s15, 1
    %p94 = scmp.ne.s32.totalorder %s89, %s91
    %p95 = scmp.eq.s32.totalorder %s15, 0
    %p96 = por %p94, %p95
    %p97 = scmp.ne.s32.totalorder %s89, %s91
    %p98 = scmp.eq.s32.totalorder %s20, 1
    %p99 = por %p97, %p98
    %p100 = scmp.ne.s32.totalorder %s91, %s92
    %p101 = scmp.eq.s32.totalorder %s20, 0
    %p102 = por %p100, %p101
    %p103 = scmp.ne.s32.totalorder %s91, %s92
    %p104 = scmp.eq.s32.totalorder %s21, 1
    %p105 = por %p103, %p104
    %p107 = scmp.ne.s32.totalorder %s92, %s106
    %p108 = scmp.eq.s32.totalorder %s21, 0
    %p109 = por %p107, %p108
    %s111 = sadd.s32 %s110, 1
    %p114 = scmp.eq.s32.totalorder %s15, 1
    %p115 = scmp.ne.s32.totalorder %s110, %s112
    %p116 = scmp.eq.s32.totalorder %s15, 0
    %p117 = por %p115, %p116
    %p118 = scmp.ne.s32.totalorder %s110, %s112
    %p119 = scmp.eq.s32.totalorder %s20, 1
    %p120 = por %p118, %p119
    %p121 = scmp.ne.s32.totalorder %s112, %s113
    %p122 = scmp.eq.s32.totalorder %s20, 0
    %p123 = por %p121, %p122
    %p124 = scmp.ne.s32.totalorder %s112, %s113
    %p125 = scmp.eq.s32.totalorder %s21, 1
    %p126 = por %p124, %p125
    %p128 = scmp.ne.s32.totalorder %s113, %s127
    %p129 = scmp.eq.s32.totalorder %s21, 0
    %p130 = por %p128, %p129
    %s132 = sadd.s32 %s131, 1
    %p135 = scmp.eq.s32.totalorder %s15, 1
    %p136 = scmp.ne.s32.totalorder %s131, %s133
    %p137 = scmp.eq.s32.totalorder %s15, 0
    %p138 = por %p136, %p137
    %p139 = scmp.ne.s32.totalorder %s131, %s133
    %p140 = scmp.eq.s32.totalorder %s20, 1
    %p141 = por %p139, %p140
    %p142 = scmp.ne.s32.totalorder %s133, %s134
    %p143 = scmp.eq.s32.totalorder %s20, 0
    %p144 = por %p142, %p143
    %p145 = scmp.ne.s32.totalorder %s133, %s134
    %p146 = scmp.eq.s32.totalorder %s21, 1
    %p147 = por %p145, %p146
    %p149 = scmp.ne.s32.totalorder %s134, %s148
    %p150 = scmp.eq.s32.totalorder %s21, 0
    %p151 = por %p149, %p150
    %s153 = sadd.s32 %s152, 1
    %p156 = scmp.eq.s32.totalorder %s15, 1
    %p157 = scmp.ne.s32.totalorder %s152, %s154
    %p158 = scmp.eq.s32.totalorder %s15, 0
    %p159 = por %p157, %p158
    %p160 = scmp.ne.s32.totalorder %s152, %s154
    %p161 = scmp.eq.s32.totalorder %s20, 1
    %p162 = por %p160, %p161
    %p163 = scmp.ne.s32.totalorder %s154, %s155
    %p164 = scmp.eq.s32.totalorder %s20, 0
    %p165 = por %p163, %p164
    %p166 = scmp.ne.s32.totalorder %s154, %s155
    %p167 = scmp.eq.s32.totalorder %s21, 1
    %p168 = por %p166, %p167
    %p170 = scmp.ne.s32.totalorder %s155, %s169
    %p171 = scmp.eq.s32.totalorder %s21, 0
    %p172 = por %p170, %p171
    %s174 = sadd.s32 %s173, 1
    %p177 = scmp.eq.s32.totalorder %s15, 1
    %p178 = scmp.ne.s32.totalorder %s173, %s175
    %p179 = scmp.eq.s32.totalorder %s15, 0
    %p180 = por %p178, %p179
    %p181 = scmp.ne.s32.totalorder %s173, %s175
    %p182 = scmp.eq.s32.totalorder %s20, 1
    %p183 = por %p181, %p182
    %p184 = scmp.ne.s32.totalorder %s175, %s176
    %p185 = scmp.eq.s32.totalorder %s20, 0
    %p186 = por %p184, %p185
    %p187 = scmp.ne.s32.totalorder %s175, %s176
    %p188 = scmp.eq.s32.totalorder %s21, 1
    %p189 = por %p187, %p188
    %p191 = scmp.ne.s32.totalorder %s176, %s190
    %p192 = scmp.eq.s32.totalorder %s21, 0
    %p193 = por %p191, %p192
    %s195 = sadd.s32 %s194, 1
    %p198 = scmp.eq.s32.totalorder %s15, 1
    %p199 = scmp.ne.s32.totalorder %s194, %s196
    %p200 = scmp.eq.s32.totalorder %s15, 0
    %p201 = por %p199, %p200
    %p202 = scmp.ne.s32.totalorder %s194, %s196
    %p203 = scmp.eq.s32.totalorder %s20, 1
    %p204 = por %p202, %p203
    %p205 = scmp.ne.s32.totalorder %s196, %s197
    %p206 = scmp.eq.s32.totalorder %s20, 0
    %p207 = por %p205, %p206
    %p208 = scmp.ne.s32.totalorder %s196, %s197
    %p209 = scmp.eq.s32.totalorder %s21, 1
    %p210 = por %p208, %p209
    %p212 = scmp.ne.s32.totalorder %s197, %s211
    %p213 = scmp.eq.s32.totalorder %s21, 0
    %p214 = por %p212, %p213
    %s216 = sadd.s32 %s215, 1
    %p219 = scmp.eq.s32.totalorder %s15, 1
    %p220 = scmp.ne.s32.totalorder %s215, %s217
    %p221 = scmp.eq.s32.totalorder %s15, 0
    %p222 = por %p220, %p221
    %p223 = scmp.ne.s32.totalorder %s215, %s217
    %p224 = scmp.eq.s32.totalorder %s20, 1
    %p225 = por %p223, %p224
    %p226 = scmp.ne.s32.totalorder %s217, %s218
    %p227 = scmp.eq.s32.totalorder %s20, 0
    %p228 = por %p226, %p227
    %p229 = scmp.ne.s32.totalorder %s217, %s218
    %p230 = scmp.eq.s32.totalorder %s21, 1
    %p231 = por %p229, %p230
    %p233 = scmp.ne.s32.totalorder %s218, %s232
    %p234 = scmp.eq.s32.totalorder %s21, 0
    %p235 = por %p233, %p234
    %s236 = ssub.s32 %s22, %s34
    %s237 = ssub.s32 %s23, %s30
    %s238 = sor.u32 %s236, %s237
    %p239 = scmp.eq.s32.totalorder %s238, 0
    %s241 = sadd.s32 %s240, 1
    %s242 = scalar_select %p239, %s240, %s241
    %p245 = pneg %p239
    %p246 = scmp.eq.s32.totalorder %s15, 1
    %p247 = por %p245, %p246
    %p248 = scmp.ne.s32.totalorder %s240, %s243
    %p249 = scmp.eq.s32.totalorder %s15, 0
    %p250 = por %p248, %p249
    %p251 = scmp.ne.s32.totalorder %s240, %s243
    %p252 = scmp.eq.s32.totalorder %s20, 1
    %p253 = por %p251, %p252
    %p254 = scmp.ne.s32.totalorder %s243, %s244
    %p255 = scmp.eq.s32.totalorder %s20, 0
    %p256 = por %p254, %p255
    %p257 = scmp.ne.s32.totalorder %s243, %s244
    %p258 = scmp.eq.s32.totalorder %s21, 1
    %p259 = por %p257, %p258
    %p261 = scmp.ne.s32.totalorder %s244, %s260
    %p262 = scmp.eq.s32.totalorder %s21, 0
    %p263 = por %p261, %p262
    %p264 = scmp.le.s32.totalorder 1, %s15
    %p265 = scmp.lt.s32.totalorder %s15, 3
    %p266 = pnand %p264, %p265
    %p267 = pneg %p266
    // Predicated region
    $region9: #{latent_injection_transformer.16} parent=5 // pred_check
      _
    $region10: #{latent_injection_transformer.16} parent=5 // pred_check_branch
      %269 = sbr.rel (%p266) target = $region12
    $region11: #{latent_injection_transformer.16} parent=5 // pred_region
      %s270 = ssub.s32 %s15, 1
      // Predicated region
      $region13: #{latent_injection_transformer.16} parent=11 // pred_check
        %p271 = pneg %p102
      $region14: #{latent_injection_transformer.16} parent=11 // pred_check_branch
        %273 = sbr.rel (%p271) target = $region16
      $region15: #{latent_injection_transformer.16} parent=11 // pred_region
        _
      $region16: #{latent_injection_transformer.16} parent=11 // pred_fallthru
        _
      // Predicated region
      $region17: #{latent_injection_transformer.16} parent=11 // pred_check
        %p274 = pneg %p123
      $region18: #{latent_injection_transformer.16} parent=11 // pred_check_branch
        %276 = sbr.rel (%p274) target = $region20
      $region19: #{latent_injection_transformer.16} parent=11 // pred_region
        _
      $region20: #{latent_injection_transformer.16} parent=11 // pred_fallthru
        _
      // Predicated region
      $region21: #{latent_injection_transformer.16} parent=11 // pred_check
        %p277 = pneg %p144
      $region22: #{latent_injection_transformer.16} parent=11 // pred_check_branch
        %279 = sbr.rel (%p277) target = $region24
      $region23: #{latent_injection_transformer.16} parent=11 // pred_region
        _
      $region24: #{latent_injection_transformer.16} parent=11 // pred_fallthru
        _
      // Predicated region
      $region25: #{latent_injection_transformer.16} parent=11 // pred_check
        %p280 = pneg %p165
      $region26: #{latent_injection_transformer.16} parent=11 // pred_check_branch
        %282 = sbr.rel (%p280) target = $region28
      $region27: #{latent_injection_transformer.16} parent=11 // pred_region
        _
      $region28: #{latent_injection_transformer.16} parent=11 // pred_fallthru
        _
      // Predicated region
      $region29: #{latent_injection_transformer.16} parent=11 // pred_check
        %p283 = pneg %p186
      $region30: #{latent_injection_transformer.16} parent=11 // pred_check_branch
        %285 = sbr.rel (%p283) target = $region32
      $region31: #{latent_injection_transformer.16} parent=11 // pred_region
        _
      $region32: #{latent_injection_transformer.16} parent=11 // pred_fallthru
        _
      // Predicated region
      $region33: #{latent_injection_transformer.16} parent=11 // pred_check
        %p286 = pneg %p207
      $region34: #{latent_injection_transformer.16} parent=11 // pred_check_branch
        %288 = sbr.rel (%p286) target = $region36
      $region35: #{latent_injection_transformer.16} parent=11 // pred_region
        _
      $region36: #{latent_injection_transformer.16} parent=11 // pred_fallthru
        _
      // Predicated region
      $region37: #{latent_injection_transformer.16} parent=11 // pred_check
        %p289 = pneg %p228
      $region38: #{latent_injection_transformer.16} parent=11 // pred_check_branch
        %291 = sbr.rel (%p289) target = $region40
      $region39: #{latent_injection_transformer.16} parent=11 // pred_region
        _
      $region40: #{latent_injection_transformer.16} parent=11 // pred_fallthru
        _
    $region12: #{latent_injection_transformer.16} parent=5 // pred_fallthru
      _
    %p292 = scmp.lt.s32.totalorder %s15, 2
    // Predicated region
    $region41: #{latent_injection_transformer.16} parent=5 // pred_check
      %p293 = pneg %p292
    $region42: #{latent_injection_transformer.16} parent=5 // pred_check_branch
      %295 = sbr.rel (%p293) target = $region44
    $region43: #{latent_injection_transformer.16} parent=5 // pred_region
      // Predicated region
      $region45: #{latent_injection_transformer.16} parent=43 // pred_check
        %p296 = pneg %p49
      $region46: #{latent_injection_transformer.16} parent=43 // pred_check_branch
        %298 = sbr.rel (%p296) target = $region48
      $region47: #{latent_injection_transformer.16} parent=43 // pred_region
        %s299 = smul.u32 2, %s23
        %p300 = scmp.lt.s32.totalorder %s22, 1
        %s301 = scalar_select %p300, %s22, 1
        %p302 = scmp.lt.s32.totalorder %s299, 1
        %s303 = scalar_select %p302, %s299, 1
        %s304 = smul.addr %s301, 2
        %s305 = sadd.s32 %s303, %s304
        %s306 = smul.addr %s305, 8
        %s307 = scalar_lea.vmem %s0, %s306
        %s308 = smul.u32 2, %s23
      $region48: #{latent_injection_transformer.16} parent=43 // pred_fallthru
        _
      // Predicated region
      $region49: #{latent_injection_transformer.16} parent=43 // pred_check
        %p309 = pneg %p75
      $region50: #{latent_injection_transformer.16} parent=43 // pred_check_branch
        %311 = sbr.rel (%p309) target = $region52
      $region51: #{latent_injection_transformer.16} parent=43 // pred_region
        %p312 = scmp.lt.s32.totalorder %s22, 1
        %s313 = scalar_select %p312, %s22, 1
        %s314 = smul.addr %s313, 2
        %s315 = smul.addr %s314, 8
        %s316 = scalar_lea.vmem %s1, %s315
      $region52: #{latent_injection_transformer.16} parent=43 // pred_fallthru
        _
    $region44: #{latent_injection_transformer.16} parent=5 // pred_fallthru
      _
    %p317 = scmp.le.s32.totalorder 1, %s15
    %p318 = scmp.lt.s32.totalorder %s15, 3
    %p319 = pnand %p317, %p318
    %p320 = pneg %p319
    // Predicated region
    $region53: #{latent_injection_transformer.16} parent=5 // pred_check
      _
    $region54: #{latent_injection_transformer.16} parent=5 // pred_check_branch
      %322 = sbr.rel (%p319) target = $region56
    $region55: #{latent_injection_transformer.16} parent=5 // pred_region
      %s323 = ssub.s32 %s15, 1
      %s324 = smul.u32 2, %s25
      %p325 = scmp.lt.s32.totalorder %s24, 1
      %s326 = scalar_select %p325, %s24, 1
      %p327 = scmp.lt.s32.totalorder %s324, 1
      %s328 = scalar_select %p327, %s324, 1
      %s329 = smul.addr %s326, 2
      %s330 = sadd.s32 %s328, %s329
      %s331 = smul.addr %s330, 8
      %s332 = scalar_lea.vmem %s0, %s331
      %p333 = pneg %p55
      %p334 = pneg %p52
      %p335 = scmp.lt.s32.totalorder %s24, 1
      %s336 = scalar_select %p335, %s24, 1
      %s337 = smul.addr %s336, 2
      %s338 = smul.addr %s337, 8
      %s339 = scalar_lea.vmem %s1, %s338
      %p340 = pneg %p81
      %p341 = pneg %p78
      %p342 = pneg %p102
      %p343 = pneg %p99
      %p344 = pneg %p123
      %p345 = pneg %p120
      %p346 = pneg %p144
      %p347 = pneg %p141
      %p348 = pneg %p165
      %p349 = pneg %p162
      %p350 = pneg %p186
      %p351 = pneg %p183
      %p352 = pneg %p207
      %p353 = pneg %p204
      %p354 = pneg %p228
      %p355 = pneg %p225
      %p356 = pneg %p256
      %p357 = pneg %p253
      %s358 = smul.u32 2, %s25
      %p359 = scmp.lt.s32.totalorder %s24, 1
      %s360 = scalar_select %p359, %s24, 1
      %p361 = scmp.lt.s32.totalorder %s358, 1
      %s362 = scalar_select %p361, %s358, 1
      %s363 = smul.addr %s360, 2
      %s364 = sadd.s32 %s362, %s363
      %s365 = smul.addr %s364, 8
      %s366 = scalar_lea.vmem %s9, %s365
      %s367 = smul.u32 2, %s25
      %p368 = scmp.lt.s32.totalorder %s24, 1
      %s369 = scalar_select %p368, %s24, 1
      %p370 = scmp.lt.s32.totalorder %s367, 1
      %s371 = scalar_select %p370, %s367, 1
      %s372 = smul.addr %s369, 2
      %s373 = sadd.s32 %s371, %s372
      %s374 = smul.addr %s373, 8
      %s375 = scalar_lea.vmem %s0, %s374
      %s376 = smul.u32 2, %s25
      %p377 = scmp.lt.s32.totalorder %s24, 1
      %s378 = scalar_select %p377, %s24, 1
      %s379 = smul.addr %s378, 2
      %s380 = smul.addr %s379, 8
      %s381 = scalar_lea.vmem %s1, %s380
      %s382 = smul.u32 2, %s25
      %p383 = scmp.lt.s32.totalorder %s24, 1
      %s384 = scalar_select %p383, %s24, 1
      %p385 = scmp.lt.s32.totalorder %s382, 1
      %s386 = scalar_select %p385, %s382, 1
      %s387 = smul.addr %s384, 2
      %s388 = sadd.s32 %s386, %s387
      %s389 = smul.addr %s388, 8
      %s390 = scalar_lea.vmem %s9, %s389
      %s391 = smul.u32 2, %s25
      %v393 = vld [vmem:[%s375] sm:$0xff]
      %v394 = vld [vmem:[%s375 + $0x8] sm:$0xff]
      %v395 = vld [vmem:[%s2] sm:$0x1]
      %v396 = vld [vmem:[%s3] sm:$0x1]
      %397 = vadd.xlane.f32.xlu0 %v393
      %v398 = vpop.xlane.xlu0 %397
      %399 = vadd.xlane.f32.xlu0 %v394
      %v400 = vpop.xlane.xlu0 %399
      %v401 = vrcp.pop 128.0
      %v402 = vmul.f32 %v398, %v401
      %v403 = vmul.f32 %v400, %v401
      %v404 = vsub.f32 %v393, %v402
      %v405 = vsub.f32 %v394, %v403
      %v406 = vmul.f32 %v404, %v404
      %v407 = vmul.f32 %v405, %v405
      %408 = vadd.xlane.f32.xlu0 %v406
      %v409 = vpop.xlane.xlu0 %408
      %410 = vadd.xlane.f32.xlu0 %v407
      %v411 = vpop.xlane.xlu0 %410
      %v412 = vmul.f32 %v409, %v401
      %v413 = vmul.f32 %v411, %v401
      %v414 = vadd.f32 %v412, 1e-05
      %v415 = vadd.f32 %v413, 1e-05
      %v416 = vrsqrt.pop %v414
      %v417 = vrsqrt.pop %v415
      %v418 = vmul.f32 %v404, %v416
      %v419 = vmul.f32 %v405, %v417
      %v421 = vlaneseq
      %v422 = vshrl.u32 %v421, 7
      %v423 = vsub.s32 0, %v422
      %v424 = vrot.slane %v395, %v423
      %v426 = vmul.f32 %v418, %v424
      %v427 = vmul.f32 %v419, %v424
      %v429 = vlaneseq
      %v430 = vshrl.u32 %v429, 7
      %v431 = vsub.s32 0, %v430
      %v432 = vrot.slane %v396, %v431
      %v434 = vadd.f32 %v426, %v432
      %v435 = vadd.f32 %v427, %v432
      %v436 = vld [vmem:[%s381] sm:$0xff]
      %v437 = vld [vmem:[%s381 + $0x8] sm:$0xff]
      %438 = vadd.xlane.f32.xlu0 %v436
      %v439 = vpop.xlane.xlu0 %438
      %440 = vadd.xlane.f32.xlu0 %v437
      %v441 = vpop.xlane.xlu0 %440
      %v442 = vmul.f32 %v439, %v401
      %v443 = vmul.f32 %v441, %v401
      %v444 = vsub.f32 %v436, %v442
      %v445 = vsub.f32 %v437, %v443
      %v446 = vmul.f32 %v444, %v444
      %v447 = vmul.f32 %v445, %v445
      %448 = vadd.xlane.f32.xlu0 %v446
      %v449 = vpop.xlane.xlu0 %448
      %450 = vadd.xlane.f32.xlu0 %v447
      %v451 = vpop.xlane.xlu0 %450
      %v452 = vmul.f32 %v449, %v401
      %v453 = vmul.f32 %v451, %v401
      %v454 = vadd.f32 %v452, 1e-05
      %v455 = vadd.f32 %v453, 1e-05
      %v456 = vrsqrt.pop %v454
      %v457 = vrsqrt.pop %v455
      %v458 = vmul.f32 %v444, %v456
      %v459 = vmul.f32 %v445, %v457
      %v460 = vmul.f32 %v458, %v424
      %v461 = vmul.f32 %v459, %v424
      %v462 = vadd.f32 %v460, %v432
      %v463 = vadd.f32 %v461, %v432
      %v464 = vld [vmem:[%s4] sm:$0xf]
      %v465 = vld [vmem:[%s4 + $0x4] sm:$0xf]
      %v466 = vld [vmem:[%s4 + $0x8] sm:$0xf]
      %v467 = vld [vmem:[%s4 + $0xc] sm:$0xf]
      %v468 = vld [vmem:[%s4 + $0x10] sm:$0xf]
      %v469 = vld [vmem:[%s4 + $0x14] sm:$0xf]
      %v470 = vld [vmem:[%s4 + $0x18] sm:$0xf]
      %v471 = vld [vmem:[%s4 + $0x1c] sm:$0xf]
      %v472 = vld [vmem:[%s4 + $0x20] sm:$0xf]
      %v473 = vld [vmem:[%s4 + $0x24] sm:$0xf]
      %v474 = vld [vmem:[%s4 + $0x28] sm:$0xf]
      %v475 = vld [vmem:[%s4 + $0x2c] sm:$0xf]
      %v476 = vld [vmem:[%s4 + $0x30] sm:$0xf]
      %v477 = vld [vmem:[%s4 + $0x34] sm:$0xf]
      %v478 = vld [vmem:[%s4 + $0x38] sm:$0xf]
      %v479 = vld [vmem:[%s4 + $0x3c] sm:$0xf]
      %v480 = vpack.c.bf16 %v435, %v434
      %v497 = vunpack.c.l.b16 %v464
      %v498 = vunpack.c.l.b16 %v465
      %v499 = vunpack.c.l.b16 %v466
      %v500 = vunpack.c.l.b16 %v467
      %v501 = vunpack.c.l.b16 %v468
      %v502 = vunpack.c.l.b16 %v469
      %v503 = vunpack.c.l.b16 %v470
      %v504 = vunpack.c.l.b16 %v471
      %v505 = vunpack.c.l.b16 %v472
      %v506 = vunpack.c.l.b16 %v473
      %v507 = vunpack.c.l.b16 %v474
      %v508 = vunpack.c.l.b16 %v475
      %v509 = vunpack.c.l.b16 %v476
      %v510 = vunpack.c.l.b16 %v477
      %v511 = vunpack.c.l.b16 %v478
      %v512 = vunpack.c.l.b16 %v479
      %v513 = vpack.c.b16 %v498, %v497
      %v514 = vpack.c.b16 %v500, %v499
      %v515 = vpack.c.b16 %v502, %v501
      %v516 = vpack.c.b16 %v504, %v503
      %v517 = vpack.c.b16 %v506, %v505
      %v518 = vpack.c.b16 %v508, %v507
      %v519 = vpack.c.b16 %v510, %v509
      %v520 = vpack.c.b16 %v512, %v511
      %529 = vmatprep.subr.bf16.mxu0 0
      %530 = vmatpush1.bf16.msra.mxu0 %v520
      %531 = vmatprep.subr.bf16.mxu0 0
      %532 = vmatpush1.bf16.msra.mxu0 %v519
      %533 = vmatprep.subr.bf16.mxu0 0
      %534 = vmatpush1.bf16.msra.mxu0 %v518
      %535 = vmatprep.subr.bf16.mxu0 0
      %536 = vmatpush1.bf16.msra.mxu0 %v517
      %537 = vmatprep.subr.bf16.mxu0 0
      %538 = vmatpush1.bf16.msra.mxu0 %v516
      %539 = vmatprep.subr.bf16.mxu0 0
      %540 = vmatpush1.bf16.msra.mxu0 %v515
      %541 = vmatprep.subr.bf16.mxu0 0
      %542 = vmatpush1.bf16.msra.mxu0 %v514
      %543 = vmatprep.subr.bf16.mxu0 0
      %544 = vmatpush1.bf16.msra.mxu0 %v513
      %545 = vmatprep.subr.bf16.mxu0 0
      %546 = vmatpush2.bf16.msra.mxu0 0
      %547 = vmatprep.subr.bf16.mxu0 0
      %548 = vmatpush2.bf16.msra.mxu0 0
      %549 = vmatprep.subr.bf16.mxu0 0
      %550 = vmatpush2.bf16.msra.mxu0 0
      %551 = vmatprep.subr.bf16.mxu0 0
      %552 = vmatpush2.bf16.msra.mxu0 0
      %553 = vmatprep.subr.bf16.mxu0 0
      %554 = vmatpush2.bf16.msra.mxu0 0
      %555 = vmatprep.subr.bf16.mxu0 0
      %556 = vmatpush2.bf16.msra.mxu0 0
      %557 = vmatprep.subr.bf16.mxu0 0
      %558 = vmatpush2.bf16.msra.mxu0 0
      %559 = vmatprep.subr.bf16.mxu0 0
      %560 = vmatpush2.bf16.msra.mxu0 0
      %561 = vmatprep.mubr.bf16.mxu0 0
      %562 = vmatmul.mubr.bf16.gmra.mxu0 %v480
      %v563 = vpop.f32.mrf.mxu0
      %v564 = vadd.f32 0.0, %v563
      %v565 = vpop.f32.mrf.mxu0
      %v566 = vpop.f32.mrf.mxu0
      %v567 = vadd.f32 0.0, %v566
      %v568 = vpop.f32.mrf.mxu0
      %569 = vdwg.mxu0
      %v570 = vpack.c.bf16 %v567, %v564
      %v571 = vld [vmem:[%s5] sm:$0xf]
      %v572 = vld [vmem:[%s5 + $0x4] sm:$0xf]
      %v573 = vld [vmem:[%s5 + $0x8] sm:$0xf]
      %v574 = vld [vmem:[%s5 + $0xc] sm:$0xf]
      %v575 = vld [vmem:[%s5 + $0x10] sm:$0xf]
      %v576 = vld [vmem:[%s5 + $0x14] sm:$0xf]
      %v577 = vld [vmem:[%s5 + $0x18] sm:$0xf]
      %v578 = vld [vmem:[%s5 + $0x1c] sm:$0xf]
      %v579 = vld [vmem:[%s5 + $0x20] sm:$0xf]
      %v580 = vld [vmem:[%s5 + $0x24] sm:$0xf]
      %v581 = vld [vmem:[%s5 + $0x28] sm:$0xf]
      %v582 = vld [vmem:[%s5 + $0x2c] sm:$0xf]
      %v583 = vld [vmem:[%s5 + $0x30] sm:$0xf]
      %v584 = vld [vmem:[%s5 + $0x34] sm:$0xf]
      %v585 = vld [vmem:[%s5 + $0x38] sm:$0xf]
      %v586 = vld [vmem:[%s5 + $0x3c] sm:$0xf]
      %v587 = vpack.c.bf16 %v463, %v462
      %v604 = vunpack.c.l.b16 %v571
      %v605 = vunpack.c.l.b16 %v572
      %v606 = vunpack.c.l.b16 %v573
      %v607 = vunpack.c.l.b16 %v574
      %v608 = vunpack.c.l.b16 %v575
      %v609 = vunpack.c.l.b16 %v576
      %v610 = vunpack.c.l.b16 %v577
      %v611 = vunpack.c.l.b16 %v578
      %v612 = vunpack.c.l.b16 %v579
      %v613 = vunpack.c.l.b16 %v580
      %v614 = vunpack.c.l.b16 %v581
      %v615 = vunpack.c.l.b16 %v582
      %v616 = vunpack.c.l.b16 %v583
      %v617 = vunpack.c.l.b16 %v584
      %v618 = vunpack.c.l.b16 %v585
      %v619 = vunpack.c.l.b16 %v586
      %v620 = vpack.c.b16 %v605, %v604
      %v621 = vpack.c.b16 %v607, %v606
      %v622 = vpack.c.b16 %v609, %v608
      %v623 = vpack.c.b16 %v611, %v610
      %v624 = vpack.c.b16 %v613, %v612
      %v625 = vpack.c.b16 %v615, %v614
      %v626 = vpack.c.b16 %v617, %v616
      %v627 = vpack.c.b16 %v619, %v618
      %636 = vmatprep.subr.bf16.mxu0 0
      %637 = vmatpush1.bf16.msra.mxu0 %v627
      %638 = vmatprep.subr.bf16.mxu0 0
      %639 = vmatpush1.bf16.msra.mxu0 %v626
      %640 = vmatprep.subr.bf16.mxu0 0
      %641 = vmatpush1.bf16.msra.mxu0 %v625
      %642 = vmatprep.subr.bf16.mxu0 0
      %643 = vmatpush1.bf16.msra.mxu0 %v624
      %644 = vmatprep.subr.bf16.mxu0 0
      %645 = vmatpush1.bf16.msra.mxu0 %v623
      %646 = vmatprep.subr.bf16.mxu0 0
      %647 = vmatpush1.bf16.msra.mxu0 %v622
      %648 = vmatprep.subr.bf16.mxu0 0
      %649 = vmatpush1.bf16.msra.mxu0 %v621
      %650 = vmatprep.subr.bf16.mxu0 0
      %651 = vmatpush1.bf16.msra.mxu0 %v620
      %652 = vmatprep.subr.bf16.mxu0 0
      %653 = vmatpush2.bf16.msra.mxu0 0
      %654 = vmatprep.subr.bf16.mxu0 0
      %655 = vmatpush2.bf16.msra.mxu0 0
      %656 = vmatprep.subr.bf16.mxu0 0
      %657 = vmatpush2.bf16.msra.mxu0 0
      %658 = vmatprep.subr.bf16.mxu0 0
      %659 = vmatpush2.bf16.msra.mxu0 0
      %660 = vmatprep.subr.bf16.mxu0 0
      %661 = vmatpush2.bf16.msra.mxu0 0
      %662 = vmatprep.subr.bf16.mxu0 0
      %663 = vmatpush2.bf16.msra.mxu0 0
      %664 = vmatprep.subr.bf16.mxu0 0
      %665 = vmatpush2.bf16.msra.mxu0 0
      %666 = vmatprep.subr.bf16.mxu0 0
      %667 = vmatpush2.bf16.msra.mxu0 0
      %668 = vmatprep.mubr.bf16.mxu0 0
      %669 = vmatmul.mubr.bf16.gmra.mxu0 %v587
      %v670 = vpop.f32.mrf.mxu0
      %v671 = vadd.f32 0.0, %v670
      %v672 = vpop.f32.mrf.mxu0
      %v673 = vpop.f32.mrf.mxu0
      %v674 = vadd.f32 0.0, %v673
      %v675 = vpop.f32.mrf.mxu0
      %676 = vdwg.mxu0
      %v677 = vpack.c.bf16 %v674, %v671
      %v678 = vld [vmem:[%s6] sm:$0xf]
      %v679 = vld [vmem:[%s6 + $0x4] sm:$0xf]
      %v680 = vld [vmem:[%s6 + $0x8] sm:$0xf]
      %v681 = vld [vmem:[%s6 + $0xc] sm:$0xf]
      %v682 = vld [vmem:[%s6 + $0x10] sm:$0xf]
      %v683 = vld [vmem:[%s6 + $0x14] sm:$0xf]
      %v684 = vld [vmem:[%s6 + $0x18] sm:$0xf]
      %v685 = vld [vmem:[%s6 + $0x1c] sm:$0xf]
      %v686 = vld [vmem:[%s6 + $0x20] sm:$0xf]
      %v687 = vld [vmem:[%s6 + $0x24] sm:$0xf]
      %v688 = vld [vmem:[%s6 + $0x28] sm:$0xf]
      %v689 = vld [vmem:[%s6 + $0x2c] sm:$0xf]
      %v690 = vld [vmem:[%s6 + $0x30] sm:$0xf]
      %v691 = vld [vmem:[%s6 + $0x34] sm:$0xf]
      %v692 = vld [vmem:[%s6 + $0x38] sm:$0xf]
      %v693 = vld [vmem:[%s6 + $0x3c] sm:$0xf]
      %v710 = vunpack.c.l.b16 %v678
      %v711 = vunpack.c.l.b16 %v679
      %v712 = vunpack.c.l.b16 %v680
      %v713 = vunpack.c.l.b16 %v681
      %v714 = vunpack.c.l.b16 %v682
      %v715 = vunpack.c.l.b16 %v683
      %v716 = vunpack.c.l.b16 %v684
      %v717 = vunpack.c.l.b16 %v685
      %v718 = vunpack.c.l.b16 %v686
      %v719 = vunpack.c.l.b16 %v687
      %v720 = vunpack.c.l.b16 %v688
      %v721 = vunpack.c.l.b16 %v689
      %v722 = vunpack.c.l.b16 %v690
      %v723 = vunpack.c.l.b16 %v691
      %v724 = vunpack.c.l.b16 %v692
      %v725 = vunpack.c.l.b16 %v693
      %v726 = vpack.c.b16 %v711, %v710
      %v727 = vpack.c.b16 %v713, %v712
      %v728 = vpack.c.b16 %v715, %v714
      %v729 = vpack.c.b16 %v717, %v716
      %v730 = vpack.c.b16 %v719, %v718
      %v731 = vpack.c.b16 %v721, %v720
      %v732 = vpack.c.b16 %v723, %v722
      %v733 = vpack.c.b16 %v725, %v724
      %742 = vmatprep.subr.bf16.mxu0 0
      %743 = vmatpush1.bf16.msra.mxu0 %v733
      %744 = vmatprep.subr.bf16.mxu0 0
      %745 = vmatpush1.bf16.msra.mxu0 %v732
      %746 = vmatprep.subr.bf16.mxu0 0
      %747 = vmatpush1.bf16.msra.mxu0 %v731
      %748 = vmatprep.subr.bf16.mxu0 0
      %749 = vmatpush1.bf16.msra.mxu0 %v730
      %750 = vmatprep.subr.bf16.mxu0 0
      %751 = vmatpush1.bf16.msra.mxu0 %v729
      %752 = vmatprep.subr.bf16.mxu0 0
      %753 = vmatpush1.bf16.msra.mxu0 %v728
      %754 = vmatprep.subr.bf16.mxu0 0
      %755 = vmatpush1.bf16.msra.mxu0 %v727
      %756 = vmatprep.subr.bf16.mxu0 0
      %757 = vmatpush1.bf16.msra.mxu0 %v726
      %758 = vmatprep.subr.bf16.mxu0 0
      %759 = vmatpush2.bf16.msra.mxu0 0
      %760 = vmatprep.subr.bf16.mxu0 0
      %761 = vmatpush2.bf16.msra.mxu0 0
      %762 = vmatprep.subr.bf16.mxu0 0
      %763 = vmatpush2.bf16.msra.mxu0 0
      %764 = vmatprep.subr.bf16.mxu0 0
      %765 = vmatpush2.bf16.msra.mxu0 0
      %766 = vmatprep.subr.bf16.mxu0 0
      %767 = vmatpush2.bf16.msra.mxu0 0
      %768 = vmatprep.subr.bf16.mxu0 0
      %769 = vmatpush2.bf16.msra.mxu0 0
      %770 = vmatprep.subr.bf16.mxu0 0
      %771 = vmatpush2.bf16.msra.mxu0 0
      %772 = vmatprep.subr.bf16.mxu0 0
      %773 = vmatpush2.bf16.msra.mxu0 0
      %774 = vmatprep.mubr.bf16.mxu0 0
      %775 = vmatmul.mubr.bf16.gmra.mxu0 %v587
      %v776 = vpop.f32.mrf.mxu0
      %v777 = vadd.f32 0.0, %v776
      %v778 = vpop.f32.mrf.mxu0
      %v779 = vpop.f32.mrf.mxu0
      %v780 = vadd.f32 0.0, %v779
      %v781 = vpop.f32.mrf.mxu0
      %782 = vdwg.mxu0
      %v783 = vpack.c.bf16 %v780, %v777
      %vm784 = vcmask 523264
      %v786 = vsel %vm784, %v570, 0
      %v789 = vsel %vm784, %v677, 0
      %791 = vmatprep.subr.bf16.mxu0 0
      %792 = vmatpush1.bf16.xpose.msra.mxu0 0
      %793 = vmatprep.subr.bf16.mxu0 0
      %794 = vmatpush1.bf16.xpose.msra.mxu0 0
      %795 = vmatprep.subr.bf16.mxu0 0
      %796 = vmatpush1.bf16.xpose.msra.mxu0 0
      %797 = vmatprep.subr.bf16.mxu0 0
      %798 = vmatpush1.bf16.xpose.msra.mxu0 0
      %799 = vmatprep.subr.bf16.mxu0 0
      %800 = vmatpush1.bf16.xpose.msra.mxu0 0
      %801 = vmatprep.subr.bf16.mxu0 0
      %802 = vmatpush1.bf16.xpose.msra.mxu0 0
      %803 = vmatprep.subr.bf16.mxu0 0
      %804 = vmatpush1.bf16.xpose.msra.mxu0 0
      %805 = vmatprep.subr.bf16.mxu0 0
      %806 = vmatpush1.bf16.xpose.msra.mxu0 %v789
      %807 = vmatprep.subr.bf16.mxu0 0
      %808 = vmatpush2.bf16.xpose.msra.mxu0 0
      %809 = vmatprep.subr.bf16.mxu0 0
      %810 = vmatpush2.bf16.xpose.msra.mxu0 0
      %811 = vmatprep.subr.bf16.mxu0 0
      %812 = vmatpush2.bf16.xpose.msra.mxu0 0
      %813 = vmatprep.subr.bf16.mxu0 0
      %814 = vmatpush2.bf16.xpose.msra.mxu0 0
      %815 = vmatprep.subr.bf16.mxu0 0
      %816 = vmatpush2.bf16.xpose.msra.mxu0 0
      %817 = vmatprep.subr.bf16.mxu0 0
      %818 = vmatpush2.bf16.xpose.msra.mxu0 0
      %819 = vmatprep.subr.bf16.mxu0 0
      %820 = vmatpush2.bf16.xpose.msra.mxu0 0
      %821 = vmatprep.subr.bf16.mxu0 0
      %822 = vmatpush2.bf16.xpose.msra.mxu0 0
      %823 = vmatprep.mubr.bf16.mxu0 0
      %824 = vmatmul.mubr.bf16.gmra.mxu0 %v786
      %v825 = vpop.f32.mrf.mxu0
      %v826 = vadd.f32 0.0, %v825
      %v827 = vpop.f32.mrf.mxu0
      %v828 = vpop.f32.mrf.mxu0
      %v829 = vadd.f32 0.0, %v828
      %v830 = vpop.f32.mrf.mxu0
      %831 = vdwg.mxu0
      %vm832 = vcmask 130048
      %v833 = vsel %vm832, %v826, -inf
      %834 = vmax.xlane.f32.xlu0 %v833
      %v835 = vpop.xlane.xlu0 %834
      %v836 = vsel %vm832, %v829, -inf
      %837 = vmax.xlane.f32.xlu0 %v836
      %v838 = vpop.xlane.xlu0 %837
      %v839 = vsub.f32 %v826, %v835
      %v840 = vsub.f32 %v829, %v838
      %v841 = vmul.f32 %v839, 1.442695
      %v842 = vpow.pop %v841
      %v843 = vmul.f32 %v840, 1.442695
      %v844 = vpow.pop %v843
      %v845 = vsel %vm832, %v842, 0.0
      %846 = vadd.xlane.f32.xlu0 %v845
      %v847 = vpop.xlane.xlu0 %846
      %v848 = vsel %vm832, %v844, 0.0
      %849 = vadd.xlane.f32.xlu0 %v848
      %v850 = vpop.xlane.xlu0 %849
      %v851 = vrcp.pop %v847
      %v852 = vrcp.pop %v850
      %v853 = vmul.f32 %v842, %v851
      %v854 = vmul.f32 %v844, %v852
      %v855 = vpack.c.bf16 %v854, %v853
      %v857 = vsel %vm832, %v855, 0
      %859 = vmatprep.subr.bf16.mxu0 0
      %860 = vmatpush1.bf16.msra.mxu0 0
      %861 = vmatprep.subr.bf16.mxu0 0
      %862 = vmatpush1.bf16.msra.mxu0 0
      %863 = vmatprep.subr.bf16.mxu0 0
      %864 = vmatpush1.bf16.msra.mxu0 0
      %865 = vmatprep.subr.bf16.mxu0 0
      %866 = vmatpush1.bf16.msra.mxu0 0
      %867 = vmatprep.subr.bf16.mxu0 0
      %868 = vmatpush1.bf16.msra.mxu0 0
      %869 = vmatprep.subr.bf16.mxu0 0
      %870 = vmatpush1.bf16.msra.mxu0 0
      %871 = vmatprep.subr.bf16.mxu0 0
      %872 = vmatpush1.bf16.msra.mxu0 0
      %873 = vmatprep.subr.bf16.mxu0 0
      %874 = vmatpush1.bf16.msra.mxu0 %v783
      %875 = vmatprep.subr.bf16.mxu0 0
      %876 = vmatpush2.bf16.msra.mxu0 0
      %877 = vmatprep.subr.bf16.mxu0 0
      %878 = vmatpush2.bf16.msra.mxu0 0
      %879 = vmatprep.subr.bf16.mxu0 0
      %880 = vmatpush2.bf16.msra.mxu0 0
      %881 = vmatprep.subr.bf16.mxu0 0
      %882 = vmatpush2.bf16.msra.mxu0 0
      %883 = vmatprep.subr.bf16.mxu0 0
      %884 = vmatpush2.bf16.msra.mxu0 0
      %885 = vmatprep.subr.bf16.mxu0 0
      %886 = vmatpush2.bf16.msra.mxu0 0
      %887 = vmatprep.subr.bf16.mxu0 0
      %888 = vmatpush2.bf16.msra.mxu0 0
      %889 = vmatprep.subr.bf16.mxu0 0
      %890 = vmatpush2.bf16.msra.mxu0 0
      %891 = vmatprep.mubr.bf16.mxu0 0
      %892 = vmatmul.mubr.bf16.gmra.mxu0 %v857
      %v893 = vpop.f32.mrf.mxu0
      %v894 = vadd.f32 0.0, %v893
      %v895 = vpop.f32.mrf.mxu0
      %v896 = vpop.f32.mrf.mxu0
      %v897 = vadd.f32 0.0, %v896
      %v898 = vpop.f32.mrf.mxu0
      %899 = vdwg.mxu0
      %v900 = vpack.c.bf16 %v897, %v894
      %v902 = vunpack.c.l.b16 %v900
      %v903 = vunpack.c.h.b16 %v900
      %v904 = vpack.c.b16 %v902, %v902
      %v905 = vpack.c.b16 %v903, %v903
      %vm908 = vcmask 519168
      %909 = vst.msk [vmem:[#allocation2] sm:$0xf] %vm908, %v904
      %910 = vst.msk [vmem:[#allocation2 + $0x4] sm:$0xf] %vm908, %v905
      %912 = vrot.lane.b32.xlu0 %v570, 64
      %v913 = vpop.permute.xlu0 %912
      %915 = vrot.lane.b32.xlu0 %v677, 64
      %v916 = vpop.permute.xlu0 %915
      %v918 = vsel %vm784, %v913, 0
      %v921 = vsel %vm784, %v916, 0
      %923 = vmatprep.subr.bf16.mxu0 0
      %924 = vmatpush1.bf16.xpose.msra.mxu0 0
      %925 = vmatprep.subr.bf16.mxu0 0
      %926 = vmatpush1.bf16.xpose.msra.mxu0 0
      %927 = vmatprep.subr.bf16.mxu0 0
      %928 = vmatpush1.bf16.xpose.msra.mxu0 0
      %929 = vmatprep.subr.bf16.mxu0 0
      %930 = vmatpush1.bf16.xpose.msra.mxu0 0
      %931 = vmatprep.subr.bf16.mxu0 0
      %932 = vmatpush1.bf16.xpose.msra.mxu0 0
      %933 = vmatprep.subr.bf16.mxu0 0
      %934 = vmatpush1.bf16.xpose.msra.mxu0 0
      %935 = vmatprep.subr.bf16.mxu0 0
      %936 = vmatpush1.bf16.xpose.msra.mxu0 0
      %937 = vmatprep.subr.bf16.mxu0 0
      %938 = vmatpush1.bf16.xpose.msra.mxu0 %v921
      %939 = vmatprep.subr.bf16.mxu0 0
      %940 = vmatpush2.bf16.xpose.msra.mxu0 0
      %941 = vmatprep.subr.bf16.mxu0 0
      %942 = vmatpush2.bf16.xpose.msra.mxu0 0
      %943 = vmatprep.subr.bf16.mxu0 0
      %944 = vmatpush2.bf16.xpose.msra.mxu0 0
      %945 = vmatprep.subr.bf16.mxu0 0
      %946 = vmatpush2.bf16.xpose.msra.mxu0 0
      %947 = vmatprep.subr.bf16.mxu0 0
      %948 = vmatpush2.bf16.xpose.msra.mxu0 0
      %949 = vmatprep.subr.bf16.mxu0 0
      %950 = vmatpush2.bf16.xpose.msra.mxu0 0
      %951 = vmatprep.subr.bf16.mxu0 0
      %952 = vmatpush2.bf16.xpose.msra.mxu0 0
      %953 = vmatprep.subr.bf16.mxu0 0
      %954 = vmatpush2.bf16.xpose.msra.mxu0 0
      %955 = vmatprep.mubr.bf16.mxu0 0
      %956 = vmatmul.mubr.bf16.gmra.mxu0 %v918
      %v957 = vpop.f32.mrf.mxu0
      %v958 = vadd.f32 0.0, %v957
      %v959 = vpop.f32.mrf.mxu0
      %v960 = vpop.f32.mrf.mxu0
      %v961 = vadd.f32 0.0, %v960
      %v962 = vpop.f32.mrf.mxu0
      %963 = vdwg.mxu0
      %v964 = vsel %vm832, %v958, -inf
      %965 = vmax.xlane.f32.xlu0 %v964
      %v966 = vpop.xlane.xlu0 %965
      %v967 = vsel %vm832, %v961, -inf
      %968 = vmax.xlane.f32.xlu0 %v967
      %v969 = vpop.xlane.xlu0 %968
      %v970 = vsub.f32 %v958, %v966
      %v971 = vsub.f32 %v961, %v969
      %v972 = vmul.f32 %v970, 1.442695
      %v973 = vpow.pop %v972
      %v974 = vmul.f32 %v971, 1.442695
      %v975 = vpow.pop %v974
      %v976 = vsel %vm832, %v973, 0.0
      %977 = vadd.xlane.f32.xlu0 %v976
      %v978 = vpop.xlane.xlu0 %977
      %v979 = vsel %vm832, %v975, 0.0
      %980 = vadd.xlane.f32.xlu0 %v979
      %v981 = vpop.xlane.xlu0 %980
      %v982 = vrcp.pop %v978
      %v983 = vrcp.pop %v981
      %v984 = vmul.f32 %v973, %v982
      %v985 = vmul.f32 %v975, %v983
      %v986 = vpack.c.bf16 %v985, %v984
      %988 = vrot.lane.b32.xlu0 %v783, 64
      %v989 = vpop.permute.xlu0 %988
      %v992 = vsel %vm832, %v986, 0
      %994 = vmatprep.subr.bf16.mxu0 0
      %995 = vmatpush1.bf16.msra.mxu0 0
      %996 = vmatprep.subr.bf16.mxu0 0
      %997 = vmatpush1.bf16.msra.mxu0 0
      %998 = vmatprep.subr.bf16.mxu0 0
      %999 = vmatpush1.bf16.msra.mxu0 0
      %1000 = vmatprep.subr.bf16.mxu0 0
      %1001 = vmatpush1.bf16.msra.mxu0 0
      %1002 = vmatprep.subr.bf16.mxu0 0
      %1003 = vmatpush1.bf16.msra.mxu0 0
      %1004 = vmatprep.subr.bf16.mxu0 0
      %1005 = vmatpush1.bf16.msra.mxu0 0
      %1006 = vmatprep.subr.bf16.mxu0 0
      %1007 = vmatpush1.bf16.msra.mxu0 0
      %1008 = vmatprep.subr.bf16.mxu0 0
      %1009 = vmatpush1.bf16.msra.mxu0 %v989
      %1010 = vmatprep.subr.bf16.mxu0 0
      %1011 = vmatpush2.bf16.msra.mxu0 0
      %1012 = vmatprep.subr.bf16.mxu0 0
      %1013 = vmatpush2.bf16.msra.mxu0 0
      %1014 = vmatprep.subr.bf16.mxu0 0
      %1015 = vmatpush2.bf16.msra.mxu0 0
      %1016 = vmatprep.subr.bf16.mxu0 0
      %1017 = vmatpush2.bf16.msra.mxu0 0
      %1018 = vmatprep.subr.bf16.mxu0 0
      %1019 = vmatpush2.bf16.msra.mxu0 0
      %1020 = vmatprep.subr.bf16.mxu0 0
      %1021 = vmatpush2.bf16.msra.mxu0 0
      %1022 = vmatprep.subr.bf16.mxu0 0
      %1023 = vmatpush2.bf16.msra.mxu0 0
      %1024 = vmatprep.subr.bf16.mxu0 0
      %1025 = vmatpush2.bf16.msra.mxu0 0
      %1026 = vmatprep.mubr.bf16.mxu0 0
      %1027 = vmatmul.mubr.bf16.gmra.mxu0 %v992
      %v1028 = vpop.f32.mrf.mxu0
      %v1029 = vadd.f32 0.0, %v1028
      %v1030 = vpop.f32.mrf.mxu0
      %v1031 = vpop.f32.mrf.mxu0
      %v1032 = vadd.f32 0.0, %v1031
      %v1033 = vpop.f32.mrf.mxu0
      %1034 = vdwg.mxu0
      %v1035 = vpack.c.bf16 %v1032, %v1029
      %v1037 = vunpack.c.l.b16 %v1035
      %v1038 = vunpack.c.h.b16 %v1035
      %v1039 = vpack.c.b16 %v1037, %v1037
      %v1040 = vpack.c.b16 %v1038, %v1038
      %1041 = vrot.lane.b32.xlu0 %v1039, 64
      %v1042 = vpop.permute.xlu0 %1041
      %1043 = vrot.lane.b32.xlu0 %v1040, 64
      %v1044 = vpop.permute.xlu0 %1043
      %vm1047 = vcmask 1043968
      %1048 = vst.msk [vmem:[#allocation2] sm:$0xf] %vm1047, %v1042
      %1049 = vst.msk [vmem:[#allocation2 + $0x4] sm:$0xf] %vm1047, %v1044
      %v1050 = vld [vmem:[%s8] sm:$0x1]
      %v1052 = vlaneseq
      %v1053 = vshrl.u32 %v1052, 7
      %v1054 = vsub.s32 0, %v1053
      %v1055 = vrot.slane %v1050, %v1054
      %v1057 = vadd.f32 %v393, %v1055
      %v1058 = vadd.f32 %v394, %v1055
      %v1059 = vld [vmem:[#allocation2] sm:$0xf]
      %v1060 = vld [vmem:[#allocation2 + $0x4] sm:$0xf]
      %v1061 = vld [vmem:[%s7] sm:$0xf]
      %v1062 = vld [vmem:[%s7 + $0x4] sm:$0xf]
      %v1063 = vld [vmem:[%s7 + $0x8] sm:$0xf]
      %v1064 = vld [vmem:[%s7 + $0xc] sm:$0xf]
      %v1065 = vld [vmem:[%s7 + $0x10] sm:$0xf]
      %v1066 = vld [vmem:[%s7 + $0x14] sm:$0xf]
      %v1067 = vld [vmem:[%s7 + $0x18] sm:$0xf]
      %v1068 = vld [vmem:[%s7 + $0x1c] sm:$0xf]
      %v1069 = vld [vmem:[%s7 + $0x20] sm:$0xf]
      %v1070 = vld [vmem:[%s7 + $0x24] sm:$0xf]
      %v1071 = vld [vmem:[%s7 + $0x28] sm:$0xf]
      %v1072 = vld [vmem:[%s7 + $0x2c] sm:$0xf]
      %v1073 = vld [vmem:[%s7 + $0x30] sm:$0xf]
      %v1074 = vld [vmem:[%s7 + $0x34] sm:$0xf]
      %v1075 = vld [vmem:[%s7 + $0x38] sm:$0xf]
      %v1076 = vld [vmem:[%s7 + $0x3c] sm:$0xf]
      %v1079 = vunpack.c.l.b16 %v1059
      %v1080 = vunpack.c.l.b16 %v1060
      %v1081 = vpack.c.b16 %v1080, %v1079
      %v1099 = vunpack.c.l.b16 %v1061
      %v1100 = vunpack.c.l.b16 %v1062
      %v1101 = vunpack.c.l.b16 %v1063
      %v1102 = vunpack.c.l.b16 %v1064
      %v1103 = vunpack.c.l.b16 %v1065
      %v1104 = vunpack.c.l.b16 %v1066
      %v1105 = vunpack.c.l.b16 %v1067
      %v1106 = vunpack.c.l.b16 %v1068
      %v1107 = vunpack.c.l.b16 %v1069
      %v1108 = vunpack.c.l.b16 %v1070
      %v1109 = vunpack.c.l.b16 %v1071
      %v1110 = vunpack.c.l.b16 %v1072
      %v1111 = vunpack.c.l.b16 %v1073
      %v1112 = vunpack.c.l.b16 %v1074
      %v1113 = vunpack.c.l.b16 %v1075
      %v1114 = vunpack.c.l.b16 %v1076
      %v1115 = vpack.c.b16 %v1100, %v1099
      %v1116 = vpack.c.b16 %v1102, %v1101
      %v1117 = vpack.c.b16 %v1104, %v1103
      %v1118 = vpack.c.b16 %v1106, %v1105
      %v1119 = vpack.c.b16 %v1108, %v1107
      %v1120 = vpack.c.b16 %v1110, %v1109
      %v1121 = vpack.c.b16 %v1112, %v1111
      %v1122 = vpack.c.b16 %v1114, %v1113
      %1131 = vmatprep.subr.bf16.mxu0 0
      %1132 = vmatpush1.bf16.msra.mxu0 %v1122
      %1133 = vmatprep.subr.bf16.mxu0 0
      %1134 = vmatpush1.bf16.msra.mxu0 %v1121
      %1135 = vmatprep.subr.bf16.mxu0 0
      %1136 = vmatpush1.bf16.msra.mxu0 %v1120
      %1137 = vmatprep.subr.bf16.mxu0 0
      %1138 = vmatpush1.bf16.msra.mxu0 %v1119
      %1139 = vmatprep.subr.bf16.mxu0 0
      %1140 = vmatpush1.bf16.msra.mxu0 %v1118
      %1141 = vmatprep.subr.bf16.mxu0 0
      %1142 = vmatpush1.bf16.msra.mxu0 %v1117
      %1143 = vmatprep.subr.bf16.mxu0 0
      %1144 = vmatpush1.bf16.msra.mxu0 %v1116
      %1145 = vmatprep.subr.bf16.mxu0 0
      %1146 = vmatpush1.bf16.msra.mxu0 %v1115
      %1147 = vmatprep.subr.bf16.mxu0 0
      %1148 = vmatpush2.bf16.msra.mxu0 0
      %1149 = vmatprep.subr.bf16.mxu0 0
      %1150 = vmatpush2.bf16.msra.mxu0 0
      %1151 = vmatprep.subr.bf16.mxu0 0
      %1152 = vmatpush2.bf16.msra.mxu0 0
      %1153 = vmatprep.subr.bf16.mxu0 0
      %1154 = vmatpush2.bf16.msra.mxu0 0
      %1155 = vmatprep.subr.bf16.mxu0 0
      %1156 = vmatpush2.bf16.msra.mxu0 0
      %1157 = vmatprep.subr.bf16.mxu0 0
      %1158 = vmatpush2.bf16.msra.mxu0 0
      %1159 = vmatprep.subr.bf16.mxu0 0
      %1160 = vmatpush2.bf16.msra.mxu0 0
      %1161 = vmatprep.subr.bf16.mxu0 0
      %1162 = vmatpush2.bf16.msra.mxu0 0
      %1163 = vmatprep.mubr.bf16.mxu0 0
      %1164 = vmatmul.mubr.bf16.gmra.mxu0 %v1081
      %v1165 = vpop.f32.mrf.mxu0
      %v1166 = vadd.f32 0.0, %v1165
      %v1167 = vpop.f32.mrf.mxu0
      %v1168 = vpop.f32.mrf.mxu0
      %v1169 = vadd.f32 0.0, %v1168
      %v1170 = vpop.f32.mrf.mxu0
      %1171 = vdwg.mxu0
      %v1172 = vadd.f32 %v1057, %v1166
      %v1173 = vadd.f32 %v1058, %v1169
      %1174 = vst [vmem:[%s390] sm:$0xff] %v1172
      %1175 = vst [vmem:[%s390 + $0x8] sm:$0xff] %v1173
      %s1176 = smul.u32 2, %s25
      %p1177 = scmp.lt.s32.totalorder %s24, 1
      %s1178 = scalar_select %p1177, %s24, 1
      %p1179 = scmp.lt.s32.totalorder %s1176, 1
      %s1180 = scalar_select %p1179, %s1176, 1
      %s1181 = smul.addr %s1178, 2
      %s1182 = sadd.s32 %s1180, %s1181
      %s1183 = smul.addr %s1182, 8
      %s1184 = scalar_lea.vmem %s9, %s1183
      // Predicated region
      $region57: #{latent_injection_transformer.16} parent=55 // pred_check
        %p1185 = pneg %p253
      $region58: #{latent_injection_transformer.16} parent=55 // pred_check_branch
        %1187 = sbr.rel (%p1185) target = $region60
      $region59: #{latent_injection_transformer.16} parent=55 // pred_region
        %s1188 = smul.u32 2, %s25
      $region60: #{latent_injection_transformer.16} parent=55 // pred_fallthru
        _
    $region56: #{latent_injection_transformer.16} parent=5 // pred_fallthru
      _
    %p1189 = scmp.le.s32.totalorder 2, %s15
    // Predicated region
    $region61: #{latent_injection_transformer.16} parent=5 // pred_check
      %p1190 = pneg %p1189
    $region62: #{latent_injection_transformer.16} parent=5 // pred_check_branch
      %1192 = sbr.rel (%p1190) target = $region64
    $region63: #{latent_injection_transformer.16} parent=5 // pred_region
      %s1193 = ssub.s32 %s15, 2
      // Predicated region
      $region65: #{latent_injection_transformer.16} parent=63 // pred_check
        %p1194 = pneg %p259
      $region66: #{latent_injection_transformer.16} parent=63 // pred_check_branch
        %1196 = sbr.rel (%p1194) target = $region68
      $region67: #{latent_injection_transformer.16} parent=63 // pred_region
        %s1197 = smul.u32 2, %s27
        %p1198 = scmp.lt.s32.totalorder %s26, 1
        %s1199 = scalar_select %p1198, %s26, 1
        %p1200 = scmp.lt.s32.totalorder %s1197, 1
        %s1201 = scalar_select %p1200, %s1197, 1
        %s1202 = smul.addr %s1199, 2
        %s1203 = sadd.s32 %s1201, %s1202
        %s1204 = smul.addr %s1203, 8
        %s1205 = scalar_lea.vmem %s9, %s1204
      $region68: #{latent_injection_transformer.16} parent=63 // pred_fallthru
        _
    $region64: #{latent_injection_transformer.16} parent=5 // pred_fallthru
      _
  $region6: #{latent_injection_transformer.16} parent=0 // loop_footer
    %s19 = sadd.s32 1, %s15
  $region7: #{latent_injection_transformer.16} parent=0 // loop_footer_branch
    %14 = sbr.rel target = $region3
  $region8: #{latent_injection_transformer.16} parent=0 // loop_exit
    _

// kernel: latent_injection_transformer.19
$region0: #{latent_injection_transformer.19}
  #allocation0 [shape = 'u32[]', space=smem, size = 0x4, offset = 0x4, fixed_abs, tag = 'smem constant byte address 0x4 - core index']
  #allocation1 [shape = 'u32[144,128]{1,0:T(1,128)}', space=vmem, size = 0x12000, scoped, tag = 'internal scratch']
  %s0 = inlined_call_operand.vmem [shape: f32[32,128], index: 0, kind: input, shape index: {}]
  %s1 = inlined_call_operand.vmem [shape: bf16[128,32], index: 1, kind: input, shape index: {}]
  %s2 = inlined_call_operand.vmem [shape: f32[1,32], index: 2, kind: input, shape index: {}]
  %s3 = inlined_call_operand.vmem [shape: bf16[32,128], index: 3, kind: input, shape index: {}]
  %s4 = inlined_call_operand.vmem [shape: f32[1,128], index: 4, kind: input, shape index: {}]
  %s5 = inlined_call_operand.vmem [shape: f32[32,128], index: 5, kind: output, shape index: {}]
  %s6 = sld [smem:[#allocation0]]
  $region30: #{latent_injection_transformer.19} parent=0
    _
  %s8 = ssub.s32 1, %s6
  %s9 = scalar_select 0, %s8, %s6
  // Predicated region
  $region2: #{latent_injection_transformer.19} parent=0 // pred_check
    _
  $region3: #{latent_injection_transformer.19} parent=0 // pred_check_branch
    %11 = sbr.rel (0) target = $region5
  $region4: #{latent_injection_transformer.19} parent=0 // pred_region
    _
  $region5: #{latent_injection_transformer.19} parent=0 // pred_fallthru
    _
  // Predicated region
  $region6: #{latent_injection_transformer.19} parent=0 // pred_check
    _
  $region7: #{latent_injection_transformer.19} parent=0 // pred_check_branch
    %13 = sbr.rel (0) target = $region9
  $region8: #{latent_injection_transformer.19} parent=0 // pred_region
    _
  $region9: #{latent_injection_transformer.19} parent=0 // pred_fallthru
    _
  // Predicated region
  $region10: #{latent_injection_transformer.19} parent=0 // pred_check
    _
  $region11: #{latent_injection_transformer.19} parent=0 // pred_check_branch
    %15 = sbr.rel (0) target = $region13
  $region12: #{latent_injection_transformer.19} parent=0 // pred_region
    _
  $region13: #{latent_injection_transformer.19} parent=0 // pred_fallthru
    _
  // Predicated region
  $region14: #{latent_injection_transformer.19} parent=0 // pred_check
    _
  $region15: #{latent_injection_transformer.19} parent=0 // pred_check_branch
    %17 = sbr.rel (0) target = $region17
  $region16: #{latent_injection_transformer.19} parent=0 // pred_region
    _
  $region17: #{latent_injection_transformer.19} parent=0 // pred_fallthru
    _
  // Predicated region
  $region18: #{latent_injection_transformer.19} parent=0 // pred_check
    _
  $region19: #{latent_injection_transformer.19} parent=0 // pred_check_branch
    %19 = sbr.rel (0) target = $region21
  $region20: #{latent_injection_transformer.19} parent=0 // pred_region
    _
  $region21: #{latent_injection_transformer.19} parent=0 // pred_fallthru
    _
  %v21 = vld [vmem:[%s0] sm:$0xff]
  %v22 = vld [vmem:[%s0 + $0x8] sm:$0xff]
  %v23 = vld [vmem:[%s0 + $0x10] sm:$0xff]
  %v24 = vld [vmem:[%s0 + $0x18] sm:$0xff]
  %v25 = vld [vmem:[%s1] sm:$0xf]
  %v26 = vld [vmem:[%s1 + $0x4] sm:$0xf]
  %v27 = vld [vmem:[%s1 + $0x8] sm:$0xf]
  %v28 = vld [vmem:[%s1 + $0xc] sm:$0xf]
  %v29 = vld [vmem:[%s1 + $0x10] sm:$0xf]
  %v30 = vld [vmem:[%s1 + $0x14] sm:$0xf]
  %v31 = vld [vmem:[%s1 + $0x18] sm:$0xf]
  %v32 = vld [vmem:[%s1 + $0x1c] sm:$0xf]
  %v33 = vld [vmem:[%s1 + $0x20] sm:$0xf]
  %v34 = vld [vmem:[%s1 + $0x24] sm:$0xf]
  %v35 = vld [vmem:[%s1 + $0x28] sm:$0xf]
  %v36 = vld [vmem:[%s1 + $0x2c] sm:$0xf]
  %v37 = vld [vmem:[%s1 + $0x30] sm:$0xf]
  %v38 = vld [vmem:[%s1 + $0x34] sm:$0xf]
  %v39 = vld [vmem:[%s1 + $0x38] sm:$0xf]
  %v40 = vld [vmem:[%s1 + $0x3c] sm:$0xf]
  %v41 = vpack.c.bf16 %v22, %v21
  %v42 = vpack.c.bf16 %v24, %v23
  %v43 = vld [vmem:[%s2] sm:$0x1]
  %v45 = vlaneseq
  %v46 = vshrl.u32 %v45, 7
  %v47 = vsub.s32 0, %v46
  %v48 = vrot.slane %v43, %v47
  %v66 = vunpack.c.l.b16 %v25
  %v67 = vunpack.c.l.b16 %v26
  %v68 = vunpack.c.l.b16 %v27
  %v69 = vunpack.c.l.b16 %v28
  %v70 = vunpack.c.l.b16 %v29
  %v71 = vunpack.c.l.b16 %v30
  %v72 = vunpack.c.l.b16 %v31
  %v73 = vunpack.c.l.b16 %v32
  %v74 = vunpack.c.l.b16 %v33
  %v75 = vunpack.c.l.b16 %v34
  %v76 = vunpack.c.l.b16 %v35
  %v77 = vunpack.c.l.b16 %v36
  %v78 = vunpack.c.l.b16 %v37
  %v79 = vunpack.c.l.b16 %v38
  %v80 = vunpack.c.l.b16 %v39
  %v81 = vunpack.c.l.b16 %v40
  %v82 = vpack.c.b16 %v67, %v66
  %v83 = vpack.c.b16 %v69, %v68
  %v84 = vpack.c.b16 %v71, %v70
  %v85 = vpack.c.b16 %v73, %v72
  %v86 = vpack.c.b16 %v75, %v74
  %v87 = vpack.c.b16 %v77, %v76
  %v88 = vpack.c.b16 %v79, %v78
  %v89 = vpack.c.b16 %v81, %v80
  %98 = vmatprep.subr.bf16.mxu0 0
  %99 = vmatpush1.bf16.msra.mxu0 %v89
  %100 = vmatprep.subr.bf16.mxu0 0
  %101 = vmatpush1.bf16.msra.mxu0 %v88
  %102 = vmatprep.subr.bf16.mxu0 0
  %103 = vmatpush1.bf16.msra.mxu0 %v87
  %104 = vmatprep.subr.bf16.mxu0 0
  %105 = vmatpush1.bf16.msra.mxu0 %v86
  %106 = vmatprep.subr.bf16.mxu0 0
  %107 = vmatpush1.bf16.msra.mxu0 %v85
  %108 = vmatprep.subr.bf16.mxu0 0
  %109 = vmatpush1.bf16.msra.mxu0 %v84
  %110 = vmatprep.subr.bf16.mxu0 0
  %111 = vmatpush1.bf16.msra.mxu0 %v83
  %112 = vmatprep.subr.bf16.mxu0 0
  %113 = vmatpush1.bf16.msra.mxu0 %v82
  %114 = vmatprep.subr.bf16.mxu0 0
  %115 = vmatpush2.bf16.msra.mxu0 0
  %116 = vmatprep.subr.bf16.mxu0 0
  %117 = vmatpush2.bf16.msra.mxu0 0
  %118 = vmatprep.subr.bf16.mxu0 0
  %119 = vmatpush2.bf16.msra.mxu0 0
  %120 = vmatprep.subr.bf16.mxu0 0
  %121 = vmatpush2.bf16.msra.mxu0 0
  %122 = vmatprep.subr.bf16.mxu0 0
  %123 = vmatpush2.bf16.msra.mxu0 0
  %124 = vmatprep.subr.bf16.mxu0 0
  %125 = vmatpush2.bf16.msra.mxu0 0
  %126 = vmatprep.subr.bf16.mxu0 0
  %127 = vmatpush2.bf16.msra.mxu0 0
  %128 = vmatprep.subr.bf16.mxu0 0
  %129 = vmatpush2.bf16.msra.mxu0 0
  %130 = vmatprep.mubr.bf16.mxu0 0
  %131 = vmatmul.mubr.bf16.gmra.mxu0 %v41
  %v132 = vpop.f32.mrf.mxu0
  %v133 = vadd.f32 %v48, %v132
  %v134 = vpop.f32.mrf.mxu0
  %v135 = vpop.f32.mrf.mxu0
  %v136 = vadd.f32 %v48, %v135
  %v137 = vpop.f32.mrf.mxu0
  %138 = vmatprep.mubr.bf16.mxu0 0
  %139 = vmatmul.mubr.bf16.gmra.mxu0 %v42
  %v140 = vpop.f32.mrf.mxu0
  %v141 = vadd.f32 %v48, %v140
  %v142 = vpop.f32.mrf.mxu0
  %v143 = vpop.f32.mrf.mxu0
  %v144 = vadd.f32 %v48, %v143
  %v145 = vpop.f32.mrf.mxu0
  %146 = vdwg.mxu0
  %v147 = vld [vmem:[%s3] sm:$0xf]
  %v148 = vld [vmem:[%s3 + $0x4] sm:$0xf]
  %v149 = vld [vmem:[%s3 + $0x8] sm:$0xf]
  %v150 = vld [vmem:[%s3 + $0xc] sm:$0xf]
  %v151 = vpack.c.bf16 %v136, %v133
  %v152 = vpack.c.bf16 %v144, %v141
  %v153 = vld [vmem:[%s4] sm:$0x1]
  %v155 = vlaneseq
  %v156 = vshrl.u32 %v155, 7
  %v157 = vsub.s32 0, %v156
  %v158 = vrot.slane %v153, %v157
  %v164 = vunpack.c.l.b16 %v147
  %v165 = vunpack.c.l.b16 %v148
  %v166 = vunpack.c.l.b16 %v149
  %v167 = vunpack.c.l.b16 %v150
  %v168 = vpack.c.b16 %v165, %v164
  %v169 = vpack.c.b16 %v167, %v166
  %vm172 = vcmask 261120
  %v174 = vsel %vm172, %v151, 0
  %v177 = vsel %vm172, %v152, 0
  %179 = vmatprep.subr.bf16.mxu0 0
  %180 = vmatpush1.bf16.msra.mxu0 0
  %181 = vmatprep.subr.bf16.mxu0 0
  %182 = vmatpush1.bf16.msra.mxu0 0
  %183 = vmatprep.subr.bf16.mxu0 0
  %184 = vmatpush1.bf16.msra.mxu0 0
  %185 = vmatprep.subr.bf16.mxu0 0
  %186 = vmatpush1.bf16.msra.mxu0 0
  %187 = vmatprep.subr.bf16.mxu0 0
  %188 = vmatpush1.bf16.msra.mxu0 0
  %189 = vmatprep.subr.bf16.mxu0 0
  %190 = vmatpush1.bf16.msra.mxu0 0
  %191 = vmatprep.subr.bf16.mxu0 0
  %192 = vmatpush1.bf16.msra.mxu0 %v169
  %193 = vmatprep.subr.bf16.mxu0 0
  %194 = vmatpush1.bf16.msra.mxu0 %v168
  %195 = vmatprep.subr.bf16.mxu0 0
  %196 = vmatpush2.bf16.msra.mxu0 0
  %197 = vmatprep.subr.bf16.mxu0 0
  %198 = vmatpush2.bf16.msra.mxu0 0
  %199 = vmatprep.subr.bf16.mxu0 0
  %200 = vmatpush2.bf16.msra.mxu0 0
  %201 = vmatprep.subr.bf16.mxu0 0
  %202 = vmatpush2.bf16.msra.mxu0 0
  %203 = vmatprep.subr.bf16.mxu0 0
  %204 = vmatpush2.bf16.msra.mxu0 0
  %205 = vmatprep.subr.bf16.mxu0 0
  %206 = vmatpush2.bf16.msra.mxu0 0
  %207 = vmatprep.subr.bf16.mxu0 0
  %208 = vmatpush2.bf16.msra.mxu0 0
  %209 = vmatprep.subr.bf16.mxu0 0
  %210 = vmatpush2.bf16.msra.mxu0 0
  %211 = vmatprep.mubr.bf16.mxu0 0
  %212 = vmatmul.mubr.bf16.gmra.mxu0 %v174
  %v213 = vpop.f32.mrf.mxu0
  %v214 = vadd.f32 %v158, %v213
  %v215 = vpop.f32.mrf.mxu0
  %v216 = vpop.f32.mrf.mxu0
  %v217 = vadd.f32 %v158, %v216
  %v218 = vpop.f32.mrf.mxu0
  %219 = vmatprep.mubr.bf16.mxu0 0
  %220 = vmatmul.mubr.bf16.gmra.mxu0 %v177
  %v221 = vpop.f32.mrf.mxu0
  %v222 = vadd.f32 %v158, %v221
  %v223 = vpop.f32.mrf.mxu0
  %v224 = vpop.f32.mrf.mxu0
  %v225 = vadd.f32 %v158, %v224
  %v226 = vpop.f32.mrf.mxu0
  %227 = vdwg.mxu0
  %228 = vst [vmem:[%s5] sm:$0xff] %v214
  %229 = vst [vmem:[%s5 + $0x8] sm:$0xff] %v217
  %230 = vst [vmem:[%s5 + $0x10] sm:$0xff] %v222
  %231 = vst [vmem:[%s5 + $0x18] sm:$0xff] %v225
  // Predicated region
  $region22: #{latent_injection_transformer.19} parent=0 // pred_check
    _
  $region23: #{latent_injection_transformer.19} parent=0 // pred_check_branch
    %233 = sbr.rel (0) target = $region25
  $region24: #{latent_injection_transformer.19} parent=0 // pred_region
    _
  $region25: #{latent_injection_transformer.19} parent=0 // pred_fallthru
    _
  // Predicated region
  $region26: #{latent_injection_transformer.19} parent=0 // pred_check
    _
  $region27: #{latent_injection_transformer.19} parent=0 // pred_check_branch
    %235 = sbr.rel (0) target = $region29
  $region28: #{latent_injection_transformer.19} parent=0 // pred_region
    _
  $region29: #{latent_injection_transformer.19} parent=0 // pred_fallthru
    _

// kernel: latent_injection_transformer.21
$region0: #{latent_injection_transformer.21}
  #allocation0 [shape = 'u32[]', space=smem, size = 0x4, offset = 0x4, fixed_abs, tag = 'smem constant byte address 0x4 - core index']
  #allocation1 [shape = 'u32[144,128]{1,0:T(1,128)}', space=vmem, size = 0x12000, scoped, tag = 'internal scratch']
  #allocation2 [shape = 'bf16[16,128]{1,0:T(8,128)(2,1)}', space=vmem, size = 0x1000, scoped, tag = 'scratch operand']
  %s0 = inlined_call_operand.vmem [shape: f32[2,16,128], index: 0, kind: input, shape index: {}]
  %s1 = inlined_call_operand.vmem [shape: f32[2,16,128], index: 1, kind: input, shape index: {}]
  %s2 = inlined_call_operand.vmem [shape: f32[1,128], index: 2, kind: input, shape index: {}]
  %s3 = inlined_call_operand.vmem [shape: f32[1,128], index: 3, kind: input, shape index: {}]
  %s4 = inlined_call_operand.vmem [shape: bf16[128,128], index: 4, kind: input, shape index: {}]
  %s5 = inlined_call_operand.vmem [shape: bf16[128,128], index: 5, kind: input, shape index: {}]
  %s6 = inlined_call_operand.vmem [shape: bf16[128,128], index: 6, kind: input, shape index: {}]
  %s7 = inlined_call_operand.vmem [shape: bf16[128,128], index: 7, kind: input, shape index: {}]
  %s8 = inlined_call_operand.vmem [shape: f32[1,128], index: 8, kind: input, shape index: {}]
  %s9 = inlined_call_operand.vmem [shape: f32[2,16,128], index: 9, kind: output, shape index: {}]
  %s10 = sld [smem:[#allocation0]]
  $region69: #{latent_injection_transformer.21} parent=0
    _
  %s12 = ssub.s32 1, %s10
  %s13 = scalar_select 0, %s12, %s10
  loop: start=0, step=1, limit=4
  $region2: #{latent_injection_transformer.21} parent=0 // loop_pre_header
    _
  $region3: #{latent_injection_transformer.21} parent=0 // loop_header
    %s15 = sphi 0, %s19
    %p16 = scmp.ge.s32.totalorder %s15, 4
    %s22 = sphi 0, %s34
    %s23 = sphi 0, %s30
    %s24 = sphi 0, %s22
    %s25 = sphi 0, %s23
    %s26 = sphi 0, %s24
    %s27 = sphi 0, %s25
    %s39 = sphi 0, %s41
    %s42 = sphi 0, %s39
    %s43 = sphi 0, %s42
    %s59 = sphi 0, %s43
    %s65 = sphi 0, %s67
    %s68 = sphi 0, %s65
    %s69 = sphi 0, %s68
    %s85 = sphi 0, %s69
    %s89 = sphi 0, %s89
    %s91 = sphi 0, %s89
    %s92 = sphi 0, %s91
    %s106 = sphi 0, %s92
    %s110 = sphi 0, %s110
    %s112 = sphi 0, %s110
    %s113 = sphi 0, %s112
    %s127 = sphi 0, %s113
    %s131 = sphi 0, %s131
    %s133 = sphi 0, %s131
    %s134 = sphi 0, %s133
    %s148 = sphi 0, %s134
    %s152 = sphi 0, %s152
    %s154 = sphi 0, %s152
    %s155 = sphi 0, %s154
    %s169 = sphi 0, %s155
    %s173 = sphi 0, %s173
    %s175 = sphi 0, %s173
    %s176 = sphi 0, %s175
    %s190 = sphi 0, %s176
    %s194 = sphi 0, %s194
    %s196 = sphi 0, %s194
    %s197 = sphi 0, %s196
    %s211 = sphi 0, %s197
    %s215 = sphi 0, %s215
    %s217 = sphi 0, %s215
    %s218 = sphi 0, %s217
    %s232 = sphi 0, %s218
    %s240 = sphi 0, %s242
    %s243 = sphi 0, %s240
    %s244 = sphi 0, %s243
    %s260 = sphi 0, %s244
  $region4: #{latent_injection_transformer.21} parent=0 // loop_header_branch
    %18 = sbr.rel (%p16) target = $region8
  $region5: #{latent_injection_transformer.21} parent=0 // loop_body
    %s20 = ssub.s32 %s15, 1
    %s21 = ssub.s32 %s15, 2
    %s28 = sadd.s32 1, %s23
    %p29 = scmp.ge.s32.totalorder %s28, 1
    %s30 = scalar_select %p29, 0, %s28
    %s31 = sadd.s32 1, %s22
    %s32 = scalar_select %p29, %s31, %s22
    %p33 = scmp.ge.s32.totalorder %s32, 2
    %s34 = scalar_select %p33, 0, %s32
    %s35 = ssub.s32 %s22, %s34
    %s36 = ssub.s32 %s23, %s30
    %s37 = sor.u32 %s35, %s36
    %p38 = scmp.eq.s32.totalorder %s37, 0
    %s40 = sadd.s32 %s39, 1
    %s41 = scalar_select %p38, %s39, %s40
    %p44 = pneg %p38
    %p45 = scmp.eq.s32.totalorder %s15, 1
    %p46 = por %p44, %p45
    %p47 = scmp.ne.s32.totalorder %s39, %s42
    %p48 = scmp.eq.s32.totalorder %s15, 0
    %p49 = por %p47, %p48
    %p50 = scmp.ne.s32.totalorder %s39, %s42
    %p51 = scmp.eq.s32.totalorder %s20, 1
    %p52 = por %p50, %p51
    %p53 = scmp.ne.s32.totalorder %s42, %s43
    %p54 = scmp.eq.s32.totalorder %s20, 0
    %p55 = por %p53, %p54
    %p56 = scmp.ne.s32.totalorder %s42, %s43
    %p57 = scmp.eq.s32.totalorder %s21, 1
    %p58 = por %p56, %p57
    %p60 = scmp.ne.s32.totalorder %s43, %s59
    %p61 = scmp.eq.s32.totalorder %s21, 0
    %p62 = por %p60, %p61
    %s63 = ssub.s32 %s22, %s34
    %p64 = scmp.eq.s32.totalorder %s63, 0
    %s66 = sadd.s32 %s65, 1
    %s67 = scalar_select %p64, %s65, %s66
    %p70 = pneg %p64
    %p71 = scmp.eq.s32.totalorder %s15, 1
    %p72 = por %p70, %p71
    %p73 = scmp.ne.s32.totalorder %s65, %s68
    %p74 = scmp.eq.s32.totalorder %s15, 0
    %p75 = por %p73, %p74
    %p76 = scmp.ne.s32.totalorder %s65, %s68
    %p77 = scmp.eq.s32.totalorder %s20, 1
    %p78 = por %p76, %p77
    %p79 = scmp.ne.s32.totalorder %s68, %s69
    %p80 = scmp.eq.s32.totalorder %s20, 0
    %p81 = por %p79, %p80
    %p82 = scmp.ne.s32.totalorder %s68, %s69
    %p83 = scmp.eq.s32.totalorder %s21, 1
    %p84 = por %p82, %p83
    %p86 = scmp.ne.s32.totalorder %s69, %s85
    %p87 = scmp.eq.s32.totalorder %s21, 0
    %p88 = por %p86, %p87
    %s90 = sadd.s32 %s89, 1
    %p93 = scmp.eq.s32.totalorder %s15, 1
    %p94 = scmp.ne.s32.totalorder %s89, %s91
    %p95 = scmp.eq.s32.totalorder %s15, 0
    %p96 = por %p94, %p95
    %p97 = scmp.ne.s32.totalorder %s89, %s91
    %p98 = scmp.eq.s32.totalorder %s20, 1
    %p99 = por %p97, %p98
    %p100 = scmp.ne.s32.totalorder %s91, %s92
    %p101 = scmp.eq.s32.totalorder %s20, 0
    %p102 = por %p100, %p101
    %p103 = scmp.ne.s32.totalorder %s91, %s92
    %p104 = scmp.eq.s32.totalorder %s21, 1
    %p105 = por %p103, %p104
    %p107 = scmp.ne.s32.totalorder %s92, %s106
    %p108 = scmp.eq.s32.totalorder %s21, 0
    %p109 = por %p107, %p108
    %s111 = sadd.s32 %s110, 1
    %p114 = scmp.eq.s32.totalorder %s15, 1
    %p115 = scmp.ne.s32.totalorder %s110, %s112
    %p116 = scmp.eq.s32.totalorder %s15, 0
    %p117 = por %p115, %p116
    %p118 = scmp.ne.s32.totalorder %s110, %s112
    %p119 = scmp.eq.s32.totalorder %s20, 1
    %p120 = por %p118, %p119
    %p121 = scmp.ne.s32.totalorder %s112, %s113
    %p122 = scmp.eq.s32.totalorder %s20, 0
    %p123 = por %p121, %p122
    %p124 = scmp.ne.s32.totalorder %s112, %s113
    %p125 = scmp.eq.s32.totalorder %s21, 1
    %p126 = por %p124, %p125
    %p128 = scmp.ne.s32.totalorder %s113, %s127
    %p129 = scmp.eq.s32.totalorder %s21, 0
    %p130 = por %p128, %p129
    %s132 = sadd.s32 %s131, 1
    %p135 = scmp.eq.s32.totalorder %s15, 1
    %p136 = scmp.ne.s32.totalorder %s131, %s133
    %p137 = scmp.eq.s32.totalorder %s15, 0
    %p138 = por %p136, %p137
    %p139 = scmp.ne.s32.totalorder %s131, %s133
    %p140 = scmp.eq.s32.totalorder %s20, 1
    %p141 = por %p139, %p140
    %p142 = scmp.ne.s32.totalorder %s133, %s134
    %p143 = scmp.eq.s32.totalorder %s20, 0
    %p144 = por %p142, %p143
    %p145 = scmp.ne.s32.totalorder %s133, %s134
    %p146 = scmp.eq.s32.totalorder %s21, 1
    %p147 = por %p145, %p146
    %p149 = scmp.ne.s32.totalorder %s134, %s148
    %p150 = scmp.eq.s32.totalorder %s21, 0
    %p151 = por %p149, %p150
    %s153 = sadd.s32 %s152, 1
    %p156 = scmp.eq.s32.totalorder %s15, 1
    %p157 = scmp.ne.s32.totalorder %s152, %s154
    %p158 = scmp.eq.s32.totalorder %s15, 0
    %p159 = por %p157, %p158
    %p160 = scmp.ne.s32.totalorder %s152, %s154
    %p161 = scmp.eq.s32.totalorder %s20, 1
    %p162 = por %p160, %p161
    %p163 = scmp.ne.s32.totalorder %s154, %s155
    %p164 = scmp.eq.s32.totalorder %s20, 0
    %p165 = por %p163, %p164
    %p166 = scmp.ne.s32.totalorder %s154, %s155
    %p167 = scmp.eq.s32.totalorder %s21, 1
    %p168 = por %p166, %p167
    %p170 = scmp.ne.s32.totalorder %s155, %s169
    %p171 = scmp.eq.s32.totalorder %s21, 0
    %p172 = por %p170, %p171
    %s174 = sadd.s32 %s173, 1
    %p177 = scmp.eq.s32.totalorder %s15, 1
    %p178 = scmp.ne.s32.totalorder %s173, %s175
    %p179 = scmp.eq.s32.totalorder %s15, 0
    %p180 = por %p178, %p179
    %p181 = scmp.ne.s32.totalorder %s173, %s175
    %p182 = scmp.eq.s32.totalorder %s20, 1
    %p183 = por %p181, %p182
    %p184 = scmp.ne.s32.totalorder %s175, %s176
    %p185 = scmp.eq.s32.totalorder %s20, 0
    %p186 = por %p184, %p185
    %p187 = scmp.ne.s32.totalorder %s175, %s176
    %p188 = scmp.eq.s32.totalorder %s21, 1
    %p189 = por %p187, %p188
    %p191 = scmp.ne.s32.totalorder %s176, %s190
    %p192 = scmp.eq.s32.totalorder %s21, 0
    %p193 = por %p191, %p192
    %s195 = sadd.s32 %s194, 1
    %p198 = scmp.eq.s32.totalorder %s15, 1
    %p199 = scmp.ne.s32.totalorder %s194, %s196
    %p200 = scmp.eq.s32.totalorder %s15, 0
    %p201 = por %p199, %p200
    %p202 = scmp.ne.s32.totalorder %s194, %s196
    %p203 = scmp.eq.s32.totalorder %s20, 1
    %p204 = por %p202, %p203
    %p205 = scmp.ne.s32.totalorder %s196, %s197
    %p206 = scmp.eq.s32.totalorder %s20, 0
    %p207 = por %p205, %p206
    %p208 = scmp.ne.s32.totalorder %s196, %s197
    %p209 = scmp.eq.s32.totalorder %s21, 1
    %p210 = por %p208, %p209
    %p212 = scmp.ne.s32.totalorder %s197, %s211
    %p213 = scmp.eq.s32.totalorder %s21, 0
    %p214 = por %p212, %p213
    %s216 = sadd.s32 %s215, 1
    %p219 = scmp.eq.s32.totalorder %s15, 1
    %p220 = scmp.ne.s32.totalorder %s215, %s217
    %p221 = scmp.eq.s32.totalorder %s15, 0
    %p222 = por %p220, %p221
    %p223 = scmp.ne.s32.totalorder %s215, %s217
    %p224 = scmp.eq.s32.totalorder %s20, 1
    %p225 = por %p223, %p224
    %p226 = scmp.ne.s32.totalorder %s217, %s218
    %p227 = scmp.eq.s32.totalorder %s20, 0
    %p228 = por %p226, %p227
    %p229 = scmp.ne.s32.totalorder %s217, %s218
    %p230 = scmp.eq.s32.totalorder %s21, 1
    %p231 = por %p229, %p230
    %p233 = scmp.ne.s32.totalorder %s218, %s232
    %p234 = scmp.eq.s32.totalorder %s21, 0
    %p235 = por %p233, %p234
    %s236 = ssub.s32 %s22, %s34
    %s237 = ssub.s32 %s23, %s30
    %s238 = sor.u32 %s236, %s237
    %p239 = scmp.eq.s32.totalorder %s238, 0
    %s241 = sadd.s32 %s240, 1
    %s242 = scalar_select %p239, %s240, %s241
    %p245 = pneg %p239
    %p246 = scmp.eq.s32.totalorder %s15, 1
    %p247 = por %p245, %p246
    %p248 = scmp.ne.s32.totalorder %s240, %s243
    %p249 = scmp.eq.s32.totalorder %s15, 0
    %p250 = por %p248, %p249
    %p251 = scmp.ne.s32.totalorder %s240, %s243
    %p252 = scmp.eq.s32.totalorder %s20, 1
    %p253 = por %p251, %p252
    %p254 = scmp.ne.s32.totalorder %s243, %s244
    %p255 = scmp.eq.s32.totalorder %s20, 0
    %p256 = por %p254, %p255
    %p257 = scmp.ne.s32.totalorder %s243, %s244
    %p258 = scmp.eq.s32.totalorder %s21, 1
    %p259 = por %p257, %p258
    %p261 = scmp.ne.s32.totalorder %s244, %s260
    %p262 = scmp.eq.s32.totalorder %s21, 0
    %p263 = por %p261, %p262
    %p264 = scmp.le.s32.totalorder 1, %s15
    %p265 = scmp.lt.s32.totalorder %s15, 3
    %p266 = pnand %p264, %p265
    %p267 = pneg %p266
    // Predicated region
    $region9: #{latent_injection_transformer.21} parent=5 // pred_check
      _
    $region10: #{latent_injection_transformer.21} parent=5 // pred_check_branch
      %269 = sbr.rel (%p266) target = $region12
    $region11: #{latent_injection_transformer.21} parent=5 // pred_region
      %s270 = ssub.s32 %s15, 1
      // Predicated region
      $region13: #{latent_injection_transformer.21} parent=11 // pred_check
        %p271 = pneg %p102
      $region14: #{latent_injection_transformer.21} parent=11 // pred_check_branch
        %273 = sbr.rel (%p271) target = $region16
      $region15: #{latent_injection_transformer.21} parent=11 // pred_region
        _
      $region16: #{latent_injection_transformer.21} parent=11 // pred_fallthru
        _
      // Predicated region
      $region17: #{latent_injection_transformer.21} parent=11 // pred_check
        %p274 = pneg %p123
      $region18: #{latent_injection_transformer.21} parent=11 // pred_check_branch
        %276 = sbr.rel (%p274) target = $region20
      $region19: #{latent_injection_transformer.21} parent=11 // pred_region
        _
      $region20: #{latent_injection_transformer.21} parent=11 // pred_fallthru
        _
      // Predicated region
      $region21: #{latent_injection_transformer.21} parent=11 // pred_check
        %p277 = pneg %p144
      $region22: #{latent_injection_transformer.21} parent=11 // pred_check_branch
        %279 = sbr.rel (%p277) target = $region24
      $region23: #{latent_injection_transformer.21} parent=11 // pred_region
        _
      $region24: #{latent_injection_transformer.21} parent=11 // pred_fallthru
        _
      // Predicated region
      $region25: #{latent_injection_transformer.21} parent=11 // pred_check
        %p280 = pneg %p165
      $region26: #{latent_injection_transformer.21} parent=11 // pred_check_branch
        %282 = sbr.rel (%p280) target = $region28
      $region27: #{latent_injection_transformer.21} parent=11 // pred_region
        _
      $region28: #{latent_injection_transformer.21} parent=11 // pred_fallthru
        _
      // Predicated region
      $region29: #{latent_injection_transformer.21} parent=11 // pred_check
        %p283 = pneg %p186
      $region30: #{latent_injection_transformer.21} parent=11 // pred_check_branch
        %285 = sbr.rel (%p283) target = $region32
      $region31: #{latent_injection_transformer.21} parent=11 // pred_region
        _
      $region32: #{latent_injection_transformer.21} parent=11 // pred_fallthru
        _
      // Predicated region
      $region33: #{latent_injection_transformer.21} parent=11 // pred_check
        %p286 = pneg %p207
      $region34: #{latent_injection_transformer.21} parent=11 // pred_check_branch
        %288 = sbr.rel (%p286) target = $region36
      $region35: #{latent_injection_transformer.21} parent=11 // pred_region
        _
      $region36: #{latent_injection_transformer.21} parent=11 // pred_fallthru
        _
      // Predicated region
      $region37: #{latent_injection_transformer.21} parent=11 // pred_check
        %p289 = pneg %p228
      $region38: #{latent_injection_transformer.21} parent=11 // pred_check_branch
        %291 = sbr.rel (%p289) target = $region40
      $region39: #{latent_injection_transformer.21} parent=11 // pred_region
        _
      $region40: #{latent_injection_transformer.21} parent=11 // pred_fallthru
        _
    $region12: #{latent_injection_transformer.21} parent=5 // pred_fallthru
      _
    %p292 = scmp.lt.s32.totalorder %s15, 2
    // Predicated region
    $region41: #{latent_injection_transformer.21} parent=5 // pred_check
      %p293 = pneg %p292
    $region42: #{latent_injection_transformer.21} parent=5 // pred_check_branch
      %295 = sbr.rel (%p293) target = $region44
    $region43: #{latent_injection_transformer.21} parent=5 // pred_region
      // Predicated region
      $region45: #{latent_injection_transformer.21} parent=43 // pred_check
        %p296 = pneg %p49
      $region46: #{latent_injection_transformer.21} parent=43 // pred_check_branch
        %298 = sbr.rel (%p296) target = $region48
      $region47: #{latent_injection_transformer.21} parent=43 // pred_region
        %s299 = smul.u32 2, %s23
        %p300 = scmp.lt.s32.totalorder %s22, 1
        %s301 = scalar_select %p300, %s22, 1
        %p302 = scmp.lt.s32.totalorder %s299, 1
        %s303 = scalar_select %p302, %s299, 1
        %s304 = smul.addr %s301, 2
        %s305 = sadd.s32 %s303, %s304
        %s306 = smul.addr %s305, 8
        %s307 = scalar_lea.vmem %s0, %s306
        %s308 = smul.u32 2, %s23
      $region48: #{latent_injection_transformer.21} parent=43 // pred_fallthru
        _
      // Predicated region
      $region49: #{latent_injection_transformer.21} parent=43 // pred_check
        %p309 = pneg %p75
      $region50: #{latent_injection_transformer.21} parent=43 // pred_check_branch
        %311 = sbr.rel (%p309) target = $region52
      $region51: #{latent_injection_transformer.21} parent=43 // pred_region
        %p312 = scmp.lt.s32.totalorder %s22, 1
        %s313 = scalar_select %p312, %s22, 1
        %s314 = smul.addr %s313, 2
        %s315 = smul.addr %s314, 8
        %s316 = scalar_lea.vmem %s1, %s315
      $region52: #{latent_injection_transformer.21} parent=43 // pred_fallthru
        _
    $region44: #{latent_injection_transformer.21} parent=5 // pred_fallthru
      _
    %p317 = scmp.le.s32.totalorder 1, %s15
    %p318 = scmp.lt.s32.totalorder %s15, 3
    %p319 = pnand %p317, %p318
    %p320 = pneg %p319
    // Predicated region
    $region53: #{latent_injection_transformer.21} parent=5 // pred_check
      _
    $region54: #{latent_injection_transformer.21} parent=5 // pred_check_branch
      %322 = sbr.rel (%p319) target = $region56
    $region55: #{latent_injection_transformer.21} parent=5 // pred_region
      %s323 = ssub.s32 %s15, 1
      %s324 = smul.u32 2, %s25
      %p325 = scmp.lt.s32.totalorder %s24, 1
      %s326 = scalar_select %p325, %s24, 1
      %p327 = scmp.lt.s32.totalorder %s324, 1
      %s328 = scalar_select %p327, %s324, 1
      %s329 = smul.addr %s326, 2
      %s330 = sadd.s32 %s328, %s329
      %s331 = smul.addr %s330, 8
      %s332 = scalar_lea.vmem %s0, %s331
      %p333 = pneg %p55
      %p334 = pneg %p52
      %p335 = scmp.lt.s32.totalorder %s24, 1
      %s336 = scalar_select %p335, %s24, 1
      %s337 = smul.addr %s336, 2
      %s338 = smul.addr %s337, 8
      %s339 = scalar_lea.vmem %s1, %s338
      %p340 = pneg %p81
      %p341 = pneg %p78
      %p342 = pneg %p102
      %p343 = pneg %p99
      %p344 = pneg %p123
      %p345 = pneg %p120
      %p346 = pneg %p144
      %p347 = pneg %p141
      %p348 = pneg %p165
      %p349 = pneg %p162
      %p350 = pneg %p186
      %p351 = pneg %p183
      %p352 = pneg %p207
      %p353 = pneg %p204
      %p354 = pneg %p228
      %p355 = pneg %p225
      %p356 = pneg %p256
      %p357 = pneg %p253
      %s358 = smul.u32 2, %s25
      %p359 = scmp.lt.s32.totalorder %s24, 1
      %s360 = scalar_select %p359, %s24, 1
      %p361 = scmp.lt.s32.totalorder %s358, 1
      %s362 = scalar_select %p361, %s358, 1
      %s363 = smul.addr %s360, 2
      %s364 = sadd.s32 %s362, %s363
      %s365 = smul.addr %s364, 8
      %s366 = scalar_lea.vmem %s9, %s365
      %s367 = smul.u32 2, %s25
      %p368 = scmp.lt.s32.totalorder %s24, 1
      %s369 = scalar_select %p368, %s24, 1
      %p370 = scmp.lt.s32.totalorder %s367, 1
      %s371 = scalar_select %p370, %s367, 1
      %s372 = smul.addr %s369, 2
      %s373 = sadd.s32 %s371, %s372
      %s374 = smul.addr %s373, 8
      %s375 = scalar_lea.vmem %s0, %s374
      %s376 = smul.u32 2, %s25
      %p377 = scmp.lt.s32.totalorder %s24, 1
      %s378 = scalar_select %p377, %s24, 1
      %s379 = smul.addr %s378, 2
      %s380 = smul.addr %s379, 8
      %s381 = scalar_lea.vmem %s1, %s380
      %s382 = smul.u32 2, %s25
      %p383 = scmp.lt.s32.totalorder %s24, 1
      %s384 = scalar_select %p383, %s24, 1
      %p385 = scmp.lt.s32.totalorder %s382, 1
      %s386 = scalar_select %p385, %s382, 1
      %s387 = smul.addr %s384, 2
      %s388 = sadd.s32 %s386, %s387
      %s389 = smul.addr %s388, 8
      %s390 = scalar_lea.vmem %s9, %s389
      %s391 = smul.u32 2, %s25
      %v393 = vld [vmem:[%s375] sm:$0xff]
      %v394 = vld [vmem:[%s375 + $0x8] sm:$0xff]
      %v395 = vld [vmem:[%s2] sm:$0x1]
      %v396 = vld [vmem:[%s3] sm:$0x1]
      %397 = vadd.xlane.f32.xlu0 %v393
      %v398 = vpop.xlane.xlu0 %397
      %399 = vadd.xlane.f32.xlu0 %v394
      %v400 = vpop.xlane.xlu0 %399
      %v401 = vrcp.pop 128.0
      %v402 = vmul.f32 %v398, %v401
      %v403 = vmul.f32 %v400, %v401
      %v404 = vsub.f32 %v393, %v402
      %v405 = vsub.f32 %v394, %v403
      %v406 = vmul.f32 %v404, %v404
      %v407 = vmul.f32 %v405, %v405
      %408 = vadd.xlane.f32.xlu0 %v406
      %v409 = vpop.xlane.xlu0 %408
      %410 = vadd.xlane.f32.xlu0 %v407
      %v411 = vpop.xlane.xlu0 %410
      %v412 = vmul.f32 %v409, %v401
      %v413 = vmul.f32 %v411, %v401
      %v414 = vadd.f32 %v412, 1e-05
      %v415 = vadd.f32 %v413, 1e-05
      %v416 = vrsqrt.pop %v414
      %v417 = vrsqrt.pop %v415
      %v418 = vmul.f32 %v404, %v416
      %v419 = vmul.f32 %v405, %v417
      %v421 = vlaneseq
      %v422 = vshrl.u32 %v421, 7
      %v423 = vsub.s32 0, %v422
      %v424 = vrot.slane %v395, %v423
      %v426 = vmul.f32 %v418, %v424
      %v427 = vmul.f32 %v419, %v424
      %v429 = vlaneseq
      %v430 = vshrl.u32 %v429, 7
      %v431 = vsub.s32 0, %v430
      %v432 = vrot.slane %v396, %v431
      %v434 = vadd.f32 %v426, %v432
      %v435 = vadd.f32 %v427, %v432
      %v436 = vld [vmem:[%s381] sm:$0xff]
      %v437 = vld [vmem:[%s381 + $0x8] sm:$0xff]
      %v438 = vld [vmem:[%s4] sm:$0xf]
      %v439 = vld [vmem:[%s4 + $0x4] sm:$0xf]
      %v440 = vld [vmem:[%s4 + $0x8] sm:$0xf]
      %v441 = vld [vmem:[%s4 + $0xc] sm:$0xf]
      %v442 = vld [vmem:[%s4 + $0x10] sm:$0xf]
      %v443 = vld [vmem:[%s4 + $0x14] sm:$0xf]
      %v444 = vld [vmem:[%s4 + $0x18] sm:$0xf]
      %v445 = vld [vmem:[%s4 + $0x1c] sm:$0xf]
      %v446 = vld [vmem:[%s4 + $0x20] sm:$0xf]
      %v447 = vld [vmem:[%s4 + $0x24] sm:$0xf]
      %v448 = vld [vmem:[%s4 + $0x28] sm:$0xf]
      %v449 = vld [vmem:[%s4 + $0x2c] sm:$0xf]
      %v450 = vld [vmem:[%s4 + $0x30] sm:$0xf]
      %v451 = vld [vmem:[%s4 + $0x34] sm:$0xf]
      %v452 = vld [vmem:[%s4 + $0x38] sm:$0xf]
      %v453 = vld [vmem:[%s4 + $0x3c] sm:$0xf]
      %v454 = vpack.c.bf16 %v435, %v434
      %v471 = vunpack.c.l.b16 %v438
      %v472 = vunpack.c.l.b16 %v439
      %v473 = vunpack.c.l.b16 %v440
      %v474 = vunpack.c.l.b16 %v441
      %v475 = vunpack.c.l.b16 %v442
      %v476 = vunpack.c.l.b16 %v443
      %v477 = vunpack.c.l.b16 %v444
      %v478 = vunpack.c.l.b16 %v445
      %v479 = vunpack.c.l.b16 %v446
      %v480 = vunpack.c.l.b16 %v447
      %v481 = vunpack.c.l.b16 %v448
      %v482 = vunpack.c.l.b16 %v449
      %v483 = vunpack.c.l.b16 %v450
      %v484 = vunpack.c.l.b16 %v451
      %v485 = vunpack.c.l.b16 %v452
      %v486 = vunpack.c.l.b16 %v453
      %v487 = vpack.c.b16 %v472, %v471
      %v488 = vpack.c.b16 %v474, %v473
      %v489 = vpack.c.b16 %v476, %v475
      %v490 = vpack.c.b16 %v478, %v477
      %v491 = vpack.c.b16 %v480, %v479
      %v492 = vpack.c.b16 %v482, %v481
      %v493 = vpack.c.b16 %v484, %v483
      %v494 = vpack.c.b16 %v486, %v485
      %503 = vmatprep.subr.bf16.mxu0 0
      %504 = vmatpush1.bf16.msra.mxu0 %v494
      %505 = vmatprep.subr.bf16.mxu0 0
      %506 = vmatpush1.bf16.msra.mxu0 %v493
      %507 = vmatprep.subr.bf16.mxu0 0
      %508 = vmatpush1.bf16.msra.mxu0 %v492
      %509 = vmatprep.subr.bf16.mxu0 0
      %510 = vmatpush1.bf16.msra.mxu0 %v491
      %511 = vmatprep.subr.bf16.mxu0 0
      %512 = vmatpush1.bf16.msra.mxu0 %v490
      %513 = vmatprep.subr.bf16.mxu0 0
      %514 = vmatpush1.bf16.msra.mxu0 %v489
      %515 = vmatprep.subr.bf16.mxu0 0
      %516 = vmatpush1.bf16.msra.mxu0 %v488
      %517 = vmatprep.subr.bf16.mxu0 0
      %518 = vmatpush1.bf16.msra.mxu0 %v487
      %519 = vmatprep.subr.bf16.mxu0 0
      %520 = vmatpush2.bf16.msra.mxu0 0
      %521 = vmatprep.subr.bf16.mxu0 0
      %522 = vmatpush2.bf16.msra.mxu0 0
      %523 = vmatprep.subr.bf16.mxu0 0
      %524 = vmatpush2.bf16.msra.mxu0 0
      %525 = vmatprep.subr.bf16.mxu0 0
      %526 = vmatpush2.bf16.msra.mxu0 0
      %527 = vmatprep.subr.bf16.mxu0 0
      %528 = vmatpush2.bf16.msra.mxu0 0
      %529 = vmatprep.subr.bf16.mxu0 0
      %530 = vmatpush2.bf16.msra.mxu0 0
      %531 = vmatprep.subr.bf16.mxu0 0
      %532 = vmatpush2.bf16.msra.mxu0 0
      %533 = vmatprep.subr.bf16.mxu0 0
      %534 = vmatpush2.bf16.msra.mxu0 0
      %535 = vmatprep.mubr.bf16.mxu0 0
      %536 = vmatmul.mubr.bf16.gmra.mxu0 %v454
      %v537 = vpop.f32.mrf.mxu0
      %v538 = vadd.f32 0.0, %v537
      %v539 = vpop.f32.mrf.mxu0
      %v540 = vpop.f32.mrf.mxu0
      %v541 = vadd.f32 0.0, %v540
      %v542 = vpop.f32.mrf.mxu0
      %543 = vdwg.mxu0
      %v544 = vpack.c.bf16 %v541, %v538
      %v545 = vld [vmem:[%s5] sm:$0xf]
      %v546 = vld [vmem:[%s5 + $0x4] sm:$0xf]
      %v547 = vld [vmem:[%s5 + $0x8] sm:$0xf]
      %v548 = vld [vmem:[%s5 + $0xc] sm:$0xf]
      %v549 = vld [vmem:[%s5 + $0x10] sm:$0xf]
      %v550 = vld [vmem:[%s5 + $0x14] sm:$0xf]
      %v551 = vld [vmem:[%s5 + $0x18] sm:$0xf]
      %v552 = vld [vmem:[%s5 + $0x1c] sm:$0xf]
      %v553 = vld [vmem:[%s5 + $0x20] sm:$0xf]
      %v554 = vld [vmem:[%s5 + $0x24] sm:$0xf]
      %v555 = vld [vmem:[%s5 + $0x28] sm:$0xf]
      %v556 = vld [vmem:[%s5 + $0x2c] sm:$0xf]
      %v557 = vld [vmem:[%s5 + $0x30] sm:$0xf]
      %v558 = vld [vmem:[%s5 + $0x34] sm:$0xf]
      %v559 = vld [vmem:[%s5 + $0x38] sm:$0xf]
      %v560 = vld [vmem:[%s5 + $0x3c] sm:$0xf]
      %v561 = vpack.c.bf16 %v437, %v436
      %v578 = vunpack.c.l.b16 %v545
      %v579 = vunpack.c.l.b16 %v546
      %v580 = vunpack.c.l.b16 %v547
      %v581 = vunpack.c.l.b16 %v548
      %v582 = vunpack.c.l.b16 %v549
      %v583 = vunpack.c.l.b16 %v550
      %v584 = vunpack.c.l.b16 %v551
      %v585 = vunpack.c.l.b16 %v552
      %v586 = vunpack.c.l.b16 %v553
      %v587 = vunpack.c.l.b16 %v554
      %v588 = vunpack.c.l.b16 %v555
      %v589 = vunpack.c.l.b16 %v556
      %v590 = vunpack.c.l.b16 %v557
      %v591 = vunpack.c.l.b16 %v558
      %v592 = vunpack.c.l.b16 %v559
      %v593 = vunpack.c.l.b16 %v560
      %v594 = vpack.c.b16 %v579, %v578
      %v595 = vpack.c.b16 %v581, %v580
      %v596 = vpack.c.b16 %v583, %v582
      %v597 = vpack.c.b16 %v585, %v584
      %v598 = vpack.c.b16 %v587, %v586
      %v599 = vpack.c.b16 %v589, %v588
      %v600 = vpack.c.b16 %v591, %v590
      %v601 = vpack.c.b16 %v593, %v592
      %610 = vmatprep.subr.bf16.mxu0 0
      %611 = vmatpush1.bf16.msra.mxu0 %v601
      %612 = vmatprep.subr.bf16.mxu0 0
      %613 = vmatpush1.bf16.msra.mxu0 %v600
      %614 = vmatprep.subr.bf16.mxu0 0
      %615 = vmatpush1.bf16.msra.mxu0 %v599
      %616 = vmatprep.subr.bf16.mxu0 0
      %617 = vmatpush1.bf16.msra.mxu0 %v598
      %618 = vmatprep.subr.bf16.mxu0 0
      %619 = vmatpush1.bf16.msra.mxu0 %v597
      %620 = vmatprep.subr.bf16.mxu0 0
      %621 = vmatpush1.bf16.msra.mxu0 %v596
      %622 = vmatprep.subr.bf16.mxu0 0
      %623 = vmatpush1.bf16.msra.mxu0 %v595
      %624 = vmatprep.subr.bf16.mxu0 0
      %625 = vmatpush1.bf16.msra.mxu0 %v594
      %626 = vmatprep.subr.bf16.mxu0 0
      %627 = vmatpush2.bf16.msra.mxu0 0
      %628 = vmatprep.subr.bf16.mxu0 0
      %629 = vmatpush2.bf16.msra.mxu0 0
      %630 = vmatprep.subr.bf16.mxu0 0
      %631 = vmatpush2.bf16.msra.mxu0 0
      %632 = vmatprep.subr.bf16.mxu0 0
      %633 = vmatpush2.bf16.msra.mxu0 0
      %634 = vmatprep.subr.bf16.mxu0 0
      %635 = vmatpush2.bf16.msra.mxu0 0
      %636 = vmatprep.subr.bf16.mxu0 0
      %637 = vmatpush2.bf16.msra.mxu0 0
      %638 = vmatprep.subr.bf16.mxu0 0
      %639 = vmatpush2.bf16.msra.mxu0 0
      %640 = vmatprep.subr.bf16.mxu0 0
      %641 = vmatpush2.bf16.msra.mxu0 0
      %642 = vmatprep.mubr.bf16.mxu0 0
      %643 = vmatmul.mubr.bf16.gmra.mxu0 %v561
      %v644 = vpop.f32.mrf.mxu0
      %v645 = vadd.f32 0.0, %v644
      %v646 = vpop.f32.mrf.mxu0
      %v647 = vpop.f32.mrf.mxu0
      %v648 = vadd.f32 0.0, %v647
      %v649 = vpop.f32.mrf.mxu0
      %650 = vdwg.mxu0
      %v651 = vpack.c.bf16 %v648, %v645
      %v652 = vld [vmem:[%s6] sm:$0xf]
      %v653 = vld [vmem:[%s6 + $0x4] sm:$0xf]
      %v654 = vld [vmem:[%s6 + $0x8] sm:$0xf]
      %v655 = vld [vmem:[%s6 + $0xc] sm:$0xf]
      %v656 = vld [vmem:[%s6 + $0x10] sm:$0xf]
      %v657 = vld [vmem:[%s6 + $0x14] sm:$0xf]
      %v658 = vld [vmem:[%s6 + $0x18] sm:$0xf]
      %v659 = vld [vmem:[%s6 + $0x1c] sm:$0xf]
      %v660 = vld [vmem:[%s6 + $0x20] sm:$0xf]
      %v661 = vld [vmem:[%s6 + $0x24] sm:$0xf]
      %v662 = vld [vmem:[%s6 + $0x28] sm:$0xf]
      %v663 = vld [vmem:[%s6 + $0x2c] sm:$0xf]
      %v664 = vld [vmem:[%s6 + $0x30] sm:$0xf]
      %v665 = vld [vmem:[%s6 + $0x34] sm:$0xf]
      %v666 = vld [vmem:[%s6 + $0x38] sm:$0xf]
      %v667 = vld [vmem:[%s6 + $0x3c] sm:$0xf]
      %v684 = vunpack.c.l.b16 %v652
      %v685 = vunpack.c.l.b16 %v653
      %v686 = vunpack.c.l.b16 %v654
      %v687 = vunpack.c.l.b16 %v655
      %v688 = vunpack.c.l.b16 %v656
      %v689 = vunpack.c.l.b16 %v657
      %v690 = vunpack.c.l.b16 %v658
      %v691 = vunpack.c.l.b16 %v659
      %v692 = vunpack.c.l.b16 %v660
      %v693 = vunpack.c.l.b16 %v661
      %v694 = vunpack.c.l.b16 %v662
      %v695 = vunpack.c.l.b16 %v663
      %v696 = vunpack.c.l.b16 %v664
      %v697 = vunpack.c.l.b16 %v665
      %v698 = vunpack.c.l.b16 %v666
      %v699 = vunpack.c.l.b16 %v667
      %v700 = vpack.c.b16 %v685, %v684
      %v701 = vpack.c.b16 %v687, %v686
      %v702 = vpack.c.b16 %v689, %v688
      %v703 = vpack.c.b16 %v691, %v690
      %v704 = vpack.c.b16 %v693, %v692
      %v705 = vpack.c.b16 %v695, %v694
      %v706 = vpack.c.b16 %v697, %v696
      %v707 = vpack.c.b16 %v699, %v698
      %716 = vmatprep.subr.bf16.mxu0 0
      %717 = vmatpush1.bf16.msra.mxu0 %v707
      %718 = vmatprep.subr.bf16.mxu0 0
      %719 = vmatpush1.bf16.msra.mxu0 %v706
      %720 = vmatprep.subr.bf16.mxu0 0
      %721 = vmatpush1.bf16.msra.mxu0 %v705
      %722 = vmatprep.subr.bf16.mxu0 0
      %723 = vmatpush1.bf16.msra.mxu0 %v704
      %724 = vmatprep.subr.bf16.mxu0 0
      %725 = vmatpush1.bf16.msra.mxu0 %v703
      %726 = vmatprep.subr.bf16.mxu0 0
      %727 = vmatpush1.bf16.msra.mxu0 %v702
      %728 = vmatprep.subr.bf16.mxu0 0
      %729 = vmatpush1.bf16.msra.mxu0 %v701
      %730 = vmatprep.subr.bf16.mxu0 0
      %731 = vmatpush1.bf16.msra.mxu0 %v700
      %732 = vmatprep.subr.bf16.mxu0 0
      %733 = vmatpush2.bf16.msra.mxu0 0
      %734 = vmatprep.subr.bf16.mxu0 0
      %735 = vmatpush2.bf16.msra.mxu0 0
      %736 = vmatprep.subr.bf16.mxu0 0
      %737 = vmatpush2.bf16.msra.mxu0 0
      %738 = vmatprep.subr.bf16.mxu0 0
      %739 = vmatpush2.bf16.msra.mxu0 0
      %740 = vmatprep.subr.bf16.mxu0 0
      %741 = vmatpush2.bf16.msra.mxu0 0
      %742 = vmatprep.subr.bf16.mxu0 0
      %743 = vmatpush2.bf16.msra.mxu0 0
      %744 = vmatprep.subr.bf16.mxu0 0
      %745 = vmatpush2.bf16.msra.mxu0 0
      %746 = vmatprep.subr.bf16.mxu0 0
      %747 = vmatpush2.bf16.msra.mxu0 0
      %748 = vmatprep.mubr.bf16.mxu0 0
      %749 = vmatmul.mubr.bf16.gmra.mxu0 %v561
      %v750 = vpop.f32.mrf.mxu0
      %v751 = vadd.f32 0.0, %v750
      %v752 = vpop.f32.mrf.mxu0
      %v753 = vpop.f32.mrf.mxu0
      %v754 = vadd.f32 0.0, %v753
      %v755 = vpop.f32.mrf.mxu0
      %756 = vdwg.mxu0
      %v757 = vpack.c.bf16 %v754, %v751
      %vm758 = vcmask 523264
      %v760 = vsel %vm758, %v544, 0
      %v763 = vsel %vm758, %v651, 0
      %765 = vmatprep.subr.bf16.mxu0 0
      %766 = vmatpush1.bf16.xpose.msra.mxu0 0
      %767 = vmatprep.subr.bf16.mxu0 0
      %768 = vmatpush1.bf16.xpose.msra.mxu0 0
      %769 = vmatprep.subr.bf16.mxu0 0
      %770 = vmatpush1.bf16.xpose.msra.mxu0 0
      %771 = vmatprep.subr.bf16.mxu0 0
      %772 = vmatpush1.bf16.xpose.msra.mxu0 0
      %773 = vmatprep.subr.bf16.mxu0 0
      %774 = vmatpush1.bf16.xpose.msra.mxu0 0
      %775 = vmatprep.subr.bf16.mxu0 0
      %776 = vmatpush1.bf16.xpose.msra.mxu0 0
      %777 = vmatprep.subr.bf16.mxu0 0
      %778 = vmatpush1.bf16.xpose.msra.mxu0 0
      %779 = vmatprep.subr.bf16.mxu0 0
      %780 = vmatpush1.bf16.xpose.msra.mxu0 %v763
      %781 = vmatprep.subr.bf16.mxu0 0
      %782 = vmatpush2.bf16.xpose.msra.mxu0 0
      %783 = vmatprep.subr.bf16.mxu0 0
      %784 = vmatpush2.bf16.xpose.msra.mxu0 0
      %785 = vmatprep.subr.bf16.mxu0 0
      %786 = vmatpush2.bf16.xpose.msra.mxu0 0
      %787 = vmatprep.subr.bf16.mxu0 0
      %788 = vmatpush2.bf16.xpose.msra.mxu0 0
      %789 = vmatprep.subr.bf16.mxu0 0
      %790 = vmatpush2.bf16.xpose.msra.mxu0 0
      %791 = vmatprep.subr.bf16.mxu0 0
      %792 = vmatpush2.bf16.xpose.msra.mxu0 0
      %793 = vmatprep.subr.bf16.mxu0 0
      %794 = vmatpush2.bf16.xpose.msra.mxu0 0
      %795 = vmatprep.subr.bf16.mxu0 0
      %796 = vmatpush2.bf16.xpose.msra.mxu0 0
      %797 = vmatprep.mubr.bf16.mxu0 0
      %798 = vmatmul.mubr.bf16.gmra.mxu0 %v760
      %v799 = vpop.f32.mrf.mxu0
      %v800 = vadd.f32 0.0, %v799
      %v801 = vpop.f32.mrf.mxu0
      %v802 = vpop.f32.mrf.mxu0
      %v803 = vadd.f32 0.0, %v802
      %v804 = vpop.f32.mrf.mxu0
      %805 = vdwg.mxu0
      %vm806 = vcmask 130048
      %v807 = vsel %vm806, %v800, -inf
      %808 = vmax.xlane.f32.xlu0 %v807
      %v809 = vpop.xlane.xlu0 %808
      %v810 = vsel %vm806, %v803, -inf
      %811 = vmax.xlane.f32.xlu0 %v810
      %v812 = vpop.xlane.xlu0 %811
      %v813 = vsub.f32 %v800, %v809
      %v814 = vsub.f32 %v803, %v812
      %v815 = vmul.f32 %v813, 1.442695
      %v816 = vpow.pop %v815
      %v817 = vmul.f32 %v814, 1.442695
      %v818 = vpow.pop %v817
      %v819 = vsel %vm806, %v816, 0.0
      %820 = vadd.xlane.f32.xlu0 %v819
      %v821 = vpop.xlane.xlu0 %820
      %v822 = vsel %vm806, %v818, 0.0
      %823 = vadd.xlane.f32.xlu0 %v822
      %v824 = vpop.xlane.xlu0 %823
      %v825 = vrcp.pop %v821
      %v826 = vrcp.pop %v824
      %v827 = vmul.f32 %v816, %v825
      %v828 = vmul.f32 %v818, %v826
      %v829 = vpack.c.bf16 %v828, %v827
      %v831 = vsel %vm806, %v829, 0
      %833 = vmatprep.subr.bf16.mxu0 0
      %834 = vmatpush1.bf16.msra.mxu0 0
      %835 = vmatprep.subr.bf16.mxu0 0
      %836 = vmatpush1.bf16.msra.mxu0 0
      %837 = vmatprep.subr.bf16.mxu0 0
      %838 = vmatpush1.bf16.msra.mxu0 0
      %839 = vmatprep.subr.bf16.mxu0 0
      %840 = vmatpush1.bf16.msra.mxu0 0
      %841 = vmatprep.subr.bf16.mxu0 0
      %842 = vmatpush1.bf16.msra.mxu0 0
      %843 = vmatprep.subr.bf16.mxu0 0
      %844 = vmatpush1.bf16.msra.mxu0 0
      %845 = vmatprep.subr.bf16.mxu0 0
      %846 = vmatpush1.bf16.msra.mxu0 0
      %847 = vmatprep.subr.bf16.mxu0 0
      %848 = vmatpush1.bf16.msra.mxu0 %v757
      %849 = vmatprep.subr.bf16.mxu0 0
      %850 = vmatpush2.bf16.msra.mxu0 0
      %851 = vmatprep.subr.bf16.mxu0 0
      %852 = vmatpush2.bf16.msra.mxu0 0
      %853 = vmatprep.subr.bf16.mxu0 0
      %854 = vmatpush2.bf16.msra.mxu0 0
      %855 = vmatprep.subr.bf16.mxu0 0
      %856 = vmatpush2.bf16.msra.mxu0 0
      %857 = vmatprep.subr.bf16.mxu0 0
      %858 = vmatpush2.bf16.msra.mxu0 0
      %859 = vmatprep.subr.bf16.mxu0 0
      %860 = vmatpush2.bf16.msra.mxu0 0
      %861 = vmatprep.subr.bf16.mxu0 0
      %862 = vmatpush2.bf16.msra.mxu0 0
      %863 = vmatprep.subr.bf16.mxu0 0
      %864 = vmatpush2.bf16.msra.mxu0 0
      %865 = vmatprep.mubr.bf16.mxu0 0
      %866 = vmatmul.mubr.bf16.gmra.mxu0 %v831
      %v867 = vpop.f32.mrf.mxu0
      %v868 = vadd.f32 0.0, %v867
      %v869 = vpop.f32.mrf.mxu0
      %v870 = vpop.f32.mrf.mxu0
      %v871 = vadd.f32 0.0, %v870
      %v872 = vpop.f32.mrf.mxu0
      %873 = vdwg.mxu0
      %v874 = vpack.c.bf16 %v871, %v868
      %v876 = vunpack.c.l.b16 %v874
      %v877 = vunpack.c.h.b16 %v874
      %v878 = vpack.c.b16 %v876, %v876
      %v879 = vpack.c.b16 %v877, %v877
      %vm882 = vcmask 519168
      %883 = vst.msk [vmem:[#allocation2] sm:$0xf] %vm882, %v878
      %884 = vst.msk [vmem:[#allocation2 + $0x4] sm:$0xf] %vm882, %v879
      %886 = vrot.lane.b32.xlu0 %v544, 64
      %v887 = vpop.permute.xlu0 %886
      %889 = vrot.lane.b32.xlu0 %v651, 64
      %v890 = vpop.permute.xlu0 %889
      %v892 = vsel %vm758, %v887, 0
      %v895 = vsel %vm758, %v890, 0
      %897 = vmatprep.subr.bf16.mxu0 0
      %898 = vmatpush1.bf16.xpose.msra.mxu0 0
      %899 = vmatprep.subr.bf16.mxu0 0
      %900 = vmatpush1.bf16.xpose.msra.mxu0 0
      %901 = vmatprep.subr.bf16.mxu0 0
      %902 = vmatpush1.bf16.xpose.msra.mxu0 0
      %903 = vmatprep.subr.bf16.mxu0 0
      %904 = vmatpush1.bf16.xpose.msra.mxu0 0
      %905 = vmatprep.subr.bf16.mxu0 0
      %906 = vmatpush1.bf16.xpose.msra.mxu0 0
      %907 = vmatprep.subr.bf16.mxu0 0
      %908 = vmatpush1.bf16.xpose.msra.mxu0 0
      %909 = vmatprep.subr.bf16.mxu0 0
      %910 = vmatpush1.bf16.xpose.msra.mxu0 0
      %911 = vmatprep.subr.bf16.mxu0 0
      %912 = vmatpush1.bf16.xpose.msra.mxu0 %v895
      %913 = vmatprep.subr.bf16.mxu0 0
      %914 = vmatpush2.bf16.xpose.msra.mxu0 0
      %915 = vmatprep.subr.bf16.mxu0 0
      %916 = vmatpush2.bf16.xpose.msra.mxu0 0
      %917 = vmatprep.subr.bf16.mxu0 0
      %918 = vmatpush2.bf16.xpose.msra.mxu0 0
      %919 = vmatprep.subr.bf16.mxu0 0
      %920 = vmatpush2.bf16.xpose.msra.mxu0 0
      %921 = vmatprep.subr.bf16.mxu0 0
      %922 = vmatpush2.bf16.xpose.msra.mxu0 0
      %923 = vmatprep.subr.bf16.mxu0 0
      %924 = vmatpush2.bf16.xpose.msra.mxu0 0
      %925 = vmatprep.subr.bf16.mxu0 0
      %926 = vmatpush2.bf16.xpose.msra.mxu0 0
      %927 = vmatprep.subr.bf16.mxu0 0
      %928 = vmatpush2.bf16.xpose.msra.mxu0 0
      %929 = vmatprep.mubr.bf16.mxu0 0
      %930 = vmatmul.mubr.bf16.gmra.mxu0 %v892
      %v931 = vpop.f32.mrf.mxu0
      %v932 = vadd.f32 0.0, %v931
      %v933 = vpop.f32.mrf.mxu0
      %v934 = vpop.f32.mrf.mxu0
      %v935 = vadd.f32 0.0, %v934
      %v936 = vpop.f32.mrf.mxu0
      %937 = vdwg.mxu0
      %v938 = vsel %vm806, %v932, -inf
      %939 = vmax.xlane.f32.xlu0 %v938
      %v940 = vpop.xlane.xlu0 %939
      %v941 = vsel %vm806, %v935, -inf
      %942 = vmax.xlane.f32.xlu0 %v941
      %v943 = vpop.xlane.xlu0 %942
      %v944 = vsub.f32 %v932, %v940
      %v945 = vsub.f32 %v935, %v943
      %v946 = vmul.f32 %v944, 1.442695
      %v947 = vpow.pop %v946
      %v948 = vmul.f32 %v945, 1.442695
      %v949 = vpow.pop %v948
      %v950 = vsel %vm806, %v947, 0.0
      %951 = vadd.xlane.f32.xlu0 %v950
      %v952 = vpop.xlane.xlu0 %951
      %v953 = vsel %vm806, %v949, 0.0
      %954 = vadd.xlane.f32.xlu0 %v953
      %v955 = vpop.xlane.xlu0 %954
      %v956 = vrcp.pop %v952
      %v957 = vrcp.pop %v955
      %v958 = vmul.f32 %v947, %v956
      %v959 = vmul.f32 %v949, %v957
      %v960 = vpack.c.bf16 %v959, %v958
      %962 = vrot.lane.b32.xlu0 %v757, 64
      %v963 = vpop.permute.xlu0 %962
      %v966 = vsel %vm806, %v960, 0
      %968 = vmatprep.subr.bf16.mxu0 0
      %969 = vmatpush1.bf16.msra.mxu0 0
      %970 = vmatprep.subr.bf16.mxu0 0
      %971 = vmatpush1.bf16.msra.mxu0 0
      %972 = vmatprep.subr.bf16.mxu0 0
      %973 = vmatpush1.bf16.msra.mxu0 0
      %974 = vmatprep.subr.bf16.mxu0 0
      %975 = vmatpush1.bf16.msra.mxu0 0
      %976 = vmatprep.subr.bf16.mxu0 0
      %977 = vmatpush1.bf16.msra.mxu0 0
      %978 = vmatprep.subr.bf16.mxu0 0
      %979 = vmatpush1.bf16.msra.mxu0 0
      %980 = vmatprep.subr.bf16.mxu0 0
      %981 = vmatpush1.bf16.msra.mxu0 0
      %982 = vmatprep.subr.bf16.mxu0 0
      %983 = vmatpush1.bf16.msra.mxu0 %v963
      %984 = vmatprep.subr.bf16.mxu0 0
      %985 = vmatpush2.bf16.msra.mxu0 0
      %986 = vmatprep.subr.bf16.mxu0 0
      %987 = vmatpush2.bf16.msra.mxu0 0
      %988 = vmatprep.subr.bf16.mxu0 0
      %989 = vmatpush2.bf16.msra.mxu0 0
      %990 = vmatprep.subr.bf16.mxu0 0
      %991 = vmatpush2.bf16.msra.mxu0 0
      %992 = vmatprep.subr.bf16.mxu0 0
      %993 = vmatpush2.bf16.msra.mxu0 0
      %994 = vmatprep.subr.bf16.mxu0 0
      %995 = vmatpush2.bf16.msra.mxu0 0
      %996 = vmatprep.subr.bf16.mxu0 0
      %997 = vmatpush2.bf16.msra.mxu0 0
      %998 = vmatprep.subr.bf16.mxu0 0
      %999 = vmatpush2.bf16.msra.mxu0 0
      %1000 = vmatprep.mubr.bf16.mxu0 0
      %1001 = vmatmul.mubr.bf16.gmra.mxu0 %v966
      %v1002 = vpop.f32.mrf.mxu0
      %v1003 = vadd.f32 0.0, %v1002
      %v1004 = vpop.f32.mrf.mxu0
      %v1005 = vpop.f32.mrf.mxu0
      %v1006 = vadd.f32 0.0, %v1005
      %v1007 = vpop.f32.mrf.mxu0
      %1008 = vdwg.mxu0
      %v1009 = vpack.c.bf16 %v1006, %v1003
      %v1011 = vunpack.c.l.b16 %v1009
      %v1012 = vunpack.c.h.b16 %v1009
      %v1013 = vpack.c.b16 %v1011, %v1011
      %v1014 = vpack.c.b16 %v1012, %v1012
      %1015 = vrot.lane.b32.xlu0 %v1013, 64
      %v1016 = vpop.permute.xlu0 %1015
      %1017 = vrot.lane.b32.xlu0 %v1014, 64
      %v1018 = vpop.permute.xlu0 %1017
      %vm1021 = vcmask 1043968
      %1022 = vst.msk [vmem:[#allocation2] sm:$0xf] %vm1021, %v1016
      %1023 = vst.msk [vmem:[#allocation2 + $0x4] sm:$0xf] %vm1021, %v1018
      %v1024 = vld [vmem:[%s8] sm:$0x1]
      %v1026 = vlaneseq
      %v1027 = vshrl.u32 %v1026, 7
      %v1028 = vsub.s32 0, %v1027
      %v1029 = vrot.slane %v1024, %v1028
      %v1031 = vadd.f32 %v393, %v1029
      %v1032 = vadd.f32 %v394, %v1029
      %v1033 = vld [vmem:[#allocation2] sm:$0xf]
      %v1034 = vld [vmem:[#allocation2 + $0x4] sm:$0xf]
      %v1035 = vld [vmem:[%s7] sm:$0xf]
      %v1036 = vld [vmem:[%s7 + $0x4] sm:$0xf]
      %v1037 = vld [vmem:[%s7 + $0x8] sm:$0xf]
      %v1038 = vld [vmem:[%s7 + $0xc] sm:$0xf]
      %v1039 = vld [vmem:[%s7 + $0x10] sm:$0xf]
      %v1040 = vld [vmem:[%s7 + $0x14] sm:$0xf]
      %v1041 = vld [vmem:[%s7 + $0x18] sm:$0xf]
      %v1042 = vld [vmem:[%s7 + $0x1c] sm:$0xf]
      %v1043 = vld [vmem:[%s7 + $0x20] sm:$0xf]
      %v1044 = vld [vmem:[%s7 + $0x24] sm:$0xf]
      %v1045 = vld [vmem:[%s7 + $0x28] sm:$0xf]
      %v1046 = vld [vmem:[%s7 + $0x2c] sm:$0xf]
      %v1047 = vld [vmem:[%s7 + $0x30] sm:$0xf]
      %v1048 = vld [vmem:[%s7 + $0x34] sm:$0xf]
      %v1049 = vld [vmem:[%s7 + $0x38] sm:$0xf]
      %v1050 = vld [vmem:[%s7 + $0x3c] sm:$0xf]
      %v1053 = vunpack.c.l.b16 %v1033
      %v1054 = vunpack.c.l.b16 %v1034
      %v1055 = vpack.c.b16 %v1054, %v1053
      %v1073 = vunpack.c.l.b16 %v1035
      %v1074 = vunpack.c.l.b16 %v1036
      %v1075 = vunpack.c.l.b16 %v1037
      %v1076 = vunpack.c.l.b16 %v1038
      %v1077 = vunpack.c.l.b16 %v1039
      %v1078 = vunpack.c.l.b16 %v1040
      %v1079 = vunpack.c.l.b16 %v1041
      %v1080 = vunpack.c.l.b16 %v1042
      %v1081 = vunpack.c.l.b16 %v1043
      %v1082 = vunpack.c.l.b16 %v1044
      %v1083 = vunpack.c.l.b16 %v1045
      %v1084 = vunpack.c.l.b16 %v1046
      %v1085 = vunpack.c.l.b16 %v1047
      %v1086 = vunpack.c.l.b16 %v1048
      %v1087 = vunpack.c.l.b16 %v1049
      %v1088 = vunpack.c.l.b16 %v1050
      %v1089 = vpack.c.b16 %v1074, %v1073
      %v1090 = vpack.c.b16 %v1076, %v1075
      %v1091 = vpack.c.b16 %v1078, %v1077
      %v1092 = vpack.c.b16 %v1080, %v1079
      %v1093 = vpack.c.b16 %v1082, %v1081
      %v1094 = vpack.c.b16 %v1084, %v1083
      %v1095 = vpack.c.b16 %v1086, %v1085
      %v1096 = vpack.c.b16 %v1088, %v1087
      %1105 = vmatprep.subr.bf16.mxu0 0
      %1106 = vmatpush1.bf16.msra.mxu0 %v1096
      %1107 = vmatprep.subr.bf16.mxu0 0
      %1108 = vmatpush1.bf16.msra.mxu0 %v1095
      %1109 = vmatprep.subr.bf16.mxu0 0
      %1110 = vmatpush1.bf16.msra.mxu0 %v1094
      %1111 = vmatprep.subr.bf16.mxu0 0
      %1112 = vmatpush1.bf16.msra.mxu0 %v1093
      %1113 = vmatprep.subr.bf16.mxu0 0
      %1114 = vmatpush1.bf16.msra.mxu0 %v1092
      %1115 = vmatprep.subr.bf16.mxu0 0
      %1116 = vmatpush1.bf16.msra.mxu0 %v1091
      %1117 = vmatprep.subr.bf16.mxu0 0
      %1118 = vmatpush1.bf16.msra.mxu0 %v1090
      %1119 = vmatprep.subr.bf16.mxu0 0
      %1120 = vmatpush1.bf16.msra.mxu0 %v1089
      %1121 = vmatprep.subr.bf16.mxu0 0
      %1122 = vmatpush2.bf16.msra.mxu0 0
      %1123 = vmatprep.subr.bf16.mxu0 0
      %1124 = vmatpush2.bf16.msra.mxu0 0
      %1125 = vmatprep.subr.bf16.mxu0 0
      %1126 = vmatpush2.bf16.msra.mxu0 0
      %1127 = vmatprep.subr.bf16.mxu0 0
      %1128 = vmatpush2.bf16.msra.mxu0 0
      %1129 = vmatprep.subr.bf16.mxu0 0
      %1130 = vmatpush2.bf16.msra.mxu0 0
      %1131 = vmatprep.subr.bf16.mxu0 0
      %1132 = vmatpush2.bf16.msra.mxu0 0
      %1133 = vmatprep.subr.bf16.mxu0 0
      %1134 = vmatpush2.bf16.msra.mxu0 0
      %1135 = vmatprep.subr.bf16.mxu0 0
      %1136 = vmatpush2.bf16.msra.mxu0 0
      %1137 = vmatprep.mubr.bf16.mxu0 0
      %1138 = vmatmul.mubr.bf16.gmra.mxu0 %v1055
      %v1139 = vpop.f32.mrf.mxu0
      %v1140 = vadd.f32 0.0, %v1139
      %v1141 = vpop.f32.mrf.mxu0
      %v1142 = vpop.f32.mrf.mxu0
      %v1143 = vadd.f32 0.0, %v1142
      %v1144 = vpop.f32.mrf.mxu0
      %1145 = vdwg.mxu0
      %v1146 = vadd.f32 %v1031, %v1140
      %v1147 = vadd.f32 %v1032, %v1143
      %1148 = vst [vmem:[%s390] sm:$0xff] %v1146
      %1149 = vst [vmem:[%s390 + $0x8] sm:$0xff] %v1147
      %s1150 = smul.u32 2, %s25
      %p1151 = scmp.lt.s32.totalorder %s24, 1
      %s1152 = scalar_select %p1151, %s24, 1
      %p1153 = scmp.lt.s32.totalorder %s1150, 1
      %s1154 = scalar_select %p1153, %s1150, 1
      %s1155 = smul.addr %s1152, 2
      %s1156 = sadd.s32 %s1154, %s1155
      %s1157 = smul.addr %s1156, 8
      %s1158 = scalar_lea.vmem %s9, %s1157
      // Predicated region
      $region57: #{latent_injection_transformer.21} parent=55 // pred_check
        %p1159 = pneg %p253
      $region58: #{latent_injection_transformer.21} parent=55 // pred_check_branch
        %1161 = sbr.rel (%p1159) target = $region60
      $region59: #{latent_injection_transformer.21} parent=55 // pred_region
        %s1162 = smul.u32 2, %s25
      $region60: #{latent_injection_transformer.21} parent=55 // pred_fallthru
        _
    $region56: #{latent_injection_transformer.21} parent=5 // pred_fallthru
      _
    %p1163 = scmp.le.s32.totalorder 2, %s15
    // Predicated region
    $region61: #{latent_injection_transformer.21} parent=5 // pred_check
      %p1164 = pneg %p1163
    $region62: #{latent_injection_transformer.21} parent=5 // pred_check_branch
      %1166 = sbr.rel (%p1164) target = $region64
    $region63: #{latent_injection_transformer.21} parent=5 // pred_region
      %s1167 = ssub.s32 %s15, 2
      // Predicated region
      $region65: #{latent_injection_transformer.21} parent=63 // pred_check
        %p1168 = pneg %p259
      $region66: #{latent_injection_transformer.21} parent=63 // pred_check_branch
        %1170 = sbr.rel (%p1168) target = $region68
      $region67: #{latent_injection_transformer.21} parent=63 // pred_region
        %s1171 = smul.u32 2, %s27
        %p1172 = scmp.lt.s32.totalorder %s26, 1
        %s1173 = scalar_select %p1172, %s26, 1
        %p1174 = scmp.lt.s32.totalorder %s1171, 1
        %s1175 = scalar_select %p1174, %s1171, 1
        %s1176 = smul.addr %s1173, 2
        %s1177 = sadd.s32 %s1175, %s1176
        %s1178 = smul.addr %s1177, 8
        %s1179 = scalar_lea.vmem %s9, %s1178
      $region68: #{latent_injection_transformer.21} parent=63 // pred_fallthru
        _
    $region64: #{latent_injection_transformer.21} parent=5 // pred_fallthru
      _
  $region6: #{latent_injection_transformer.21} parent=0 // loop_footer
    %s19 = sadd.s32 1, %s15
  $region7: #{latent_injection_transformer.21} parent=0 // loop_footer_branch
    %14 = sbr.rel target = $region3
  $region8: #{latent_injection_transformer.21} parent=0 // loop_exit
    _

// kernel: latent_injection_transformer.18
$region0: #{latent_injection_transformer.18}
  #allocation0 [shape = 'u32[]', space=smem, size = 0x4, offset = 0x4, fixed_abs, tag = 'smem constant byte address 0x4 - core index']
  #allocation1 [shape = 'u32[144,128]{1,0:T(1,128)}', space=vmem, size = 0x12000, scoped, tag = 'internal scratch']
  #allocation2 [shape = 'bf16[32,128]{1,0:T(8,128)(2,1)}', space=vmem, size = 0x2000, scoped, tag = 'scratch operand']
  #allocation3 [shape = 'f32[32,128]{1,0:T(8,128)}', space=vmem, size = 0x4000, scoped, tag = 'scratch operand']
  %s0 = inlined_call_operand.vmem [shape: f32[32,128], index: 0, kind: input, shape index: {}]
  %s1 = inlined_call_operand.vmem [shape: f32[1,128], index: 1, kind: input, shape index: {}]
  %s2 = inlined_call_operand.vmem [shape: f32[1,128], index: 2, kind: input, shape index: {}]
  %s3 = inlined_call_operand.vmem [shape: bf16[128,512], index: 3, kind: input, shape index: {}]
  %s4 = inlined_call_operand.vmem [shape: f32[1,512], index: 4, kind: input, shape index: {}]
  %s5 = inlined_call_operand.vmem [shape: bf16[128,512], index: 5, kind: input, shape index: {}]
  %s6 = inlined_call_operand.vmem [shape: f32[1,512], index: 6, kind: input, shape index: {}]
  %s7 = inlined_call_operand.vmem [shape: bf16[512,128], index: 7, kind: input, shape index: {}]
  %s8 = inlined_call_operand.vmem [shape: f32[1,128], index: 8, kind: input, shape index: {}]
  %s9 = inlined_call_operand.vmem [shape: f32[32,128], index: 9, kind: output, shape index: {}]
  %s10 = sld [smem:[#allocation0]]
  $region54: #{latent_injection_transformer.18} parent=0
    _
  %s12 = ssub.s32 1, %s10
  %s13 = scalar_select 0, %s12, %s10
  // Predicated region
  $region2: #{latent_injection_transformer.18} parent=0 // pred_check
    _
  $region3: #{latent_injection_transformer.18} parent=0 // pred_check_branch
    %15 = sbr.rel (0) target = $region5
  $region4: #{latent_injection_transformer.18} parent=0 // pred_region
    _
  $region5: #{latent_injection_transformer.18} parent=0 // pred_fallthru
    _
  // Predicated region
  $region6: #{latent_injection_transformer.18} parent=0 // pred_check
    _
  $region7: #{latent_injection_transformer.18} parent=0 // pred_check_branch
    %17 = sbr.rel (0) target = $region9
  $region8: #{latent_injection_transformer.18} parent=0 // pred_region
    _
  $region9: #{latent_injection_transformer.18} parent=0 // pred_fallthru
    _
  // Predicated region
  $region10: #{latent_injection_transformer.18} parent=0 // pred_check
    _
  $region11: #{latent_injection_transformer.18} parent=0 // pred_check_branch
    %19 = sbr.rel (0) target = $region13
  $region12: #{latent_injection_transformer.18} parent=0 // pred_region
    _
  $region13: #{latent_injection_transformer.18} parent=0 // pred_fallthru
    _
  // Predicated region
  $region14: #{latent_injection_transformer.18} parent=0 // pred_check
    _
  $region15: #{latent_injection_transformer.18} parent=0 // pred_check_branch
    %21 = sbr.rel (0) target = $region17
  $region16: #{latent_injection_transformer.18} parent=0 // pred_region
    _
  $region17: #{latent_injection_transformer.18} parent=0 // pred_fallthru
    _
  // Predicated region
  $region18: #{latent_injection_transformer.18} parent=0 // pred_check
    _
  $region19: #{latent_injection_transformer.18} parent=0 // pred_check_branch
    %23 = sbr.rel (0) target = $region21
  $region20: #{latent_injection_transformer.18} parent=0 // pred_region
    _
  $region21: #{latent_injection_transformer.18} parent=0 // pred_fallthru
    _
  // Predicated region
  $region22: #{latent_injection_transformer.18} parent=0 // pred_check
    _
  $region23: #{latent_injection_transformer.18} parent=0 // pred_check_branch
    %25 = sbr.rel (0) target = $region25
  $region24: #{latent_injection_transformer.18} parent=0 // pred_region
    _
  $region25: #{latent_injection_transformer.18} parent=0 // pred_fallthru
    _
  // Predicated region
  $region26: #{latent_injection_transformer.18} parent=0 // pred_check
    _
  $region27: #{latent_injection_transformer.18} parent=0 // pred_check_branch
    %27 = sbr.rel (0) target = $region29
  $region28: #{latent_injection_transformer.18} parent=0 // pred_region
    _
  $region29: #{latent_injection_transformer.18} parent=0 // pred_fallthru
    _
  // Predicated region
  $region30: #{latent_injection_transformer.18} parent=0 // pred_check
    _
  $region31: #{latent_injection_transformer.18} parent=0 // pred_check_branch
    %29 = sbr.rel (0) target = $region33
  $region32: #{latent_injection_transformer.18} parent=0 // pred_region
    _
  $region33: #{latent_injection_transformer.18} parent=0 // pred_fallthru
    _
  // Predicated region
  $region34: #{latent_injection_transformer.18} parent=0 // pred_check
    _
  $region35: #{latent_injection_transformer.18} parent=0 // pred_check_branch
    %31 = sbr.rel (0) target = $region37
  $region36: #{latent_injection_transformer.18} parent=0 // pred_region
    _
  $region37: #{latent_injection_transformer.18} parent=0 // pred_fallthru
    _
  %p33 = scmp.eq.s32.totalorder 0, 0
  // Predicated region
  $region38: #{latent_injection_transformer.18} parent=0 // pred_check
    %p34 = pneg %p33
  $region39: #{latent_injection_transformer.18} parent=0 // pred_check_branch
    %36 = sbr.rel (%p34) target = $region41
  $region40: #{latent_injection_transformer.18} parent=0 // pred_region
    %v37 = vld [vmem:[%s0] sm:$0xff]
    %v38 = vld [vmem:[%s0 + $0x8] sm:$0xff]
    %v39 = vld [vmem:[%s0 + $0x10] sm:$0xff]
    %v40 = vld [vmem:[%s0 + $0x18] sm:$0xff]
    %v41 = vld [vmem:[%s1] sm:$0x1]
    %v42 = vld [vmem:[%s2] sm:$0x1]
    %43 = vadd.xlane.f32.xlu0 %v37
    %v44 = vpop.xlane.xlu0 %43
    %45 = vadd.xlane.f32.xlu0 %v38
    %v46 = vpop.xlane.xlu0 %45
    %47 = vadd.xlane.f32.xlu0 %v39
    %v48 = vpop.xlane.xlu0 %47
    %49 = vadd.xlane.f32.xlu0 %v40
    %v50 = vpop.xlane.xlu0 %49
    %v51 = vrcp.pop 128.0
    %v52 = vmul.f32 %v44, %v51
    %v53 = vmul.f32 %v46, %v51
    %v54 = vmul.f32 %v48, %v51
    %v55 = vmul.f32 %v50, %v51
    %v56 = vsub.f32 %v37, %v52
    %v57 = vsub.f32 %v38, %v53
    %v58 = vsub.f32 %v39, %v54
    %v59 = vsub.f32 %v40, %v55
    %v60 = vmul.f32 %v56, %v56
    %v61 = vmul.f32 %v57, %v57
    %v62 = vmul.f32 %v58, %v58
    %v63 = vmul.f32 %v59, %v59
    %64 = vadd.xlane.f32.xlu0 %v60
    %v65 = vpop.xlane.xlu0 %64
    %66 = vadd.xlane.f32.xlu0 %v61
    %v67 = vpop.xlane.xlu0 %66
    %68 = vadd.xlane.f32.xlu0 %v62
    %v69 = vpop.xlane.xlu0 %68
    %70 = vadd.xlane.f32.xlu0 %v63
    %v71 = vpop.xlane.xlu0 %70
    %v72 = vmul.f32 %v65, %v51
    %v73 = vmul.f32 %v67, %v51
    %v74 = vmul.f32 %v69, %v51
    %v75 = vmul.f32 %v71, %v51
    %v76 = vadd.f32 %v72, 1e-05
    %v77 = vadd.f32 %v73, 1e-05
    %v78 = vadd.f32 %v74, 1e-05
    %v79 = vadd.f32 %v75, 1e-05
    %v80 = vrsqrt.pop %v76
    %v81 = vrsqrt.pop %v77
    %v82 = vrsqrt.pop %v78
    %v83 = vrsqrt.pop %v79
    %v84 = vmul.f32 %v56, %v80
    %v85 = vmul.f32 %v57, %v81
    %v86 = vmul.f32 %v58, %v82
    %v87 = vmul.f32 %v59, %v83
    %v89 = vlaneseq
    %v90 = vshrl.u32 %v89, 7
    %v91 = vsub.s32 0, %v90
    %v92 = vrot.slane %v41, %v91
    %v94 = vmul.f32 %v84, %v92
    %v95 = vmul.f32 %v85, %v92
    %v96 = vmul.f32 %v86, %v92
    %v97 = vmul.f32 %v87, %v92
    %v99 = vlaneseq
    %v100 = vshrl.u32 %v99, 7
    %v101 = vsub.s32 0, %v100
    %v102 = vrot.slane %v42, %v101
    %v104 = vadd.f32 %v94, %v102
    %v105 = vadd.f32 %v95, %v102
    %v106 = vadd.f32 %v96, %v102
    %v107 = vadd.f32 %v97, %v102
    %v108 = vpack.c.bf16 %v105, %v104
    %v109 = vpack.c.bf16 %v107, %v106
    %v112 = vunpack.c.l.b16 %v108
    %v113 = vunpack.c.h.b16 %v108
    %v114 = vunpack.c.l.b16 %v109
    %v115 = vunpack.c.h.b16 %v109
    %v116 = vpack.c.b16 %v112, %v112
    %v117 = vpack.c.b16 %v113, %v113
    %v118 = vpack.c.b16 %v114, %v114
    %v119 = vpack.c.b16 %v115, %v115
    %124 = vst [vmem:[#allocation2] sm:$0xf] %v116
    %125 = vst [vmem:[#allocation2 + $0x4] sm:$0xf] %v117
    %126 = vst [vmem:[#allocation2 + $0x8] sm:$0xf] %v118
    %127 = vst [vmem:[#allocation2 + $0xc] sm:$0xf] %v119
    %128 = vst [vmem:[#allocation3] sm:$0xff] 0.0
    %129 = vst [vmem:[#allocation3 + $0x8] sm:$0xff] 0.0
    %130 = vst [vmem:[#allocation3 + $0x10] sm:$0xff] 0.0
    %131 = vst [vmem:[#allocation3 + $0x18] sm:$0xff] 0.0
  $region41: #{latent_injection_transformer.18} parent=0 // pred_fallthru
    _
  %v132 = vld [vmem:[#allocation2] sm:$0xf]
  %v133 = vld [vmem:[#allocation2 + $0x4] sm:$0xf]
  %v134 = vld [vmem:[#allocation2 + $0x8] sm:$0xf]
  %v135 = vld [vmem:[#allocation2 + $0xc] sm:$0xf]
  %v136 = vld [vmem:[%s3] sm:$0xff]
  %v137 = vld [vmem:[%s3 + $0x8] sm:$0xff]
  %v138 = vld [vmem:[%s3 + $0x10] sm:$0xff]
  %v139 = vld [vmem:[%s3 + $0x18] sm:$0xff]
  %v140 = vld [vmem:[%s3 + $0x20] sm:$0xff]
  %v141 = vld [vmem:[%s3 + $0x28] sm:$0xff]
  %v142 = vld [vmem:[%s3 + $0x30] sm:$0xff]
  %v143 = vld [vmem:[%s3 + $0x38] sm:$0xff]
  %v144 = vld [vmem:[%s3 + $0x40] sm:$0xff]
  %v145 = vld [vmem:[%s3 + $0x48] sm:$0xff]
  %v146 = vld [vmem:[%s3 + $0x50] sm:$0xff]
  %v147 = vld [vmem:[%s3 + $0x58] sm:$0xff]
  %v148 = vld [vmem:[%s3 + $0x60] sm:$0xff]
  %v149 = vld [vmem:[%s3 + $0x68] sm:$0xff]
  %v150 = vld [vmem:[%s3 + $0x70] sm:$0xff]
  %v151 = vld [vmem:[%s3 + $0x78] sm:$0xff]
  %v152 = vld [vmem:[%s3 + $0x80] sm:$0xff]
  %v153 = vld [vmem:[%s3 + $0x88] sm:$0xff]
  %v154 = vld [vmem:[%s3 + $0x90] sm:$0xff]
  %v155 = vld [vmem:[%s3 + $0x98] sm:$0xff]
  %v156 = vld [vmem:[%s3 + $0xa0] sm:$0xff]
  %v157 = vld [vmem:[%s3 + $0xa8] sm:$0xff]
  %v158 = vld [vmem:[%s3 + $0xb0] sm:$0xff]
  %v159 = vld [vmem:[%s3 + $0xb8] sm:$0xff]
  %v160 = vld [vmem:[%s3 + $0xc0] sm:$0xff]
  %v161 = vld [vmem:[%s3 + $0xc8] sm:$0xff]
  %v162 = vld [vmem:[%s3 + $0xd0] sm:$0xff]
  %v163 = vld [vmem:[%s3 + $0xd8] sm:$0xff]
  %v164 = vld [vmem:[%s3 + $0xe0] sm:$0xff]
  %v165 = vld [vmem:[%s3 + $0xe8] sm:$0xff]
  %v166 = vld [vmem:[%s3 + $0xf0] sm:$0xff]
  %v167 = vld [vmem:[%s3 + $0xf8] sm:$0xff]
  %v168 = vld [vmem:[%s4] sm:$0xf]
  %v170 = vlaneseq
  %v171 = vshrl.u32 %v170, 7
  %v172 = vsub.s32 0, %v171
  %v173 = vrot.slane %v168, %v172
  %v174 = vlaneseq
  %v175 = vshrl.u32 %v174, 7
  %v176 = vsub.s32 1, %v175
  %v177 = vrot.slane %v168, %v176
  %v178 = vlaneseq
  %v179 = vshrl.u32 %v178, 7
  %v180 = vsub.s32 2, %v179
  %v181 = vrot.slane %v168, %v180
  %v182 = vlaneseq
  %v183 = vshrl.u32 %v182, 7
  %v184 = vsub.s32 3, %v183
  %v185 = vrot.slane %v168, %v184
  %v194 = vunpack.c.l.b16 %v132
  %v195 = vunpack.c.l.b16 %v133
  %v196 = vunpack.c.l.b16 %v134
  %v197 = vunpack.c.l.b16 %v135
  %v198 = vpack.c.b16 %v195, %v194
  %v199 = vpack.c.b16 %v197, %v196
  %v234 = vunpack.c.l.b16 %v136
  %v235 = vunpack.c.h.b16 %v136
  %v236 = vunpack.c.l.b16 %v137
  %v237 = vunpack.c.h.b16 %v137
  %v238 = vunpack.c.l.b16 %v138
  %v239 = vunpack.c.h.b16 %v138
  %v240 = vunpack.c.l.b16 %v139
  %v241 = vunpack.c.h.b16 %v139
  %v242 = vunpack.c.l.b16 %v140
  %v243 = vunpack.c.h.b16 %v140
  %v244 = vunpack.c.l.b16 %v141
  %v245 = vunpack.c.h.b16 %v141
  %v246 = vunpack.c.l.b16 %v142
  %v247 = vunpack.c.h.b16 %v142
  %v248 = vunpack.c.l.b16 %v143
  %v249 = vunpack.c.h.b16 %v143
  %v250 = vunpack.c.l.b16 %v144
  %v251 = vunpack.c.h.b16 %v144
  %v252 = vunpack.c.l.b16 %v145
  %v253 = vunpack.c.h.b16 %v145
  %v254 = vunpack.c.l.b16 %v146
  %v255 = vunpack.c.h.b16 %v146
  %v256 = vunpack.c.l.b16 %v147
  %v257 = vunpack.c.h.b16 %v147
  %v258 = vunpack.c.l.b16 %v148
  %v259 = vunpack.c.h.b16 %v148
  %v260 = vunpack.c.l.b16 %v149
  %v261 = vunpack.c.h.b16 %v149
  %v262 = vunpack.c.l.b16 %v150
  %v263 = vunpack.c.h.b16 %v150
  %v264 = vunpack.c.l.b16 %v151
  %v265 = vunpack.c.h.b16 %v151
  %v266 = vunpack.c.l.b16 %v152
  %v267 = vunpack.c.h.b16 %v152
  %v268 = vunpack.c.l.b16 %v153
  %v269 = vunpack.c.h.b16 %v153
  %v270 = vunpack.c.l.b16 %v154
  %v271 = vunpack.c.h.b16 %v154
  %v272 = vunpack.c.l.b16 %v155
  %v273 = vunpack.c.h.b16 %v155
  %v274 = vunpack.c.l.b16 %v156
  %v275 = vunpack.c.h.b16 %v156
  %v276 = vunpack.c.l.b16 %v157
  %v277 = vunpack.c.h.b16 %v157
  %v278 = vunpack.c.l.b16 %v158
  %v279 = vunpack.c.h.b16 %v158
  %v280 = vunpack.c.l.b16 %v159
  %v281 = vunpack.c.h.b16 %v159
  %v282 = vunpack.c.l.b16 %v160
  %v283 = vunpack.c.h.b16 %v160
  %v284 = vunpack.c.l.b16 %v161
  %v285 = vunpack.c.h.b16 %v161
  %v286 = vunpack.c.l.b16 %v162
  %v287 = vunpack.c.h.b16 %v162
  %v288 = vunpack.c.l.b16 %v163
  %v289 = vunpack.c.h.b16 %v163
  %v290 = vunpack.c.l.b16 %v164
  %v291 = vunpack.c.h.b16 %v164
  %v292 = vunpack.c.l.b16 %v165
  %v293 = vunpack.c.h.b16 %v165
  %v294 = vunpack.c.l.b16 %v166
  %v295 = vunpack.c.h.b16 %v166
  %v296 = vunpack.c.l.b16 %v167
  %v297 = vunpack.c.h.b16 %v167
  %v298 = vpack.c.b16 %v238, %v234
  %v299 = vpack.c.b16 %v239, %v235
  %v300 = vpack.c.b16 %v240, %v236
  %v301 = vpack.c.b16 %v241, %v237
  %v302 = vpack.c.b16 %v246, %v242
  %v303 = vpack.c.b16 %v247, %v243
  %v304 = vpack.c.b16 %v248, %v244
  %v305 = vpack.c.b16 %v249, %v245
  %v306 = vpack.c.b16 %v254, %v250
  %v307 = vpack.c.b16 %v255, %v251
  %v308 = vpack.c.b16 %v256, %v252
  %v309 = vpack.c.b16 %v257, %v253
  %v310 = vpack.c.b16 %v262, %v258
  %v311 = vpack.c.b16 %v263, %v259
  %v312 = vpack.c.b16 %v264, %v260
  %v313 = vpack.c.b16 %v265, %v261
  %v314 = vpack.c.b16 %v270, %v266
  %v315 = vpack.c.b16 %v271, %v267
  %v316 = vpack.c.b16 %v272, %v268
  %v317 = vpack.c.b16 %v273, %v269
  %v318 = vpack.c.b16 %v278, %v274
  %v319 = vpack.c.b16 %v279, %v275
  %v320 = vpack.c.b16 %v280, %v276
  %v321 = vpack.c.b16 %v281, %v277
  %v322 = vpack.c.b16 %v286, %v282
  %v323 = vpack.c.b16 %v287, %v283
  %v324 = vpack.c.b16 %v288, %v284
  %v325 = vpack.c.b16 %v289, %v285
  %v326 = vpack.c.b16 %v294, %v290
  %v327 = vpack.c.b16 %v295, %v291
  %v328 = vpack.c.b16 %v296, %v292
  %v329 = vpack.c.b16 %v297, %v293
  %362 = vmatprep.subr.bf16.mxu0 %v327
  %363 = vmatpush1.bf16.msra.mxu0 %v326
  %364 = vmatprep.subr.bf16.mxu0 %v323
  %365 = vmatpush1.bf16.msra.mxu0 %v322
  %366 = vmatprep.subr.bf16.mxu0 %v319
  %367 = vmatpush1.bf16.msra.mxu0 %v318
  %368 = vmatprep.subr.bf16.mxu0 %v315
  %369 = vmatpush1.bf16.msra.mxu0 %v314
  %370 = vmatprep.subr.bf16.mxu0 %v311
  %371 = vmatpush1.bf16.msra.mxu0 %v310
  %372 = vmatprep.subr.bf16.mxu0 %v307
  %373 = vmatpush1.bf16.msra.mxu0 %v306
  %374 = vmatprep.subr.bf16.mxu0 %v303
  %375 = vmatpush1.bf16.msra.mxu0 %v302
  %376 = vmatprep.subr.bf16.mxu0 %v299
  %377 = vmatpush1.bf16.msra.mxu0 %v298
  %378 = vmatprep.subr.bf16.mxu0 0
  %379 = vmatpush2.bf16.msra.mxu0 0
  %380 = vmatprep.subr.bf16.mxu0 0
  %381 = vmatpush2.bf16.msra.mxu0 0
  %382 = vmatprep.subr.bf16.mxu0 0
  %383 = vmatpush2.bf16.msra.mxu0 0
  %384 = vmatprep.subr.bf16.mxu0 0
  %385 = vmatpush2.bf16.msra.mxu0 0
  %386 = vmatprep.subr.bf16.mxu0 0
  %387 = vmatpush2.bf16.msra.mxu0 0
  %388 = vmatprep.subr.bf16.mxu0 0
  %389 = vmatpush2.bf16.msra.mxu0 0
  %390 = vmatprep.subr.bf16.mxu0 0
  %391 = vmatpush2.bf16.msra.mxu0 0
  %392 = vmatprep.subr.bf16.mxu0 0
  %393 = vmatpush2.bf16.msra.mxu0 0
  %394 = vmatprep.mubr.bf16.mxu0 0
  %395 = vmatmul.mubr.bf16.gmra.mxu0 %v198
  %v396 = vpop.f32.mrf.mxu0
  %v397 = vadd.f32 %v173, %v396
  %v398 = vpop.f32.mrf.mxu0
  %v399 = vadd.f32 %v177, %v398
  %v400 = vpop.f32.mrf.mxu0
  %v401 = vadd.f32 %v173, %v400
  %v402 = vpop.f32.mrf.mxu0
  %v403 = vadd.f32 %v177, %v402
  %404 = vmatprep.mubr.bf16.mxu0 0
  %405 = vmatmul.mubr.bf16.gmra.mxu0 %v199
  %v406 = vpop.f32.mrf.mxu0
  %v407 = vadd.f32 %v173, %v406
  %v408 = vpop.f32.mrf.mxu0
  %v409 = vadd.f32 %v177, %v408
  %v410 = vpop.f32.mrf.mxu0
  %v411 = vadd.f32 %v173, %v410
  %v412 = vpop.f32.mrf.mxu0
  %v413 = vadd.f32 %v177, %v412
  %414 = vdwg.mxu0
  %415 = vmatprep.subr.bf16.mxu0 %v329
  %416 = vmatpush1.bf16.msra.mxu0 %v328
  %417 = vmatprep.subr.bf16.mxu0 %v325
  %418 = vmatpush1.bf16.msra.mxu0 %v324
  %419 = vmatprep.subr.bf16.mxu0 %v321
  %420 = vmatpush1.bf16.msra.mxu0 %v320
  %421 = vmatprep.subr.bf16.mxu0 %v317
  %422 = vmatpush1.bf16.msra.mxu0 %v316
  %423 = vmatprep.subr.bf16.mxu0 %v313
  %424 = vmatpush1.bf16.msra.mxu0 %v312
  %425 = vmatprep.subr.bf16.mxu0 %v309
  %426 = vmatpush1.bf16.msra.mxu0 %v308
  %427 = vmatprep.subr.bf16.mxu0 %v305
  %428 = vmatpush1.bf16.msra.mxu0 %v304
  %429 = vmatprep.subr.bf16.mxu0 %v301
  %430 = vmatpush1.bf16.msra.mxu0 %v300
  %431 = vmatprep.subr.bf16.mxu0 0
  %432 = vmatpush2.bf16.msra.mxu0 0
  %433 = vmatprep.subr.bf16.mxu0 0
  %434 = vmatpush2.bf16.msra.mxu0 0
  %435 = vmatprep.subr.bf16.mxu0 0
  %436 = vmatpush2.bf16.msra.mxu0 0
  %437 = vmatprep.subr.bf16.mxu0 0
  %438 = vmatpush2.bf16.msra.mxu0 0
  %439 = vmatprep.subr.bf16.mxu0 0
  %440 = vmatpush2.bf16.msra.mxu0 0
  %441 = vmatprep.subr.bf16.mxu0 0
  %442 = vmatpush2.bf16.msra.mxu0 0
  %443 = vmatprep.subr.bf16.mxu0 0
  %444 = vmatpush2.bf16.msra.mxu0 0
  %445 = vmatprep.subr.bf16.mxu0 0
  %446 = vmatpush2.bf16.msra.mxu0 0
  %447 = vmatprep.mubr.bf16.mxu0 0
  %448 = vmatmul.mubr.bf16.gmra.mxu0 %v198
  %v449 = vpop.f32.mrf.mxu0
  %v450 = vadd.f32 %v181, %v449
  %v451 = vpop.f32.mrf.mxu0
  %v452 = vadd.f32 %v185, %v451
  %v453 = vpop.f32.mrf.mxu0
  %v454 = vadd.f32 %v181, %v453
  %v455 = vpop.f32.mrf.mxu0
  %v456 = vadd.f32 %v185, %v455
  %457 = vmatprep.mubr.bf16.mxu0 0
  %458 = vmatmul.mubr.bf16.gmra.mxu0 %v199
  %v459 = vpop.f32.mrf.mxu0
  %v460 = vadd.f32 %v181, %v459
  %v461 = vpop.f32.mrf.mxu0
  %v462 = vadd.f32 %v185, %v461
  %v463 = vpop.f32.mrf.mxu0
  %v464 = vadd.f32 %v181, %v463
  %v465 = vpop.f32.mrf.mxu0
  %v466 = vadd.f32 %v185, %v465
  %467 = vdwg.mxu0
  %v468 = vld [vmem:[%s5] sm:$0xff]
  %v469 = vld [vmem:[%s5 + $0x8] sm:$0xff]
  %v470 = vld [vmem:[%s5 + $0x10] sm:$0xff]
  %v471 = vld [vmem:[%s5 + $0x18] sm:$0xff]
  %v472 = vld [vmem:[%s5 + $0x20] sm:$0xff]
  %v473 = vld [vmem:[%s5 + $0x28] sm:$0xff]
  %v474 = vld [vmem:[%s5 + $0x30] sm:$0xff]
  %v475 = vld [vmem:[%s5 + $0x38] sm:$0xff]
  %v476 = vld [vmem:[%s5 + $0x40] sm:$0xff]
  %v477 = vld [vmem:[%s5 + $0x48] sm:$0xff]
  %v478 = vld [vmem:[%s5 + $0x50] sm:$0xff]
  %v479 = vld [vmem:[%s5 + $0x58] sm:$0xff]
  %v480 = vld [vmem:[%s5 + $0x60] sm:$0xff]
  %v481 = vld [vmem:[%s5 + $0x68] sm:$0xff]
  %v482 = vld [vmem:[%s5 + $0x70] sm:$0xff]
  %v483 = vld [vmem:[%s5 + $0x78] sm:$0xff]
  %v484 = vld [vmem:[%s5 + $0x80] sm:$0xff]
  %v485 = vld [vmem:[%s5 + $0x88] sm:$0xff]
  %v486 = vld [vmem:[%s5 + $0x90] sm:$0xff]
  %v487 = vld [vmem:[%s5 + $0x98] sm:$0xff]
  %v488 = vld [vmem:[%s5 + $0xa0] sm:$0xff]
  %v489 = vld [vmem:[%s5 + $0xa8] sm:$0xff]
  %v490 = vld [vmem:[%s5 + $0xb0] sm:$0xff]
  %v491 = vld [vmem:[%s5 + $0xb8] sm:$0xff]
  %v492 = vld [vmem:[%s5 + $0xc0] sm:$0xff]
  %v493 = vld [vmem:[%s5 + $0xc8] sm:$0xff]
  %v494 = vld [vmem:[%s5 + $0xd0] sm:$0xff]
  %v495 = vld [vmem:[%s5 + $0xd8] sm:$0xff]
  %v496 = vld [vmem:[%s5 + $0xe0] sm:$0xff]
  %v497 = vld [vmem:[%s5 + $0xe8] sm:$0xff]
  %v498 = vld [vmem:[%s5 + $0xf0] sm:$0xff]
  %v499 = vld [vmem:[%s5 + $0xf8] sm:$0xff]
  %v500 = vld [vmem:[%s6] sm:$0xf]
  %v502 = vlaneseq
  %v503 = vshrl.u32 %v502, 7
  %v504 = vsub.s32 0, %v503
  %v505 = vrot.slane %v500, %v504
  %v506 = vlaneseq
  %v507 = vshrl.u32 %v506, 7
  %v508 = vsub.s32 1, %v507
  %v509 = vrot.slane %v500, %v508
  %v510 = vlaneseq
  %v511 = vshrl.u32 %v510, 7
  %v512 = vsub.s32 2, %v511
  %v513 = vrot.slane %v500, %v512
  %v514 = vlaneseq
  %v515 = vshrl.u32 %v514, 7
  %v516 = vsub.s32 3, %v515
  %v517 = vrot.slane %v500, %v516
  %v554 = vunpack.c.l.b16 %v468
  %v555 = vunpack.c.h.b16 %v468
  %v556 = vunpack.c.l.b16 %v469
  %v557 = vunpack.c.h.b16 %v469
  %v558 = vunpack.c.l.b16 %v470
  %v559 = vunpack.c.h.b16 %v470
  %v560 = vunpack.c.l.b16 %v471
  %v561 = vunpack.c.h.b16 %v471
  %v562 = vunpack.c.l.b16 %v472
  %v563 = vunpack.c.h.b16 %v472
  %v564 = vunpack.c.l.b16 %v473
  %v565 = vunpack.c.h.b16 %v473
  %v566 = vunpack.c.l.b16 %v474
  %v567 = vunpack.c.h.b16 %v474
  %v568 = vunpack.c.l.b16 %v475
  %v569 = vunpack.c.h.b16 %v475
  %v570 = vunpack.c.l.b16 %v476
  %v571 = vunpack.c.h.b16 %v476
  %v572 = vunpack.c.l.b16 %v477
  %v573 = vunpack.c.h.b16 %v477
  %v574 = vunpack.c.l.b16 %v478
  %v575 = vunpack.c.h.b16 %v478
  %v576 = vunpack.c.l.b16 %v479
  %v577 = vunpack.c.h.b16 %v479
  %v578 = vunpack.c.l.b16 %v480
  %v579 = vunpack.c.h.b16 %v480
  %v580 = vunpack.c.l.b16 %v481
  %v581 = vunpack.c.h.b16 %v481
  %v582 = vunpack.c.l.b16 %v482
  %v583 = vunpack.c.h.b16 %v482
  %v584 = vunpack.c.l.b16 %v483
  %v585 = vunpack.c.h.b16 %v483
  %v586 = vunpack.c.l.b16 %v484
  %v587 = vunpack.c.h.b16 %v484
  %v588 = vunpack.c.l.b16 %v485
  %v589 = vunpack.c.h.b16 %v485
  %v590 = vunpack.c.l.b16 %v486
  %v591 = vunpack.c.h.b16 %v486
  %v592 = vunpack.c.l.b16 %v487
  %v593 = vunpack.c.h.b16 %v487
  %v594 = vunpack.c.l.b16 %v488
  %v595 = vunpack.c.h.b16 %v488
  %v596 = vunpack.c.l.b16 %v489
  %v597 = vunpack.c.h.b16 %v489
  %v598 = vunpack.c.l.b16 %v490
  %v599 = vunpack.c.h.b16 %v490
  %v600 = vunpack.c.l.b16 %v491
  %v601 = vunpack.c.h.b16 %v491
  %v602 = vunpack.c.l.b16 %v492
  %v603 = vunpack.c.h.b16 %v492
  %v604 = vunpack.c.l.b16 %v493
  %v605 = vunpack.c.h.b16 %v493
  %v606 = vunpack.c.l.b16 %v494
  %v607 = vunpack.c.h.b16 %v494
  %v608 = vunpack.c.l.b16 %v495
  %v609 = vunpack.c.h.b16 %v495
  %v610 = vunpack.c.l.b16 %v496
  %v611 = vunpack.c.h.b16 %v496
  %v612 = vunpack.c.l.b16 %v497
  %v613 = vunpack.c.h.b16 %v497
  %v614 = vunpack.c.l.b16 %v498
  %v615 = vunpack.c.h.b16 %v498
  %v616 = vunpack.c.l.b16 %v499
  %v617 = vunpack.c.h.b16 %v499
  %v618 = vpack.c.b16 %v558, %v554
  %v619 = vpack.c.b16 %v559, %v555
  %v620 = vpack.c.b16 %v560, %v556
  %v621 = vpack.c.b16 %v561, %v557
  %v622 = vpack.c.b16 %v566, %v562
  %v623 = vpack.c.b16 %v567, %v563
  %v624 = vpack.c.b16 %v568, %v564
  %v625 = vpack.c.b16 %v569, %v565
  %v626 = vpack.c.b16 %v574, %v570
  %v627 = vpack.c.b16 %v575, %v571
  %v628 = vpack.c.b16 %v576, %v572
  %v629 = vpack.c.b16 %v577, %v573
  %v630 = vpack.c.b16 %v582, %v578
  %v631 = vpack.c.b16 %v583, %v579
  %v632 = vpack.c.b16 %v584, %v580
  %v633 = vpack.c.b16 %v585, %v581
  %v634 = vpack.c.b16 %v590, %v586
  %v635 = vpack.c.b16 %v591, %v587
  %v636 = vpack.c.b16 %v592, %v588
  %v637 = vpack.c.b16 %v593, %v589
  %v638 = vpack.c.b16 %v598, %v594
  %v639 = vpack.c.b16 %v599, %v595
  %v640 = vpack.c.b16 %v600, %v596
  %v641 = vpack.c.b16 %v601, %v597
  %v642 = vpack.c.b16 %v606, %v602
  %v643 = vpack.c.b16 %v607, %v603
  %v644 = vpack.c.b16 %v608, %v604
  %v645 = vpack.c.b16 %v609, %v605
  %v646 = vpack.c.b16 %v614, %v610
  %v647 = vpack.c.b16 %v615, %v611
  %v648 = vpack.c.b16 %v616, %v612
  %v649 = vpack.c.b16 %v617, %v613
  %682 = vmatprep.subr.bf16.mxu0 %v647
  %683 = vmatpush1.bf16.msra.mxu0 %v646
  %684 = vmatprep.subr.bf16.mxu0 %v643
  %685 = vmatpush1.bf16.msra.mxu0 %v642
  %686 = vmatprep.subr.bf16.mxu0 %v639
  %687 = vmatpush1.bf16.msra.mxu0 %v638
  %688 = vmatprep.subr.bf16.mxu0 %v635
  %689 = vmatpush1.bf16.msra.mxu0 %v634
  %690 = vmatprep.subr.bf16.mxu0 %v631
  %691 = vmatpush1.bf16.msra.mxu0 %v630
  %692 = vmatprep.subr.bf16.mxu0 %v627
  %693 = vmatpush1.bf16.msra.mxu0 %v626
  %694 = vmatprep.subr.bf16.mxu0 %v623
  %695 = vmatpush1.bf16.msra.mxu0 %v622
  %696 = vmatprep.subr.bf16.mxu0 %v619
  %697 = vmatpush1.bf16.msra.mxu0 %v618
  %698 = vmatprep.subr.bf16.mxu0 0
  %699 = vmatpush2.bf16.msra.mxu0 0
  %700 = vmatprep.subr.bf16.mxu0 0
  %701 = vmatpush2.bf16.msra.mxu0 0
  %702 = vmatprep.subr.bf16.mxu0 0
  %703 = vmatpush2.bf16.msra.mxu0 0
  %704 = vmatprep.subr.bf16.mxu0 0
  %705 = vmatpush2.bf16.msra.mxu0 0
  %706 = vmatprep.subr.bf16.mxu0 0
  %707 = vmatpush2.bf16.msra.mxu0 0
  %708 = vmatprep.subr.bf16.mxu0 0
  %709 = vmatpush2.bf16.msra.mxu0 0
  %710 = vmatprep.subr.bf16.mxu0 0
  %711 = vmatpush2.bf16.msra.mxu0 0
  %712 = vmatprep.subr.bf16.mxu0 0
  %713 = vmatpush2.bf16.msra.mxu0 0
  %714 = vmatprep.mubr.bf16.mxu0 0
  %715 = vmatmul.mubr.bf16.gmra.mxu0 %v198
  %v716 = vpop.f32.mrf.mxu0
  %v717 = vadd.f32 %v505, %v716
  %v718 = vpop.f32.mrf.mxu0
  %v719 = vadd.f32 %v509, %v718
  %v720 = vpop.f32.mrf.mxu0
  %v721 = vadd.f32 %v505, %v720
  %v722 = vpop.f32.mrf.mxu0
  %v723 = vadd.f32 %v509, %v722
  %724 = vmatprep.mubr.bf16.mxu0 0
  %725 = vmatmul.mubr.bf16.gmra.mxu0 %v199
  %v726 = vpop.f32.mrf.mxu0
  %v727 = vadd.f32 %v505, %v726
  %v728 = vpop.f32.mrf.mxu0
  %v729 = vadd.f32 %v509, %v728
  %v730 = vpop.f32.mrf.mxu0
  %v731 = vadd.f32 %v505, %v730
  %v732 = vpop.f32.mrf.mxu0
  %v733 = vadd.f32 %v509, %v732
  %734 = vdwg.mxu0
  %735 = vmatprep.subr.bf16.mxu0 %v649
  %736 = vmatpush1.bf16.msra.mxu0 %v648
  %737 = vmatprep.subr.bf16.mxu0 %v645
  %738 = vmatpush1.bf16.msra.mxu0 %v644
  %739 = vmatprep.subr.bf16.mxu0 %v641
  %740 = vmatpush1.bf16.msra.mxu0 %v640
  %741 = vmatprep.subr.bf16.mxu0 %v637
  %742 = vmatpush1.bf16.msra.mxu0 %v636
  %743 = vmatprep.subr.bf16.mxu0 %v633
  %744 = vmatpush1.bf16.msra.mxu0 %v632
  %745 = vmatprep.subr.bf16.mxu0 %v629
  %746 = vmatpush1.bf16.msra.mxu0 %v628
  %747 = vmatprep.subr.bf16.mxu0 %v625
  %748 = vmatpush1.bf16.msra.mxu0 %v624
  %749 = vmatprep.subr.bf16.mxu0 %v621
  %750 = vmatpush1.bf16.msra.mxu0 %v620
  %751 = vmatprep.subr.bf16.mxu0 0
  %752 = vmatpush2.bf16.msra.mxu0 0
  %753 = vmatprep.subr.bf16.mxu0 0
  %754 = vmatpush2.bf16.msra.mxu0 0
  %755 = vmatprep.subr.bf16.mxu0 0
  %756 = vmatpush2.bf16.msra.mxu0 0
  %757 = vmatprep.subr.bf16.mxu0 0
  %758 = vmatpush2.bf16.msra.mxu0 0
  %759 = vmatprep.subr.bf16.mxu0 0
  %760 = vmatpush2.bf16.msra.mxu0 0
  %761 = vmatprep.subr.bf16.mxu0 0
  %762 = vmatpush2.bf16.msra.mxu0 0
  %763 = vmatprep.subr.bf16.mxu0 0
  %764 = vmatpush2.bf16.msra.mxu0 0
  %765 = vmatprep.subr.bf16.mxu0 0
  %766 = vmatpush2.bf16.msra.mxu0 0
  %767 = vmatprep.mubr.bf16.mxu0 0
  %768 = vmatmul.mubr.bf16.gmra.mxu0 %v198
  %v769 = vpop.f32.mrf.mxu0
  %v770 = vadd.f32 %v513, %v769
  %v771 = vpop.f32.mrf.mxu0
  %v772 = vadd.f32 %v517, %v771
  %v773 = vpop.f32.mrf.mxu0
  %v774 = vadd.f32 %v513, %v773
  %v775 = vpop.f32.mrf.mxu0
  %v776 = vadd.f32 %v517, %v775
  %777 = vmatprep.mubr.bf16.mxu0 0
  %778 = vmatmul.mubr.bf16.gmra.mxu0 %v199
  %v779 = vpop.f32.mrf.mxu0
  %v780 = vadd.f32 %v513, %v779
  %v781 = vpop.f32.mrf.mxu0
  %v782 = vadd.f32 %v517, %v781
  %v783 = vpop.f32.mrf.mxu0
  %v784 = vadd.f32 %v513, %v783
  %v785 = vpop.f32.mrf.mxu0
  %v786 = vadd.f32 %v517, %v785
  %787 = vdwg.mxu0
  %v788 = vmul.f32 %v717, 0.5
  %v789 = vmul.f32 %v719, 0.5
  %v790 = vmul.f32 %v770, 0.5
  %v791 = vmul.f32 %v772, 0.5
  %v792 = vmul.f32 %v721, 0.5
  %v793 = vmul.f32 %v723, 0.5
  %v794 = vmul.f32 %v774, 0.5
  %v795 = vmul.f32 %v776, 0.5
  %v796 = vmul.f32 %v727, 0.5
  %v797 = vmul.f32 %v729, 0.5
  %v798 = vmul.f32 %v780, 0.5
  %v799 = vmul.f32 %v782, 0.5
  %v800 = vmul.f32 %v731, 0.5
  %v801 = vmul.f32 %v733, 0.5
  %v802 = vmul.f32 %v784, 0.5
  %v803 = vmul.f32 %v786, 0.5
  %v804 = vmul.f32 %v717, 0.044715
  %v805 = vmul.f32 %v719, 0.044715
  %v806 = vmul.f32 %v770, 0.044715
  %v807 = vmul.f32 %v772, 0.044715
  %v808 = vmul.f32 %v721, 0.044715
  %v809 = vmul.f32 %v723, 0.044715
  %v810 = vmul.f32 %v774, 0.044715
  %v811 = vmul.f32 %v776, 0.044715
  %v812 = vmul.f32 %v727, 0.044715
  %v813 = vmul.f32 %v729, 0.044715
  %v814 = vmul.f32 %v780, 0.044715
  %v815 = vmul.f32 %v782, 0.044715
  %v816 = vmul.f32 %v731, 0.044715
  %v817 = vmul.f32 %v733, 0.044715
  %v818 = vmul.f32 %v784, 0.044715
  %v819 = vmul.f32 %v786, 0.044715
  %v820 = vmul.f32 %v804, %v717
  %v821 = vmul.f32 %v805, %v719
  %v822 = vmul.f32 %v806, %v770
  %v823 = vmul.f32 %v807, %v772
  %v824 = vmul.f32 %v808, %v721
  %v825 = vmul.f32 %v809, %v723
  %v826 = vmul.f32 %v810, %v774
  %v827 = vmul.f32 %v811, %v776
  %v828 = vmul.f32 %v812, %v727
  %v829 = vmul.f32 %v813, %v729
  %v830 = vmul.f32 %v814, %v780
  %v831 = vmul.f32 %v815, %v782
  %v832 = vmul.f32 %v816, %v731
  %v833 = vmul.f32 %v817, %v733
  %v834 = vmul.f32 %v818, %v784
  %v835 = vmul.f32 %v819, %v786
  %v836 = vmul.f32 %v820, %v717
  %v837 = vmul.f32 %v821, %v719
  %v838 = vmul.f32 %v822, %v770
  %v839 = vmul.f32 %v823, %v772
  %v840 = vmul.f32 %v824, %v721
  %v841 = vmul.f32 %v825, %v723
  %v842 = vmul.f32 %v826, %v774
  %v843 = vmul.f32 %v827, %v776
  %v844 = vmul.f32 %v828, %v727
  %v845 = vmul.f32 %v829, %v729
  %v846 = vmul.f32 %v830, %v780
  %v847 = vmul.f32 %v831, %v782
  %v848 = vmul.f32 %v832, %v731
  %v849 = vmul.f32 %v833, %v733
  %v850 = vmul.f32 %v834, %v784
  %v851 = vmul.f32 %v835, %v786
  %v852 = vadd.f32 %v717, %v836
  %v853 = vadd.f32 %v719, %v837
  %v854 = vadd.f32 %v770, %v838
  %v855 = vadd.f32 %v772, %v839
  %v856 = vadd.f32 %v721, %v840
  %v857 = vadd.f32 %v723, %v841
  %v858 = vadd.f32 %v774, %v842
  %v859 = vadd.f32 %v776, %v843
  %v860 = vadd.f32 %v727, %v844
  %v861 = vadd.f32 %v729, %v845
  %v862 = vadd.f32 %v780, %v846
  %v863 = vadd.f32 %v782, %v847
  %v864 = vadd.f32 %v731, %v848
  %v865 = vadd.f32 %v733, %v849
  %v866 = vadd.f32 %v784, %v850
  %v867 = vadd.f32 %v786, %v851
  %v868 = vmul.f32 %v852, 0.7978846
  %v869 = vmul.f32 %v853, 0.7978846
  %v870 = vmul.f32 %v854, 0.7978846
  %v871 = vmul.f32 %v855, 0.7978846
  %v872 = vmul.f32 %v856, 0.7978846
  %v873 = vmul.f32 %v857, 0.7978846
  %v874 = vmul.f32 %v858, 0.7978846
  %v875 = vmul.f32 %v859, 0.7978846
  %v876 = vmul.f32 %v860, 0.7978846
  %v877 = vmul.f32 %v861, 0.7978846
  %v878 = vmul.f32 %v862, 0.7978846
  %v879 = vmul.f32 %v863, 0.7978846
  %v880 = vmul.f32 %v864, 0.7978846
  %v881 = vmul.f32 %v865, 0.7978846
  %v882 = vmul.f32 %v866, 0.7978846
  %v883 = vmul.f32 %v867, 0.7978846
  %v884 = vtanh.pop %v868
  %v885 = vtanh.pop %v869
  %v886 = vtanh.pop %v870
  %v887 = vtanh.pop %v871
  %v888 = vtanh.pop %v872
  %v889 = vtanh.pop %v873
  %v890 = vtanh.pop %v874
  %v891 = vtanh.pop %v875
  %v892 = vtanh.pop %v876
  %v893 = vtanh.pop %v877
  %v894 = vtanh.pop %v878
  %v895 = vtanh.pop %v879
  %v896 = vtanh.pop %v880
  %v897 = vtanh.pop %v881
  %v898 = vtanh.pop %v882
  %v899 = vtanh.pop %v883
  %v900 = vadd.f32 %v884, 1.0
  %v901 = vadd.f32 %v885, 1.0
  %v902 = vadd.f32 %v886, 1.0
  %v903 = vadd.f32 %v887, 1.0
  %v904 = vadd.f32 %v888, 1.0
  %v905 = vadd.f32 %v889, 1.0
  %v906 = vadd.f32 %v890, 1.0
  %v907 = vadd.f32 %v891, 1.0
  %v908 = vadd.f32 %v892, 1.0
  %v909 = vadd.f32 %v893, 1.0
  %v910 = vadd.f32 %v894, 1.0
  %v911 = vadd.f32 %v895, 1.0
  %v912 = vadd.f32 %v896, 1.0
  %v913 = vadd.f32 %v897, 1.0
  %v914 = vadd.f32 %v898, 1.0
  %v915 = vadd.f32 %v899, 1.0
  %v916 = vmul.f32 %v788, %v900
  %v917 = vmul.f32 %v789, %v901
  %v918 = vmul.f32 %v790, %v902
  %v919 = vmul.f32 %v791, %v903
  %v920 = vmul.f32 %v792, %v904
  %v921 = vmul.f32 %v793, %v905
  %v922 = vmul.f32 %v794, %v906
  %v923 = vmul.f32 %v795, %v907
  %v924 = vmul.f32 %v796, %v908
  %v925 = vmul.f32 %v797, %v909
  %v926 = vmul.f32 %v798, %v910
  %v927 = vmul.f32 %v799, %v911
  %v928 = vmul.f32 %v800, %v912
  %v929 = vmul.f32 %v801, %v913
  %v930 = vmul.f32 %v802, %v914
  %v931 = vmul.f32 %v803, %v915
  %v932 = vmul.f32 %v397, %v916
  %v933 = vmul.f32 %v399, %v917
  %v934 = vmul.f32 %v450, %v918
  %v935 = vmul.f32 %v452, %v919
  %v936 = vmul.f32 %v401, %v920
  %v937 = vmul.f32 %v403, %v921
  %v938 = vmul.f32 %v454, %v922
  %v939 = vmul.f32 %v456, %v923
  %v940 = vmul.f32 %v407, %v924
  %v941 = vmul.f32 %v409, %v925
  %v942 = vmul.f32 %v460, %v926
  %v943 = vmul.f32 %v462, %v927
  %v944 = vmul.f32 %v411, %v928
  %v945 = vmul.f32 %v413, %v929
  %v946 = vmul.f32 %v464, %v930
  %v947 = vmul.f32 %v466, %v931
  %v948 = vpack.c.bf16 %v936, %v932
  %v949 = vpack.c.bf16 %v937, %v933
  %v950 = vpack.c.bf16 %v938, %v934
  %v951 = vpack.c.bf16 %v939, %v935
  %v952 = vpack.c.bf16 %v944, %v940
  %v953 = vpack.c.bf16 %v945, %v941
  %v954 = vpack.c.bf16 %v946, %v942
  %v955 = vpack.c.bf16 %v947, %v943
  %v956 = vld [vmem:[#allocation3] sm:$0xff]
  %v957 = vld [vmem:[#allocation3 + $0x8] sm:$0xff]
  %v958 = vld [vmem:[#allocation3 + $0x10] sm:$0xff]
  %v959 = vld [vmem:[#allocation3 + $0x18] sm:$0xff]
  %v960 = vld [vmem:[%s7] sm:$0xf]
  %v961 = vld [vmem:[%s7 + $0x4] sm:$0xf]
  %v962 = vld [vmem:[%s7 + $0x8] sm:$0xf]
  %v963 = vld [vmem:[%s7 + $0xc] sm:$0xf]
  %v964 = vld [vmem:[%s7 + $0x10] sm:$0xf]
  %v965 = vld [vmem:[%s7 + $0x14] sm:$0xf]
  %v966 = vld [vmem:[%s7 + $0x18] sm:$0xf]
  %v967 = vld [vmem:[%s7 + $0x1c] sm:$0xf]
  %v968 = vld [vmem:[%s7 + $0x20] sm:$0xf]
  %v969 = vld [vmem:[%s7 + $0x24] sm:$0xf]
  %v970 = vld [vmem:[%s7 + $0x28] sm:$0xf]
  %v971 = vld [vmem:[%s7 + $0x2c] sm:$0xf]
  %v972 = vld [vmem:[%s7 + $0x30] sm:$0xf]
  %v973 = vld [vmem:[%s7 + $0x34] sm:$0xf]
  %v974 = vld [vmem:[%s7 + $0x38] sm:$0xf]
  %v975 = vld [vmem:[%s7 + $0x3c] sm:$0xf]
  %v976 = vld [vmem:[%s7 + $0x40] sm:$0xf]
  %v977 = vld [vmem:[%s7 + $0x44] sm:$0xf]
  %v978 = vld [vmem:[%s7 + $0x48] sm:$0xf]
  %v979 = vld [vmem:[%s7 + $0x4c] sm:$0xf]
  %v980 = vld [vmem:[%s7 + $0x50] sm:$0xf]
  %v981 = vld [vmem:[%s7 + $0x54] sm:$0xf]
  %v982 = vld [vmem:[%s7 + $0x58] sm:$0xf]
  %v983 = vld [vmem:[%s7 + $0x5c] sm:$0xf]
  %v984 = vld [vmem:[%s7 + $0x60] sm:$0xf]
  %v985 = vld [vmem:[%s7 + $0x64] sm:$0xf]
  %v986 = vld [vmem:[%s7 + $0x68] sm:$0xf]
  %v987 = vld [vmem:[%s7 + $0x6c] sm:$0xf]
  %v988 = vld [vmem:[%s7 + $0x70] sm:$0xf]
  %v989 = vld [vmem:[%s7 + $0x74] sm:$0xf]
  %v990 = vld [vmem:[%s7 + $0x78] sm:$0xf]
  %v991 = vld [vmem:[%s7 + $0x7c] sm:$0xf]
  %v992 = vld [vmem:[%s7 + $0x80] sm:$0xf]
  %v993 = vld [vmem:[%s7 + $0x84] sm:$0xf]
  %v994 = vld [vmem:[%s7 + $0x88] sm:$0xf]
  %v995 = vld [vmem:[%s7 + $0x8c] sm:$0xf]
  %v996 = vld [vmem:[%s7 + $0x90] sm:$0xf]
  %v997 = vld [vmem:[%s7 + $0x94] sm:$0xf]
  %v998 = vld [vmem:[%s7 + $0x98] sm:$0xf]
  %v999 = vld [vmem:[%s7 + $0x9c] sm:$0xf]
  %v1000 = vld [vmem:[%s7 + $0xa0] sm:$0xf]
  %v1001 = vld [vmem:[%s7 + $0xa4] sm:$0xf]
  %v1002 = vld [vmem:[%s7 + $0xa8] sm:$0xf]
  %v1003 = vld [vmem:[%s7 + $0xac] sm:$0xf]
  %v1004 = vld [vmem:[%s7 + $0xb0] sm:$0xf]
  %v1005 = vld [vmem:[%s7 + $0xb4] sm:$0xf]
  %v1006 = vld [vmem:[%s7 + $0xb8] sm:$0xf]
  %v1007 = vld [vmem:[%s7 + $0xbc] sm:$0xf]
  %v1008 = vld [vmem:[%s7 + $0xc0] sm:$0xf]
  %v1009 = vld [vmem:[%s7 + $0xc4] sm:$0xf]
  %v1010 = vld [vmem:[%s7 + $0xc8] sm:$0xf]
  %v1011 = vld [vmem:[%s7 + $0xcc] sm:$0xf]
  %v1012 = vld [vmem:[%s7 + $0xd0] sm:$0xf]
  %v1013 = vld [vmem:[%s7 + $0xd4] sm:$0xf]
  %v1014 = vld [vmem:[%s7 + $0xd8] sm:$0xf]
  %v1015 = vld [vmem:[%s7 + $0xdc] sm:$0xf]
  %v1016 = vld [vmem:[%s7 + $0xe0] sm:$0xf]
  %v1017 = vld [vmem:[%s7 + $0xe4] sm:$0xf]
  %v1018 = vld [vmem:[%s7 + $0xe8] sm:$0xf]
  %v1019 = vld [vmem:[%s7 + $0xec] sm:$0xf]
  %v1020 = vld [vmem:[%s7 + $0xf0] sm:$0xf]
  %v1021 = vld [vmem:[%s7 + $0xf4] sm:$0xf]
  %v1022 = vld [vmem:[%s7 + $0xf8] sm:$0xf]
  %v1023 = vld [vmem:[%s7 + $0xfc] sm:$0xf]
  %v1088 = vunpack.c.l.b16 %v960
  %v1089 = vunpack.c.l.b16 %v961
  %v1090 = vunpack.c.l.b16 %v962
  %v1091 = vunpack.c.l.b16 %v963
  %v1092 = vunpack.c.l.b16 %v964
  %v1093 = vunpack.c.l.b16 %v965
  %v1094 = vunpack.c.l.b16 %v966
  %v1095 = vunpack.c.l.b16 %v967
  %v1096 = vunpack.c.l.b16 %v968
  %v1097 = vunpack.c.l.b16 %v969
  %v1098 = vunpack.c.l.b16 %v970
  %v1099 = vunpack.c.l.b16 %v971
  %v1100 = vunpack.c.l.b16 %v972
  %v1101 = vunpack.c.l.b16 %v973
  %v1102 = vunpack.c.l.b16 %v974
  %v1103 = vunpack.c.l.b16 %v975
  %v1104 = vunpack.c.l.b16 %v976
  %v1105 = vunpack.c.l.b16 %v977
  %v1106 = vunpack.c.l.b16 %v978
  %v1107 = vunpack.c.l.b16 %v979
  %v1108 = vunpack.c.l.b16 %v980
  %v1109 = vunpack.c.l.b16 %v981
  %v1110 = vunpack.c.l.b16 %v982
  %v1111 = vunpack.c.l.b16 %v983
  %v1112 = vunpack.c.l.b16 %v984
  %v1113 = vunpack.c.l.b16 %v985
  %v1114 = vunpack.c.l.b16 %v986
  %v1115 = vunpack.c.l.b16 %v987
  %v1116 = vunpack.c.l.b16 %v988
  %v1117 = vunpack.c.l.b16 %v989
  %v1118 = vunpack.c.l.b16 %v990
  %v1119 = vunpack.c.l.b16 %v991
  %v1120 = vunpack.c.l.b16 %v992
  %v1121 = vunpack.c.l.b16 %v993
  %v1122 = vunpack.c.l.b16 %v994
  %v1123 = vunpack.c.l.b16 %v995
  %v1124 = vunpack.c.l.b16 %v996
  %v1125 = vunpack.c.l.b16 %v997
  %v1126 = vunpack.c.l.b16 %v998
  %v1127 = vunpack.c.l.b16 %v999
  %v1128 = vunpack.c.l.b16 %v1000
  %v1129 = vunpack.c.l.b16 %v1001
  %v1130 = vunpack.c.l.b16 %v1002
  %v1131 = vunpack.c.l.b16 %v1003
  %v1132 = vunpack.c.l.b16 %v1004
  %v1133 = vunpack.c.l.b16 %v1005
  %v1134 = vunpack.c.l.b16 %v1006
  %v1135 = vunpack.c.l.b16 %v1007
  %v1136 = vunpack.c.l.b16 %v1008
  %v1137 = vunpack.c.l.b16 %v1009
  %v1138 = vunpack.c.l.b16 %v1010
  %v1139 = vunpack.c.l.b16 %v1011
  %v1140 = vunpack.c.l.b16 %v1012
  %v1141 = vunpack.c.l.b16 %v1013
  %v1142 = vunpack.c.l.b16 %v1014
  %v1143 = vunpack.c.l.b16 %v1015
  %v1144 = vunpack.c.l.b16 %v1016
  %v1145 = vunpack.c.l.b16 %v1017
  %v1146 = vunpack.c.l.b16 %v1018
  %v1147 = vunpack.c.l.b16 %v1019
  %v1148 = vunpack.c.l.b16 %v1020
  %v1149 = vunpack.c.l.b16 %v1021
  %v1150 = vunpack.c.l.b16 %v1022
  %v1151 = vunpack.c.l.b16 %v1023
  %v1152 = vpack.c.b16 %v1089, %v1088
  %v1153 = vpack.c.b16 %v1091, %v1090
  %v1154 = vpack.c.b16 %v1093, %v1092
  %v1155 = vpack.c.b16 %v1095, %v1094
  %v1156 = vpack.c.b16 %v1097, %v1096
  %v1157 = vpack.c.b16 %v1099, %v1098
  %v1158 = vpack.c.b16 %v1101, %v1100
  %v1159 = vpack.c.b16 %v1103, %v1102
  %v1160 = vpack.c.b16 %v1105, %v1104
  %v1161 = vpack.c.b16 %v1107, %v1106
  %v1162 = vpack.c.b16 %v1109, %v1108
  %v1163 = vpack.c.b16 %v1111, %v1110
  %v1164 = vpack.c.b16 %v1113, %v1112
  %v1165 = vpack.c.b16 %v1115, %v1114
  %v1166 = vpack.c.b16 %v1117, %v1116
  %v1167 = vpack.c.b16 %v1119, %v1118
  %v1168 = vpack.c.b16 %v1121, %v1120
  %v1169 = vpack.c.b16 %v1123, %v1122
  %v1170 = vpack.c.b16 %v1125, %v1124
  %v1171 = vpack.c.b16 %v1127, %v1126
  %v1172 = vpack.c.b16 %v1129, %v1128
  %v1173 = vpack.c.b16 %v1131, %v1130
  %v1174 = vpack.c.b16 %v1133, %v1132
  %v1175 = vpack.c.b16 %v1135, %v1134
  %v1176 = vpack.c.b16 %v1137, %v1136
  %v1177 = vpack.c.b16 %v1139, %v1138
  %v1178 = vpack.c.b16 %v1141, %v1140
  %v1179 = vpack.c.b16 %v1143, %v1142
  %v1180 = vpack.c.b16 %v1145, %v1144
  %v1181 = vpack.c.b16 %v1147, %v1146
  %v1182 = vpack.c.b16 %v1149, %v1148
  %v1183 = vpack.c.b16 %v1151, %v1150
  %1216 = vmatprep.subr.bf16.mxu0 0
  %1217 = vmatpush1.bf16.msra.mxu0 %v1159
  %1218 = vmatprep.subr.bf16.mxu0 0
  %1219 = vmatpush1.bf16.msra.mxu0 %v1158
  %1220 = vmatprep.subr.bf16.mxu0 0
  %1221 = vmatpush1.bf16.msra.mxu0 %v1157
  %1222 = vmatprep.subr.bf16.mxu0 0
  %1223 = vmatpush1.bf16.msra.mxu0 %v1156
  %1224 = vmatprep.subr.bf16.mxu0 0
  %1225 = vmatpush1.bf16.msra.mxu0 %v1155
  %1226 = vmatprep.subr.bf16.mxu0 0
  %1227 = vmatpush1.bf16.msra.mxu0 %v1154
  %1228 = vmatprep.subr.bf16.mxu0 0
  %1229 = vmatpush1.bf16.msra.mxu0 %v1153
  %1230 = vmatprep.subr.bf16.mxu0 0
  %1231 = vmatpush1.bf16.msra.mxu0 %v1152
  %1232 = vmatprep.subr.bf16.mxu0 0
  %1233 = vmatpush2.bf16.msra.mxu0 %v1167
  %1234 = vmatprep.subr.bf16.mxu0 0
  %1235 = vmatpush2.bf16.msra.mxu0 %v1166
  %1236 = vmatprep.subr.bf16.mxu0 0
  %1237 = vmatpush2.bf16.msra.mxu0 %v1165
  %1238 = vmatprep.subr.bf16.mxu0 0
  %1239 = vmatpush2.bf16.msra.mxu0 %v1164
  %1240 = vmatprep.subr.bf16.mxu0 0
  %1241 = vmatpush2.bf16.msra.mxu0 %v1163
  %1242 = vmatprep.subr.bf16.mxu0 0
  %1243 = vmatpush2.bf16.msra.mxu0 %v1162
  %1244 = vmatprep.subr.bf16.mxu0 0
  %1245 = vmatpush2.bf16.msra.mxu0 %v1161
  %1246 = vmatprep.subr.bf16.mxu0 0
  %1247 = vmatpush2.bf16.msra.mxu0 %v1160
  %1248 = vmatprep.mubr.bf16.mxu0 %v949
  %1249 = vmatmul.mubr.bf16.gmra.mxu0 %v948
  %v1250 = vpop.f32.mrf.mxu0
  %v1251 = vadd.f32 0.0, %v1250
  %v1252 = vpop.f32.mrf.mxu0
  %v1253 = vpop.f32.mrf.mxu0
  %v1254 = vadd.f32 0.0, %v1253
  %v1255 = vpop.f32.mrf.mxu0
  %1256 = vmatprep.mubr.bf16.mxu0 %v953
  %1257 = vmatmul.mubr.bf16.gmra.mxu0 %v952
  %v1258 = vpop.f32.mrf.mxu0
  %v1259 = vadd.f32 0.0, %v1258
  %v1260 = vpop.f32.mrf.mxu0
  %v1261 = vpop.f32.mrf.mxu0
  %v1262 = vadd.f32 0.0, %v1261
  %v1263 = vpop.f32.mrf.mxu0
  %1264 = vdwg.mxu0
  %1265 = vmatprep.subr.bf16.mxu0 0
  %1266 = vmatpush1.bf16.msra.mxu0 %v1175
  %1267 = vmatprep.subr.bf16.mxu0 0
  %1268 = vmatpush1.bf16.msra.mxu0 %v1174
  %1269 = vmatprep.subr.bf16.mxu0 0
  %1270 = vmatpush1.bf16.msra.mxu0 %v1173
  %1271 = vmatprep.subr.bf16.mxu0 0
  %1272 = vmatpush1.bf16.msra.mxu0 %v1172
  %1273 = vmatprep.subr.bf16.mxu0 0
  %1274 = vmatpush1.bf16.msra.mxu0 %v1171
  %1275 = vmatprep.subr.bf16.mxu0 0
  %1276 = vmatpush1.bf16.msra.mxu0 %v1170
  %1277 = vmatprep.subr.bf16.mxu0 0
  %1278 = vmatpush1.bf16.msra.mxu0 %v1169
  %1279 = vmatprep.subr.bf16.mxu0 0
  %1280 = vmatpush1.bf16.msra.mxu0 %v1168
  %1281 = vmatprep.subr.bf16.mxu0 0
  %1282 = vmatpush2.bf16.msra.mxu0 %v1183
  %1283 = vmatprep.subr.bf16.mxu0 0
  %1284 = vmatpush2.bf16.msra.mxu0 %v1182
  %1285 = vmatprep.subr.bf16.mxu0 0
  %1286 = vmatpush2.bf16.msra.mxu0 %v1181
  %1287 = vmatprep.subr.bf16.mxu0 0
  %1288 = vmatpush2.bf16.msra.mxu0 %v1180
  %1289 = vmatprep.subr.bf16.mxu0 0
  %1290 = vmatpush2.bf16.msra.mxu0 %v1179
  %1291 = vmatprep.subr.bf16.mxu0 0
  %1292 = vmatpush2.bf16.msra.mxu0 %v1178
  %1293 = vmatprep.subr.bf16.mxu0 0
  %1294 = vmatpush2.bf16.msra.mxu0 %v1177
  %1295 = vmatprep.subr.bf16.mxu0 0
  %1296 = vmatpush2.bf16.msra.mxu0 %v1176
  %1297 = vmatprep.mubr.bf16.mxu0 %v951
  %1298 = vmatmul.mubr.bf16.gmra.mxu0 %v950
  %v1299 = vpop.f32.mrf.mxu0
  %v1300 = vadd.f32 %v1251, %v1299
  %v1301 = vpop.f32.mrf.mxu0
  %v1302 = vpop.f32.mrf.mxu0
  %v1303 = vadd.f32 %v1254, %v1302
  %v1304 = vpop.f32.mrf.mxu0
  %1305 = vmatprep.mubr.bf16.mxu0 %v955
  %1306 = vmatmul.mubr.bf16.gmra.mxu0 %v954
  %v1307 = vpop.f32.mrf.mxu0
  %v1308 = vadd.f32 %v1259, %v1307
  %v1309 = vpop.f32.mrf.mxu0
  %v1310 = vpop.f32.mrf.mxu0
  %v1311 = vadd.f32 %v1262, %v1310
  %v1312 = vpop.f32.mrf.mxu0
  %1313 = vdwg.mxu0
  %v1314 = vadd.f32 %v956, %v1300
  %v1315 = vadd.f32 %v957, %v1303
  %v1316 = vadd.f32 %v958, %v1308
  %v1317 = vadd.f32 %v959, %v1311
  %1318 = vst [vmem:[#allocation3] sm:$0xff] %v1314
  %1319 = vst [vmem:[#allocation3 + $0x8] sm:$0xff] %v1315
  %1320 = vst [vmem:[#allocation3 + $0x10] sm:$0xff] %v1316
  %1321 = vst [vmem:[#allocation3 + $0x18] sm:$0xff] %v1317
  // Predicated region
  $region42: #{latent_injection_transformer.18} parent=0 // pred_check
    %p1322 = pneg %p33
  $region43: #{latent_injection_transformer.18} parent=0 // pred_check_branch
    %1324 = sbr.rel (%p1322) target = $region45
  $region44: #{latent_injection_transformer.18} parent=0 // pred_region
    %v1325 = vld [vmem:[#allocation3] sm:$0xff]
    %v1326 = vld [vmem:[#allocation3 + $0x8] sm:$0xff]
    %v1327 = vld [vmem:[#allocation3 + $0x10] sm:$0xff]
    %v1328 = vld [vmem:[#allocation3 + $0x18] sm:$0xff]
    %v1329 = vld [vmem:[%s8] sm:$0x1]
    %v1331 = vlaneseq
    %v1332 = vshrl.u32 %v1331, 7
    %v1333 = vsub.s32 0, %v1332
    %v1334 = vrot.slane %v1329, %v1333
    %v1336 = vadd.f32 %v1325, %v1334
    %v1337 = vadd.f32 %v1326, %v1334
    %v1338 = vadd.f32 %v1327, %v1334
    %v1339 = vadd.f32 %v1328, %v1334
    %v1340 = vld [vmem:[%s0] sm:$0xff]
    %v1341 = vld [vmem:[%s0 + $0x8] sm:$0xff]
    %v1342 = vld [vmem:[%s0 + $0x10] sm:$0xff]
    %v1343 = vld [vmem:[%s0 + $0x18] sm:$0xff]
    %v1344 = vadd.f32 %v1336, %v1340
    %v1345 = vadd.f32 %v1337, %v1341
    %v1346 = vadd.f32 %v1338, %v1342
    %v1347 = vadd.f32 %v1339, %v1343
    %1348 = vst [vmem:[%s9] sm:$0xff] %v1344
    %1349 = vst [vmem:[%s9 + $0x8] sm:$0xff] %v1345
    %1350 = vst [vmem:[%s9 + $0x10] sm:$0xff] %v1346
    %1351 = vst [vmem:[%s9 + $0x18] sm:$0xff] %v1347
  $region45: #{latent_injection_transformer.18} parent=0 // pred_fallthru
    _
  // Predicated region
  $region46: #{latent_injection_transformer.18} parent=0 // pred_check
    _
  $region47: #{latent_injection_transformer.18} parent=0 // pred_check_branch
    %1353 = sbr.rel (0) target = $region49
  $region48: #{latent_injection_transformer.18} parent=0 // pred_region
    _
  $region49: #{latent_injection_transformer.18} parent=0 // pred_fallthru
    _
  // Predicated region
  $region50: #{latent_injection_transformer.18} parent=0 // pred_check
    _
  $region51: #{latent_injection_transformer.18} parent=0 // pred_check_branch
    %1355 = sbr.rel (0) target = $region53
  $region52: #{latent_injection_transformer.18} parent=0 // pred_region
    _
  $region53: #{latent_injection_transformer.18} parent=0 // pred_fallthru
    _

</llo_original>
